<compile_context>
chip_gen: v6e
topology: v6e:2x2x1
jax: 0.10.0
libtpu: 0.0.40
codegen_flags: <defaults>
</compile_context>

<pallas_src>
import jax
import jax.numpy as jnp
from jax.experimental import pallas as pl
from jax.experimental.pallas import tpu as pltpu

MASK_CENTER = [5, 14, 23]
AUG_WEIGHT = 0.9
NUM_LOOP = 9
NUM_INNER = 3
NUM_TOTAL = NUM_LOOP * NUM_INNER

K_IN = 784          # 28 * 28
K_PAD = 896         # 7 * 128  (lane-aligned contraction dim for layer 1)
N_OUT = 10
N_OUT_PAD = 128     # lane-dense prediction slab (sliced back to 10 in wrapper)
N_FEAT = 256

# MXU operand dtype.  bf16 halves the dominant weight DMA and runs at native
# MXU rate on all generations; accumulation / bias / ReLU remain float32.
MATMUL_DTYPE = jnp.bfloat16


# ----------------------------- Pallas kernel --------------------------------
def _mlp_kernel(x_ref, w1_ref, b1_ref, w2_ref, b2_ref, w3_ref, b3_ref,
                w4_ref, b4_ref, feat_ref, pred_ref):
    # Encoder: Linear(896->1024)+ReLU, Linear(1024->1024)+ReLU,
    #          Linear(1024->256)+ReLU.  Decoder: Linear(256->128[10 real]).
    # Weights arrive already in MATMUL_DTYPE (cast host-side, once); only the
    # small per-tile activations are cast in-kernel.
    md = MATMUL_DTYPE
    x = x_ref[...].astype(md)
    h1 = jnp.maximum(
        jnp.dot(x, w1_ref[...], preferred_element_type=jnp.float32)
        + b1_ref[...], 0.0)
    h2 = jnp.maximum(
        jnp.dot(h1.astype(md), w2_ref[...], preferred_element_type=jnp.float32)
        + b2_ref[...], 0.0)
    feats = jnp.maximum(
        jnp.dot(h2.astype(md), w3_ref[...], preferred_element_type=jnp.float32)
        + b3_ref[...], 0.0)
    preds = (jnp.dot(feats.astype(md), w4_ref[...],
                     preferred_element_type=jnp.float32) + b4_ref[...])
    feat_ref[...] = feats
    pred_ref[...] = preds


def _row_tiling(R):
    """Pick (tile_r, r_pad).

    Small R: a single sublane-aligned tile (one grid step) so the one-shot
    weight fetch is never duplicated per TensorCore (v7x) and there is zero
    grid overhead.  Large R: 256-row tiles (full v6e/v7x MXU pass; on v5e a
    128-row tile is also reasonable — could gate on pltpu.get_tpu_info()).
    """
    if R <= 512:
        tile = max(8, ((R + 7) // 8) * 8)
    else:
        tile = 256
    r_pad = ((R + tile - 1) // tile) * tile
    return tile, r_pad


def encoder_decoder(x_flat, prepared):
    """x_flat: (R, 784) f32 -> (feats (R, 256) f32, preds (R, 10) f32)."""
    w1, b1, w2, b2, w3, b3, w4, b4 = prepared
    R = x_flat.shape[0]
    tile_r, r_pad = _row_tiling(R)
    grid_r = r_pad // tile_r

    # Per-call padding is activations-only (zero rows / zero K columns are
    # exact: they multiply zero weight rows and are sliced off below).
    x_p = jnp.pad(x_flat, ((0, r_pad - R), (0, K_PAD - K_IN)))

    const = lambda i: (0, 0)
    # Constant-index weight/bias blocks: fetched from HBM once per call;
    # single-buffer them so the dead second VMEM buffer is not allocated.
    wspec = lambda shape: pl.BlockSpec(shape, const,
                                       pipeline_mode=pl.Buffered(1))

    feats, preds = pl.pallas_call(
        _mlp_kernel,
        out_shape=(jax.ShapeDtypeStruct((r_pad, N_FEAT), jnp.float32),
                   jax.ShapeDtypeStruct((r_pad, N_OUT_PAD), jnp.float32)),
        grid_spec=pltpu.PrefetchScalarGridSpec(
            num_scalar_prefetch=0,
            grid=(grid_r,),
            in_specs=[
                pl.BlockSpec((tile_r, K_PAD), lambda i: (i, 0)),
                wspec((K_PAD, 1024)),
                wspec((1, 1024)),
                wspec((1024, 1024)),
                wspec((1, 1024)),
                wspec((1024, N_FEAT)),
                wspec((1, N_FEAT)),
                wspec((N_FEAT, N_OUT_PAD)),
                wspec((1, N_OUT_PAD)),
            ],
            out_specs=[
                pl.BlockSpec((tile_r, N_FEAT), lambda i: (i, 0)),
                pl.BlockSpec((tile_r, N_OUT_PAD), lambda i: (i, 0)),
            ],
        ),
        compiler_params=pltpu.CompilerParams(
            # One grid step at small R: do NOT shard across v7x's 2 TCs (it
            # would duplicate the whole weight fetch).  Row-parallel otherwise.
            dimension_semantics=("arbitrary",) if grid_r == 1 else ("parallel",),
            vmem_limit_bytes=24 * 1024 * 1024),
    )(x_p, w1, b1, w2, b2, w3, b3, w4, b4)
    return feats[:R], preds[:R, :N_OUT]


# ------------------------------- JAX glue ------------------------------------
def init_params(key):
    """Deterministic PyTorch-default-style init (uniform +/- 1/sqrt(fan_in))."""
    def linear(k, fan_in, fan_out):
        kw, kb = jax.random.split(k)
        bound = 1.0 / (fan_in ** 0.5)
        w = jax.random.uniform(kw, (fan_in, fan_out), jnp.float32, -bound, bound)
        b = jax.random.uniform(kb, (1, fan_out), jnp.float32, -bound, bound)
        return w, b
    k1, k2, k3, k4 = jax.random.split(key, 4)
    w1, b1 = linear(k1, 784, 1024)
    w2, b2 = linear(k2, 1024, 1024)
    w3, b3 = linear(k3, 1024, 256)
    w4, b4 = linear(k4, 256, 10)
    return (w1, b1, w2, b2, w3, b3, w4, b4)


def prepare_params(params, matmul_dtype=MATMUL_DTYPE):
    """One-time pad + cast (call ONCE, outside the per-step forward).

    w1: 784 -> 896 contraction rows; w4/b4: 10 -> 128 lane-dense output cols.
    Weights are cast to the MXU operand dtype; biases stay float32 (added to
    the f32 accumulator in-kernel)."""
    w1, b1, w2, b2, w3, b3, w4, b4 = params
    w1p = jnp.pad(w1, ((0, K_PAD - K_IN), (0, 0))).astype(matmul_dtype)
    w2p = w2.astype(matmul_dtype)
    w3p = w3.astype(matmul_dtype)
    w4p = jnp.pad(w4, ((0, 0), (0, N_OUT_PAD - N_OUT))).astype(matmul_dtype)
    b4p = jnp.pad(b4, ((0, 0), (0, N_OUT_PAD - N_OUT))).astype(jnp.float32)
    return (w1p, b1.astype(jnp.float32), w2p, b2.astype(jnp.float32),
            w3p, b3.astype(jnp.float32), w4p, b4p)


def create_group_masks(key, w, h, alpha=10.0):
    """All 27 boolean masks in one batched computation.

    Sample i uses the center of group i // NUM_INNER (centers on a 3x3 grid
    from MASK_CENTER); every sample gets its own uniform noise, matching the
    per-call create_mask of the PyTorch model."""
    cx = jnp.array([MASK_CENTER[g // 3] for g in range(NUM_LOOP)],
                   jnp.float32).reshape(NUM_LOOP, 1, 1)
    cy = jnp.array([MASK_CENTER[g % 3] for g in range(NUM_LOOP)],
                   jnp.float32).reshape(NUM_LOOP, 1, 1)
    widths = jnp.arange(w, dtype=jnp.float32).reshape(1, 1, w)
    heights = jnp.arange(h, dtype=jnp.float32).reshape(1, h, 1)
    dist = jnp.sqrt((widths - cx) ** 2 + (heights - cy) ** 2)        # (9, h, w)
    m = (dist.max(axis=(1, 2), keepdims=True) - dist + alpha) ** 0.3
    m = m / m.max(axis=(1, 2), keepdims=True)
    m = jnp.repeat(m, NUM_INNER, axis=0)                             # (27, h, w)
    noise = jax.random.uniform(key, m.shape)
    return (m + noise) > 0.9                                         # bool


def causal_forward(x, prepared_params, key):
    b, w, h = x.shape
    k_noise, k_mask = jax.random.split(key)

    # --- vectorized augmentation: all 27 noisy samples + masks at once -------
    noise = jax.random.uniform(k_noise, (NUM_TOTAL, b, w, h),
                               jnp.float32, -1.0, 1.0)
    samples = jnp.maximum(x[None] + noise * AUG_WEIGHT, 0.0)        # ReLU
    samples = samples / (samples + 1e-5)
    masks = create_group_masks(k_mask, w, h, alpha=10.0)             # (27, h, w)
    samples = samples * masks[:, None, :, :].astype(jnp.float32)     # (27,b,h,w)

    # --- group averages: (9, b, 784) inputs and (9,) z-scores ---------------
    inputs = samples.reshape(NUM_LOOP, NUM_INNER, b, w * h).mean(axis=1)
    z = masks.reshape(NUM_LOOP, NUM_INNER, w, h).astype(jnp.float32
                                                        ).mean(axis=(1, 2, 3))

    # --- one fused Pallas call over all 9 groups stacked along rows ---------
    # (the ~4.3 MiB of bf16 weights is fetched from HBM once per forward)
    feats_all, preds_all = encoder_decoder(
        inputs.reshape(NUM_LOOP * b, w * h), prepared_params)
    feats_all = feats_all.reshape(NUM_LOOP, b, N_FEAT)
    preds_all = preds_all.reshape(NUM_LOOP, b, N_OUT)

    z_scores = [jnp.broadcast_to(z[g].reshape(1, 1), (b, 1))
                for g in range(NUM_LOOP)]
    features = [feats_all[g] for g in range(NUM_LOOP)]
    outputs = [preds_all[g] for g in range(NUM_LOOP)]

    final_pred = (preds_all / (z.reshape(NUM_LOOP, 1, 1) + 1e-9)).mean(axis=0)
    return final_pred, z_scores, features, outputs


# --------------------------------- main ---------------------------------------
if __name__ == "__main__":
    key = jax.random.PRNGKey(0)
    kx, kp, ks = jax.random.split(key, 3)

    b = 8                                # small batch; spatial fixed at 28x28
    x = jax.random.uniform(kx, (b, 28, 28), jnp.float32)
    params = init_params(kp)
    prepared = prepare_params(params)    # pad + bf16-cast ONCE, outside forward

    fwd = jax.jit(causal_forward)
    final_pred, z_scores, features, outputs = fwd(x, prepared, ks)
    jax.block_until_ready(final_pred)

    assert final_pred.shape == (b, 10)
    assert len(z_scores) == NUM_LOOP and z_scores[0].shape == (b, 1)
    assert len(features) == NUM_LOOP and features[0].shape == (b, 256)
    assert len(outputs) == NUM_LOOP and outputs[0].shape == (b, 10)
    assert bool(jnp.all(jnp.isfinite(final_pred)))

    print("KERNEL_OK")
</pallas_src>

<mosaic_0001>
module attributes {stable_mosaic.version = 11 : i64} {
  func.func @_mlp_kernel(%arg0: i32, %arg1: memref<72x896xf32, #tpu.memory_space<vmem>>, %arg2: memref<896x1024xbf16, #tpu.memory_space<vmem>>, %arg3: memref<1x1024xf32, #tpu.memory_space<vmem>>, %arg4: memref<1024x1024xbf16, #tpu.memory_space<vmem>>, %arg5: memref<1x1024xf32, #tpu.memory_space<vmem>>, %arg6: memref<1024x256xbf16, #tpu.memory_space<vmem>>, %arg7: memref<1x256xf32, #tpu.memory_space<vmem>>, %arg8: memref<256x128xbf16, #tpu.memory_space<vmem>>, %arg9: memref<1x128xf32, #tpu.memory_space<vmem>>, %arg10: memref<72x256xf32, #tpu.memory_space<vmem>>, %arg11: memref<72x128xf32, #tpu.memory_space<vmem>>) attributes {dimension_semantics = [#tpu.dimension_semantics<arbitrary>], iteration_bounds = array<i64: 1>, scalar_prefetch = 0 : i64, scratch_operands = 0 : i64, tpu.core_type = #tpu.core_type<tc>, window_params = [{transform_indices = @transform_0, window_bounds = array<i64: 72, 896>}, {pipeline_mode = #tpu.pipeline_mode<synchronous>, transform_indices = @transform_1, window_bounds = array<i64: 896, 1024>}, {pipeline_mode = #tpu.pipeline_mode<synchronous>, transform_indices = @transform_2, window_bounds = array<i64: 1, 1024>}, {pipeline_mode = #tpu.pipeline_mode<synchronous>, transform_indices = @transform_3, window_bounds = array<i64: 1024, 1024>}, {pipeline_mode = #tpu.pipeline_mode<synchronous>, transform_indices = @transform_4, window_bounds = array<i64: 1, 1024>}, {pipeline_mode = #tpu.pipeline_mode<synchronous>, transform_indices = @transform_5, window_bounds = array<i64: 1024, 256>}, {pipeline_mode = #tpu.pipeline_mode<synchronous>, transform_indices = @transform_6, window_bounds = array<i64: 1, 256>}, {pipeline_mode = #tpu.pipeline_mode<synchronous>, transform_indices = @transform_7, window_bounds = array<i64: 256, 128>}, {pipeline_mode = #tpu.pipeline_mode<synchronous>, transform_indices = @transform_8, window_bounds = array<i64: 1, 128>}, {transform_indices = @transform_9, window_bounds = array<i64: 72, 256>}, {transform_indices = @transform_10, window_bounds = array<i64: 72, 128>}]} {
    %c0 = arith.constant 0 : index
    %c0_0 = arith.constant 0 : index
    %0 = vector.load %arg1[%c0, %c0_0] : memref<72x896xf32, #tpu.memory_space<vmem>>, vector<72x896xf32>
    %1 = arith.truncf %0 : vector<72x896xf32> to vector<72x896xbf16>
    %c0_1 = arith.constant 0 : index
    %c0_2 = arith.constant 0 : index
    %2 = vector.load %arg2[%c0_1, %c0_2] : memref<896x1024xbf16, #tpu.memory_space<vmem>>, vector<896x1024xbf16>
    %cst = arith.constant dense<0.000000e+00> : vector<72x1024xf32>
    %3 = tpu.matmul %1, %2, %cst {dimension_numbers = #tpu.dot_dimension_numbers<[1], [0], [0], [1], [0, 0, 1, 1], [], []>} : vector<72x896xbf16>, vector<896x1024xbf16>, vector<72x1024xf32> -> vector<72x1024xf32>
    %c0_3 = arith.constant 0 : index
    %c0_4 = arith.constant 0 : index
    %4 = vector.load %arg3[%c0_3, %c0_4] : memref<1x1024xf32, #tpu.memory_space<vmem>>, vector<1x1024xf32>
    %5 = vector.broadcast %4 : vector<1x1024xf32> to vector<72x1024xf32>
    %6 = arith.addf %3, %5 : vector<72x1024xf32>
    %cst_5 = arith.constant 0.000000e+00 : f32
    %7 = vector.broadcast %cst_5 : f32 to vector<72x1024xf32>
    %8 = arith.maximumf %6, %7 : vector<72x1024xf32>
    %9 = arith.truncf %8 : vector<72x1024xf32> to vector<72x1024xbf16>
    %c0_6 = arith.constant 0 : index
    %c0_7 = arith.constant 0 : index
    %10 = vector.load %arg4[%c0_6, %c0_7] : memref<1024x1024xbf16, #tpu.memory_space<vmem>>, vector<1024x1024xbf16>
    %cst_8 = arith.constant dense<0.000000e+00> : vector<72x1024xf32>
    %11 = tpu.matmul %9, %10, %cst_8 {dimension_numbers = #tpu.dot_dimension_numbers<[1], [0], [0], [1], [0, 0, 1, 1], [], []>} : vector<72x1024xbf16>, vector<1024x1024xbf16>, vector<72x1024xf32> -> vector<72x1024xf32>
    %c0_9 = arith.constant 0 : index
    %c0_10 = arith.constant 0 : index
    %12 = vector.load %arg5[%c0_9, %c0_10] : memref<1x1024xf32, #tpu.memory_space<vmem>>, vector<1x1024xf32>
    %13 = vector.broadcast %12 : vector<1x1024xf32> to vector<72x1024xf32>
    %14 = arith.addf %11, %13 : vector<72x1024xf32>
    %cst_11 = arith.constant 0.000000e+00 : f32
    %15 = vector.broadcast %cst_11 : f32 to vector<72x1024xf32>
    %16 = arith.maximumf %14, %15 : vector<72x1024xf32>
    %17 = arith.truncf %16 : vector<72x1024xf32> to vector<72x1024xbf16>
    %c0_12 = arith.constant 0 : index
    %c0_13 = arith.constant 0 : index
    %18 = vector.load %arg6[%c0_12, %c0_13] : memref<1024x256xbf16, #tpu.memory_space<vmem>>, vector<1024x256xbf16>
    %cst_14 = arith.constant dense<0.000000e+00> : vector<72x256xf32>
    %19 = tpu.matmul %17, %18, %cst_14 {dimension_numbers = #tpu.dot_dimension_numbers<[1], [0], [0], [1], [0, 0, 1, 1], [], []>} : vector<72x1024xbf16>, vector<1024x256xbf16>, vector<72x256xf32> -> vector<72x256xf32>
    %c0_15 = arith.constant 0 : index
    %c0_16 = arith.constant 0 : index
    %20 = vector.load %arg7[%c0_15, %c0_16] : memref<1x256xf32, #tpu.memory_space<vmem>>, vector<1x256xf32>
    %21 = vector.broadcast %20 : vector<1x256xf32> to vector<72x256xf32>
    %22 = arith.addf %19, %21 : vector<72x256xf32>
    %cst_17 = arith.constant 0.000000e+00 : f32
    %23 = vector.broadcast %cst_17 : f32 to vector<72x256xf32>
    %24 = arith.maximumf %22, %23 : vector<72x256xf32>
    %25 = arith.truncf %24 : vector<72x256xf32> to vector<72x256xbf16>
    %c0_18 = arith.constant 0 : index
    %c0_19 = arith.constant 0 : index
    %26 = vector.load %arg8[%c0_18, %c0_19] : memref<256x128xbf16, #tpu.memory_space<vmem>>, vector<256x128xbf16>
    %cst_20 = arith.constant dense<0.000000e+00> : vector<72x128xf32>
    %27 = tpu.matmul %25, %26, %cst_20 {dimension_numbers = #tpu.dot_dimension_numbers<[1], [0], [0], [1], [0, 0, 1, 1], [], []>} : vector<72x256xbf16>, vector<256x128xbf16>, vector<72x128xf32> -> vector<72x128xf32>
    %c0_21 = arith.constant 0 : index
    %c0_22 = arith.constant 0 : index
    %28 = vector.load %arg9[%c0_21, %c0_22] : memref<1x128xf32, #tpu.memory_space<vmem>>, vector<1x128xf32>
    %29 = vector.broadcast %28 : vector<1x128xf32> to vector<72x128xf32>
    %30 = arith.addf %27, %29 : vector<72x128xf32>
    %c0_23 = arith.constant 0 : index
    %c0_24 = arith.constant 0 : index
    %31 = vector.load %arg10[%c0_23, %c0_24] : memref<72x256xf32, #tpu.memory_space<vmem>>, vector<72x256xf32>
    tpu.vector_store %arg10[%c0_23, %c0_24], %24 {strides = array<i32>} : memref<72x256xf32, #tpu.memory_space<vmem>>, vector<72x256xf32>,
    %c0_25 = arith.constant 0 : index
    %c0_26 = arith.constant 0 : index
    %32 = vector.load %arg11[%c0_25, %c0_26] : memref<72x128xf32, #tpu.memory_space<vmem>>, vector<72x128xf32>
    tpu.vector_store %arg11[%c0_25, %c0_26], %30 {strides = array<i32>} : memref<72x128xf32, #tpu.memory_space<vmem>>, vector<72x128xf32>,
    return
  }
  func.func @transform_0(%arg0: i32) -> (i32, i32) {
    %c0_i32 = arith.constant 0 : i32
    %c0_i32_0 = arith.constant 0 : i32
    return %arg0, %c0_i32 : i32, i32
  }
  func.func @transform_1(%arg0: i32) -> (i32, i32) {
    %c0_i32 = arith.constant 0 : i32
    %c0_i32_0 = arith.constant 0 : i32
    %c0_i32_1 = arith.constant 0 : i32
    return %c0_i32, %c0_i32_0 : i32, i32
  }
  func.func @transform_2(%arg0: i32) -> (i32, i32) {
    %c0_i32 = arith.constant 0 : i32
    %c0_i32_0 = arith.constant 0 : i32
    %c0_i32_1 = arith.constant 0 : i32
    return %c0_i32, %c0_i32_0 : i32, i32
  }
  func.func @transform_3(%arg0: i32) -> (i32, i32) {
    %c0_i32 = arith.constant 0 : i32
    %c0_i32_0 = arith.constant 0 : i32
    %c0_i32_1 = arith.constant 0 : i32
    return %c0_i32, %c0_i32_0 : i32, i32
  }
  func.func @transform_4(%arg0: i32) -> (i32, i32) {
    %c0_i32 = arith.constant 0 : i32
    %c0_i32_0 = arith.constant 0 : i32
    %c0_i32_1 = arith.constant 0 : i32
    return %c0_i32, %c0_i32_0 : i32, i32
  }
  func.func @transform_5(%arg0: i32) -> (i32, i32) {
    %c0_i32 = arith.constant 0 : i32
    %c0_i32_0 = arith.constant 0 : i32
    %c0_i32_1 = arith.constant 0 : i32
    return %c0_i32, %c0_i32_0 : i32, i32
  }
  func.func @transform_6(%arg0: i32) -> (i32, i32) {
    %c0_i32 = arith.constant 0 : i32
    %c0_i32_0 = arith.constant 0 : i32
    %c0_i32_1 = arith.constant 0 : i32
    return %c0_i32, %c0_i32_0 : i32, i32
  }
  func.func @transform_7(%arg0: i32) -> (i32, i32) {
    %c0_i32 = arith.constant 0 : i32
    %c0_i32_0 = arith.constant 0 : i32
    %c0_i32_1 = arith.constant 0 : i32
    return %c0_i32, %c0_i32_0 : i32, i32
  }
  func.func @transform_8(%arg0: i32) -> (i32, i32) {
    %c0_i32 = arith.constant 0 : i32
    %c0_i32_0 = arith.constant 0 : i32
    %c0_i32_1 = arith.constant 0 : i32
    return %c0_i32, %c0_i32_0 : i32, i32
  }
  func.func @transform_9(%arg0: i32) -> (i32, i32) {
    %c0_i32 = arith.constant 0 : i32
    %c0_i32_0 = arith.constant 0 : i32
    return %arg0, %c0_i32 : i32, i32
  }
  func.func @transform_10(%arg0: i32) -> (i32, i32) {
    %c0_i32 = arith.constant 0 : i32
    %c0_i32_0 = arith.constant 0 : i32
    return %arg0, %c0_i32 : i32, i32
  }
}

</mosaic_0001>

<llo_original>
// kernel: causal_forward.3
$region0: #{causal_forward.3}
  #allocation0 [shape = 'u32[]', space=smem, size = 0x4, offset = 0x4, fixed_abs, tag = 'smem constant byte address 0x4 - core index']
  #allocation1 [shape = 'u32[144,128]{1,0:T(1,128)}', space=vmem, size = 0x12000, scoped, tag = 'internal scratch']
  %s0 = inlined_call_operand.vmem [shape: f32[72,896], index: 0, kind: input, shape index: {}]
  %s1 = inlined_call_operand.hbm [shape: bf16[896,1024], index: 1, kind: input, shape index: {}]
  %s2 = inlined_call_operand.vmem [shape: f32[1,1024], index: 2, kind: input, shape index: {}]
  %s3 = inlined_call_operand.vmem [shape: bf16[1024,1024], index: 3, kind: input, shape index: {}]
  %s4 = inlined_call_operand.vmem [shape: f32[1,1024], index: 4, kind: input, shape index: {}]
  %s5 = inlined_call_operand.vmem [shape: bf16[1024,256], index: 5, kind: input, shape index: {}]
  %s6 = inlined_call_operand.vmem [shape: f32[1,256], index: 6, kind: input, shape index: {}]
  %s7 = inlined_call_operand.vmem [shape: bf16[256,128], index: 7, kind: input, shape index: {}]
  %s8 = inlined_call_operand.vmem [shape: f32[1,128], index: 8, kind: input, shape index: {}]
  %s9 = inlined_call_operand.vmem [shape: f32[72,256], index: 9, kind: output, shape index: {0}]
  %s10 = inlined_call_operand.vmem [shape: f32[72,128], index: 10, kind: output, shape index: {1}]
  %11 = xla_tuple %s9, %s10
  %s12 = sld [smem:[#allocation0]]
  $region58: #{causal_forward.3} parent=0
    _
  %s14 = ssub.s32 1, %s12
  %s15 = scalar_select 0, %s14, %s12
  $region1: #{causal_forward.3} parent=0
    #allocation2 [shape = 'u8[1835008]{0}', space=vmem, size = 0x1c0000, scoped, tag = 'input window, operand 1, single buffered']
    #allocation3 [shape = 's32[1]{0}', space=sflag, size = 0x4, scoped, tag = 'scoped memory for causal_forward.3']
    %16 = vsyncpa [#allocation3], 0
    // Predicated region
    $region2: #{causal_forward.3} parent=1 // pred_check
      _
    $region3: #{causal_forward.3} parent=1 // pred_check_branch
      %18 = sbr.rel (0) target = $region5
    $region4: #{causal_forward.3} parent=1 // pred_region
      _
    $region5: #{causal_forward.3} parent=1 // pred_fallthru
      _
    // Predicated region
    $region6: #{causal_forward.3} parent=1 // pred_check
      _
    $region7: #{causal_forward.3} parent=1 // pred_check_branch
      %20 = sbr.rel (0) target = $region9
    $region8: #{causal_forward.3} parent=1 // pred_region
      %s22 = ssub.s32 57344, 57344
      %23 = vsyncadd [#allocation3], %s22
      %s24 = sshll.u32 [#allocation2], 4
      %s25 = int_to_ptr.vmem [resolvable:$true] %s24
      %30 = dma.hbm_to_vmem [thread:$0]  %s1, 57344, %s25, [#allocation3], 512, 512, 32
    $region9: #{causal_forward.3} parent=1 // pred_fallthru
      _
    // Predicated region
    $region10: #{causal_forward.3} parent=1 // pred_check
      _
    $region11: #{causal_forward.3} parent=1 // pred_check_branch
      %32 = sbr.rel (0) target = $region13
    $region12: #{causal_forward.3} parent=1 // pred_region
      _
    $region13: #{causal_forward.3} parent=1 // pred_fallthru
      _
    // Predicated region
    $region14: #{causal_forward.3} parent=1 // pred_check
      _
    $region15: #{causal_forward.3} parent=1 // pred_check_branch
      %34 = sbr.rel (0) target = $region17
    $region16: #{causal_forward.3} parent=1 // pred_region
      _
    $region17: #{causal_forward.3} parent=1 // pred_fallthru
      _
    // Predicated region
    $region18: #{causal_forward.3} parent=1 // pred_check
      _
    $region19: #{causal_forward.3} parent=1 // pred_check_branch
      %36 = sbr.rel (0) target = $region21
    $region20: #{causal_forward.3} parent=1 // pred_region
      _
    $region21: #{causal_forward.3} parent=1 // pred_fallthru
      _
    // Predicated region
    $region22: #{causal_forward.3} parent=1 // pred_check
      _
    $region23: #{causal_forward.3} parent=1 // pred_check_branch
      %38 = sbr.rel (0) target = $region25
    $region24: #{causal_forward.3} parent=1 // pred_region
      _
    $region25: #{causal_forward.3} parent=1 // pred_fallthru
      _
    // Predicated region
    $region26: #{causal_forward.3} parent=1 // pred_check
      _
    $region27: #{causal_forward.3} parent=1 // pred_check_branch
      %40 = sbr.rel (0) target = $region29
    $region28: #{causal_forward.3} parent=1 // pred_region
      _
    $region29: #{causal_forward.3} parent=1 // pred_fallthru
      _
    // Predicated region
    $region30: #{causal_forward.3} parent=1 // pred_check
      _
    $region31: #{causal_forward.3} parent=1 // pred_check_branch
      %42 = sbr.rel (0) target = $region33
    $region32: #{causal_forward.3} parent=1 // pred_region
      _
    $region33: #{causal_forward.3} parent=1 // pred_fallthru
      _
    // Predicated region
    $region34: #{causal_forward.3} parent=1 // pred_check
      _
    $region35: #{causal_forward.3} parent=1 // pred_check_branch
      %44 = sbr.rel (0) target = $region37
    $region36: #{causal_forward.3} parent=1 // pred_region
      _
    $region37: #{causal_forward.3} parent=1 // pred_fallthru
      _
    // Predicated region
    $region38: #{causal_forward.3} parent=1 // pred_check
      _
    $region39: #{causal_forward.3} parent=1 // pred_check_branch
      %46 = sbr.rel (0) target = $region41
    $region40: #{causal_forward.3} parent=1 // pred_region
      %47 = dma.done [#allocation3], 57344
    $region41: #{causal_forward.3} parent=1 // pred_fallthru
      _
    %v49 = vld [vmem:[%s0] sm:$0xff]
    %v50 = vld [vmem:[%s0 + $0x8] sm:$0xff]
    %v51 = vld [vmem:[%s0 + $0x10] sm:$0xff]
    %v52 = vld [vmem:[%s0 + $0x18] sm:$0xff]
    %v53 = vld [vmem:[%s0 + $0x20] sm:$0xff]
    %v54 = vld [vmem:[%s0 + $0x28] sm:$0xff]
    %v55 = vld [vmem:[%s0 + $0x30] sm:$0xff]
    %v56 = vld [vmem:[%s0 + $0x38] sm:$0xff]
    %v57 = vld [vmem:[%s0 + $0x40] sm:$0xff]
    %v58 = vld [vmem:[%s0 + $0x48] sm:$0xff]
    %v59 = vld [vmem:[%s0 + $0x50] sm:$0xff]
    %v60 = vld [vmem:[%s0 + $0x58] sm:$0xff]
    %v61 = vld [vmem:[%s0 + $0x60] sm:$0xff]
    %v62 = vld [vmem:[%s0 + $0x68] sm:$0xff]
    %v63 = vld [vmem:[%s0 + $0x70] sm:$0xff]
    %v64 = vld [vmem:[%s0 + $0x78] sm:$0xff]
    %v65 = vld [vmem:[%s0 + $0x80] sm:$0xff]
    %v66 = vld [vmem:[%s0 + $0x88] sm:$0xff]
    %v67 = vld [vmem:[%s0 + $0x90] sm:$0xff]
    %v68 = vld [vmem:[%s0 + $0x98] sm:$0xff]
    %v69 = vld [vmem:[%s0 + $0xa0] sm:$0xff]
    %v70 = vld [vmem:[%s0 + $0xa8] sm:$0xff]
    %v71 = vld [vmem:[%s0 + $0xb0] sm:$0xff]
    %v72 = vld [vmem:[%s0 + $0xb8] sm:$0xff]
    %v73 = vld [vmem:[%s0 + $0xc0] sm:$0xff]
    %v74 = vld [vmem:[%s0 + $0xc8] sm:$0xff]
    %v75 = vld [vmem:[%s0 + $0xd0] sm:$0xff]
    %v76 = vld [vmem:[%s0 + $0xd8] sm:$0xff]
    %v77 = vld [vmem:[%s0 + $0xe0] sm:$0xff]
    %v78 = vld [vmem:[%s0 + $0xe8] sm:$0xff]
    %v79 = vld [vmem:[%s0 + $0xf0] sm:$0xff]
    %v80 = vld [vmem:[%s0 + $0xf8] sm:$0xff]
    %v81 = vld [vmem:[%s0 + $0x100] sm:$0xff]
    %v82 = vld [vmem:[%s0 + $0x108] sm:$0xff]
    %v83 = vld [vmem:[%s0 + $0x110] sm:$0xff]
    %v84 = vld [vmem:[%s0 + $0x118] sm:$0xff]
    %v85 = vld [vmem:[%s0 + $0x120] sm:$0xff]
    %v86 = vld [vmem:[%s0 + $0x128] sm:$0xff]
    %v87 = vld [vmem:[%s0 + $0x130] sm:$0xff]
    %v88 = vld [vmem:[%s0 + $0x138] sm:$0xff]
    %v89 = vld [vmem:[%s0 + $0x140] sm:$0xff]
    %v90 = vld [vmem:[%s0 + $0x148] sm:$0xff]
    %v91 = vld [vmem:[%s0 + $0x150] sm:$0xff]
    %v92 = vld [vmem:[%s0 + $0x158] sm:$0xff]
    %v93 = vld [vmem:[%s0 + $0x160] sm:$0xff]
    %v94 = vld [vmem:[%s0 + $0x168] sm:$0xff]
    %v95 = vld [vmem:[%s0 + $0x170] sm:$0xff]
    %v96 = vld [vmem:[%s0 + $0x178] sm:$0xff]
    %v97 = vld [vmem:[%s0 + $0x180] sm:$0xff]
    %v98 = vld [vmem:[%s0 + $0x188] sm:$0xff]
    %v99 = vld [vmem:[%s0 + $0x190] sm:$0xff]
    %v100 = vld [vmem:[%s0 + $0x198] sm:$0xff]
    %v101 = vld [vmem:[%s0 + $0x1a0] sm:$0xff]
    %v102 = vld [vmem:[%s0 + $0x1a8] sm:$0xff]
    %v103 = vld [vmem:[%s0 + $0x1b0] sm:$0xff]
    %v104 = vld [vmem:[%s0 + $0x1b8] sm:$0xff]
    %v105 = vld [vmem:[%s0 + $0x1c0] sm:$0xff]
    %v106 = vld [vmem:[%s0 + $0x1c8] sm:$0xff]
    %v107 = vld [vmem:[%s0 + $0x1d0] sm:$0xff]
    %v108 = vld [vmem:[%s0 + $0x1d8] sm:$0xff]
    %v109 = vld [vmem:[%s0 + $0x1e0] sm:$0xff]
    %v110 = vld [vmem:[%s0 + $0x1e8] sm:$0xff]
    %v111 = vld [vmem:[%s0 + $0x1f0] sm:$0xff]
    %v112 = vpack.c.bf16 %v56, %v49
    %v113 = vpack.c.bf16 %v57, %v50
    %v114 = vpack.c.bf16 %v58, %v51
    %v115 = vpack.c.bf16 %v59, %v52
    %v116 = vpack.c.bf16 %v60, %v53
    %v117 = vpack.c.bf16 %v61, %v54
    %v118 = vpack.c.bf16 %v62, %v55
    %v119 = vpack.c.bf16 %v70, %v63
    %v120 = vpack.c.bf16 %v71, %v64
    %v121 = vpack.c.bf16 %v72, %v65
    %v122 = vpack.c.bf16 %v73, %v66
    %v123 = vpack.c.bf16 %v74, %v67
    %v124 = vpack.c.bf16 %v75, %v68
    %v125 = vpack.c.bf16 %v76, %v69
    %v126 = vpack.c.bf16 %v84, %v77
    %v127 = vpack.c.bf16 %v85, %v78
    %v128 = vpack.c.bf16 %v86, %v79
    %v129 = vpack.c.bf16 %v87, %v80
    %v130 = vpack.c.bf16 %v88, %v81
    %v131 = vpack.c.bf16 %v89, %v82
    %v132 = vpack.c.bf16 %v90, %v83
    %v133 = vpack.c.bf16 %v98, %v91
    %v134 = vpack.c.bf16 %v99, %v92
    %v135 = vpack.c.bf16 %v100, %v93
    %v136 = vpack.c.bf16 %v101, %v94
    %v137 = vpack.c.bf16 %v102, %v95
    %v138 = vpack.c.bf16 %v103, %v96
    %v139 = vpack.c.bf16 %v104, %v97
    %v140 = vpack.c.bf16 %v105, %v105
    %v141 = vpack.c.bf16 %v106, %v106
    %v142 = vpack.c.bf16 %v107, %v107
    %v143 = vpack.c.bf16 %v108, %v108
    %v144 = vpack.c.bf16 %v109, %v109
    %v145 = vpack.c.bf16 %v110, %v110
    %v146 = vpack.c.bf16 %v111, %v111
    %v147 = vld [vmem:[#allocation2] sm:$0xff]
    %v148 = vld [vmem:[#allocation2 + $0x8] sm:$0xff]
    %v149 = vld [vmem:[#allocation2 + $0x10] sm:$0xff]
    %v150 = vld [vmem:[#allocation2 + $0x18] sm:$0xff]
    %v151 = vld [vmem:[#allocation2 + $0x20] sm:$0xff]
    %v152 = vld [vmem:[#allocation2 + $0x28] sm:$0xff]
    %v153 = vld [vmem:[#allocation2 + $0x30] sm:$0xff]
    %v154 = vld [vmem:[#allocation2 + $0x38] sm:$0xff]
    %v155 = vld [vmem:[#allocation2 + $0x40] sm:$0xff]
    %v156 = vld [vmem:[#allocation2 + $0x48] sm:$0xff]
    %v157 = vld [vmem:[#allocation2 + $0x50] sm:$0xff]
    %v158 = vld [vmem:[#allocation2 + $0x58] sm:$0xff]
    %v159 = vld [vmem:[#allocation2 + $0x60] sm:$0xff]
    %v160 = vld [vmem:[#allocation2 + $0x68] sm:$0xff]
    %v161 = vld [vmem:[#allocation2 + $0x70] sm:$0xff]
    %v162 = vld [vmem:[#allocation2 + $0x78] sm:$0xff]
    %v163 = vld [vmem:[#allocation2 + $0x80] sm:$0xff]
    %v164 = vld [vmem:[#allocation2 + $0x88] sm:$0xff]
    %v165 = vld [vmem:[#allocation2 + $0x90] sm:$0xff]
    %v166 = vld [vmem:[#allocation2 + $0x98] sm:$0xff]
    %v167 = vld [vmem:[#allocation2 + $0xa0] sm:$0xff]
    %v168 = vld [vmem:[#allocation2 + $0xa8] sm:$0xff]
    %v169 = vld [vmem:[#allocation2 + $0xb0] sm:$0xff]
    %v170 = vld [vmem:[#allocation2 + $0xb8] sm:$0xff]
    %v171 = vld [vmem:[#allocation2 + $0xc0] sm:$0xff]
    %v172 = vld [vmem:[#allocation2 + $0xc8] sm:$0xff]
    %v173 = vld [vmem:[#allocation2 + $0xd0] sm:$0xff]
    %v174 = vld [vmem:[#allocation2 + $0xd8] sm:$0xff]
    %v175 = vld [vmem:[#allocation2 + $0xe0] sm:$0xff]
    %v176 = vld [vmem:[#allocation2 + $0xe8] sm:$0xff]
    %v177 = vld [vmem:[#allocation2 + $0xf0] sm:$0xff]
    %v178 = vld [vmem:[#allocation2 + $0xf8] sm:$0xff]
    %v179 = vld [vmem:[#allocation2 + $0x100] sm:$0xff]
    %v180 = vld [vmem:[#allocation2 + $0x108] sm:$0xff]
    %v181 = vld [vmem:[#allocation2 + $0x110] sm:$0xff]
    %v182 = vld [vmem:[#allocation2 + $0x118] sm:$0xff]
    %v183 = vld [vmem:[#allocation2 + $0x120] sm:$0xff]
    %v184 = vld [vmem:[#allocation2 + $0x128] sm:$0xff]
    %v185 = vld [vmem:[#allocation2 + $0x130] sm:$0xff]
    %v186 = vld [vmem:[#allocation2 + $0x138] sm:$0xff]
    %v187 = vld [vmem:[#allocation2 + $0x140] sm:$0xff]
    %v188 = vld [vmem:[#allocation2 + $0x148] sm:$0xff]
    %v189 = vld [vmem:[#allocation2 + $0x150] sm:$0xff]
    %v190 = vld [vmem:[#allocation2 + $0x158] sm:$0xff]
    %v191 = vld [vmem:[#allocation2 + $0x160] sm:$0xff]
    %v192 = vld [vmem:[#allocation2 + $0x168] sm:$0xff]
    %v193 = vld [vmem:[#allocation2 + $0x170] sm:$0xff]
    %v194 = vld [vmem:[#allocation2 + $0x178] sm:$0xff]
    %v195 = vld [vmem:[#allocation2 + $0x180] sm:$0xff]
    %v196 = vld [vmem:[#allocation2 + $0x188] sm:$0xff]
    %v197 = vld [vmem:[#allocation2 + $0x190] sm:$0xff]
    %v198 = vld [vmem:[#allocation2 + $0x198] sm:$0xff]
    %v199 = vld [vmem:[#allocation2 + $0x1a0] sm:$0xff]
    %v200 = vld [vmem:[#allocation2 + $0x1a8] sm:$0xff]
    %v201 = vld [vmem:[#allocation2 + $0x1b0] sm:$0xff]
    %v202 = vld [vmem:[#allocation2 + $0x1b8] sm:$0xff]
    %v203 = vld [vmem:[#allocation2 + $0x1c0] sm:$0xff]
    %v204 = vld [vmem:[#allocation2 + $0x1c8] sm:$0xff]
    %v205 = vld [vmem:[#allocation2 + $0x1d0] sm:$0xff]
    %v206 = vld [vmem:[#allocation2 + $0x1d8] sm:$0xff]
    %v207 = vld [vmem:[#allocation2 + $0x1e0] sm:$0xff]
    %v208 = vld [vmem:[#allocation2 + $0x1e8] sm:$0xff]
    %v209 = vld [vmem:[#allocation2 + $0x1f0] sm:$0xff]
    %v210 = vld [vmem:[#allocation2 + $0x1f8] sm:$0xff]
    %v211 = vld [vmem:[#allocation2 + $0x200] sm:$0xff]
    %v212 = vld [vmem:[#allocation2 + $0x208] sm:$0xff]
    %v213 = vld [vmem:[#allocation2 + $0x210] sm:$0xff]
    %v214 = vld [vmem:[#allocation2 + $0x218] sm:$0xff]
    %v215 = vld [vmem:[#allocation2 + $0x220] sm:$0xff]
    %v216 = vld [vmem:[#allocation2 + $0x228] sm:$0xff]
    %v217 = vld [vmem:[#allocation2 + $0x230] sm:$0xff]
    %v218 = vld [vmem:[#allocation2 + $0x238] sm:$0xff]
    %v219 = vld [vmem:[#allocation2 + $0x240] sm:$0xff]
    %v220 = vld [vmem:[#allocation2 + $0x248] sm:$0xff]
    %v221 = vld [vmem:[#allocation2 + $0x250] sm:$0xff]
    %v222 = vld [vmem:[#allocation2 + $0x258] sm:$0xff]
    %v223 = vld [vmem:[#allocation2 + $0x260] sm:$0xff]
    %v224 = vld [vmem:[#allocation2 + $0x268] sm:$0xff]
    %v225 = vld [vmem:[#allocation2 + $0x270] sm:$0xff]
    %v226 = vld [vmem:[#allocation2 + $0x278] sm:$0xff]
    %v227 = vld [vmem:[#allocation2 + $0x280] sm:$0xff]
    %v228 = vld [vmem:[#allocation2 + $0x288] sm:$0xff]
    %v229 = vld [vmem:[#allocation2 + $0x290] sm:$0xff]
    %v230 = vld [vmem:[#allocation2 + $0x298] sm:$0xff]
    %v231 = vld [vmem:[#allocation2 + $0x2a0] sm:$0xff]
    %v232 = vld [vmem:[#allocation2 + $0x2a8] sm:$0xff]
    %v233 = vld [vmem:[#allocation2 + $0x2b0] sm:$0xff]
    %v234 = vld [vmem:[#allocation2 + $0x2b8] sm:$0xff]
    %v235 = vld [vmem:[#allocation2 + $0x2c0] sm:$0xff]
    %v236 = vld [vmem:[#allocation2 + $0x2c8] sm:$0xff]
    %v237 = vld [vmem:[#allocation2 + $0x2d0] sm:$0xff]
    %v238 = vld [vmem:[#allocation2 + $0x2d8] sm:$0xff]
    %v239 = vld [vmem:[#allocation2 + $0x2e0] sm:$0xff]
    %v240 = vld [vmem:[#allocation2 + $0x2e8] sm:$0xff]
    %v241 = vld [vmem:[#allocation2 + $0x2f0] sm:$0xff]
    %v242 = vld [vmem:[#allocation2 + $0x2f8] sm:$0xff]
    %v243 = vld [vmem:[#allocation2 + $0x300] sm:$0xff]
    %v244 = vld [vmem:[#allocation2 + $0x308] sm:$0xff]
    %v245 = vld [vmem:[#allocation2 + $0x310] sm:$0xff]
    %v246 = vld [vmem:[#allocation2 + $0x318] sm:$0xff]
    %v247 = vld [vmem:[#allocation2 + $0x320] sm:$0xff]
    %v248 = vld [vmem:[#allocation2 + $0x328] sm:$0xff]
    %v249 = vld [vmem:[#allocation2 + $0x330] sm:$0xff]
    %v250 = vld [vmem:[#allocation2 + $0x338] sm:$0xff]
    %v251 = vld [vmem:[#allocation2 + $0x340] sm:$0xff]
    %v252 = vld [vmem:[#allocation2 + $0x348] sm:$0xff]
    %v253 = vld [vmem:[#allocation2 + $0x350] sm:$0xff]
    %v254 = vld [vmem:[#allocation2 + $0x358] sm:$0xff]
    %v255 = vld [vmem:[#allocation2 + $0x360] sm:$0xff]
    %v256 = vld [vmem:[#allocation2 + $0x368] sm:$0xff]
    %v257 = vld [vmem:[#allocation2 + $0x370] sm:$0xff]
    %v258 = vld [vmem:[#allocation2 + $0x378] sm:$0xff]
    %v259 = vld [vmem:[#allocation2 + $0x380] sm:$0xff]
    %v260 = vld [vmem:[#allocation2 + $0x388] sm:$0xff]
    %v261 = vld [vmem:[#allocation2 + $0x390] sm:$0xff]
    %v262 = vld [vmem:[#allocation2 + $0x398] sm:$0xff]
    %v263 = vld [vmem:[#allocation2 + $0x3a0] sm:$0xff]
    %v264 = vld [vmem:[#allocation2 + $0x3a8] sm:$0xff]
    %v265 = vld [vmem:[#allocation2 + $0x3b0] sm:$0xff]
    %v266 = vld [vmem:[#allocation2 + $0x3b8] sm:$0xff]
    %v267 = vld [vmem:[#allocation2 + $0x3c0] sm:$0xff]
    %v268 = vld [vmem:[#allocation2 + $0x3c8] sm:$0xff]
    %v269 = vld [vmem:[#allocation2 + $0x3d0] sm:$0xff]
    %v270 = vld [vmem:[#allocation2 + $0x3d8] sm:$0xff]
    %v271 = vld [vmem:[#allocation2 + $0x3e0] sm:$0xff]
    %v272 = vld [vmem:[#allocation2 + $0x3e8] sm:$0xff]
    %v273 = vld [vmem:[#allocation2 + $0x3f0] sm:$0xff]
    %v274 = vld [vmem:[#allocation2 + $0x3f8] sm:$0xff]
    %v275 = vld [vmem:[#allocation2 + $0x400] sm:$0xff]
    %v276 = vld [vmem:[#allocation2 + $0x408] sm:$0xff]
    %v277 = vld [vmem:[#allocation2 + $0x410] sm:$0xff]
    %v278 = vld [vmem:[#allocation2 + $0x418] sm:$0xff]
    %v279 = vld [vmem:[#allocation2 + $0x420] sm:$0xff]
    %v280 = vld [vmem:[#allocation2 + $0x428] sm:$0xff]
    %v281 = vld [vmem:[#allocation2 + $0x430] sm:$0xff]
    %v282 = vld [vmem:[#allocation2 + $0x438] sm:$0xff]
    %v283 = vld [vmem:[#allocation2 + $0x440] sm:$0xff]
    %v284 = vld [vmem:[#allocation2 + $0x448] sm:$0xff]
    %v285 = vld [vmem:[#allocation2 + $0x450] sm:$0xff]
    %v286 = vld [vmem:[#allocation2 + $0x458] sm:$0xff]
    %v287 = vld [vmem:[#allocation2 + $0x460] sm:$0xff]
    %v288 = vld [vmem:[#allocation2 + $0x468] sm:$0xff]
    %v289 = vld [vmem:[#allocation2 + $0x470] sm:$0xff]
    %v290 = vld [vmem:[#allocation2 + $0x478] sm:$0xff]
    %v291 = vld [vmem:[#allocation2 + $0x480] sm:$0xff]
    %v292 = vld [vmem:[#allocation2 + $0x488] sm:$0xff]
    %v293 = vld [vmem:[#allocation2 + $0x490] sm:$0xff]
    %v294 = vld [vmem:[#allocation2 + $0x498] sm:$0xff]
    %v295 = vld [vmem:[#allocation2 + $0x4a0] sm:$0xff]
    %v296 = vld [vmem:[#allocation2 + $0x4a8] sm:$0xff]
    %v297 = vld [vmem:[#allocation2 + $0x4b0] sm:$0xff]
    %v298 = vld [vmem:[#allocation2 + $0x4b8] sm:$0xff]
    %v299 = vld [vmem:[#allocation2 + $0x4c0] sm:$0xff]
    %v300 = vld [vmem:[#allocation2 + $0x4c8] sm:$0xff]
    %v301 = vld [vmem:[#allocation2 + $0x4d0] sm:$0xff]
    %v302 = vld [vmem:[#allocation2 + $0x4d8] sm:$0xff]
    %v303 = vld [vmem:[#allocation2 + $0x4e0] sm:$0xff]
    %v304 = vld [vmem:[#allocation2 + $0x4e8] sm:$0xff]
    %v305 = vld [vmem:[#allocation2 + $0x4f0] sm:$0xff]
    %v306 = vld [vmem:[#allocation2 + $0x4f8] sm:$0xff]
    %v307 = vld [vmem:[#allocation2 + $0x500] sm:$0xff]
    %v308 = vld [vmem:[#allocation2 + $0x508] sm:$0xff]
    %v309 = vld [vmem:[#allocation2 + $0x510] sm:$0xff]
    %v310 = vld [vmem:[#allocation2 + $0x518] sm:$0xff]
    %v311 = vld [vmem:[#allocation2 + $0x520] sm:$0xff]
    %v312 = vld [vmem:[#allocation2 + $0x528] sm:$0xff]
    %v313 = vld [vmem:[#allocation2 + $0x530] sm:$0xff]
    %v314 = vld [vmem:[#allocation2 + $0x538] sm:$0xff]
    %v315 = vld [vmem:[#allocation2 + $0x540] sm:$0xff]
    %v316 = vld [vmem:[#allocation2 + $0x548] sm:$0xff]
    %v317 = vld [vmem:[#allocation2 + $0x550] sm:$0xff]
    %v318 = vld [vmem:[#allocation2 + $0x558] sm:$0xff]
    %v319 = vld [vmem:[#allocation2 + $0x560] sm:$0xff]
    %v320 = vld [vmem:[#allocation2 + $0x568] sm:$0xff]
    %v321 = vld [vmem:[#allocation2 + $0x570] sm:$0xff]
    %v322 = vld [vmem:[#allocation2 + $0x578] sm:$0xff]
    %v323 = vld [vmem:[#allocation2 + $0x580] sm:$0xff]
    %v324 = vld [vmem:[#allocation2 + $0x588] sm:$0xff]
    %v325 = vld [vmem:[#allocation2 + $0x590] sm:$0xff]
    %v326 = vld [vmem:[#allocation2 + $0x598] sm:$0xff]
    %v327 = vld [vmem:[#allocation2 + $0x5a0] sm:$0xff]
    %v328 = vld [vmem:[#allocation2 + $0x5a8] sm:$0xff]
    %v329 = vld [vmem:[#allocation2 + $0x5b0] sm:$0xff]
    %v330 = vld [vmem:[#allocation2 + $0x5b8] sm:$0xff]
    %v331 = vld [vmem:[#allocation2 + $0x5c0] sm:$0xff]
    %v332 = vld [vmem:[#allocation2 + $0x5c8] sm:$0xff]
    %v333 = vld [vmem:[#allocation2 + $0x5d0] sm:$0xff]
    %v334 = vld [vmem:[#allocation2 + $0x5d8] sm:$0xff]
    %v335 = vld [vmem:[#allocation2 + $0x5e0] sm:$0xff]
    %v336 = vld [vmem:[#allocation2 + $0x5e8] sm:$0xff]
    %v337 = vld [vmem:[#allocation2 + $0x5f0] sm:$0xff]
    %v338 = vld [vmem:[#allocation2 + $0x5f8] sm:$0xff]
    %v339 = vld [vmem:[#allocation2 + $0x600] sm:$0xff]
    %v340 = vld [vmem:[#allocation2 + $0x608] sm:$0xff]
    %v341 = vld [vmem:[#allocation2 + $0x610] sm:$0xff]
    %v342 = vld [vmem:[#allocation2 + $0x618] sm:$0xff]
    %v343 = vld [vmem:[#allocation2 + $0x620] sm:$0xff]
    %v344 = vld [vmem:[#allocation2 + $0x628] sm:$0xff]
    %v345 = vld [vmem:[#allocation2 + $0x630] sm:$0xff]
    %v346 = vld [vmem:[#allocation2 + $0x638] sm:$0xff]
    %v347 = vld [vmem:[#allocation2 + $0x640] sm:$0xff]
    %v348 = vld [vmem:[#allocation2 + $0x648] sm:$0xff]
    %v349 = vld [vmem:[#allocation2 + $0x650] sm:$0xff]
    %v350 = vld [vmem:[#allocation2 + $0x658] sm:$0xff]
    %v351 = vld [vmem:[#allocation2 + $0x660] sm:$0xff]
    %v352 = vld [vmem:[#allocation2 + $0x668] sm:$0xff]
    %v353 = vld [vmem:[#allocation2 + $0x670] sm:$0xff]
    %v354 = vld [vmem:[#allocation2 + $0x678] sm:$0xff]
    %v355 = vld [vmem:[#allocation2 + $0x680] sm:$0xff]
    %v356 = vld [vmem:[#allocation2 + $0x688] sm:$0xff]
    %v357 = vld [vmem:[#allocation2 + $0x690] sm:$0xff]
    %v358 = vld [vmem:[#allocation2 + $0x698] sm:$0xff]
    %v359 = vld [vmem:[#allocation2 + $0x6a0] sm:$0xff]
    %v360 = vld [vmem:[#allocation2 + $0x6a8] sm:$0xff]
    %v361 = vld [vmem:[#allocation2 + $0x6b0] sm:$0xff]
    %v362 = vld [vmem:[#allocation2 + $0x6b8] sm:$0xff]
    %v363 = vld [vmem:[#allocation2 + $0x6c0] sm:$0xff]
    %v364 = vld [vmem:[#allocation2 + $0x6c8] sm:$0xff]
    %v365 = vld [vmem:[#allocation2 + $0x6d0] sm:$0xff]
    %v366 = vld [vmem:[#allocation2 + $0x6d8] sm:$0xff]
    %v367 = vld [vmem:[#allocation2 + $0x6e0] sm:$0xff]
    %v368 = vld [vmem:[#allocation2 + $0x6e8] sm:$0xff]
    %v369 = vld [vmem:[#allocation2 + $0x6f0] sm:$0xff]
    %v370 = vld [vmem:[#allocation2 + $0x6f8] sm:$0xff]
    %v371 = vld [vmem:[#allocation2 + $0x700] sm:$0xff]
    %v372 = vld [vmem:[#allocation2 + $0x708] sm:$0xff]
    %v373 = vld [vmem:[#allocation2 + $0x710] sm:$0xff]
    %v374 = vld [vmem:[#allocation2 + $0x718] sm:$0xff]
    %v375 = vld [vmem:[#allocation2 + $0x720] sm:$0xff]
    %v376 = vld [vmem:[#allocation2 + $0x728] sm:$0xff]
    %v377 = vld [vmem:[#allocation2 + $0x730] sm:$0xff]
    %v378 = vld [vmem:[#allocation2 + $0x738] sm:$0xff]
    %v379 = vld [vmem:[#allocation2 + $0x740] sm:$0xff]
    %v380 = vld [vmem:[#allocation2 + $0x748] sm:$0xff]
    %v381 = vld [vmem:[#allocation2 + $0x750] sm:$0xff]
    %v382 = vld [vmem:[#allocation2 + $0x758] sm:$0xff]
    %v383 = vld [vmem:[#allocation2 + $0x760] sm:$0xff]
    %v384 = vld [vmem:[#allocation2 + $0x768] sm:$0xff]
    %v385 = vld [vmem:[#allocation2 + $0x770] sm:$0xff]
    %v386 = vld [vmem:[#allocation2 + $0x778] sm:$0xff]
    %v387 = vld [vmem:[#allocation2 + $0x780] sm:$0xff]
    %v388 = vld [vmem:[#allocation2 + $0x788] sm:$0xff]
    %v389 = vld [vmem:[#allocation2 + $0x790] sm:$0xff]
    %v390 = vld [vmem:[#allocation2 + $0x798] sm:$0xff]
    %v391 = vld [vmem:[#allocation2 + $0x7a0] sm:$0xff]
    %v392 = vld [vmem:[#allocation2 + $0x7a8] sm:$0xff]
    %v393 = vld [vmem:[#allocation2 + $0x7b0] sm:$0xff]
    %v394 = vld [vmem:[#allocation2 + $0x7b8] sm:$0xff]
    %v395 = vld [vmem:[#allocation2 + $0x7c0] sm:$0xff]
    %v396 = vld [vmem:[#allocation2 + $0x7c8] sm:$0xff]
    %v397 = vld [vmem:[#allocation2 + $0x7d0] sm:$0xff]
    %v398 = vld [vmem:[#allocation2 + $0x7d8] sm:$0xff]
    %v399 = vld [vmem:[#allocation2 + $0x7e0] sm:$0xff]
    %v400 = vld [vmem:[#allocation2 + $0x7e8] sm:$0xff]
    %v401 = vld [vmem:[#allocation2 + $0x7f0] sm:$0xff]
    %v402 = vld [vmem:[#allocation2 + $0x7f8] sm:$0xff]
    %v403 = vld [vmem:[#allocation2 + $0x800] sm:$0xff]
    %v404 = vld [vmem:[#allocation2 + $0x808] sm:$0xff]
    %v405 = vld [vmem:[#allocation2 + $0x810] sm:$0xff]
    %v406 = vld [vmem:[#allocation2 + $0x818] sm:$0xff]
    %v407 = vld [vmem:[#allocation2 + $0x820] sm:$0xff]
    %v408 = vld [vmem:[#allocation2 + $0x828] sm:$0xff]
    %v409 = vld [vmem:[#allocation2 + $0x830] sm:$0xff]
    %v410 = vld [vmem:[#allocation2 + $0x838] sm:$0xff]
    %v411 = vld [vmem:[#allocation2 + $0x840] sm:$0xff]
    %v412 = vld [vmem:[#allocation2 + $0x848] sm:$0xff]
    %v413 = vld [vmem:[#allocation2 + $0x850] sm:$0xff]
    %v414 = vld [vmem:[#allocation2 + $0x858] sm:$0xff]
    %v415 = vld [vmem:[#allocation2 + $0x860] sm:$0xff]
    %v416 = vld [vmem:[#allocation2 + $0x868] sm:$0xff]
    %v417 = vld [vmem:[#allocation2 + $0x870] sm:$0xff]
    %v418 = vld [vmem:[#allocation2 + $0x878] sm:$0xff]
    %v419 = vld [vmem:[#allocation2 + $0x880] sm:$0xff]
    %v420 = vld [vmem:[#allocation2 + $0x888] sm:$0xff]
    %v421 = vld [vmem:[#allocation2 + $0x890] sm:$0xff]
    %v422 = vld [vmem:[#allocation2 + $0x898] sm:$0xff]
    %v423 = vld [vmem:[#allocation2 + $0x8a0] sm:$0xff]
    %v424 = vld [vmem:[#allocation2 + $0x8a8] sm:$0xff]
    %v425 = vld [vmem:[#allocation2 + $0x8b0] sm:$0xff]
    %v426 = vld [vmem:[#allocation2 + $0x8b8] sm:$0xff]
    %v427 = vld [vmem:[#allocation2 + $0x8c0] sm:$0xff]
    %v428 = vld [vmem:[#allocation2 + $0x8c8] sm:$0xff]
    %v429 = vld [vmem:[#allocation2 + $0x8d0] sm:$0xff]
    %v430 = vld [vmem:[#allocation2 + $0x8d8] sm:$0xff]
    %v431 = vld [vmem:[#allocation2 + $0x8e0] sm:$0xff]
    %v432 = vld [vmem:[#allocation2 + $0x8e8] sm:$0xff]
    %v433 = vld [vmem:[#allocation2 + $0x8f0] sm:$0xff]
    %v434 = vld [vmem:[#allocation2 + $0x8f8] sm:$0xff]
    %v435 = vld [vmem:[#allocation2 + $0x900] sm:$0xff]
    %v436 = vld [vmem:[#allocation2 + $0x908] sm:$0xff]
    %v437 = vld [vmem:[#allocation2 + $0x910] sm:$0xff]
    %v438 = vld [vmem:[#allocation2 + $0x918] sm:$0xff]
    %v439 = vld [vmem:[#allocation2 + $0x920] sm:$0xff]
    %v440 = vld [vmem:[#allocation2 + $0x928] sm:$0xff]
    %v441 = vld [vmem:[#allocation2 + $0x930] sm:$0xff]
    %v442 = vld [vmem:[#allocation2 + $0x938] sm:$0xff]
    %v443 = vld [vmem:[#allocation2 + $0x940] sm:$0xff]
    %v444 = vld [vmem:[#allocation2 + $0x948] sm:$0xff]
    %v445 = vld [vmem:[#allocation2 + $0x950] sm:$0xff]
    %v446 = vld [vmem:[#allocation2 + $0x958] sm:$0xff]
    %v447 = vld [vmem:[#allocation2 + $0x960] sm:$0xff]
    %v448 = vld [vmem:[#allocation2 + $0x968] sm:$0xff]
    %v449 = vld [vmem:[#allocation2 + $0x970] sm:$0xff]
    %v450 = vld [vmem:[#allocation2 + $0x978] sm:$0xff]
    %v451 = vld [vmem:[#allocation2 + $0x980] sm:$0xff]
    %v452 = vld [vmem:[#allocation2 + $0x988] sm:$0xff]
    %v453 = vld [vmem:[#allocation2 + $0x990] sm:$0xff]
    %v454 = vld [vmem:[#allocation2 + $0x998] sm:$0xff]
    %v455 = vld [vmem:[#allocation2 + $0x9a0] sm:$0xff]
    %v456 = vld [vmem:[#allocation2 + $0x9a8] sm:$0xff]
    %v457 = vld [vmem:[#allocation2 + $0x9b0] sm:$0xff]
    %v458 = vld [vmem:[#allocation2 + $0x9b8] sm:$0xff]
    %v459 = vld [vmem:[#allocation2 + $0x9c0] sm:$0xff]
    %v460 = vld [vmem:[#allocation2 + $0x9c8] sm:$0xff]
    %v461 = vld [vmem:[#allocation2 + $0x9d0] sm:$0xff]
    %v462 = vld [vmem:[#allocation2 + $0x9d8] sm:$0xff]
    %v463 = vld [vmem:[#allocation2 + $0x9e0] sm:$0xff]
    %v464 = vld [vmem:[#allocation2 + $0x9e8] sm:$0xff]
    %v465 = vld [vmem:[#allocation2 + $0x9f0] sm:$0xff]
    %v466 = vld [vmem:[#allocation2 + $0x9f8] sm:$0xff]
    %v467 = vld [vmem:[#allocation2 + $0xa00] sm:$0xff]
    %v468 = vld [vmem:[#allocation2 + $0xa08] sm:$0xff]
    %v469 = vld [vmem:[#allocation2 + $0xa10] sm:$0xff]
    %v470 = vld [vmem:[#allocation2 + $0xa18] sm:$0xff]
    %v471 = vld [vmem:[#allocation2 + $0xa20] sm:$0xff]
    %v472 = vld [vmem:[#allocation2 + $0xa28] sm:$0xff]
    %v473 = vld [vmem:[#allocation2 + $0xa30] sm:$0xff]
    %v474 = vld [vmem:[#allocation2 + $0xa38] sm:$0xff]
    %v475 = vld [vmem:[#allocation2 + $0xa40] sm:$0xff]
    %v476 = vld [vmem:[#allocation2 + $0xa48] sm:$0xff]
    %v477 = vld [vmem:[#allocation2 + $0xa50] sm:$0xff]
    %v478 = vld [vmem:[#allocation2 + $0xa58] sm:$0xff]
    %v479 = vld [vmem:[#allocation2 + $0xa60] sm:$0xff]
    %v480 = vld [vmem:[#allocation2 + $0xa68] sm:$0xff]
    %v481 = vld [vmem:[#allocation2 + $0xa70] sm:$0xff]
    %v482 = vld [vmem:[#allocation2 + $0xa78] sm:$0xff]
    %v483 = vld [vmem:[#allocation2 + $0xa80] sm:$0xff]
    %v484 = vld [vmem:[#allocation2 + $0xa88] sm:$0xff]
    %v485 = vld [vmem:[#allocation2 + $0xa90] sm:$0xff]
    %v486 = vld [vmem:[#allocation2 + $0xa98] sm:$0xff]
    %v487 = vld [vmem:[#allocation2 + $0xaa0] sm:$0xff]
    %v488 = vld [vmem:[#allocation2 + $0xaa8] sm:$0xff]
    %v489 = vld [vmem:[#allocation2 + $0xab0] sm:$0xff]
    %v490 = vld [vmem:[#allocation2 + $0xab8] sm:$0xff]
    %v491 = vld [vmem:[#allocation2 + $0xac0] sm:$0xff]
    %v492 = vld [vmem:[#allocation2 + $0xac8] sm:$0xff]
    %v493 = vld [vmem:[#allocation2 + $0xad0] sm:$0xff]
    %v494 = vld [vmem:[#allocation2 + $0xad8] sm:$0xff]
    %v495 = vld [vmem:[#allocation2 + $0xae0] sm:$0xff]
    %v496 = vld [vmem:[#allocation2 + $0xae8] sm:$0xff]
    %v497 = vld [vmem:[#allocation2 + $0xaf0] sm:$0xff]
    %v498 = vld [vmem:[#allocation2 + $0xaf8] sm:$0xff]
    %v499 = vld [vmem:[#allocation2 + $0xb00] sm:$0xff]
    %v500 = vld [vmem:[#allocation2 + $0xb08] sm:$0xff]
    %v501 = vld [vmem:[#allocation2 + $0xb10] sm:$0xff]
    %v502 = vld [vmem:[#allocation2 + $0xb18] sm:$0xff]
    %v503 = vld [vmem:[#allocation2 + $0xb20] sm:$0xff]
    %v504 = vld [vmem:[#allocation2 + $0xb28] sm:$0xff]
    %v505 = vld [vmem:[#allocation2 + $0xb30] sm:$0xff]
    %v506 = vld [vmem:[#allocation2 + $0xb38] sm:$0xff]
    %v507 = vld [vmem:[#allocation2 + $0xb40] sm:$0xff]
    %v508 = vld [vmem:[#allocation2 + $0xb48] sm:$0xff]
    %v509 = vld [vmem:[#allocation2 + $0xb50] sm:$0xff]
    %v510 = vld [vmem:[#allocation2 + $0xb58] sm:$0xff]
    %v511 = vld [vmem:[#allocation2 + $0xb60] sm:$0xff]
    %v512 = vld [vmem:[#allocation2 + $0xb68] sm:$0xff]
    %v513 = vld [vmem:[#allocation2 + $0xb70] sm:$0xff]
    %v514 = vld [vmem:[#allocation2 + $0xb78] sm:$0xff]
    %v515 = vld [vmem:[#allocation2 + $0xb80] sm:$0xff]
    %v516 = vld [vmem:[#allocation2 + $0xb88] sm:$0xff]
    %v517 = vld [vmem:[#allocation2 + $0xb90] sm:$0xff]
    %v518 = vld [vmem:[#allocation2 + $0xb98] sm:$0xff]
    %v519 = vld [vmem:[#allocation2 + $0xba0] sm:$0xff]
    %v520 = vld [vmem:[#allocation2 + $0xba8] sm:$0xff]
    %v521 = vld [vmem:[#allocation2 + $0xbb0] sm:$0xff]
    %v522 = vld [vmem:[#allocation2 + $0xbb8] sm:$0xff]
    %v523 = vld [vmem:[#allocation2 + $0xbc0] sm:$0xff]
    %v524 = vld [vmem:[#allocation2 + $0xbc8] sm:$0xff]
    %v525 = vld [vmem:[#allocation2 + $0xbd0] sm:$0xff]
    %v526 = vld [vmem:[#allocation2 + $0xbd8] sm:$0xff]
    %v527 = vld [vmem:[#allocation2 + $0xbe0] sm:$0xff]
    %v528 = vld [vmem:[#allocation2 + $0xbe8] sm:$0xff]
    %v529 = vld [vmem:[#allocation2 + $0xbf0] sm:$0xff]
    %v530 = vld [vmem:[#allocation2 + $0xbf8] sm:$0xff]
    %v531 = vld [vmem:[#allocation2 + $0xc00] sm:$0xff]
    %v532 = vld [vmem:[#allocation2 + $0xc08] sm:$0xff]
    %v533 = vld [vmem:[#allocation2 + $0xc10] sm:$0xff]
    %v534 = vld [vmem:[#allocation2 + $0xc18] sm:$0xff]
    %v535 = vld [vmem:[#allocation2 + $0xc20] sm:$0xff]
    %v536 = vld [vmem:[#allocation2 + $0xc28] sm:$0xff]
    %v537 = vld [vmem:[#allocation2 + $0xc30] sm:$0xff]
    %v538 = vld [vmem:[#allocation2 + $0xc38] sm:$0xff]
    %v539 = vld [vmem:[#allocation2 + $0xc40] sm:$0xff]
    %v540 = vld [vmem:[#allocation2 + $0xc48] sm:$0xff]
    %v541 = vld [vmem:[#allocation2 + $0xc50] sm:$0xff]
    %v542 = vld [vmem:[#allocation2 + $0xc58] sm:$0xff]
    %v543 = vld [vmem:[#allocation2 + $0xc60] sm:$0xff]
    %v544 = vld [vmem:[#allocation2 + $0xc68] sm:$0xff]
    %v545 = vld [vmem:[#allocation2 + $0xc70] sm:$0xff]
    %v546 = vld [vmem:[#allocation2 + $0xc78] sm:$0xff]
    %v547 = vld [vmem:[#allocation2 + $0xc80] sm:$0xff]
    %v548 = vld [vmem:[#allocation2 + $0xc88] sm:$0xff]
    %v549 = vld [vmem:[#allocation2 + $0xc90] sm:$0xff]
    %v550 = vld [vmem:[#allocation2 + $0xc98] sm:$0xff]
    %v551 = vld [vmem:[#allocation2 + $0xca0] sm:$0xff]
    %v552 = vld [vmem:[#allocation2 + $0xca8] sm:$0xff]
    %v553 = vld [vmem:[#allocation2 + $0xcb0] sm:$0xff]
    %v554 = vld [vmem:[#allocation2 + $0xcb8] sm:$0xff]
    %v555 = vld [vmem:[#allocation2 + $0xcc0] sm:$0xff]
    %v556 = vld [vmem:[#allocation2 + $0xcc8] sm:$0xff]
    %v557 = vld [vmem:[#allocation2 + $0xcd0] sm:$0xff]
    %v558 = vld [vmem:[#allocation2 + $0xcd8] sm:$0xff]
    %v559 = vld [vmem:[#allocation2 + $0xce0] sm:$0xff]
    %v560 = vld [vmem:[#allocation2 + $0xce8] sm:$0xff]
    %v561 = vld [vmem:[#allocation2 + $0xcf0] sm:$0xff]
    %v562 = vld [vmem:[#allocation2 + $0xcf8] sm:$0xff]
    %v563 = vld [vmem:[#allocation2 + $0xd00] sm:$0xff]
    %v564 = vld [vmem:[#allocation2 + $0xd08] sm:$0xff]
    %v565 = vld [vmem:[#allocation2 + $0xd10] sm:$0xff]
    %v566 = vld [vmem:[#allocation2 + $0xd18] sm:$0xff]
    %v567 = vld [vmem:[#allocation2 + $0xd20] sm:$0xff]
    %v568 = vld [vmem:[#allocation2 + $0xd28] sm:$0xff]
    %v569 = vld [vmem:[#allocation2 + $0xd30] sm:$0xff]
    %v570 = vld [vmem:[#allocation2 + $0xd38] sm:$0xff]
    %v571 = vld [vmem:[#allocation2 + $0xd40] sm:$0xff]
    %v572 = vld [vmem:[#allocation2 + $0xd48] sm:$0xff]
    %v573 = vld [vmem:[#allocation2 + $0xd50] sm:$0xff]
    %v574 = vld [vmem:[#allocation2 + $0xd58] sm:$0xff]
    %v575 = vld [vmem:[#allocation2 + $0xd60] sm:$0xff]
    %v576 = vld [vmem:[#allocation2 + $0xd68] sm:$0xff]
    %v577 = vld [vmem:[#allocation2 + $0xd70] sm:$0xff]
    %v578 = vld [vmem:[#allocation2 + $0xd78] sm:$0xff]
    %v579 = vld [vmem:[#allocation2 + $0xd80] sm:$0xff]
    %v580 = vld [vmem:[#allocation2 + $0xd88] sm:$0xff]
    %v581 = vld [vmem:[#allocation2 + $0xd90] sm:$0xff]
    %v582 = vld [vmem:[#allocation2 + $0xd98] sm:$0xff]
    %v583 = vld [vmem:[#allocation2 + $0xda0] sm:$0xff]
    %v584 = vld [vmem:[#allocation2 + $0xda8] sm:$0xff]
    %v585 = vld [vmem:[#allocation2 + $0xdb0] sm:$0xff]
    %v586 = vld [vmem:[#allocation2 + $0xdb8] sm:$0xff]
    %v587 = vld [vmem:[#allocation2 + $0xdc0] sm:$0xff]
    %v588 = vld [vmem:[#allocation2 + $0xdc8] sm:$0xff]
    %v589 = vld [vmem:[#allocation2 + $0xdd0] sm:$0xff]
    %v590 = vld [vmem:[#allocation2 + $0xdd8] sm:$0xff]
    %v591 = vld [vmem:[#allocation2 + $0xde0] sm:$0xff]
    %v592 = vld [vmem:[#allocation2 + $0xde8] sm:$0xff]
    %v593 = vld [vmem:[#allocation2 + $0xdf0] sm:$0xff]
    %v594 = vld [vmem:[#allocation2 + $0xdf8] sm:$0xff]
    %v595 = vld [vmem:[%s2] sm:$0xff]
    %v597 = vlaneseq
    %v598 = vshrl.u32 %v597, 7
    %v599 = vsub.s32 0, %v598
    %v600 = vrot.slane %v595, %v599
    %v601 = vlaneseq
    %v602 = vshrl.u32 %v601, 7
    %v603 = vsub.s32 1, %v602
    %v604 = vrot.slane %v595, %v603
    %v605 = vlaneseq
    %v606 = vshrl.u32 %v605, 7
    %v607 = vsub.s32 2, %v606
    %v608 = vrot.slane %v595, %v607
    %v609 = vlaneseq
    %v610 = vshrl.u32 %v609, 7
    %v611 = vsub.s32 3, %v610
    %v612 = vrot.slane %v595, %v611
    %v613 = vlaneseq
    %v614 = vshrl.u32 %v613, 7
    %v615 = vsub.s32 4, %v614
    %v616 = vrot.slane %v595, %v615
    %v617 = vlaneseq
    %v618 = vshrl.u32 %v617, 7
    %v619 = vsub.s32 5, %v618
    %v620 = vrot.slane %v595, %v619
    %v621 = vlaneseq
    %v622 = vshrl.u32 %v621, 7
    %v623 = vsub.s32 6, %v622
    %v624 = vrot.slane %v595, %v623
    %v625 = vlaneseq
    %v626 = vshrl.u32 %v625, 7
    %v627 = vsub.s32 7, %v626
    %v628 = vrot.slane %v595, %v627
    %v1085 = vunpack.c.l.b16 %v147
    %v1086 = vunpack.c.h.b16 %v147
    %v1087 = vunpack.c.l.b16 %v148
    %v1088 = vunpack.c.h.b16 %v148
    %v1089 = vunpack.c.l.b16 %v149
    %v1090 = vunpack.c.h.b16 %v149
    %v1091 = vunpack.c.l.b16 %v150
    %v1092 = vunpack.c.h.b16 %v150
    %v1093 = vunpack.c.l.b16 %v151
    %v1094 = vunpack.c.h.b16 %v151
    %v1095 = vunpack.c.l.b16 %v152
    %v1096 = vunpack.c.h.b16 %v152
    %v1097 = vunpack.c.l.b16 %v153
    %v1098 = vunpack.c.h.b16 %v153
    %v1099 = vunpack.c.l.b16 %v154
    %v1100 = vunpack.c.h.b16 %v154
    %v1101 = vunpack.c.l.b16 %v155
    %v1102 = vunpack.c.h.b16 %v155
    %v1103 = vunpack.c.l.b16 %v156
    %v1104 = vunpack.c.h.b16 %v156
    %v1105 = vunpack.c.l.b16 %v157
    %v1106 = vunpack.c.h.b16 %v157
    %v1107 = vunpack.c.l.b16 %v158
    %v1108 = vunpack.c.h.b16 %v158
    %v1109 = vunpack.c.l.b16 %v159
    %v1110 = vunpack.c.h.b16 %v159
    %v1111 = vunpack.c.l.b16 %v160
    %v1112 = vunpack.c.h.b16 %v160
    %v1113 = vunpack.c.l.b16 %v161
    %v1114 = vunpack.c.h.b16 %v161
    %v1115 = vunpack.c.l.b16 %v162
    %v1116 = vunpack.c.h.b16 %v162
    %v1117 = vunpack.c.l.b16 %v163
    %v1118 = vunpack.c.h.b16 %v163
    %v1119 = vunpack.c.l.b16 %v164
    %v1120 = vunpack.c.h.b16 %v164
    %v1121 = vunpack.c.l.b16 %v165
    %v1122 = vunpack.c.h.b16 %v165
    %v1123 = vunpack.c.l.b16 %v166
    %v1124 = vunpack.c.h.b16 %v166
    %v1125 = vunpack.c.l.b16 %v167
    %v1126 = vunpack.c.h.b16 %v167
    %v1127 = vunpack.c.l.b16 %v168
    %v1128 = vunpack.c.h.b16 %v168
    %v1129 = vunpack.c.l.b16 %v169
    %v1130 = vunpack.c.h.b16 %v169
    %v1131 = vunpack.c.l.b16 %v170
    %v1132 = vunpack.c.h.b16 %v170
    %v1133 = vunpack.c.l.b16 %v171
    %v1134 = vunpack.c.h.b16 %v171
    %v1135 = vunpack.c.l.b16 %v172
    %v1136 = vunpack.c.h.b16 %v172
    %v1137 = vunpack.c.l.b16 %v173
    %v1138 = vunpack.c.h.b16 %v173
    %v1139 = vunpack.c.l.b16 %v174
    %v1140 = vunpack.c.h.b16 %v174
    %v1141 = vunpack.c.l.b16 %v175
    %v1142 = vunpack.c.h.b16 %v175
    %v1143 = vunpack.c.l.b16 %v176
    %v1144 = vunpack.c.h.b16 %v176
    %v1145 = vunpack.c.l.b16 %v177
    %v1146 = vunpack.c.h.b16 %v177
    %v1147 = vunpack.c.l.b16 %v178
    %v1148 = vunpack.c.h.b16 %v178
    %v1149 = vunpack.c.l.b16 %v179
    %v1150 = vunpack.c.h.b16 %v179
    %v1151 = vunpack.c.l.b16 %v180
    %v1152 = vunpack.c.h.b16 %v180
    %v1153 = vunpack.c.l.b16 %v181
    %v1154 = vunpack.c.h.b16 %v181
    %v1155 = vunpack.c.l.b16 %v182
    %v1156 = vunpack.c.h.b16 %v182
    %v1157 = vunpack.c.l.b16 %v183
    %v1158 = vunpack.c.h.b16 %v183
    %v1159 = vunpack.c.l.b16 %v184
    %v1160 = vunpack.c.h.b16 %v184
    %v1161 = vunpack.c.l.b16 %v185
    %v1162 = vunpack.c.h.b16 %v185
    %v1163 = vunpack.c.l.b16 %v186
    %v1164 = vunpack.c.h.b16 %v186
    %v1165 = vunpack.c.l.b16 %v187
    %v1166 = vunpack.c.h.b16 %v187
    %v1167 = vunpack.c.l.b16 %v188
    %v1168 = vunpack.c.h.b16 %v188
    %v1169 = vunpack.c.l.b16 %v189
    %v1170 = vunpack.c.h.b16 %v189
    %v1171 = vunpack.c.l.b16 %v190
    %v1172 = vunpack.c.h.b16 %v190
    %v1173 = vunpack.c.l.b16 %v191
    %v1174 = vunpack.c.h.b16 %v191
    %v1175 = vunpack.c.l.b16 %v192
    %v1176 = vunpack.c.h.b16 %v192
    %v1177 = vunpack.c.l.b16 %v193
    %v1178 = vunpack.c.h.b16 %v193
    %v1179 = vunpack.c.l.b16 %v194
    %v1180 = vunpack.c.h.b16 %v194
    %v1181 = vunpack.c.l.b16 %v195
    %v1182 = vunpack.c.h.b16 %v195
    %v1183 = vunpack.c.l.b16 %v196
    %v1184 = vunpack.c.h.b16 %v196
    %v1185 = vunpack.c.l.b16 %v197
    %v1186 = vunpack.c.h.b16 %v197
    %v1187 = vunpack.c.l.b16 %v198
    %v1188 = vunpack.c.h.b16 %v198
    %v1189 = vunpack.c.l.b16 %v199
    %v1190 = vunpack.c.h.b16 %v199
    %v1191 = vunpack.c.l.b16 %v200
    %v1192 = vunpack.c.h.b16 %v200
    %v1193 = vunpack.c.l.b16 %v201
    %v1194 = vunpack.c.h.b16 %v201
    %v1195 = vunpack.c.l.b16 %v202
    %v1196 = vunpack.c.h.b16 %v202
    %v1197 = vunpack.c.l.b16 %v203
    %v1198 = vunpack.c.h.b16 %v203
    %v1199 = vunpack.c.l.b16 %v204
    %v1200 = vunpack.c.h.b16 %v204
    %v1201 = vunpack.c.l.b16 %v205
    %v1202 = vunpack.c.h.b16 %v205
    %v1203 = vunpack.c.l.b16 %v206
    %v1204 = vunpack.c.h.b16 %v206
    %v1205 = vunpack.c.l.b16 %v207
    %v1206 = vunpack.c.h.b16 %v207
    %v1207 = vunpack.c.l.b16 %v208
    %v1208 = vunpack.c.h.b16 %v208
    %v1209 = vunpack.c.l.b16 %v209
    %v1210 = vunpack.c.h.b16 %v209
    %v1211 = vunpack.c.l.b16 %v210
    %v1212 = vunpack.c.h.b16 %v210
    %v1213 = vunpack.c.l.b16 %v211
    %v1214 = vunpack.c.h.b16 %v211
    %v1215 = vunpack.c.l.b16 %v212
    %v1216 = vunpack.c.h.b16 %v212
    %v1217 = vunpack.c.l.b16 %v213
    %v1218 = vunpack.c.h.b16 %v213
    %v1219 = vunpack.c.l.b16 %v214
    %v1220 = vunpack.c.h.b16 %v214
    %v1221 = vunpack.c.l.b16 %v215
    %v1222 = vunpack.c.h.b16 %v215
    %v1223 = vunpack.c.l.b16 %v216
    %v1224 = vunpack.c.h.b16 %v216
    %v1225 = vunpack.c.l.b16 %v217
    %v1226 = vunpack.c.h.b16 %v217
    %v1227 = vunpack.c.l.b16 %v218
    %v1228 = vunpack.c.h.b16 %v218
    %v1229 = vunpack.c.l.b16 %v219
    %v1230 = vunpack.c.h.b16 %v219
    %v1231 = vunpack.c.l.b16 %v220
    %v1232 = vunpack.c.h.b16 %v220
    %v1233 = vunpack.c.l.b16 %v221
    %v1234 = vunpack.c.h.b16 %v221
    %v1235 = vunpack.c.l.b16 %v222
    %v1236 = vunpack.c.h.b16 %v222
    %v1237 = vunpack.c.l.b16 %v223
    %v1238 = vunpack.c.h.b16 %v223
    %v1239 = vunpack.c.l.b16 %v224
    %v1240 = vunpack.c.h.b16 %v224
    %v1241 = vunpack.c.l.b16 %v225
    %v1242 = vunpack.c.h.b16 %v225
    %v1243 = vunpack.c.l.b16 %v226
    %v1244 = vunpack.c.h.b16 %v226
    %v1245 = vunpack.c.l.b16 %v227
    %v1246 = vunpack.c.h.b16 %v227
    %v1247 = vunpack.c.l.b16 %v228
    %v1248 = vunpack.c.h.b16 %v228
    %v1249 = vunpack.c.l.b16 %v229
    %v1250 = vunpack.c.h.b16 %v229
    %v1251 = vunpack.c.l.b16 %v230
    %v1252 = vunpack.c.h.b16 %v230
    %v1253 = vunpack.c.l.b16 %v231
    %v1254 = vunpack.c.h.b16 %v231
    %v1255 = vunpack.c.l.b16 %v232
    %v1256 = vunpack.c.h.b16 %v232
    %v1257 = vunpack.c.l.b16 %v233
    %v1258 = vunpack.c.h.b16 %v233
    %v1259 = vunpack.c.l.b16 %v234
    %v1260 = vunpack.c.h.b16 %v234
    %v1261 = vunpack.c.l.b16 %v235
    %v1262 = vunpack.c.h.b16 %v235
    %v1263 = vunpack.c.l.b16 %v236
    %v1264 = vunpack.c.h.b16 %v236
    %v1265 = vunpack.c.l.b16 %v237
    %v1266 = vunpack.c.h.b16 %v237
    %v1267 = vunpack.c.l.b16 %v238
    %v1268 = vunpack.c.h.b16 %v238
    %v1269 = vunpack.c.l.b16 %v239
    %v1270 = vunpack.c.h.b16 %v239
    %v1271 = vunpack.c.l.b16 %v240
    %v1272 = vunpack.c.h.b16 %v240
    %v1273 = vunpack.c.l.b16 %v241
    %v1274 = vunpack.c.h.b16 %v241
    %v1275 = vunpack.c.l.b16 %v242
    %v1276 = vunpack.c.h.b16 %v242
    %v1277 = vunpack.c.l.b16 %v243
    %v1278 = vunpack.c.h.b16 %v243
    %v1279 = vunpack.c.l.b16 %v244
    %v1280 = vunpack.c.h.b16 %v244
    %v1281 = vunpack.c.l.b16 %v245
    %v1282 = vunpack.c.h.b16 %v245
    %v1283 = vunpack.c.l.b16 %v246
    %v1284 = vunpack.c.h.b16 %v246
    %v1285 = vunpack.c.l.b16 %v247
    %v1286 = vunpack.c.h.b16 %v247
    %v1287 = vunpack.c.l.b16 %v248
    %v1288 = vunpack.c.h.b16 %v248
    %v1289 = vunpack.c.l.b16 %v249
    %v1290 = vunpack.c.h.b16 %v249
    %v1291 = vunpack.c.l.b16 %v250
    %v1292 = vunpack.c.h.b16 %v250
    %v1293 = vunpack.c.l.b16 %v251
    %v1294 = vunpack.c.h.b16 %v251
    %v1295 = vunpack.c.l.b16 %v252
    %v1296 = vunpack.c.h.b16 %v252
    %v1297 = vunpack.c.l.b16 %v253
    %v1298 = vunpack.c.h.b16 %v253
    %v1299 = vunpack.c.l.b16 %v254
    %v1300 = vunpack.c.h.b16 %v254
    %v1301 = vunpack.c.l.b16 %v255
    %v1302 = vunpack.c.h.b16 %v255
    %v1303 = vunpack.c.l.b16 %v256
    %v1304 = vunpack.c.h.b16 %v256
    %v1305 = vunpack.c.l.b16 %v257
    %v1306 = vunpack.c.h.b16 %v257
    %v1307 = vunpack.c.l.b16 %v258
    %v1308 = vunpack.c.h.b16 %v258
    %v1309 = vunpack.c.l.b16 %v259
    %v1310 = vunpack.c.h.b16 %v259
    %v1311 = vunpack.c.l.b16 %v260
    %v1312 = vunpack.c.h.b16 %v260
    %v1313 = vunpack.c.l.b16 %v261
    %v1314 = vunpack.c.h.b16 %v261
    %v1315 = vunpack.c.l.b16 %v262
    %v1316 = vunpack.c.h.b16 %v262
    %v1317 = vunpack.c.l.b16 %v263
    %v1318 = vunpack.c.h.b16 %v263
    %v1319 = vunpack.c.l.b16 %v264
    %v1320 = vunpack.c.h.b16 %v264
    %v1321 = vunpack.c.l.b16 %v265
    %v1322 = vunpack.c.h.b16 %v265
    %v1323 = vunpack.c.l.b16 %v266
    %v1324 = vunpack.c.h.b16 %v266
    %v1325 = vunpack.c.l.b16 %v267
    %v1326 = vunpack.c.h.b16 %v267
    %v1327 = vunpack.c.l.b16 %v268
    %v1328 = vunpack.c.h.b16 %v268
    %v1329 = vunpack.c.l.b16 %v269
    %v1330 = vunpack.c.h.b16 %v269
    %v1331 = vunpack.c.l.b16 %v270
    %v1332 = vunpack.c.h.b16 %v270
    %v1333 = vunpack.c.l.b16 %v271
    %v1334 = vunpack.c.h.b16 %v271
    %v1335 = vunpack.c.l.b16 %v272
    %v1336 = vunpack.c.h.b16 %v272
    %v1337 = vunpack.c.l.b16 %v273
    %v1338 = vunpack.c.h.b16 %v273
    %v1339 = vunpack.c.l.b16 %v274
    %v1340 = vunpack.c.h.b16 %v274
    %v1341 = vunpack.c.l.b16 %v275
    %v1342 = vunpack.c.h.b16 %v275
    %v1343 = vunpack.c.l.b16 %v276
    %v1344 = vunpack.c.h.b16 %v276
    %v1345 = vunpack.c.l.b16 %v277
    %v1346 = vunpack.c.h.b16 %v277
    %v1347 = vunpack.c.l.b16 %v278
    %v1348 = vunpack.c.h.b16 %v278
    %v1349 = vunpack.c.l.b16 %v279
    %v1350 = vunpack.c.h.b16 %v279
    %v1351 = vunpack.c.l.b16 %v280
    %v1352 = vunpack.c.h.b16 %v280
    %v1353 = vunpack.c.l.b16 %v281
    %v1354 = vunpack.c.h.b16 %v281
    %v1355 = vunpack.c.l.b16 %v282
    %v1356 = vunpack.c.h.b16 %v282
    %v1357 = vunpack.c.l.b16 %v283
    %v1358 = vunpack.c.h.b16 %v283
    %v1359 = vunpack.c.l.b16 %v284
    %v1360 = vunpack.c.h.b16 %v284
    %v1361 = vunpack.c.l.b16 %v285
    %v1362 = vunpack.c.h.b16 %v285
    %v1363 = vunpack.c.l.b16 %v286
    %v1364 = vunpack.c.h.b16 %v286
    %v1365 = vunpack.c.l.b16 %v287
    %v1366 = vunpack.c.h.b16 %v287
    %v1367 = vunpack.c.l.b16 %v288
    %v1368 = vunpack.c.h.b16 %v288
    %v1369 = vunpack.c.l.b16 %v289
    %v1370 = vunpack.c.h.b16 %v289
    %v1371 = vunpack.c.l.b16 %v290
    %v1372 = vunpack.c.h.b16 %v290
    %v1373 = vunpack.c.l.b16 %v291
    %v1374 = vunpack.c.h.b16 %v291
    %v1375 = vunpack.c.l.b16 %v292
    %v1376 = vunpack.c.h.b16 %v292
    %v1377 = vunpack.c.l.b16 %v293
    %v1378 = vunpack.c.h.b16 %v293
    %v1379 = vunpack.c.l.b16 %v294
    %v1380 = vunpack.c.h.b16 %v294
    %v1381 = vunpack.c.l.b16 %v295
    %v1382 = vunpack.c.h.b16 %v295
    %v1383 = vunpack.c.l.b16 %v296
    %v1384 = vunpack.c.h.b16 %v296
    %v1385 = vunpack.c.l.b16 %v297
    %v1386 = vunpack.c.h.b16 %v297
    %v1387 = vunpack.c.l.b16 %v298
    %v1388 = vunpack.c.h.b16 %v298
    %v1389 = vunpack.c.l.b16 %v299
    %v1390 = vunpack.c.h.b16 %v299
    %v1391 = vunpack.c.l.b16 %v300
    %v1392 = vunpack.c.h.b16 %v300
    %v1393 = vunpack.c.l.b16 %v301
    %v1394 = vunpack.c.h.b16 %v301
    %v1395 = vunpack.c.l.b16 %v302
    %v1396 = vunpack.c.h.b16 %v302
    %v1397 = vunpack.c.l.b16 %v303
    %v1398 = vunpack.c.h.b16 %v303
    %v1399 = vunpack.c.l.b16 %v304
    %v1400 = vunpack.c.h.b16 %v304
    %v1401 = vunpack.c.l.b16 %v305
    %v1402 = vunpack.c.h.b16 %v305
    %v1403 = vunpack.c.l.b16 %v306
    %v1404 = vunpack.c.h.b16 %v306
    %v1405 = vunpack.c.l.b16 %v307
    %v1406 = vunpack.c.h.b16 %v307
    %v1407 = vunpack.c.l.b16 %v308
    %v1408 = vunpack.c.h.b16 %v308
    %v1409 = vunpack.c.l.b16 %v309
    %v1410 = vunpack.c.h.b16 %v309
    %v1411 = vunpack.c.l.b16 %v310
    %v1412 = vunpack.c.h.b16 %v310
    %v1413 = vunpack.c.l.b16 %v311
    %v1414 = vunpack.c.h.b16 %v311
    %v1415 = vunpack.c.l.b16 %v312
    %v1416 = vunpack.c.h.b16 %v312
    %v1417 = vunpack.c.l.b16 %v313
    %v1418 = vunpack.c.h.b16 %v313
    %v1419 = vunpack.c.l.b16 %v314
    %v1420 = vunpack.c.h.b16 %v314
    %v1421 = vunpack.c.l.b16 %v315
    %v1422 = vunpack.c.h.b16 %v315
    %v1423 = vunpack.c.l.b16 %v316
    %v1424 = vunpack.c.h.b16 %v316
    %v1425 = vunpack.c.l.b16 %v317
    %v1426 = vunpack.c.h.b16 %v317
    %v1427 = vunpack.c.l.b16 %v318
    %v1428 = vunpack.c.h.b16 %v318
    %v1429 = vunpack.c.l.b16 %v319
    %v1430 = vunpack.c.h.b16 %v319
    %v1431 = vunpack.c.l.b16 %v320
    %v1432 = vunpack.c.h.b16 %v320
    %v1433 = vunpack.c.l.b16 %v321
    %v1434 = vunpack.c.h.b16 %v321
    %v1435 = vunpack.c.l.b16 %v322
    %v1436 = vunpack.c.h.b16 %v322
    %v1437 = vunpack.c.l.b16 %v323
    %v1438 = vunpack.c.h.b16 %v323
    %v1439 = vunpack.c.l.b16 %v324
    %v1440 = vunpack.c.h.b16 %v324
    %v1441 = vunpack.c.l.b16 %v325
    %v1442 = vunpack.c.h.b16 %v325
    %v1443 = vunpack.c.l.b16 %v326
    %v1444 = vunpack.c.h.b16 %v326
    %v1445 = vunpack.c.l.b16 %v327
    %v1446 = vunpack.c.h.b16 %v327
    %v1447 = vunpack.c.l.b16 %v328
    %v1448 = vunpack.c.h.b16 %v328
    %v1449 = vunpack.c.l.b16 %v329
    %v1450 = vunpack.c.h.b16 %v329
    %v1451 = vunpack.c.l.b16 %v330
    %v1452 = vunpack.c.h.b16 %v330
    %v1453 = vunpack.c.l.b16 %v331
    %v1454 = vunpack.c.h.b16 %v331
    %v1455 = vunpack.c.l.b16 %v332
    %v1456 = vunpack.c.h.b16 %v332
    %v1457 = vunpack.c.l.b16 %v333
    %v1458 = vunpack.c.h.b16 %v333
    %v1459 = vunpack.c.l.b16 %v334
    %v1460 = vunpack.c.h.b16 %v334
    %v1461 = vunpack.c.l.b16 %v335
    %v1462 = vunpack.c.h.b16 %v335
    %v1463 = vunpack.c.l.b16 %v336
    %v1464 = vunpack.c.h.b16 %v336
    %v1465 = vunpack.c.l.b16 %v337
    %v1466 = vunpack.c.h.b16 %v337
    %v1467 = vunpack.c.l.b16 %v338
    %v1468 = vunpack.c.h.b16 %v338
    %v1469 = vunpack.c.l.b16 %v339
    %v1470 = vunpack.c.h.b16 %v339
    %v1471 = vunpack.c.l.b16 %v340
    %v1472 = vunpack.c.h.b16 %v340
    %v1473 = vunpack.c.l.b16 %v341
    %v1474 = vunpack.c.h.b16 %v341
    %v1475 = vunpack.c.l.b16 %v342
    %v1476 = vunpack.c.h.b16 %v342
    %v1477 = vunpack.c.l.b16 %v343
    %v1478 = vunpack.c.h.b16 %v343
    %v1479 = vunpack.c.l.b16 %v344
    %v1480 = vunpack.c.h.b16 %v344
    %v1481 = vunpack.c.l.b16 %v345
    %v1482 = vunpack.c.h.b16 %v345
    %v1483 = vunpack.c.l.b16 %v346
    %v1484 = vunpack.c.h.b16 %v346
    %v1485 = vunpack.c.l.b16 %v347
    %v1486 = vunpack.c.h.b16 %v347
    %v1487 = vunpack.c.l.b16 %v348
    %v1488 = vunpack.c.h.b16 %v348
    %v1489 = vunpack.c.l.b16 %v349
    %v1490 = vunpack.c.h.b16 %v349
    %v1491 = vunpack.c.l.b16 %v350
    %v1492 = vunpack.c.h.b16 %v350
    %v1493 = vunpack.c.l.b16 %v351
    %v1494 = vunpack.c.h.b16 %v351
    %v1495 = vunpack.c.l.b16 %v352
    %v1496 = vunpack.c.h.b16 %v352
    %v1497 = vunpack.c.l.b16 %v353
    %v1498 = vunpack.c.h.b16 %v353
    %v1499 = vunpack.c.l.b16 %v354
    %v1500 = vunpack.c.h.b16 %v354
    %v1501 = vunpack.c.l.b16 %v355
    %v1502 = vunpack.c.h.b16 %v355
    %v1503 = vunpack.c.l.b16 %v356
    %v1504 = vunpack.c.h.b16 %v356
    %v1505 = vunpack.c.l.b16 %v357
    %v1506 = vunpack.c.h.b16 %v357
    %v1507 = vunpack.c.l.b16 %v358
    %v1508 = vunpack.c.h.b16 %v358
    %v1509 = vunpack.c.l.b16 %v359
    %v1510 = vunpack.c.h.b16 %v359
    %v1511 = vunpack.c.l.b16 %v360
    %v1512 = vunpack.c.h.b16 %v360
    %v1513 = vunpack.c.l.b16 %v361
    %v1514 = vunpack.c.h.b16 %v361
    %v1515 = vunpack.c.l.b16 %v362
    %v1516 = vunpack.c.h.b16 %v362
    %v1517 = vunpack.c.l.b16 %v363
    %v1518 = vunpack.c.h.b16 %v363
    %v1519 = vunpack.c.l.b16 %v364
    %v1520 = vunpack.c.h.b16 %v364
    %v1521 = vunpack.c.l.b16 %v365
    %v1522 = vunpack.c.h.b16 %v365
    %v1523 = vunpack.c.l.b16 %v366
    %v1524 = vunpack.c.h.b16 %v366
    %v1525 = vunpack.c.l.b16 %v367
    %v1526 = vunpack.c.h.b16 %v367
    %v1527 = vunpack.c.l.b16 %v368
    %v1528 = vunpack.c.h.b16 %v368
    %v1529 = vunpack.c.l.b16 %v369
    %v1530 = vunpack.c.h.b16 %v369
    %v1531 = vunpack.c.l.b16 %v370
    %v1532 = vunpack.c.h.b16 %v370
    %v1533 = vunpack.c.l.b16 %v371
    %v1534 = vunpack.c.h.b16 %v371
    %v1535 = vunpack.c.l.b16 %v372
    %v1536 = vunpack.c.h.b16 %v372
    %v1537 = vunpack.c.l.b16 %v373
    %v1538 = vunpack.c.h.b16 %v373
    %v1539 = vunpack.c.l.b16 %v374
    %v1540 = vunpack.c.h.b16 %v374
    %v1541 = vunpack.c.l.b16 %v375
    %v1542 = vunpack.c.h.b16 %v375
    %v1543 = vunpack.c.l.b16 %v376
    %v1544 = vunpack.c.h.b16 %v376
    %v1545 = vunpack.c.l.b16 %v377
    %v1546 = vunpack.c.h.b16 %v377
    %v1547 = vunpack.c.l.b16 %v378
    %v1548 = vunpack.c.h.b16 %v378
    %v1549 = vunpack.c.l.b16 %v379
    %v1550 = vunpack.c.h.b16 %v379
    %v1551 = vunpack.c.l.b16 %v380
    %v1552 = vunpack.c.h.b16 %v380
    %v1553 = vunpack.c.l.b16 %v381
    %v1554 = vunpack.c.h.b16 %v381
    %v1555 = vunpack.c.l.b16 %v382
    %v1556 = vunpack.c.h.b16 %v382
    %v1557 = vunpack.c.l.b16 %v383
    %v1558 = vunpack.c.h.b16 %v383
    %v1559 = vunpack.c.l.b16 %v384
    %v1560 = vunpack.c.h.b16 %v384
    %v1561 = vunpack.c.l.b16 %v385
    %v1562 = vunpack.c.h.b16 %v385
    %v1563 = vunpack.c.l.b16 %v386
    %v1564 = vunpack.c.h.b16 %v386
    %v1565 = vunpack.c.l.b16 %v387
    %v1566 = vunpack.c.h.b16 %v387
    %v1567 = vunpack.c.l.b16 %v388
    %v1568 = vunpack.c.h.b16 %v388
    %v1569 = vunpack.c.l.b16 %v389
    %v1570 = vunpack.c.h.b16 %v389
    %v1571 = vunpack.c.l.b16 %v390
    %v1572 = vunpack.c.h.b16 %v390
    %v1573 = vunpack.c.l.b16 %v391
    %v1574 = vunpack.c.h.b16 %v391
    %v1575 = vunpack.c.l.b16 %v392
    %v1576 = vunpack.c.h.b16 %v392
    %v1577 = vunpack.c.l.b16 %v393
    %v1578 = vunpack.c.h.b16 %v393
    %v1579 = vunpack.c.l.b16 %v394
    %v1580 = vunpack.c.h.b16 %v394
    %v1581 = vunpack.c.l.b16 %v395
    %v1582 = vunpack.c.h.b16 %v395
    %v1583 = vunpack.c.l.b16 %v396
    %v1584 = vunpack.c.h.b16 %v396
    %v1585 = vunpack.c.l.b16 %v397
    %v1586 = vunpack.c.h.b16 %v397
    %v1587 = vunpack.c.l.b16 %v398
    %v1588 = vunpack.c.h.b16 %v398
    %v1589 = vunpack.c.l.b16 %v399
    %v1590 = vunpack.c.h.b16 %v399
    %v1591 = vunpack.c.l.b16 %v400
    %v1592 = vunpack.c.h.b16 %v400
    %v1593 = vunpack.c.l.b16 %v401
    %v1594 = vunpack.c.h.b16 %v401
    %v1595 = vunpack.c.l.b16 %v402
    %v1596 = vunpack.c.h.b16 %v402
    %v1597 = vunpack.c.l.b16 %v403
    %v1598 = vunpack.c.h.b16 %v403
    %v1599 = vunpack.c.l.b16 %v404
    %v1600 = vunpack.c.h.b16 %v404
    %v1601 = vunpack.c.l.b16 %v405
    %v1602 = vunpack.c.h.b16 %v405
    %v1603 = vunpack.c.l.b16 %v406
    %v1604 = vunpack.c.h.b16 %v406
    %v1605 = vunpack.c.l.b16 %v407
    %v1606 = vunpack.c.h.b16 %v407
    %v1607 = vunpack.c.l.b16 %v408
    %v1608 = vunpack.c.h.b16 %v408
    %v1609 = vunpack.c.l.b16 %v409
    %v1610 = vunpack.c.h.b16 %v409
    %v1611 = vunpack.c.l.b16 %v410
    %v1612 = vunpack.c.h.b16 %v410
    %v1613 = vunpack.c.l.b16 %v411
    %v1614 = vunpack.c.h.b16 %v411
    %v1615 = vunpack.c.l.b16 %v412
    %v1616 = vunpack.c.h.b16 %v412
    %v1617 = vunpack.c.l.b16 %v413
    %v1618 = vunpack.c.h.b16 %v413
    %v1619 = vunpack.c.l.b16 %v414
    %v1620 = vunpack.c.h.b16 %v414
    %v1621 = vunpack.c.l.b16 %v415
    %v1622 = vunpack.c.h.b16 %v415
    %v1623 = vunpack.c.l.b16 %v416
    %v1624 = vunpack.c.h.b16 %v416
    %v1625 = vunpack.c.l.b16 %v417
    %v1626 = vunpack.c.h.b16 %v417
    %v1627 = vunpack.c.l.b16 %v418
    %v1628 = vunpack.c.h.b16 %v418
    %v1629 = vunpack.c.l.b16 %v419
    %v1630 = vunpack.c.h.b16 %v419
    %v1631 = vunpack.c.l.b16 %v420
    %v1632 = vunpack.c.h.b16 %v420
    %v1633 = vunpack.c.l.b16 %v421
    %v1634 = vunpack.c.h.b16 %v421
    %v1635 = vunpack.c.l.b16 %v422
    %v1636 = vunpack.c.h.b16 %v422
    %v1637 = vunpack.c.l.b16 %v423
    %v1638 = vunpack.c.h.b16 %v423
    %v1639 = vunpack.c.l.b16 %v424
    %v1640 = vunpack.c.h.b16 %v424
    %v1641 = vunpack.c.l.b16 %v425
    %v1642 = vunpack.c.h.b16 %v425
    %v1643 = vunpack.c.l.b16 %v426
    %v1644 = vunpack.c.h.b16 %v426
    %v1645 = vunpack.c.l.b16 %v427
    %v1646 = vunpack.c.h.b16 %v427
    %v1647 = vunpack.c.l.b16 %v428
    %v1648 = vunpack.c.h.b16 %v428
    %v1649 = vunpack.c.l.b16 %v429
    %v1650 = vunpack.c.h.b16 %v429
    %v1651 = vunpack.c.l.b16 %v430
    %v1652 = vunpack.c.h.b16 %v430
    %v1653 = vunpack.c.l.b16 %v431
    %v1654 = vunpack.c.h.b16 %v431
    %v1655 = vunpack.c.l.b16 %v432
    %v1656 = vunpack.c.h.b16 %v432
    %v1657 = vunpack.c.l.b16 %v433
    %v1658 = vunpack.c.h.b16 %v433
    %v1659 = vunpack.c.l.b16 %v434
    %v1660 = vunpack.c.h.b16 %v434
    %v1661 = vunpack.c.l.b16 %v435
    %v1662 = vunpack.c.h.b16 %v435
    %v1663 = vunpack.c.l.b16 %v436
    %v1664 = vunpack.c.h.b16 %v436
    %v1665 = vunpack.c.l.b16 %v437
    %v1666 = vunpack.c.h.b16 %v437
    %v1667 = vunpack.c.l.b16 %v438
    %v1668 = vunpack.c.h.b16 %v438
    %v1669 = vunpack.c.l.b16 %v439
    %v1670 = vunpack.c.h.b16 %v439
    %v1671 = vunpack.c.l.b16 %v440
    %v1672 = vunpack.c.h.b16 %v440
    %v1673 = vunpack.c.l.b16 %v441
    %v1674 = vunpack.c.h.b16 %v441
    %v1675 = vunpack.c.l.b16 %v442
    %v1676 = vunpack.c.h.b16 %v442
    %v1677 = vunpack.c.l.b16 %v443
    %v1678 = vunpack.c.h.b16 %v443
    %v1679 = vunpack.c.l.b16 %v444
    %v1680 = vunpack.c.h.b16 %v444
    %v1681 = vunpack.c.l.b16 %v445
    %v1682 = vunpack.c.h.b16 %v445
    %v1683 = vunpack.c.l.b16 %v446
    %v1684 = vunpack.c.h.b16 %v446
    %v1685 = vunpack.c.l.b16 %v447
    %v1686 = vunpack.c.h.b16 %v447
    %v1687 = vunpack.c.l.b16 %v448
    %v1688 = vunpack.c.h.b16 %v448
    %v1689 = vunpack.c.l.b16 %v449
    %v1690 = vunpack.c.h.b16 %v449
    %v1691 = vunpack.c.l.b16 %v450
    %v1692 = vunpack.c.h.b16 %v450
    %v1693 = vunpack.c.l.b16 %v451
    %v1694 = vunpack.c.h.b16 %v451
    %v1695 = vunpack.c.l.b16 %v452
    %v1696 = vunpack.c.h.b16 %v452
    %v1697 = vunpack.c.l.b16 %v453
    %v1698 = vunpack.c.h.b16 %v453
    %v1699 = vunpack.c.l.b16 %v454
    %v1700 = vunpack.c.h.b16 %v454
    %v1701 = vunpack.c.l.b16 %v455
    %v1702 = vunpack.c.h.b16 %v455
    %v1703 = vunpack.c.l.b16 %v456
    %v1704 = vunpack.c.h.b16 %v456
    %v1705 = vunpack.c.l.b16 %v457
    %v1706 = vunpack.c.h.b16 %v457
    %v1707 = vunpack.c.l.b16 %v458
    %v1708 = vunpack.c.h.b16 %v458
    %v1709 = vunpack.c.l.b16 %v459
    %v1710 = vunpack.c.h.b16 %v459
    %v1711 = vunpack.c.l.b16 %v460
    %v1712 = vunpack.c.h.b16 %v460
    %v1713 = vunpack.c.l.b16 %v461
    %v1714 = vunpack.c.h.b16 %v461
    %v1715 = vunpack.c.l.b16 %v462
    %v1716 = vunpack.c.h.b16 %v462
    %v1717 = vunpack.c.l.b16 %v463
    %v1718 = vunpack.c.h.b16 %v463
    %v1719 = vunpack.c.l.b16 %v464
    %v1720 = vunpack.c.h.b16 %v464
    %v1721 = vunpack.c.l.b16 %v465
    %v1722 = vunpack.c.h.b16 %v465
    %v1723 = vunpack.c.l.b16 %v466
    %v1724 = vunpack.c.h.b16 %v466
    %v1725 = vunpack.c.l.b16 %v467
    %v1726 = vunpack.c.h.b16 %v467
    %v1727 = vunpack.c.l.b16 %v468
    %v1728 = vunpack.c.h.b16 %v468
    %v1729 = vunpack.c.l.b16 %v469
    %v1730 = vunpack.c.h.b16 %v469
    %v1731 = vunpack.c.l.b16 %v470
    %v1732 = vunpack.c.h.b16 %v470
    %v1733 = vunpack.c.l.b16 %v471
    %v1734 = vunpack.c.h.b16 %v471
    %v1735 = vunpack.c.l.b16 %v472
    %v1736 = vunpack.c.h.b16 %v472
    %v1737 = vunpack.c.l.b16 %v473
    %v1738 = vunpack.c.h.b16 %v473
    %v1739 = vunpack.c.l.b16 %v474
    %v1740 = vunpack.c.h.b16 %v474
    %v1741 = vunpack.c.l.b16 %v475
    %v1742 = vunpack.c.h.b16 %v475
    %v1743 = vunpack.c.l.b16 %v476
    %v1744 = vunpack.c.h.b16 %v476
    %v1745 = vunpack.c.l.b16 %v477
    %v1746 = vunpack.c.h.b16 %v477
    %v1747 = vunpack.c.l.b16 %v478
    %v1748 = vunpack.c.h.b16 %v478
    %v1749 = vunpack.c.l.b16 %v479
    %v1750 = vunpack.c.h.b16 %v479
    %v1751 = vunpack.c.l.b16 %v480
    %v1752 = vunpack.c.h.b16 %v480
    %v1753 = vunpack.c.l.b16 %v481
    %v1754 = vunpack.c.h.b16 %v481
    %v1755 = vunpack.c.l.b16 %v482
    %v1756 = vunpack.c.h.b16 %v482
    %v1757 = vunpack.c.l.b16 %v483
    %v1758 = vunpack.c.h.b16 %v483
    %v1759 = vunpack.c.l.b16 %v484
    %v1760 = vunpack.c.h.b16 %v484
    %v1761 = vunpack.c.l.b16 %v485
    %v1762 = vunpack.c.h.b16 %v485
    %v1763 = vunpack.c.l.b16 %v486
    %v1764 = vunpack.c.h.b16 %v486
    %v1765 = vunpack.c.l.b16 %v487
    %v1766 = vunpack.c.h.b16 %v487
    %v1767 = vunpack.c.l.b16 %v488
    %v1768 = vunpack.c.h.b16 %v488
    %v1769 = vunpack.c.l.b16 %v489
    %v1770 = vunpack.c.h.b16 %v489
    %v1771 = vunpack.c.l.b16 %v490
    %v1772 = vunpack.c.h.b16 %v490
    %v1773 = vunpack.c.l.b16 %v491
    %v1774 = vunpack.c.h.b16 %v491
    %v1775 = vunpack.c.l.b16 %v492
    %v1776 = vunpack.c.h.b16 %v492
    %v1777 = vunpack.c.l.b16 %v493
    %v1778 = vunpack.c.h.b16 %v493
    %v1779 = vunpack.c.l.b16 %v494
    %v1780 = vunpack.c.h.b16 %v494
    %v1781 = vunpack.c.l.b16 %v495
    %v1782 = vunpack.c.h.b16 %v495
    %v1783 = vunpack.c.l.b16 %v496
    %v1784 = vunpack.c.h.b16 %v496
    %v1785 = vunpack.c.l.b16 %v497
    %v1786 = vunpack.c.h.b16 %v497
    %v1787 = vunpack.c.l.b16 %v498
    %v1788 = vunpack.c.h.b16 %v498
    %v1789 = vunpack.c.l.b16 %v499
    %v1790 = vunpack.c.h.b16 %v499
    %v1791 = vunpack.c.l.b16 %v500
    %v1792 = vunpack.c.h.b16 %v500
    %v1793 = vunpack.c.l.b16 %v501
    %v1794 = vunpack.c.h.b16 %v501
    %v1795 = vunpack.c.l.b16 %v502
    %v1796 = vunpack.c.h.b16 %v502
    %v1797 = vunpack.c.l.b16 %v503
    %v1798 = vunpack.c.h.b16 %v503
    %v1799 = vunpack.c.l.b16 %v504
    %v1800 = vunpack.c.h.b16 %v504
    %v1801 = vunpack.c.l.b16 %v505
    %v1802 = vunpack.c.h.b16 %v505
    %v1803 = vunpack.c.l.b16 %v506
    %v1804 = vunpack.c.h.b16 %v506
    %v1805 = vunpack.c.l.b16 %v507
    %v1806 = vunpack.c.h.b16 %v507
    %v1807 = vunpack.c.l.b16 %v508
    %v1808 = vunpack.c.h.b16 %v508
    %v1809 = vunpack.c.l.b16 %v509
    %v1810 = vunpack.c.h.b16 %v509
    %v1811 = vunpack.c.l.b16 %v510
    %v1812 = vunpack.c.h.b16 %v510
    %v1813 = vunpack.c.l.b16 %v511
    %v1814 = vunpack.c.h.b16 %v511
    %v1815 = vunpack.c.l.b16 %v512
    %v1816 = vunpack.c.h.b16 %v512
    %v1817 = vunpack.c.l.b16 %v513
    %v1818 = vunpack.c.h.b16 %v513
    %v1819 = vunpack.c.l.b16 %v514
    %v1820 = vunpack.c.h.b16 %v514
    %v1821 = vunpack.c.l.b16 %v515
    %v1822 = vunpack.c.h.b16 %v515
    %v1823 = vunpack.c.l.b16 %v516
    %v1824 = vunpack.c.h.b16 %v516
    %v1825 = vunpack.c.l.b16 %v517
    %v1826 = vunpack.c.h.b16 %v517
    %v1827 = vunpack.c.l.b16 %v518
    %v1828 = vunpack.c.h.b16 %v518
    %v1829 = vunpack.c.l.b16 %v519
    %v1830 = vunpack.c.h.b16 %v519
    %v1831 = vunpack.c.l.b16 %v520
    %v1832 = vunpack.c.h.b16 %v520
    %v1833 = vunpack.c.l.b16 %v521
    %v1834 = vunpack.c.h.b16 %v521
    %v1835 = vunpack.c.l.b16 %v522
    %v1836 = vunpack.c.h.b16 %v522
    %v1837 = vunpack.c.l.b16 %v523
    %v1838 = vunpack.c.h.b16 %v523
    %v1839 = vunpack.c.l.b16 %v524
    %v1840 = vunpack.c.h.b16 %v524
    %v1841 = vunpack.c.l.b16 %v525
    %v1842 = vunpack.c.h.b16 %v525
    %v1843 = vunpack.c.l.b16 %v526
    %v1844 = vunpack.c.h.b16 %v526
    %v1845 = vunpack.c.l.b16 %v527
    %v1846 = vunpack.c.h.b16 %v527
    %v1847 = vunpack.c.l.b16 %v528
    %v1848 = vunpack.c.h.b16 %v528
    %v1849 = vunpack.c.l.b16 %v529
    %v1850 = vunpack.c.h.b16 %v529
    %v1851 = vunpack.c.l.b16 %v530
    %v1852 = vunpack.c.h.b16 %v530
    %v1853 = vunpack.c.l.b16 %v531
    %v1854 = vunpack.c.h.b16 %v531
    %v1855 = vunpack.c.l.b16 %v532
    %v1856 = vunpack.c.h.b16 %v532
    %v1857 = vunpack.c.l.b16 %v533
    %v1858 = vunpack.c.h.b16 %v533
    %v1859 = vunpack.c.l.b16 %v534
    %v1860 = vunpack.c.h.b16 %v534
    %v1861 = vunpack.c.l.b16 %v535
    %v1862 = vunpack.c.h.b16 %v535
    %v1863 = vunpack.c.l.b16 %v536
    %v1864 = vunpack.c.h.b16 %v536
    %v1865 = vunpack.c.l.b16 %v537
    %v1866 = vunpack.c.h.b16 %v537
    %v1867 = vunpack.c.l.b16 %v538
    %v1868 = vunpack.c.h.b16 %v538
    %v1869 = vunpack.c.l.b16 %v539
    %v1870 = vunpack.c.h.b16 %v539
    %v1871 = vunpack.c.l.b16 %v540
    %v1872 = vunpack.c.h.b16 %v540
    %v1873 = vunpack.c.l.b16 %v541
    %v1874 = vunpack.c.h.b16 %v541
    %v1875 = vunpack.c.l.b16 %v542
    %v1876 = vunpack.c.h.b16 %v542
    %v1877 = vunpack.c.l.b16 %v543
    %v1878 = vunpack.c.h.b16 %v543
    %v1879 = vunpack.c.l.b16 %v544
    %v1880 = vunpack.c.h.b16 %v544
    %v1881 = vunpack.c.l.b16 %v545
    %v1882 = vunpack.c.h.b16 %v545
    %v1883 = vunpack.c.l.b16 %v546
    %v1884 = vunpack.c.h.b16 %v546
    %v1885 = vunpack.c.l.b16 %v547
    %v1886 = vunpack.c.h.b16 %v547
    %v1887 = vunpack.c.l.b16 %v548
    %v1888 = vunpack.c.h.b16 %v548
    %v1889 = vunpack.c.l.b16 %v549
    %v1890 = vunpack.c.h.b16 %v549
    %v1891 = vunpack.c.l.b16 %v550
    %v1892 = vunpack.c.h.b16 %v550
    %v1893 = vunpack.c.l.b16 %v551
    %v1894 = vunpack.c.h.b16 %v551
    %v1895 = vunpack.c.l.b16 %v552
    %v1896 = vunpack.c.h.b16 %v552
    %v1897 = vunpack.c.l.b16 %v553
    %v1898 = vunpack.c.h.b16 %v553
    %v1899 = vunpack.c.l.b16 %v554
    %v1900 = vunpack.c.h.b16 %v554
    %v1901 = vunpack.c.l.b16 %v555
    %v1902 = vunpack.c.h.b16 %v555
    %v1903 = vunpack.c.l.b16 %v556
    %v1904 = vunpack.c.h.b16 %v556
    %v1905 = vunpack.c.l.b16 %v557
    %v1906 = vunpack.c.h.b16 %v557
    %v1907 = vunpack.c.l.b16 %v558
    %v1908 = vunpack.c.h.b16 %v558
    %v1909 = vunpack.c.l.b16 %v559
    %v1910 = vunpack.c.h.b16 %v559
    %v1911 = vunpack.c.l.b16 %v560
    %v1912 = vunpack.c.h.b16 %v560
    %v1913 = vunpack.c.l.b16 %v561
    %v1914 = vunpack.c.h.b16 %v561
    %v1915 = vunpack.c.l.b16 %v562
    %v1916 = vunpack.c.h.b16 %v562
    %v1917 = vunpack.c.l.b16 %v563
    %v1918 = vunpack.c.h.b16 %v563
    %v1919 = vunpack.c.l.b16 %v564
    %v1920 = vunpack.c.h.b16 %v564
    %v1921 = vunpack.c.l.b16 %v565
    %v1922 = vunpack.c.h.b16 %v565
    %v1923 = vunpack.c.l.b16 %v566
    %v1924 = vunpack.c.h.b16 %v566
    %v1925 = vunpack.c.l.b16 %v567
    %v1926 = vunpack.c.h.b16 %v567
    %v1927 = vunpack.c.l.b16 %v568
    %v1928 = vunpack.c.h.b16 %v568
    %v1929 = vunpack.c.l.b16 %v569
    %v1930 = vunpack.c.h.b16 %v569
    %v1931 = vunpack.c.l.b16 %v570
    %v1932 = vunpack.c.h.b16 %v570
    %v1933 = vunpack.c.l.b16 %v571
    %v1934 = vunpack.c.h.b16 %v571
    %v1935 = vunpack.c.l.b16 %v572
    %v1936 = vunpack.c.h.b16 %v572
    %v1937 = vunpack.c.l.b16 %v573
    %v1938 = vunpack.c.h.b16 %v573
    %v1939 = vunpack.c.l.b16 %v574
    %v1940 = vunpack.c.h.b16 %v574
    %v1941 = vunpack.c.l.b16 %v575
    %v1942 = vunpack.c.h.b16 %v575
    %v1943 = vunpack.c.l.b16 %v576
    %v1944 = vunpack.c.h.b16 %v576
    %v1945 = vunpack.c.l.b16 %v577
    %v1946 = vunpack.c.h.b16 %v577
    %v1947 = vunpack.c.l.b16 %v578
    %v1948 = vunpack.c.h.b16 %v578
    %v1949 = vunpack.c.l.b16 %v579
    %v1950 = vunpack.c.h.b16 %v579
    %v1951 = vunpack.c.l.b16 %v580
    %v1952 = vunpack.c.h.b16 %v580
    %v1953 = vunpack.c.l.b16 %v581
    %v1954 = vunpack.c.h.b16 %v581
    %v1955 = vunpack.c.l.b16 %v582
    %v1956 = vunpack.c.h.b16 %v582
    %v1957 = vunpack.c.l.b16 %v583
    %v1958 = vunpack.c.h.b16 %v583
    %v1959 = vunpack.c.l.b16 %v584
    %v1960 = vunpack.c.h.b16 %v584
    %v1961 = vunpack.c.l.b16 %v585
    %v1962 = vunpack.c.h.b16 %v585
    %v1963 = vunpack.c.l.b16 %v586
    %v1964 = vunpack.c.h.b16 %v586
    %v1965 = vunpack.c.l.b16 %v587
    %v1966 = vunpack.c.h.b16 %v587
    %v1967 = vunpack.c.l.b16 %v588
    %v1968 = vunpack.c.h.b16 %v588
    %v1969 = vunpack.c.l.b16 %v589
    %v1970 = vunpack.c.h.b16 %v589
    %v1971 = vunpack.c.l.b16 %v590
    %v1972 = vunpack.c.h.b16 %v590
    %v1973 = vunpack.c.l.b16 %v591
    %v1974 = vunpack.c.h.b16 %v591
    %v1975 = vunpack.c.l.b16 %v592
    %v1976 = vunpack.c.h.b16 %v592
    %v1977 = vunpack.c.l.b16 %v593
    %v1978 = vunpack.c.h.b16 %v593
    %v1979 = vunpack.c.l.b16 %v594
    %v1980 = vunpack.c.h.b16 %v594
    %v1981 = vpack.c.b16 %v1093, %v1085
    %v1982 = vpack.c.b16 %v1094, %v1086
    %v1983 = vpack.c.b16 %v1095, %v1087
    %v1984 = vpack.c.b16 %v1096, %v1088
    %v1985 = vpack.c.b16 %v1097, %v1089
    %v1986 = vpack.c.b16 %v1098, %v1090
    %v1987 = vpack.c.b16 %v1099, %v1091
    %v1988 = vpack.c.b16 %v1100, %v1092
    %v1989 = vpack.c.b16 %v1109, %v1101
    %v1990 = vpack.c.b16 %v1110, %v1102
    %v1991 = vpack.c.b16 %v1111, %v1103
    %v1992 = vpack.c.b16 %v1112, %v1104
    %v1993 = vpack.c.b16 %v1113, %v1105
    %v1994 = vpack.c.b16 %v1114, %v1106
    %v1995 = vpack.c.b16 %v1115, %v1107
    %v1996 = vpack.c.b16 %v1116, %v1108
    %v1997 = vpack.c.b16 %v1125, %v1117
    %v1998 = vpack.c.b16 %v1126, %v1118
    %v1999 = vpack.c.b16 %v1127, %v1119
    %v2000 = vpack.c.b16 %v1128, %v1120
    %v2001 = vpack.c.b16 %v1129, %v1121
    %v2002 = vpack.c.b16 %v1130, %v1122
    %v2003 = vpack.c.b16 %v1131, %v1123
    %v2004 = vpack.c.b16 %v1132, %v1124
    %v2005 = vpack.c.b16 %v1141, %v1133
    %v2006 = vpack.c.b16 %v1142, %v1134
    %v2007 = vpack.c.b16 %v1143, %v1135
    %v2008 = vpack.c.b16 %v1144, %v1136
    %v2009 = vpack.c.b16 %v1145, %v1137
    %v2010 = vpack.c.b16 %v1146, %v1138
    %v2011 = vpack.c.b16 %v1147, %v1139
    %v2012 = vpack.c.b16 %v1148, %v1140
    %v2013 = vpack.c.b16 %v1157, %v1149
    %v2014 = vpack.c.b16 %v1158, %v1150
    %v2015 = vpack.c.b16 %v1159, %v1151
    %v2016 = vpack.c.b16 %v1160, %v1152
    %v2017 = vpack.c.b16 %v1161, %v1153
    %v2018 = vpack.c.b16 %v1162, %v1154
    %v2019 = vpack.c.b16 %v1163, %v1155
    %v2020 = vpack.c.b16 %v1164, %v1156
    %v2021 = vpack.c.b16 %v1173, %v1165
    %v2022 = vpack.c.b16 %v1174, %v1166
    %v2023 = vpack.c.b16 %v1175, %v1167
    %v2024 = vpack.c.b16 %v1176, %v1168
    %v2025 = vpack.c.b16 %v1177, %v1169
    %v2026 = vpack.c.b16 %v1178, %v1170
    %v2027 = vpack.c.b16 %v1179, %v1171
    %v2028 = vpack.c.b16 %v1180, %v1172
    %v2029 = vpack.c.b16 %v1189, %v1181
    %v2030 = vpack.c.b16 %v1190, %v1182
    %v2031 = vpack.c.b16 %v1191, %v1183
    %v2032 = vpack.c.b16 %v1192, %v1184
    %v2033 = vpack.c.b16 %v1193, %v1185
    %v2034 = vpack.c.b16 %v1194, %v1186
    %v2035 = vpack.c.b16 %v1195, %v1187
    %v2036 = vpack.c.b16 %v1196, %v1188
    %v2037 = vpack.c.b16 %v1205, %v1197
    %v2038 = vpack.c.b16 %v1206, %v1198
    %v2039 = vpack.c.b16 %v1207, %v1199
    %v2040 = vpack.c.b16 %v1208, %v1200
    %v2041 = vpack.c.b16 %v1209, %v1201
    %v2042 = vpack.c.b16 %v1210, %v1202
    %v2043 = vpack.c.b16 %v1211, %v1203
    %v2044 = vpack.c.b16 %v1212, %v1204
    %v2045 = vpack.c.b16 %v1221, %v1213
    %v2046 = vpack.c.b16 %v1222, %v1214
    %v2047 = vpack.c.b16 %v1223, %v1215
    %v2048 = vpack.c.b16 %v1224, %v1216
    %v2049 = vpack.c.b16 %v1225, %v1217
    %v2050 = vpack.c.b16 %v1226, %v1218
    %v2051 = vpack.c.b16 %v1227, %v1219
    %v2052 = vpack.c.b16 %v1228, %v1220
    %v2053 = vpack.c.b16 %v1237, %v1229
    %v2054 = vpack.c.b16 %v1238, %v1230
    %v2055 = vpack.c.b16 %v1239, %v1231
    %v2056 = vpack.c.b16 %v1240, %v1232
    %v2057 = vpack.c.b16 %v1241, %v1233
    %v2058 = vpack.c.b16 %v1242, %v1234
    %v2059 = vpack.c.b16 %v1243, %v1235
    %v2060 = vpack.c.b16 %v1244, %v1236
    %v2061 = vpack.c.b16 %v1253, %v1245
    %v2062 = vpack.c.b16 %v1254, %v1246
    %v2063 = vpack.c.b16 %v1255, %v1247
    %v2064 = vpack.c.b16 %v1256, %v1248
    %v2065 = vpack.c.b16 %v1257, %v1249
    %v2066 = vpack.c.b16 %v1258, %v1250
    %v2067 = vpack.c.b16 %v1259, %v1251
    %v2068 = vpack.c.b16 %v1260, %v1252
    %v2069 = vpack.c.b16 %v1269, %v1261
    %v2070 = vpack.c.b16 %v1270, %v1262
    %v2071 = vpack.c.b16 %v1271, %v1263
    %v2072 = vpack.c.b16 %v1272, %v1264
    %v2073 = vpack.c.b16 %v1273, %v1265
    %v2074 = vpack.c.b16 %v1274, %v1266
    %v2075 = vpack.c.b16 %v1275, %v1267
    %v2076 = vpack.c.b16 %v1276, %v1268
    %v2077 = vpack.c.b16 %v1285, %v1277
    %v2078 = vpack.c.b16 %v1286, %v1278
    %v2079 = vpack.c.b16 %v1287, %v1279
    %v2080 = vpack.c.b16 %v1288, %v1280
    %v2081 = vpack.c.b16 %v1289, %v1281
    %v2082 = vpack.c.b16 %v1290, %v1282
    %v2083 = vpack.c.b16 %v1291, %v1283
    %v2084 = vpack.c.b16 %v1292, %v1284
    %v2085 = vpack.c.b16 %v1301, %v1293
    %v2086 = vpack.c.b16 %v1302, %v1294
    %v2087 = vpack.c.b16 %v1303, %v1295
    %v2088 = vpack.c.b16 %v1304, %v1296
    %v2089 = vpack.c.b16 %v1305, %v1297
    %v2090 = vpack.c.b16 %v1306, %v1298
    %v2091 = vpack.c.b16 %v1307, %v1299
    %v2092 = vpack.c.b16 %v1308, %v1300
    %v2093 = vpack.c.b16 %v1317, %v1309
    %v2094 = vpack.c.b16 %v1318, %v1310
    %v2095 = vpack.c.b16 %v1319, %v1311
    %v2096 = vpack.c.b16 %v1320, %v1312
    %v2097 = vpack.c.b16 %v1321, %v1313
    %v2098 = vpack.c.b16 %v1322, %v1314
    %v2099 = vpack.c.b16 %v1323, %v1315
    %v2100 = vpack.c.b16 %v1324, %v1316
    %v2101 = vpack.c.b16 %v1333, %v1325
    %v2102 = vpack.c.b16 %v1334, %v1326
    %v2103 = vpack.c.b16 %v1335, %v1327
    %v2104 = vpack.c.b16 %v1336, %v1328
    %v2105 = vpack.c.b16 %v1337, %v1329
    %v2106 = vpack.c.b16 %v1338, %v1330
    %v2107 = vpack.c.b16 %v1339, %v1331
    %v2108 = vpack.c.b16 %v1340, %v1332
    %v2109 = vpack.c.b16 %v1349, %v1341
    %v2110 = vpack.c.b16 %v1350, %v1342
    %v2111 = vpack.c.b16 %v1351, %v1343
    %v2112 = vpack.c.b16 %v1352, %v1344
    %v2113 = vpack.c.b16 %v1353, %v1345
    %v2114 = vpack.c.b16 %v1354, %v1346
    %v2115 = vpack.c.b16 %v1355, %v1347
    %v2116 = vpack.c.b16 %v1356, %v1348
    %v2117 = vpack.c.b16 %v1365, %v1357
    %v2118 = vpack.c.b16 %v1366, %v1358
    %v2119 = vpack.c.b16 %v1367, %v1359
    %v2120 = vpack.c.b16 %v1368, %v1360
    %v2121 = vpack.c.b16 %v1369, %v1361
    %v2122 = vpack.c.b16 %v1370, %v1362
    %v2123 = vpack.c.b16 %v1371, %v1363
    %v2124 = vpack.c.b16 %v1372, %v1364
    %v2125 = vpack.c.b16 %v1381, %v1373
    %v2126 = vpack.c.b16 %v1382, %v1374
    %v2127 = vpack.c.b16 %v1383, %v1375
    %v2128 = vpack.c.b16 %v1384, %v1376
    %v2129 = vpack.c.b16 %v1385, %v1377
    %v2130 = vpack.c.b16 %v1386, %v1378
    %v2131 = vpack.c.b16 %v1387, %v1379
    %v2132 = vpack.c.b16 %v1388, %v1380
    %v2133 = vpack.c.b16 %v1397, %v1389
    %v2134 = vpack.c.b16 %v1398, %v1390
    %v2135 = vpack.c.b16 %v1399, %v1391
    %v2136 = vpack.c.b16 %v1400, %v1392
    %v2137 = vpack.c.b16 %v1401, %v1393
    %v2138 = vpack.c.b16 %v1402, %v1394
    %v2139 = vpack.c.b16 %v1403, %v1395
    %v2140 = vpack.c.b16 %v1404, %v1396
    %v2141 = vpack.c.b16 %v1413, %v1405
    %v2142 = vpack.c.b16 %v1414, %v1406
    %v2143 = vpack.c.b16 %v1415, %v1407
    %v2144 = vpack.c.b16 %v1416, %v1408
    %v2145 = vpack.c.b16 %v1417, %v1409
    %v2146 = vpack.c.b16 %v1418, %v1410
    %v2147 = vpack.c.b16 %v1419, %v1411
    %v2148 = vpack.c.b16 %v1420, %v1412
    %v2149 = vpack.c.b16 %v1429, %v1421
    %v2150 = vpack.c.b16 %v1430, %v1422
    %v2151 = vpack.c.b16 %v1431, %v1423
    %v2152 = vpack.c.b16 %v1432, %v1424
    %v2153 = vpack.c.b16 %v1433, %v1425
    %v2154 = vpack.c.b16 %v1434, %v1426
    %v2155 = vpack.c.b16 %v1435, %v1427
    %v2156 = vpack.c.b16 %v1436, %v1428
    %v2157 = vpack.c.b16 %v1445, %v1437
    %v2158 = vpack.c.b16 %v1446, %v1438
    %v2159 = vpack.c.b16 %v1447, %v1439
    %v2160 = vpack.c.b16 %v1448, %v1440
    %v2161 = vpack.c.b16 %v1449, %v1441
    %v2162 = vpack.c.b16 %v1450, %v1442
    %v2163 = vpack.c.b16 %v1451, %v1443
    %v2164 = vpack.c.b16 %v1452, %v1444
    %v2165 = vpack.c.b16 %v1461, %v1453
    %v2166 = vpack.c.b16 %v1462, %v1454
    %v2167 = vpack.c.b16 %v1463, %v1455
    %v2168 = vpack.c.b16 %v1464, %v1456
    %v2169 = vpack.c.b16 %v1465, %v1457
    %v2170 = vpack.c.b16 %v1466, %v1458
    %v2171 = vpack.c.b16 %v1467, %v1459
    %v2172 = vpack.c.b16 %v1468, %v1460
    %v2173 = vpack.c.b16 %v1477, %v1469
    %v2174 = vpack.c.b16 %v1478, %v1470
    %v2175 = vpack.c.b16 %v1479, %v1471
    %v2176 = vpack.c.b16 %v1480, %v1472
    %v2177 = vpack.c.b16 %v1481, %v1473
    %v2178 = vpack.c.b16 %v1482, %v1474
    %v2179 = vpack.c.b16 %v1483, %v1475
    %v2180 = vpack.c.b16 %v1484, %v1476
    %v2181 = vpack.c.b16 %v1493, %v1485
    %v2182 = vpack.c.b16 %v1494, %v1486
    %v2183 = vpack.c.b16 %v1495, %v1487
    %v2184 = vpack.c.b16 %v1496, %v1488
    %v2185 = vpack.c.b16 %v1497, %v1489
    %v2186 = vpack.c.b16 %v1498, %v1490
    %v2187 = vpack.c.b16 %v1499, %v1491
    %v2188 = vpack.c.b16 %v1500, %v1492
    %v2189 = vpack.c.b16 %v1509, %v1501
    %v2190 = vpack.c.b16 %v1510, %v1502
    %v2191 = vpack.c.b16 %v1511, %v1503
    %v2192 = vpack.c.b16 %v1512, %v1504
    %v2193 = vpack.c.b16 %v1513, %v1505
    %v2194 = vpack.c.b16 %v1514, %v1506
    %v2195 = vpack.c.b16 %v1515, %v1507
    %v2196 = vpack.c.b16 %v1516, %v1508
    %v2197 = vpack.c.b16 %v1525, %v1517
    %v2198 = vpack.c.b16 %v1526, %v1518
    %v2199 = vpack.c.b16 %v1527, %v1519
    %v2200 = vpack.c.b16 %v1528, %v1520
    %v2201 = vpack.c.b16 %v1529, %v1521
    %v2202 = vpack.c.b16 %v1530, %v1522
    %v2203 = vpack.c.b16 %v1531, %v1523
    %v2204 = vpack.c.b16 %v1532, %v1524
    %v2205 = vpack.c.b16 %v1541, %v1533
    %v2206 = vpack.c.b16 %v1542, %v1534
    %v2207 = vpack.c.b16 %v1543, %v1535
    %v2208 = vpack.c.b16 %v1544, %v1536
    %v2209 = vpack.c.b16 %v1545, %v1537
    %v2210 = vpack.c.b16 %v1546, %v1538
    %v2211 = vpack.c.b16 %v1547, %v1539
    %v2212 = vpack.c.b16 %v1548, %v1540
    %v2213 = vpack.c.b16 %v1557, %v1549
    %v2214 = vpack.c.b16 %v1558, %v1550
    %v2215 = vpack.c.b16 %v1559, %v1551
    %v2216 = vpack.c.b16 %v1560, %v1552
    %v2217 = vpack.c.b16 %v1561, %v1553
    %v2218 = vpack.c.b16 %v1562, %v1554
    %v2219 = vpack.c.b16 %v1563, %v1555
    %v2220 = vpack.c.b16 %v1564, %v1556
    %v2221 = vpack.c.b16 %v1573, %v1565
    %v2222 = vpack.c.b16 %v1574, %v1566
    %v2223 = vpack.c.b16 %v1575, %v1567
    %v2224 = vpack.c.b16 %v1576, %v1568
    %v2225 = vpack.c.b16 %v1577, %v1569
    %v2226 = vpack.c.b16 %v1578, %v1570
    %v2227 = vpack.c.b16 %v1579, %v1571
    %v2228 = vpack.c.b16 %v1580, %v1572
    %v2229 = vpack.c.b16 %v1589, %v1581
    %v2230 = vpack.c.b16 %v1590, %v1582
    %v2231 = vpack.c.b16 %v1591, %v1583
    %v2232 = vpack.c.b16 %v1592, %v1584
    %v2233 = vpack.c.b16 %v1593, %v1585
    %v2234 = vpack.c.b16 %v1594, %v1586
    %v2235 = vpack.c.b16 %v1595, %v1587
    %v2236 = vpack.c.b16 %v1596, %v1588
    %v2237 = vpack.c.b16 %v1605, %v1597
    %v2238 = vpack.c.b16 %v1606, %v1598
    %v2239 = vpack.c.b16 %v1607, %v1599
    %v2240 = vpack.c.b16 %v1608, %v1600
    %v2241 = vpack.c.b16 %v1609, %v1601
    %v2242 = vpack.c.b16 %v1610, %v1602
    %v2243 = vpack.c.b16 %v1611, %v1603
    %v2244 = vpack.c.b16 %v1612, %v1604
    %v2245 = vpack.c.b16 %v1621, %v1613
    %v2246 = vpack.c.b16 %v1622, %v1614
    %v2247 = vpack.c.b16 %v1623, %v1615
    %v2248 = vpack.c.b16 %v1624, %v1616
    %v2249 = vpack.c.b16 %v1625, %v1617
    %v2250 = vpack.c.b16 %v1626, %v1618
    %v2251 = vpack.c.b16 %v1627, %v1619
    %v2252 = vpack.c.b16 %v1628, %v1620
    %v2253 = vpack.c.b16 %v1637, %v1629
    %v2254 = vpack.c.b16 %v1638, %v1630
    %v2255 = vpack.c.b16 %v1639, %v1631
    %v2256 = vpack.c.b16 %v1640, %v1632
    %v2257 = vpack.c.b16 %v1641, %v1633
    %v2258 = vpack.c.b16 %v1642, %v1634
    %v2259 = vpack.c.b16 %v1643, %v1635
    %v2260 = vpack.c.b16 %v1644, %v1636
    %v2261 = vpack.c.b16 %v1653, %v1645
    %v2262 = vpack.c.b16 %v1654, %v1646
    %v2263 = vpack.c.b16 %v1655, %v1647
    %v2264 = vpack.c.b16 %v1656, %v1648
    %v2265 = vpack.c.b16 %v1657, %v1649
    %v2266 = vpack.c.b16 %v1658, %v1650
    %v2267 = vpack.c.b16 %v1659, %v1651
    %v2268 = vpack.c.b16 %v1660, %v1652
    %v2269 = vpack.c.b16 %v1669, %v1661
    %v2270 = vpack.c.b16 %v1670, %v1662
    %v2271 = vpack.c.b16 %v1671, %v1663
    %v2272 = vpack.c.b16 %v1672, %v1664
    %v2273 = vpack.c.b16 %v1673, %v1665
    %v2274 = vpack.c.b16 %v1674, %v1666
    %v2275 = vpack.c.b16 %v1675, %v1667
    %v2276 = vpack.c.b16 %v1676, %v1668
    %v2277 = vpack.c.b16 %v1685, %v1677
    %v2278 = vpack.c.b16 %v1686, %v1678
    %v2279 = vpack.c.b16 %v1687, %v1679
    %v2280 = vpack.c.b16 %v1688, %v1680
    %v2281 = vpack.c.b16 %v1689, %v1681
    %v2282 = vpack.c.b16 %v1690, %v1682
    %v2283 = vpack.c.b16 %v1691, %v1683
    %v2284 = vpack.c.b16 %v1692, %v1684
    %v2285 = vpack.c.b16 %v1701, %v1693
    %v2286 = vpack.c.b16 %v1702, %v1694
    %v2287 = vpack.c.b16 %v1703, %v1695
    %v2288 = vpack.c.b16 %v1704, %v1696
    %v2289 = vpack.c.b16 %v1705, %v1697
    %v2290 = vpack.c.b16 %v1706, %v1698
    %v2291 = vpack.c.b16 %v1707, %v1699
    %v2292 = vpack.c.b16 %v1708, %v1700
    %v2293 = vpack.c.b16 %v1717, %v1709
    %v2294 = vpack.c.b16 %v1718, %v1710
    %v2295 = vpack.c.b16 %v1719, %v1711
    %v2296 = vpack.c.b16 %v1720, %v1712
    %v2297 = vpack.c.b16 %v1721, %v1713
    %v2298 = vpack.c.b16 %v1722, %v1714
    %v2299 = vpack.c.b16 %v1723, %v1715
    %v2300 = vpack.c.b16 %v1724, %v1716
    %v2301 = vpack.c.b16 %v1733, %v1725
    %v2302 = vpack.c.b16 %v1734, %v1726
    %v2303 = vpack.c.b16 %v1735, %v1727
    %v2304 = vpack.c.b16 %v1736, %v1728
    %v2305 = vpack.c.b16 %v1737, %v1729
    %v2306 = vpack.c.b16 %v1738, %v1730
    %v2307 = vpack.c.b16 %v1739, %v1731
    %v2308 = vpack.c.b16 %v1740, %v1732
    %v2309 = vpack.c.b16 %v1749, %v1741
    %v2310 = vpack.c.b16 %v1750, %v1742
    %v2311 = vpack.c.b16 %v1751, %v1743
    %v2312 = vpack.c.b16 %v1752, %v1744
    %v2313 = vpack.c.b16 %v1753, %v1745
    %v2314 = vpack.c.b16 %v1754, %v1746
    %v2315 = vpack.c.b16 %v1755, %v1747
    %v2316 = vpack.c.b16 %v1756, %v1748
    %v2317 = vpack.c.b16 %v1765, %v1757
    %v2318 = vpack.c.b16 %v1766, %v1758
    %v2319 = vpack.c.b16 %v1767, %v1759
    %v2320 = vpack.c.b16 %v1768, %v1760
    %v2321 = vpack.c.b16 %v1769, %v1761
    %v2322 = vpack.c.b16 %v1770, %v1762
    %v2323 = vpack.c.b16 %v1771, %v1763
    %v2324 = vpack.c.b16 %v1772, %v1764
    %v2325 = vpack.c.b16 %v1781, %v1773
    %v2326 = vpack.c.b16 %v1782, %v1774
    %v2327 = vpack.c.b16 %v1783, %v1775
    %v2328 = vpack.c.b16 %v1784, %v1776
    %v2329 = vpack.c.b16 %v1785, %v1777
    %v2330 = vpack.c.b16 %v1786, %v1778
    %v2331 = vpack.c.b16 %v1787, %v1779
    %v2332 = vpack.c.b16 %v1788, %v1780
    %v2333 = vpack.c.b16 %v1797, %v1789
    %v2334 = vpack.c.b16 %v1798, %v1790
    %v2335 = vpack.c.b16 %v1799, %v1791
    %v2336 = vpack.c.b16 %v1800, %v1792
    %v2337 = vpack.c.b16 %v1801, %v1793
    %v2338 = vpack.c.b16 %v1802, %v1794
    %v2339 = vpack.c.b16 %v1803, %v1795
    %v2340 = vpack.c.b16 %v1804, %v1796
    %v2341 = vpack.c.b16 %v1813, %v1805
    %v2342 = vpack.c.b16 %v1814, %v1806
    %v2343 = vpack.c.b16 %v1815, %v1807
    %v2344 = vpack.c.b16 %v1816, %v1808
    %v2345 = vpack.c.b16 %v1817, %v1809
    %v2346 = vpack.c.b16 %v1818, %v1810
    %v2347 = vpack.c.b16 %v1819, %v1811
    %v2348 = vpack.c.b16 %v1820, %v1812
    %v2349 = vpack.c.b16 %v1829, %v1821
    %v2350 = vpack.c.b16 %v1830, %v1822
    %v2351 = vpack.c.b16 %v1831, %v1823
    %v2352 = vpack.c.b16 %v1832, %v1824
    %v2353 = vpack.c.b16 %v1833, %v1825
    %v2354 = vpack.c.b16 %v1834, %v1826
    %v2355 = vpack.c.b16 %v1835, %v1827
    %v2356 = vpack.c.b16 %v1836, %v1828
    %v2357 = vpack.c.b16 %v1845, %v1837
    %v2358 = vpack.c.b16 %v1846, %v1838
    %v2359 = vpack.c.b16 %v1847, %v1839
    %v2360 = vpack.c.b16 %v1848, %v1840
    %v2361 = vpack.c.b16 %v1849, %v1841
    %v2362 = vpack.c.b16 %v1850, %v1842
    %v2363 = vpack.c.b16 %v1851, %v1843
    %v2364 = vpack.c.b16 %v1852, %v1844
    %v2365 = vpack.c.b16 %v1861, %v1853
    %v2366 = vpack.c.b16 %v1862, %v1854
    %v2367 = vpack.c.b16 %v1863, %v1855
    %v2368 = vpack.c.b16 %v1864, %v1856
    %v2369 = vpack.c.b16 %v1865, %v1857
    %v2370 = vpack.c.b16 %v1866, %v1858
    %v2371 = vpack.c.b16 %v1867, %v1859
    %v2372 = vpack.c.b16 %v1868, %v1860
    %v2373 = vpack.c.b16 %v1877, %v1869
    %v2374 = vpack.c.b16 %v1878, %v1870
    %v2375 = vpack.c.b16 %v1879, %v1871
    %v2376 = vpack.c.b16 %v1880, %v1872
    %v2377 = vpack.c.b16 %v1881, %v1873
    %v2378 = vpack.c.b16 %v1882, %v1874
    %v2379 = vpack.c.b16 %v1883, %v1875
    %v2380 = vpack.c.b16 %v1884, %v1876
    %v2381 = vpack.c.b16 %v1893, %v1885
    %v2382 = vpack.c.b16 %v1894, %v1886
    %v2383 = vpack.c.b16 %v1895, %v1887
    %v2384 = vpack.c.b16 %v1896, %v1888
    %v2385 = vpack.c.b16 %v1897, %v1889
    %v2386 = vpack.c.b16 %v1898, %v1890
    %v2387 = vpack.c.b16 %v1899, %v1891
    %v2388 = vpack.c.b16 %v1900, %v1892
    %v2389 = vpack.c.b16 %v1909, %v1901
    %v2390 = vpack.c.b16 %v1910, %v1902
    %v2391 = vpack.c.b16 %v1911, %v1903
    %v2392 = vpack.c.b16 %v1912, %v1904
    %v2393 = vpack.c.b16 %v1913, %v1905
    %v2394 = vpack.c.b16 %v1914, %v1906
    %v2395 = vpack.c.b16 %v1915, %v1907
    %v2396 = vpack.c.b16 %v1916, %v1908
    %v2397 = vpack.c.b16 %v1925, %v1917
    %v2398 = vpack.c.b16 %v1926, %v1918
    %v2399 = vpack.c.b16 %v1927, %v1919
    %v2400 = vpack.c.b16 %v1928, %v1920
    %v2401 = vpack.c.b16 %v1929, %v1921
    %v2402 = vpack.c.b16 %v1930, %v1922
    %v2403 = vpack.c.b16 %v1931, %v1923
    %v2404 = vpack.c.b16 %v1932, %v1924
    %v2405 = vpack.c.b16 %v1941, %v1933
    %v2406 = vpack.c.b16 %v1942, %v1934
    %v2407 = vpack.c.b16 %v1943, %v1935
    %v2408 = vpack.c.b16 %v1944, %v1936
    %v2409 = vpack.c.b16 %v1945, %v1937
    %v2410 = vpack.c.b16 %v1946, %v1938
    %v2411 = vpack.c.b16 %v1947, %v1939
    %v2412 = vpack.c.b16 %v1948, %v1940
    %v2413 = vpack.c.b16 %v1957, %v1949
    %v2414 = vpack.c.b16 %v1958, %v1950
    %v2415 = vpack.c.b16 %v1959, %v1951
    %v2416 = vpack.c.b16 %v1960, %v1952
    %v2417 = vpack.c.b16 %v1961, %v1953
    %v2418 = vpack.c.b16 %v1962, %v1954
    %v2419 = vpack.c.b16 %v1963, %v1955
    %v2420 = vpack.c.b16 %v1964, %v1956
    %v2421 = vpack.c.b16 %v1973, %v1965
    %v2422 = vpack.c.b16 %v1974, %v1966
    %v2423 = vpack.c.b16 %v1975, %v1967
    %v2424 = vpack.c.b16 %v1976, %v1968
    %v2425 = vpack.c.b16 %v1977, %v1969
    %v2426 = vpack.c.b16 %v1978, %v1970
    %v2427 = vpack.c.b16 %v1979, %v1971
    %v2428 = vpack.c.b16 %v1980, %v1972
    %2877 = vmatprep.subr.bf16.mxu0 %v2038
    %2878 = vmatpush1.bf16.msra.mxu0 %v2037
    %2879 = vmatprep.subr.bf16.mxu0 %v2030
    %2880 = vmatpush1.bf16.msra.mxu0 %v2029
    %2881 = vmatprep.subr.bf16.mxu0 %v2022
    %2882 = vmatpush1.bf16.msra.mxu0 %v2021
    %2883 = vmatprep.subr.bf16.mxu0 %v2014
    %2884 = vmatpush1.bf16.msra.mxu0 %v2013
    %2885 = vmatprep.subr.bf16.mxu0 %v2006
    %2886 = vmatpush1.bf16.msra.mxu0 %v2005
    %2887 = vmatprep.subr.bf16.mxu0 %v1998
    %2888 = vmatpush1.bf16.msra.mxu0 %v1997
    %2889 = vmatprep.subr.bf16.mxu0 %v1990
    %2890 = vmatpush1.bf16.msra.mxu0 %v1989
    %2891 = vmatprep.subr.bf16.mxu0 %v1982
    %2892 = vmatpush1.bf16.msra.mxu0 %v1981
    %2893 = vmatprep.subr.bf16.mxu0 %v2102
    %2894 = vmatpush2.bf16.msra.mxu0 %v2101
    %2895 = vmatprep.subr.bf16.mxu0 %v2094
    %2896 = vmatpush2.bf16.msra.mxu0 %v2093
    %2897 = vmatprep.subr.bf16.mxu0 %v2086
    %2898 = vmatpush2.bf16.msra.mxu0 %v2085
    %2899 = vmatprep.subr.bf16.mxu0 %v2078
    %2900 = vmatpush2.bf16.msra.mxu0 %v2077
    %2901 = vmatprep.subr.bf16.mxu0 %v2070
    %2902 = vmatpush2.bf16.msra.mxu0 %v2069
    %2903 = vmatprep.subr.bf16.mxu0 %v2062
    %2904 = vmatpush2.bf16.msra.mxu0 %v2061
    %2905 = vmatprep.subr.bf16.mxu0 %v2054
    %2906 = vmatpush2.bf16.msra.mxu0 %v2053
    %2907 = vmatprep.subr.bf16.mxu0 %v2046
    %2908 = vmatpush2.bf16.msra.mxu0 %v2045
    %2909 = vmatprep.mubr.bf16.mxu0 %v113
    %2910 = vmatmul.mubr.bf16.gmra.mxu0 %v112
    %v2911 = vpop.f32.mrf.mxu0
    %v2912 = vadd.f32 %v600, %v2911
    %v2913 = vpop.f32.mrf.mxu0
    %v2914 = vadd.f32 %v604, %v2913
    %v2915 = vpop.f32.mrf.mxu0
    %v2916 = vadd.f32 %v600, %v2915
    %v2917 = vpop.f32.mrf.mxu0
    %v2918 = vadd.f32 %v604, %v2917
    %2919 = vmatprep.mubr.bf16.mxu0 %v120
    %2920 = vmatmul.mubr.bf16.gmra.mxu0 %v119
    %v2921 = vpop.f32.mrf.mxu0
    %v2922 = vadd.f32 %v600, %v2921
    %v2923 = vpop.f32.mrf.mxu0
    %v2924 = vadd.f32 %v604, %v2923
    %v2925 = vpop.f32.mrf.mxu0
    %v2926 = vadd.f32 %v600, %v2925
    %v2927 = vpop.f32.mrf.mxu0
    %v2928 = vadd.f32 %v604, %v2927
    %2929 = vmatprep.mubr.bf16.mxu0 %v127
    %2930 = vmatmul.mubr.bf16.gmra.mxu0 %v126
    %v2931 = vpop.f32.mrf.mxu0
    %v2932 = vadd.f32 %v600, %v2931
    %v2933 = vpop.f32.mrf.mxu0
    %v2934 = vadd.f32 %v604, %v2933
    %v2935 = vpop.f32.mrf.mxu0
    %v2936 = vadd.f32 %v600, %v2935
    %v2937 = vpop.f32.mrf.mxu0
    %v2938 = vadd.f32 %v604, %v2937
    %2939 = vmatprep.mubr.bf16.mxu0 %v134
    %2940 = vmatmul.mubr.bf16.gmra.mxu0 %v133
    %v2941 = vpop.f32.mrf.mxu0
    %v2942 = vadd.f32 %v600, %v2941
    %v2943 = vpop.f32.mrf.mxu0
    %v2944 = vadd.f32 %v604, %v2943
    %v2945 = vpop.f32.mrf.mxu0
    %v2946 = vadd.f32 %v600, %v2945
    %v2947 = vpop.f32.mrf.mxu0
    %v2948 = vadd.f32 %v604, %v2947
    %2949 = vmatprep.mubr.bf16.mxu0 %v141
    %2950 = vmatmul.mubr.bf16.gmra.mxu0 %v140
    %v2951 = vpop.f32.mrf.mxu0
    %v2952 = vadd.f32 %v600, %v2951
    %v2953 = vpop.f32.mrf.mxu0
    %v2954 = vadd.f32 %v604, %v2953
    %v2955 = vpop.f32.mrf.mxu0
    %v2956 = vpop.f32.mrf.mxu0
    %2957 = vdwg.mxu0
    %2958 = vmatprep.subr.bf16.mxu0 %v2166
    %2959 = vmatpush1.bf16.msra.mxu0 %v2165
    %2960 = vmatprep.subr.bf16.mxu0 %v2158
    %2961 = vmatpush1.bf16.msra.mxu0 %v2157
    %2962 = vmatprep.subr.bf16.mxu0 %v2150
    %2963 = vmatpush1.bf16.msra.mxu0 %v2149
    %2964 = vmatprep.subr.bf16.mxu0 %v2142
    %2965 = vmatpush1.bf16.msra.mxu0 %v2141
    %2966 = vmatprep.subr.bf16.mxu0 %v2134
    %2967 = vmatpush1.bf16.msra.mxu0 %v2133
    %2968 = vmatprep.subr.bf16.mxu0 %v2126
    %2969 = vmatpush1.bf16.msra.mxu0 %v2125
    %2970 = vmatprep.subr.bf16.mxu0 %v2118
    %2971 = vmatpush1.bf16.msra.mxu0 %v2117
    %2972 = vmatprep.subr.bf16.mxu0 %v2110
    %2973 = vmatpush1.bf16.msra.mxu0 %v2109
    %2974 = vmatprep.subr.bf16.mxu0 %v2230
    %2975 = vmatpush2.bf16.msra.mxu0 %v2229
    %2976 = vmatprep.subr.bf16.mxu0 %v2222
    %2977 = vmatpush2.bf16.msra.mxu0 %v2221
    %2978 = vmatprep.subr.bf16.mxu0 %v2214
    %2979 = vmatpush2.bf16.msra.mxu0 %v2213
    %2980 = vmatprep.subr.bf16.mxu0 %v2206
    %2981 = vmatpush2.bf16.msra.mxu0 %v2205
    %2982 = vmatprep.subr.bf16.mxu0 %v2198
    %2983 = vmatpush2.bf16.msra.mxu0 %v2197
    %2984 = vmatprep.subr.bf16.mxu0 %v2190
    %2985 = vmatpush2.bf16.msra.mxu0 %v2189
    %2986 = vmatprep.subr.bf16.mxu0 %v2182
    %2987 = vmatpush2.bf16.msra.mxu0 %v2181
    %2988 = vmatprep.subr.bf16.mxu0 %v2174
    %2989 = vmatpush2.bf16.msra.mxu0 %v2173
    %2990 = vmatprep.mubr.bf16.mxu0 %v115
    %2991 = vmatmul.mubr.bf16.gmra.mxu0 %v114
    %v2992 = vpop.f32.mrf.mxu0
    %v2993 = vadd.f32 %v2912, %v2992
    %v2994 = vpop.f32.mrf.mxu0
    %v2995 = vadd.f32 %v2914, %v2994
    %v2996 = vpop.f32.mrf.mxu0
    %v2997 = vadd.f32 %v2916, %v2996
    %v2998 = vpop.f32.mrf.mxu0
    %v2999 = vadd.f32 %v2918, %v2998
    %3000 = vmatprep.mubr.bf16.mxu0 %v122
    %3001 = vmatmul.mubr.bf16.gmra.mxu0 %v121
    %v3002 = vpop.f32.mrf.mxu0
    %v3003 = vadd.f32 %v2922, %v3002
    %v3004 = vpop.f32.mrf.mxu0
    %v3005 = vadd.f32 %v2924, %v3004
    %v3006 = vpop.f32.mrf.mxu0
    %v3007 = vadd.f32 %v2926, %v3006
    %v3008 = vpop.f32.mrf.mxu0
    %v3009 = vadd.f32 %v2928, %v3008
    %3010 = vmatprep.mubr.bf16.mxu0 %v129
    %3011 = vmatmul.mubr.bf16.gmra.mxu0 %v128
    %v3012 = vpop.f32.mrf.mxu0
    %v3013 = vadd.f32 %v2932, %v3012
    %v3014 = vpop.f32.mrf.mxu0
    %v3015 = vadd.f32 %v2934, %v3014
    %v3016 = vpop.f32.mrf.mxu0
    %v3017 = vadd.f32 %v2936, %v3016
    %v3018 = vpop.f32.mrf.mxu0
    %v3019 = vadd.f32 %v2938, %v3018
    %3020 = vmatprep.mubr.bf16.mxu0 %v136
    %3021 = vmatmul.mubr.bf16.gmra.mxu0 %v135
    %v3022 = vpop.f32.mrf.mxu0
    %v3023 = vadd.f32 %v2942, %v3022
    %v3024 = vpop.f32.mrf.mxu0
    %v3025 = vadd.f32 %v2944, %v3024
    %v3026 = vpop.f32.mrf.mxu0
    %v3027 = vadd.f32 %v2946, %v3026
    %v3028 = vpop.f32.mrf.mxu0
    %v3029 = vadd.f32 %v2948, %v3028
    %3030 = vmatprep.mubr.bf16.mxu0 %v143
    %3031 = vmatmul.mubr.bf16.gmra.mxu0 %v142
    %v3032 = vpop.f32.mrf.mxu0
    %v3033 = vadd.f32 %v2952, %v3032
    %v3034 = vpop.f32.mrf.mxu0
    %v3035 = vadd.f32 %v2954, %v3034
    %v3036 = vpop.f32.mrf.mxu0
    %v3037 = vpop.f32.mrf.mxu0
    %3038 = vdwg.mxu0
    %3039 = vmatprep.subr.bf16.mxu0 %v2294
    %3040 = vmatpush1.bf16.msra.mxu0 %v2293
    %3041 = vmatprep.subr.bf16.mxu0 %v2286
    %3042 = vmatpush1.bf16.msra.mxu0 %v2285
    %3043 = vmatprep.subr.bf16.mxu0 %v2278
    %3044 = vmatpush1.bf16.msra.mxu0 %v2277
    %3045 = vmatprep.subr.bf16.mxu0 %v2270
    %3046 = vmatpush1.bf16.msra.mxu0 %v2269
    %3047 = vmatprep.subr.bf16.mxu0 %v2262
    %3048 = vmatpush1.bf16.msra.mxu0 %v2261
    %3049 = vmatprep.subr.bf16.mxu0 %v2254
    %3050 = vmatpush1.bf16.msra.mxu0 %v2253
    %3051 = vmatprep.subr.bf16.mxu0 %v2246
    %3052 = vmatpush1.bf16.msra.mxu0 %v2245
    %3053 = vmatprep.subr.bf16.mxu0 %v2238
    %3054 = vmatpush1.bf16.msra.mxu0 %v2237
    %3055 = vmatprep.subr.bf16.mxu0 %v2358
    %3056 = vmatpush2.bf16.msra.mxu0 %v2357
    %3057 = vmatprep.subr.bf16.mxu0 %v2350
    %3058 = vmatpush2.bf16.msra.mxu0 %v2349
    %3059 = vmatprep.subr.bf16.mxu0 %v2342
    %3060 = vmatpush2.bf16.msra.mxu0 %v2341
    %3061 = vmatprep.subr.bf16.mxu0 %v2334
    %3062 = vmatpush2.bf16.msra.mxu0 %v2333
    %3063 = vmatprep.subr.bf16.mxu0 %v2326
    %3064 = vmatpush2.bf16.msra.mxu0 %v2325
    %3065 = vmatprep.subr.bf16.mxu0 %v2318
    %3066 = vmatpush2.bf16.msra.mxu0 %v2317
    %3067 = vmatprep.subr.bf16.mxu0 %v2310
    %3068 = vmatpush2.bf16.msra.mxu0 %v2309
    %3069 = vmatprep.subr.bf16.mxu0 %v2302
    %3070 = vmatpush2.bf16.msra.mxu0 %v2301
    %3071 = vmatprep.mubr.bf16.mxu0 %v117
    %3072 = vmatmul.mubr.bf16.gmra.mxu0 %v116
    %v3073 = vpop.f32.mrf.mxu0
    %v3074 = vadd.f32 %v2993, %v3073
    %v3075 = vpop.f32.mrf.mxu0
    %v3076 = vadd.f32 %v2995, %v3075
    %v3077 = vpop.f32.mrf.mxu0
    %v3078 = vadd.f32 %v2997, %v3077
    %v3079 = vpop.f32.mrf.mxu0
    %v3080 = vadd.f32 %v2999, %v3079
    %3081 = vmatprep.mubr.bf16.mxu0 %v124
    %3082 = vmatmul.mubr.bf16.gmra.mxu0 %v123
    %v3083 = vpop.f32.mrf.mxu0
    %v3084 = vadd.f32 %v3003, %v3083
    %v3085 = vpop.f32.mrf.mxu0
    %v3086 = vadd.f32 %v3005, %v3085
    %v3087 = vpop.f32.mrf.mxu0
    %v3088 = vadd.f32 %v3007, %v3087
    %v3089 = vpop.f32.mrf.mxu0
    %v3090 = vadd.f32 %v3009, %v3089
    %3091 = vmatprep.mubr.bf16.mxu0 %v131
    %3092 = vmatmul.mubr.bf16.gmra.mxu0 %v130
    %v3093 = vpop.f32.mrf.mxu0
    %v3094 = vadd.f32 %v3013, %v3093
    %v3095 = vpop.f32.mrf.mxu0
    %v3096 = vadd.f32 %v3015, %v3095
    %v3097 = vpop.f32.mrf.mxu0
    %v3098 = vadd.f32 %v3017, %v3097
    %v3099 = vpop.f32.mrf.mxu0
    %v3100 = vadd.f32 %v3019, %v3099
    %3101 = vmatprep.mubr.bf16.mxu0 %v138
    %3102 = vmatmul.mubr.bf16.gmra.mxu0 %v137
    %v3103 = vpop.f32.mrf.mxu0
    %v3104 = vadd.f32 %v3023, %v3103
    %v3105 = vpop.f32.mrf.mxu0
    %v3106 = vadd.f32 %v3025, %v3105
    %v3107 = vpop.f32.mrf.mxu0
    %v3108 = vadd.f32 %v3027, %v3107
    %v3109 = vpop.f32.mrf.mxu0
    %v3110 = vadd.f32 %v3029, %v3109
    %3111 = vmatprep.mubr.bf16.mxu0 %v145
    %3112 = vmatmul.mubr.bf16.gmra.mxu0 %v144
    %v3113 = vpop.f32.mrf.mxu0
    %v3114 = vadd.f32 %v3033, %v3113
    %v3115 = vpop.f32.mrf.mxu0
    %v3116 = vadd.f32 %v3035, %v3115
    %v3117 = vpop.f32.mrf.mxu0
    %v3118 = vpop.f32.mrf.mxu0
    %3119 = vdwg.mxu0
    %3120 = vmatprep.subr.bf16.mxu0 %v2422
    %3121 = vmatpush1.bf16.msra.mxu0 %v2421
    %3122 = vmatprep.subr.bf16.mxu0 %v2414
    %3123 = vmatpush1.bf16.msra.mxu0 %v2413
    %3124 = vmatprep.subr.bf16.mxu0 %v2406
    %3125 = vmatpush1.bf16.msra.mxu0 %v2405
    %3126 = vmatprep.subr.bf16.mxu0 %v2398
    %3127 = vmatpush1.bf16.msra.mxu0 %v2397
    %3128 = vmatprep.subr.bf16.mxu0 %v2390
    %3129 = vmatpush1.bf16.msra.mxu0 %v2389
    %3130 = vmatprep.subr.bf16.mxu0 %v2382
    %3131 = vmatpush1.bf16.msra.mxu0 %v2381
    %3132 = vmatprep.subr.bf16.mxu0 %v2374
    %3133 = vmatpush1.bf16.msra.mxu0 %v2373
    %3134 = vmatprep.subr.bf16.mxu0 %v2366
    %3135 = vmatpush1.bf16.msra.mxu0 %v2365
    %3136 = vmatprep.subr.bf16.mxu0 0
    %3137 = vmatpush2.bf16.msra.mxu0 0
    %3138 = vmatprep.subr.bf16.mxu0 0
    %3139 = vmatpush2.bf16.msra.mxu0 0
    %3140 = vmatprep.subr.bf16.mxu0 0
    %3141 = vmatpush2.bf16.msra.mxu0 0
    %3142 = vmatprep.subr.bf16.mxu0 0
    %3143 = vmatpush2.bf16.msra.mxu0 0
    %3144 = vmatprep.subr.bf16.mxu0 0
    %3145 = vmatpush2.bf16.msra.mxu0 0
    %3146 = vmatprep.subr.bf16.mxu0 0
    %3147 = vmatpush2.bf16.msra.mxu0 0
    %3148 = vmatprep.subr.bf16.mxu0 0
    %3149 = vmatpush2.bf16.msra.mxu0 0
    %3150 = vmatprep.subr.bf16.mxu0 0
    %3151 = vmatpush2.bf16.msra.mxu0 0
    %3152 = vmatprep.mubr.bf16.mxu0 0
    %3153 = vmatmul.mubr.bf16.gmra.mxu0 %v118
    %v3154 = vpop.f32.mrf.mxu0
    %v3155 = vadd.f32 %v3074, %v3154
    %v3156 = vpop.f32.mrf.mxu0
    %v3157 = vadd.f32 %v3076, %v3156
    %v3158 = vpop.f32.mrf.mxu0
    %v3159 = vadd.f32 %v3078, %v3158
    %v3160 = vpop.f32.mrf.mxu0
    %v3161 = vadd.f32 %v3080, %v3160
    %3162 = vmatprep.mubr.bf16.mxu0 0
    %3163 = vmatmul.mubr.bf16.gmra.mxu0 %v125
    %v3164 = vpop.f32.mrf.mxu0
    %v3165 = vadd.f32 %v3084, %v3164
    %v3166 = vpop.f32.mrf.mxu0
    %v3167 = vadd.f32 %v3086, %v3166
    %v3168 = vpop.f32.mrf.mxu0
    %v3169 = vadd.f32 %v3088, %v3168
    %v3170 = vpop.f32.mrf.mxu0
    %v3171 = vadd.f32 %v3090, %v3170
    %3172 = vmatprep.mubr.bf16.mxu0 0
    %3173 = vmatmul.mubr.bf16.gmra.mxu0 %v132
    %v3174 = vpop.f32.mrf.mxu0
    %v3175 = vadd.f32 %v3094, %v3174
    %v3176 = vpop.f32.mrf.mxu0
    %v3177 = vadd.f32 %v3096, %v3176
    %v3178 = vpop.f32.mrf.mxu0
    %v3179 = vadd.f32 %v3098, %v3178
    %v3180 = vpop.f32.mrf.mxu0
    %v3181 = vadd.f32 %v3100, %v3180
    %3182 = vmatprep.mubr.bf16.mxu0 0
    %3183 = vmatmul.mubr.bf16.gmra.mxu0 %v139
    %v3184 = vpop.f32.mrf.mxu0
    %v3185 = vadd.f32 %v3104, %v3184
    %v3186 = vpop.f32.mrf.mxu0
    %v3187 = vadd.f32 %v3106, %v3186
    %v3188 = vpop.f32.mrf.mxu0
    %v3189 = vadd.f32 %v3108, %v3188
    %v3190 = vpop.f32.mrf.mxu0
    %v3191 = vadd.f32 %v3110, %v3190
    %3192 = vmatprep.mubr.bf16.mxu0 0
    %3193 = vmatmul.mubr.bf16.gmra.mxu0 %v146
    %v3194 = vpop.f32.mrf.mxu0
    %v3195 = vadd.f32 %v3114, %v3194
    %v3196 = vpop.f32.mrf.mxu0
    %v3197 = vadd.f32 %v3116, %v3196
    %v3198 = vpop.f32.mrf.mxu0
    %v3199 = vpop.f32.mrf.mxu0
    %3200 = vdwg.mxu0
    %3201 = vmatprep.subr.bf16.mxu0 %v2040
    %3202 = vmatpush1.bf16.msra.mxu0 %v2039
    %3203 = vmatprep.subr.bf16.mxu0 %v2032
    %3204 = vmatpush1.bf16.msra.mxu0 %v2031
    %3205 = vmatprep.subr.bf16.mxu0 %v2024
    %3206 = vmatpush1.bf16.msra.mxu0 %v2023
    %3207 = vmatprep.subr.bf16.mxu0 %v2016
    %3208 = vmatpush1.bf16.msra.mxu0 %v2015
    %3209 = vmatprep.subr.bf16.mxu0 %v2008
    %3210 = vmatpush1.bf16.msra.mxu0 %v2007
    %3211 = vmatprep.subr.bf16.mxu0 %v2000
    %3212 = vmatpush1.bf16.msra.mxu0 %v1999
    %3213 = vmatprep.subr.bf16.mxu0 %v1992
    %3214 = vmatpush1.bf16.msra.mxu0 %v1991
    %3215 = vmatprep.subr.bf16.mxu0 %v1984
    %3216 = vmatpush1.bf16.msra.mxu0 %v1983
    %3217 = vmatprep.subr.bf16.mxu0 %v2104
    %3218 = vmatpush2.bf16.msra.mxu0 %v2103
    %3219 = vmatprep.subr.bf16.mxu0 %v2096
    %3220 = vmatpush2.bf16.msra.mxu0 %v2095
    %3221 = vmatprep.subr.bf16.mxu0 %v2088
    %3222 = vmatpush2.bf16.msra.mxu0 %v2087
    %3223 = vmatprep.subr.bf16.mxu0 %v2080
    %3224 = vmatpush2.bf16.msra.mxu0 %v2079
    %3225 = vmatprep.subr.bf16.mxu0 %v2072
    %3226 = vmatpush2.bf16.msra.mxu0 %v2071
    %3227 = vmatprep.subr.bf16.mxu0 %v2064
    %3228 = vmatpush2.bf16.msra.mxu0 %v2063
    %3229 = vmatprep.subr.bf16.mxu0 %v2056
    %3230 = vmatpush2.bf16.msra.mxu0 %v2055
    %3231 = vmatprep.subr.bf16.mxu0 %v2048
    %3232 = vmatpush2.bf16.msra.mxu0 %v2047
    %3233 = vmatprep.mubr.bf16.mxu0 %v113
    %3234 = vmatmul.mubr.bf16.gmra.mxu0 %v112
    %v3235 = vpop.f32.mrf.mxu0
    %v3236 = vadd.f32 %v608, %v3235
    %v3237 = vpop.f32.mrf.mxu0
    %v3238 = vadd.f32 %v612, %v3237
    %v3239 = vpop.f32.mrf.mxu0
    %v3240 = vadd.f32 %v608, %v3239
    %v3241 = vpop.f32.mrf.mxu0
    %v3242 = vadd.f32 %v612, %v3241
    %3243 = vmatprep.mubr.bf16.mxu0 %v120
    %3244 = vmatmul.mubr.bf16.gmra.mxu0 %v119
    %v3245 = vpop.f32.mrf.mxu0
    %v3246 = vadd.f32 %v608, %v3245
    %v3247 = vpop.f32.mrf.mxu0
    %v3248 = vadd.f32 %v612, %v3247
    %v3249 = vpop.f32.mrf.mxu0
    %v3250 = vadd.f32 %v608, %v3249
    %v3251 = vpop.f32.mrf.mxu0
    %v3252 = vadd.f32 %v612, %v3251
    %3253 = vmatprep.mubr.bf16.mxu0 %v127
    %3254 = vmatmul.mubr.bf16.gmra.mxu0 %v126
    %v3255 = vpop.f32.mrf.mxu0
    %v3256 = vadd.f32 %v608, %v3255
    %v3257 = vpop.f32.mrf.mxu0
    %v3258 = vadd.f32 %v612, %v3257
    %v3259 = vpop.f32.mrf.mxu0
    %v3260 = vadd.f32 %v608, %v3259
    %v3261 = vpop.f32.mrf.mxu0
    %v3262 = vadd.f32 %v612, %v3261
    %3263 = vmatprep.mubr.bf16.mxu0 %v134
    %3264 = vmatmul.mubr.bf16.gmra.mxu0 %v133
    %v3265 = vpop.f32.mrf.mxu0
    %v3266 = vadd.f32 %v608, %v3265
    %v3267 = vpop.f32.mrf.mxu0
    %v3268 = vadd.f32 %v612, %v3267
    %v3269 = vpop.f32.mrf.mxu0
    %v3270 = vadd.f32 %v608, %v3269
    %v3271 = vpop.f32.mrf.mxu0
    %v3272 = vadd.f32 %v612, %v3271
    %3273 = vmatprep.mubr.bf16.mxu0 %v141
    %3274 = vmatmul.mubr.bf16.gmra.mxu0 %v140
    %v3275 = vpop.f32.mrf.mxu0
    %v3276 = vadd.f32 %v608, %v3275
    %v3277 = vpop.f32.mrf.mxu0
    %v3278 = vadd.f32 %v612, %v3277
    %v3279 = vpop.f32.mrf.mxu0
    %v3280 = vpop.f32.mrf.mxu0
    %3281 = vdwg.mxu0
    %3282 = vmatprep.subr.bf16.mxu0 %v2168
    %3283 = vmatpush1.bf16.msra.mxu0 %v2167
    %3284 = vmatprep.subr.bf16.mxu0 %v2160
    %3285 = vmatpush1.bf16.msra.mxu0 %v2159
    %3286 = vmatprep.subr.bf16.mxu0 %v2152
    %3287 = vmatpush1.bf16.msra.mxu0 %v2151
    %3288 = vmatprep.subr.bf16.mxu0 %v2144
    %3289 = vmatpush1.bf16.msra.mxu0 %v2143
    %3290 = vmatprep.subr.bf16.mxu0 %v2136
    %3291 = vmatpush1.bf16.msra.mxu0 %v2135
    %3292 = vmatprep.subr.bf16.mxu0 %v2128
    %3293 = vmatpush1.bf16.msra.mxu0 %v2127
    %3294 = vmatprep.subr.bf16.mxu0 %v2120
    %3295 = vmatpush1.bf16.msra.mxu0 %v2119
    %3296 = vmatprep.subr.bf16.mxu0 %v2112
    %3297 = vmatpush1.bf16.msra.mxu0 %v2111
    %3298 = vmatprep.subr.bf16.mxu0 %v2232
    %3299 = vmatpush2.bf16.msra.mxu0 %v2231
    %3300 = vmatprep.subr.bf16.mxu0 %v2224
    %3301 = vmatpush2.bf16.msra.mxu0 %v2223
    %3302 = vmatprep.subr.bf16.mxu0 %v2216
    %3303 = vmatpush2.bf16.msra.mxu0 %v2215
    %3304 = vmatprep.subr.bf16.mxu0 %v2208
    %3305 = vmatpush2.bf16.msra.mxu0 %v2207
    %3306 = vmatprep.subr.bf16.mxu0 %v2200
    %3307 = vmatpush2.bf16.msra.mxu0 %v2199
    %3308 = vmatprep.subr.bf16.mxu0 %v2192
    %3309 = vmatpush2.bf16.msra.mxu0 %v2191
    %3310 = vmatprep.subr.bf16.mxu0 %v2184
    %3311 = vmatpush2.bf16.msra.mxu0 %v2183
    %3312 = vmatprep.subr.bf16.mxu0 %v2176
    %3313 = vmatpush2.bf16.msra.mxu0 %v2175
    %3314 = vmatprep.mubr.bf16.mxu0 %v115
    %3315 = vmatmul.mubr.bf16.gmra.mxu0 %v114
    %v3316 = vpop.f32.mrf.mxu0
    %v3317 = vadd.f32 %v3236, %v3316
    %v3318 = vpop.f32.mrf.mxu0
    %v3319 = vadd.f32 %v3238, %v3318
    %v3320 = vpop.f32.mrf.mxu0
    %v3321 = vadd.f32 %v3240, %v3320
    %v3322 = vpop.f32.mrf.mxu0
    %v3323 = vadd.f32 %v3242, %v3322
    %3324 = vmatprep.mubr.bf16.mxu0 %v122
    %3325 = vmatmul.mubr.bf16.gmra.mxu0 %v121
    %v3326 = vpop.f32.mrf.mxu0
    %v3327 = vadd.f32 %v3246, %v3326
    %v3328 = vpop.f32.mrf.mxu0
    %v3329 = vadd.f32 %v3248, %v3328
    %v3330 = vpop.f32.mrf.mxu0
    %v3331 = vadd.f32 %v3250, %v3330
    %v3332 = vpop.f32.mrf.mxu0
    %v3333 = vadd.f32 %v3252, %v3332
    %3334 = vmatprep.mubr.bf16.mxu0 %v129
    %3335 = vmatmul.mubr.bf16.gmra.mxu0 %v128
    %v3336 = vpop.f32.mrf.mxu0
    %v3337 = vadd.f32 %v3256, %v3336
    %v3338 = vpop.f32.mrf.mxu0
    %v3339 = vadd.f32 %v3258, %v3338
    %v3340 = vpop.f32.mrf.mxu0
    %v3341 = vadd.f32 %v3260, %v3340
    %v3342 = vpop.f32.mrf.mxu0
    %v3343 = vadd.f32 %v3262, %v3342
    %3344 = vmatprep.mubr.bf16.mxu0 %v136
    %3345 = vmatmul.mubr.bf16.gmra.mxu0 %v135
    %v3346 = vpop.f32.mrf.mxu0
    %v3347 = vadd.f32 %v3266, %v3346
    %v3348 = vpop.f32.mrf.mxu0
    %v3349 = vadd.f32 %v3268, %v3348
    %v3350 = vpop.f32.mrf.mxu0
    %v3351 = vadd.f32 %v3270, %v3350
    %v3352 = vpop.f32.mrf.mxu0
    %v3353 = vadd.f32 %v3272, %v3352
    %3354 = vmatprep.mubr.bf16.mxu0 %v143
    %3355 = vmatmul.mubr.bf16.gmra.mxu0 %v142
    %v3356 = vpop.f32.mrf.mxu0
    %v3357 = vadd.f32 %v3276, %v3356
    %v3358 = vpop.f32.mrf.mxu0
    %v3359 = vadd.f32 %v3278, %v3358
    %v3360 = vpop.f32.mrf.mxu0
    %v3361 = vpop.f32.mrf.mxu0
    %3362 = vdwg.mxu0
    %3363 = vmatprep.subr.bf16.mxu0 %v2296
    %3364 = vmatpush1.bf16.msra.mxu0 %v2295
    %3365 = vmatprep.subr.bf16.mxu0 %v2288
    %3366 = vmatpush1.bf16.msra.mxu0 %v2287
    %3367 = vmatprep.subr.bf16.mxu0 %v2280
    %3368 = vmatpush1.bf16.msra.mxu0 %v2279
    %3369 = vmatprep.subr.bf16.mxu0 %v2272
    %3370 = vmatpush1.bf16.msra.mxu0 %v2271
    %3371 = vmatprep.subr.bf16.mxu0 %v2264
    %3372 = vmatpush1.bf16.msra.mxu0 %v2263
    %3373 = vmatprep.subr.bf16.mxu0 %v2256
    %3374 = vmatpush1.bf16.msra.mxu0 %v2255
    %3375 = vmatprep.subr.bf16.mxu0 %v2248
    %3376 = vmatpush1.bf16.msra.mxu0 %v2247
    %3377 = vmatprep.subr.bf16.mxu0 %v2240
    %3378 = vmatpush1.bf16.msra.mxu0 %v2239
    %3379 = vmatprep.subr.bf16.mxu0 %v2360
    %3380 = vmatpush2.bf16.msra.mxu0 %v2359
    %3381 = vmatprep.subr.bf16.mxu0 %v2352
    %3382 = vmatpush2.bf16.msra.mxu0 %v2351
    %3383 = vmatprep.subr.bf16.mxu0 %v2344
    %3384 = vmatpush2.bf16.msra.mxu0 %v2343
    %3385 = vmatprep.subr.bf16.mxu0 %v2336
    %3386 = vmatpush2.bf16.msra.mxu0 %v2335
    %3387 = vmatprep.subr.bf16.mxu0 %v2328
    %3388 = vmatpush2.bf16.msra.mxu0 %v2327
    %3389 = vmatprep.subr.bf16.mxu0 %v2320
    %3390 = vmatpush2.bf16.msra.mxu0 %v2319
    %3391 = vmatprep.subr.bf16.mxu0 %v2312
    %3392 = vmatpush2.bf16.msra.mxu0 %v2311
    %3393 = vmatprep.subr.bf16.mxu0 %v2304
    %3394 = vmatpush2.bf16.msra.mxu0 %v2303
    %3395 = vmatprep.mubr.bf16.mxu0 %v117
    %3396 = vmatmul.mubr.bf16.gmra.mxu0 %v116
    %v3397 = vpop.f32.mrf.mxu0
    %v3398 = vadd.f32 %v3317, %v3397
    %v3399 = vpop.f32.mrf.mxu0
    %v3400 = vadd.f32 %v3319, %v3399
    %v3401 = vpop.f32.mrf.mxu0
    %v3402 = vadd.f32 %v3321, %v3401
    %v3403 = vpop.f32.mrf.mxu0
    %v3404 = vadd.f32 %v3323, %v3403
    %3405 = vmatprep.mubr.bf16.mxu0 %v124
    %3406 = vmatmul.mubr.bf16.gmra.mxu0 %v123
    %v3407 = vpop.f32.mrf.mxu0
    %v3408 = vadd.f32 %v3327, %v3407
    %v3409 = vpop.f32.mrf.mxu0
    %v3410 = vadd.f32 %v3329, %v3409
    %v3411 = vpop.f32.mrf.mxu0
    %v3412 = vadd.f32 %v3331, %v3411
    %v3413 = vpop.f32.mrf.mxu0
    %v3414 = vadd.f32 %v3333, %v3413
    %3415 = vmatprep.mubr.bf16.mxu0 %v131
    %3416 = vmatmul.mubr.bf16.gmra.mxu0 %v130
    %v3417 = vpop.f32.mrf.mxu0
    %v3418 = vadd.f32 %v3337, %v3417
    %v3419 = vpop.f32.mrf.mxu0
    %v3420 = vadd.f32 %v3339, %v3419
    %v3421 = vpop.f32.mrf.mxu0
    %v3422 = vadd.f32 %v3341, %v3421
    %v3423 = vpop.f32.mrf.mxu0
    %v3424 = vadd.f32 %v3343, %v3423
    %3425 = vmatprep.mubr.bf16.mxu0 %v138
    %3426 = vmatmul.mubr.bf16.gmra.mxu0 %v137
    %v3427 = vpop.f32.mrf.mxu0
    %v3428 = vadd.f32 %v3347, %v3427
    %v3429 = vpop.f32.mrf.mxu0
    %v3430 = vadd.f32 %v3349, %v3429
    %v3431 = vpop.f32.mrf.mxu0
    %v3432 = vadd.f32 %v3351, %v3431
    %v3433 = vpop.f32.mrf.mxu0
    %v3434 = vadd.f32 %v3353, %v3433
    %3435 = vmatprep.mubr.bf16.mxu0 %v145
    %3436 = vmatmul.mubr.bf16.gmra.mxu0 %v144
    %v3437 = vpop.f32.mrf.mxu0
    %v3438 = vadd.f32 %v3357, %v3437
    %v3439 = vpop.f32.mrf.mxu0
    %v3440 = vadd.f32 %v3359, %v3439
    %v3441 = vpop.f32.mrf.mxu0
    %v3442 = vpop.f32.mrf.mxu0
    %3443 = vdwg.mxu0
    %3444 = vmatprep.subr.bf16.mxu0 %v2424
    %3445 = vmatpush1.bf16.msra.mxu0 %v2423
    %3446 = vmatprep.subr.bf16.mxu0 %v2416
    %3447 = vmatpush1.bf16.msra.mxu0 %v2415
    %3448 = vmatprep.subr.bf16.mxu0 %v2408
    %3449 = vmatpush1.bf16.msra.mxu0 %v2407
    %3450 = vmatprep.subr.bf16.mxu0 %v2400
    %3451 = vmatpush1.bf16.msra.mxu0 %v2399
    %3452 = vmatprep.subr.bf16.mxu0 %v2392
    %3453 = vmatpush1.bf16.msra.mxu0 %v2391
    %3454 = vmatprep.subr.bf16.mxu0 %v2384
    %3455 = vmatpush1.bf16.msra.mxu0 %v2383
    %3456 = vmatprep.subr.bf16.mxu0 %v2376
    %3457 = vmatpush1.bf16.msra.mxu0 %v2375
    %3458 = vmatprep.subr.bf16.mxu0 %v2368
    %3459 = vmatpush1.bf16.msra.mxu0 %v2367
    %3460 = vmatprep.subr.bf16.mxu0 0
    %3461 = vmatpush2.bf16.msra.mxu0 0
    %3462 = vmatprep.subr.bf16.mxu0 0
    %3463 = vmatpush2.bf16.msra.mxu0 0
    %3464 = vmatprep.subr.bf16.mxu0 0
    %3465 = vmatpush2.bf16.msra.mxu0 0
    %3466 = vmatprep.subr.bf16.mxu0 0
    %3467 = vmatpush2.bf16.msra.mxu0 0
    %3468 = vmatprep.subr.bf16.mxu0 0
    %3469 = vmatpush2.bf16.msra.mxu0 0
    %3470 = vmatprep.subr.bf16.mxu0 0
    %3471 = vmatpush2.bf16.msra.mxu0 0
    %3472 = vmatprep.subr.bf16.mxu0 0
    %3473 = vmatpush2.bf16.msra.mxu0 0
    %3474 = vmatprep.subr.bf16.mxu0 0
    %3475 = vmatpush2.bf16.msra.mxu0 0
    %3476 = vmatprep.mubr.bf16.mxu0 0
    %3477 = vmatmul.mubr.bf16.gmra.mxu0 %v118
    %v3478 = vpop.f32.mrf.mxu0
    %v3479 = vadd.f32 %v3398, %v3478
    %v3480 = vpop.f32.mrf.mxu0
    %v3481 = vadd.f32 %v3400, %v3480
    %v3482 = vpop.f32.mrf.mxu0
    %v3483 = vadd.f32 %v3402, %v3482
    %v3484 = vpop.f32.mrf.mxu0
    %v3485 = vadd.f32 %v3404, %v3484
    %3486 = vmatprep.mubr.bf16.mxu0 0
    %3487 = vmatmul.mubr.bf16.gmra.mxu0 %v125
    %v3488 = vpop.f32.mrf.mxu0
    %v3489 = vadd.f32 %v3408, %v3488
    %v3490 = vpop.f32.mrf.mxu0
    %v3491 = vadd.f32 %v3410, %v3490
    %v3492 = vpop.f32.mrf.mxu0
    %v3493 = vadd.f32 %v3412, %v3492
    %v3494 = vpop.f32.mrf.mxu0
    %v3495 = vadd.f32 %v3414, %v3494
    %3496 = vmatprep.mubr.bf16.mxu0 0
    %3497 = vmatmul.mubr.bf16.gmra.mxu0 %v132
    %v3498 = vpop.f32.mrf.mxu0
    %v3499 = vadd.f32 %v3418, %v3498
    %v3500 = vpop.f32.mrf.mxu0
    %v3501 = vadd.f32 %v3420, %v3500
    %v3502 = vpop.f32.mrf.mxu0
    %v3503 = vadd.f32 %v3422, %v3502
    %v3504 = vpop.f32.mrf.mxu0
    %v3505 = vadd.f32 %v3424, %v3504
    %3506 = vmatprep.mubr.bf16.mxu0 0
    %3507 = vmatmul.mubr.bf16.gmra.mxu0 %v139
    %v3508 = vpop.f32.mrf.mxu0
    %v3509 = vadd.f32 %v3428, %v3508
    %v3510 = vpop.f32.mrf.mxu0
    %v3511 = vadd.f32 %v3430, %v3510
    %v3512 = vpop.f32.mrf.mxu0
    %v3513 = vadd.f32 %v3432, %v3512
    %v3514 = vpop.f32.mrf.mxu0
    %v3515 = vadd.f32 %v3434, %v3514
    %3516 = vmatprep.mubr.bf16.mxu0 0
    %3517 = vmatmul.mubr.bf16.gmra.mxu0 %v146
    %v3518 = vpop.f32.mrf.mxu0
    %v3519 = vadd.f32 %v3438, %v3518
    %v3520 = vpop.f32.mrf.mxu0
    %v3521 = vadd.f32 %v3440, %v3520
    %v3522 = vpop.f32.mrf.mxu0
    %v3523 = vpop.f32.mrf.mxu0
    %3524 = vdwg.mxu0
    %3525 = vmatprep.subr.bf16.mxu0 %v2042
    %3526 = vmatpush1.bf16.msra.mxu0 %v2041
    %3527 = vmatprep.subr.bf16.mxu0 %v2034
    %3528 = vmatpush1.bf16.msra.mxu0 %v2033
    %3529 = vmatprep.subr.bf16.mxu0 %v2026
    %3530 = vmatpush1.bf16.msra.mxu0 %v2025
    %3531 = vmatprep.subr.bf16.mxu0 %v2018
    %3532 = vmatpush1.bf16.msra.mxu0 %v2017
    %3533 = vmatprep.subr.bf16.mxu0 %v2010
    %3534 = vmatpush1.bf16.msra.mxu0 %v2009
    %3535 = vmatprep.subr.bf16.mxu0 %v2002
    %3536 = vmatpush1.bf16.msra.mxu0 %v2001
    %3537 = vmatprep.subr.bf16.mxu0 %v1994
    %3538 = vmatpush1.bf16.msra.mxu0 %v1993
    %3539 = vmatprep.subr.bf16.mxu0 %v1986
    %3540 = vmatpush1.bf16.msra.mxu0 %v1985
    %3541 = vmatprep.subr.bf16.mxu0 %v2106
    %3542 = vmatpush2.bf16.msra.mxu0 %v2105
    %3543 = vmatprep.subr.bf16.mxu0 %v2098
    %3544 = vmatpush2.bf16.msra.mxu0 %v2097
    %3545 = vmatprep.subr.bf16.mxu0 %v2090
    %3546 = vmatpush2.bf16.msra.mxu0 %v2089
    %3547 = vmatprep.subr.bf16.mxu0 %v2082
    %3548 = vmatpush2.bf16.msra.mxu0 %v2081
    %3549 = vmatprep.subr.bf16.mxu0 %v2074
    %3550 = vmatpush2.bf16.msra.mxu0 %v2073
    %3551 = vmatprep.subr.bf16.mxu0 %v2066
    %3552 = vmatpush2.bf16.msra.mxu0 %v2065
    %3553 = vmatprep.subr.bf16.mxu0 %v2058
    %3554 = vmatpush2.bf16.msra.mxu0 %v2057
    %3555 = vmatprep.subr.bf16.mxu0 %v2050
    %3556 = vmatpush2.bf16.msra.mxu0 %v2049
    %3557 = vmatprep.mubr.bf16.mxu0 %v113
    %3558 = vmatmul.mubr.bf16.gmra.mxu0 %v112
    %v3559 = vpop.f32.mrf.mxu0
    %v3560 = vadd.f32 %v616, %v3559
    %v3561 = vpop.f32.mrf.mxu0
    %v3562 = vadd.f32 %v620, %v3561
    %v3563 = vpop.f32.mrf.mxu0
    %v3564 = vadd.f32 %v616, %v3563
    %v3565 = vpop.f32.mrf.mxu0
    %v3566 = vadd.f32 %v620, %v3565
    %3567 = vmatprep.mubr.bf16.mxu0 %v120
    %3568 = vmatmul.mubr.bf16.gmra.mxu0 %v119
    %v3569 = vpop.f32.mrf.mxu0
    %v3570 = vadd.f32 %v616, %v3569
    %v3571 = vpop.f32.mrf.mxu0
    %v3572 = vadd.f32 %v620, %v3571
    %v3573 = vpop.f32.mrf.mxu0
    %v3574 = vadd.f32 %v616, %v3573
    %v3575 = vpop.f32.mrf.mxu0
    %v3576 = vadd.f32 %v620, %v3575
    %3577 = vmatprep.mubr.bf16.mxu0 %v127
    %3578 = vmatmul.mubr.bf16.gmra.mxu0 %v126
    %v3579 = vpop.f32.mrf.mxu0
    %v3580 = vadd.f32 %v616, %v3579
    %v3581 = vpop.f32.mrf.mxu0
    %v3582 = vadd.f32 %v620, %v3581
    %v3583 = vpop.f32.mrf.mxu0
    %v3584 = vadd.f32 %v616, %v3583
    %v3585 = vpop.f32.mrf.mxu0
    %v3586 = vadd.f32 %v620, %v3585
    %3587 = vmatprep.mubr.bf16.mxu0 %v134
    %3588 = vmatmul.mubr.bf16.gmra.mxu0 %v133
    %v3589 = vpop.f32.mrf.mxu0
    %v3590 = vadd.f32 %v616, %v3589
    %v3591 = vpop.f32.mrf.mxu0
    %v3592 = vadd.f32 %v620, %v3591
    %v3593 = vpop.f32.mrf.mxu0
    %v3594 = vadd.f32 %v616, %v3593
    %v3595 = vpop.f32.mrf.mxu0
    %v3596 = vadd.f32 %v620, %v3595
    %3597 = vmatprep.mubr.bf16.mxu0 %v141
    %3598 = vmatmul.mubr.bf16.gmra.mxu0 %v140
    %v3599 = vpop.f32.mrf.mxu0
    %v3600 = vadd.f32 %v616, %v3599
    %v3601 = vpop.f32.mrf.mxu0
    %v3602 = vadd.f32 %v620, %v3601
    %v3603 = vpop.f32.mrf.mxu0
    %v3604 = vpop.f32.mrf.mxu0
    %3605 = vdwg.mxu0
    %3606 = vmatprep.subr.bf16.mxu0 %v2170
    %3607 = vmatpush1.bf16.msra.mxu0 %v2169
    %3608 = vmatprep.subr.bf16.mxu0 %v2162
    %3609 = vmatpush1.bf16.msra.mxu0 %v2161
    %3610 = vmatprep.subr.bf16.mxu0 %v2154
    %3611 = vmatpush1.bf16.msra.mxu0 %v2153
    %3612 = vmatprep.subr.bf16.mxu0 %v2146
    %3613 = vmatpush1.bf16.msra.mxu0 %v2145
    %3614 = vmatprep.subr.bf16.mxu0 %v2138
    %3615 = vmatpush1.bf16.msra.mxu0 %v2137
    %3616 = vmatprep.subr.bf16.mxu0 %v2130
    %3617 = vmatpush1.bf16.msra.mxu0 %v2129
    %3618 = vmatprep.subr.bf16.mxu0 %v2122
    %3619 = vmatpush1.bf16.msra.mxu0 %v2121
    %3620 = vmatprep.subr.bf16.mxu0 %v2114
    %3621 = vmatpush1.bf16.msra.mxu0 %v2113
    %3622 = vmatprep.subr.bf16.mxu0 %v2234
    %3623 = vmatpush2.bf16.msra.mxu0 %v2233
    %3624 = vmatprep.subr.bf16.mxu0 %v2226
    %3625 = vmatpush2.bf16.msra.mxu0 %v2225
    %3626 = vmatprep.subr.bf16.mxu0 %v2218
    %3627 = vmatpush2.bf16.msra.mxu0 %v2217
    %3628 = vmatprep.subr.bf16.mxu0 %v2210
    %3629 = vmatpush2.bf16.msra.mxu0 %v2209
    %3630 = vmatprep.subr.bf16.mxu0 %v2202
    %3631 = vmatpush2.bf16.msra.mxu0 %v2201
    %3632 = vmatprep.subr.bf16.mxu0 %v2194
    %3633 = vmatpush2.bf16.msra.mxu0 %v2193
    %3634 = vmatprep.subr.bf16.mxu0 %v2186
    %3635 = vmatpush2.bf16.msra.mxu0 %v2185
    %3636 = vmatprep.subr.bf16.mxu0 %v2178
    %3637 = vmatpush2.bf16.msra.mxu0 %v2177
    %3638 = vmatprep.mubr.bf16.mxu0 %v115
    %3639 = vmatmul.mubr.bf16.gmra.mxu0 %v114
    %v3640 = vpop.f32.mrf.mxu0
    %v3641 = vadd.f32 %v3560, %v3640
    %v3642 = vpop.f32.mrf.mxu0
    %v3643 = vadd.f32 %v3562, %v3642
    %v3644 = vpop.f32.mrf.mxu0
    %v3645 = vadd.f32 %v3564, %v3644
    %v3646 = vpop.f32.mrf.mxu0
    %v3647 = vadd.f32 %v3566, %v3646
    %3648 = vmatprep.mubr.bf16.mxu0 %v122
    %3649 = vmatmul.mubr.bf16.gmra.mxu0 %v121
    %v3650 = vpop.f32.mrf.mxu0
    %v3651 = vadd.f32 %v3570, %v3650
    %v3652 = vpop.f32.mrf.mxu0
    %v3653 = vadd.f32 %v3572, %v3652
    %v3654 = vpop.f32.mrf.mxu0
    %v3655 = vadd.f32 %v3574, %v3654
    %v3656 = vpop.f32.mrf.mxu0
    %v3657 = vadd.f32 %v3576, %v3656
    %3658 = vmatprep.mubr.bf16.mxu0 %v129
    %3659 = vmatmul.mubr.bf16.gmra.mxu0 %v128
    %v3660 = vpop.f32.mrf.mxu0
    %v3661 = vadd.f32 %v3580, %v3660
    %v3662 = vpop.f32.mrf.mxu0
    %v3663 = vadd.f32 %v3582, %v3662
    %v3664 = vpop.f32.mrf.mxu0
    %v3665 = vadd.f32 %v3584, %v3664
    %v3666 = vpop.f32.mrf.mxu0
    %v3667 = vadd.f32 %v3586, %v3666
    %3668 = vmatprep.mubr.bf16.mxu0 %v136
    %3669 = vmatmul.mubr.bf16.gmra.mxu0 %v135
    %v3670 = vpop.f32.mrf.mxu0
    %v3671 = vadd.f32 %v3590, %v3670
    %v3672 = vpop.f32.mrf.mxu0
    %v3673 = vadd.f32 %v3592, %v3672
    %v3674 = vpop.f32.mrf.mxu0
    %v3675 = vadd.f32 %v3594, %v3674
    %v3676 = vpop.f32.mrf.mxu0
    %v3677 = vadd.f32 %v3596, %v3676
    %3678 = vmatprep.mubr.bf16.mxu0 %v143
    %3679 = vmatmul.mubr.bf16.gmra.mxu0 %v142
    %v3680 = vpop.f32.mrf.mxu0
    %v3681 = vadd.f32 %v3600, %v3680
    %v3682 = vpop.f32.mrf.mxu0
    %v3683 = vadd.f32 %v3602, %v3682
    %v3684 = vpop.f32.mrf.mxu0
    %v3685 = vpop.f32.mrf.mxu0
    %3686 = vdwg.mxu0
    %3687 = vmatprep.subr.bf16.mxu0 %v2298
    %3688 = vmatpush1.bf16.msra.mxu0 %v2297
    %3689 = vmatprep.subr.bf16.mxu0 %v2290
    %3690 = vmatpush1.bf16.msra.mxu0 %v2289
    %3691 = vmatprep.subr.bf16.mxu0 %v2282
    %3692 = vmatpush1.bf16.msra.mxu0 %v2281
    %3693 = vmatprep.subr.bf16.mxu0 %v2274
    %3694 = vmatpush1.bf16.msra.mxu0 %v2273
    %3695 = vmatprep.subr.bf16.mxu0 %v2266
    %3696 = vmatpush1.bf16.msra.mxu0 %v2265
    %3697 = vmatprep.subr.bf16.mxu0 %v2258
    %3698 = vmatpush1.bf16.msra.mxu0 %v2257
    %3699 = vmatprep.subr.bf16.mxu0 %v2250
    %3700 = vmatpush1.bf16.msra.mxu0 %v2249
    %3701 = vmatprep.subr.bf16.mxu0 %v2242
    %3702 = vmatpush1.bf16.msra.mxu0 %v2241
    %3703 = vmatprep.subr.bf16.mxu0 %v2362
    %3704 = vmatpush2.bf16.msra.mxu0 %v2361
    %3705 = vmatprep.subr.bf16.mxu0 %v2354
    %3706 = vmatpush2.bf16.msra.mxu0 %v2353
    %3707 = vmatprep.subr.bf16.mxu0 %v2346
    %3708 = vmatpush2.bf16.msra.mxu0 %v2345
    %3709 = vmatprep.subr.bf16.mxu0 %v2338
    %3710 = vmatpush2.bf16.msra.mxu0 %v2337
    %3711 = vmatprep.subr.bf16.mxu0 %v2330
    %3712 = vmatpush2.bf16.msra.mxu0 %v2329
    %3713 = vmatprep.subr.bf16.mxu0 %v2322
    %3714 = vmatpush2.bf16.msra.mxu0 %v2321
    %3715 = vmatprep.subr.bf16.mxu0 %v2314
    %3716 = vmatpush2.bf16.msra.mxu0 %v2313
    %3717 = vmatprep.subr.bf16.mxu0 %v2306
    %3718 = vmatpush2.bf16.msra.mxu0 %v2305
    %3719 = vmatprep.mubr.bf16.mxu0 %v117
    %3720 = vmatmul.mubr.bf16.gmra.mxu0 %v116
    %v3721 = vpop.f32.mrf.mxu0
    %v3722 = vadd.f32 %v3641, %v3721
    %v3723 = vpop.f32.mrf.mxu0
    %v3724 = vadd.f32 %v3643, %v3723
    %v3725 = vpop.f32.mrf.mxu0
    %v3726 = vadd.f32 %v3645, %v3725
    %v3727 = vpop.f32.mrf.mxu0
    %v3728 = vadd.f32 %v3647, %v3727
    %3729 = vmatprep.mubr.bf16.mxu0 %v124
    %3730 = vmatmul.mubr.bf16.gmra.mxu0 %v123
    %v3731 = vpop.f32.mrf.mxu0
    %v3732 = vadd.f32 %v3651, %v3731
    %v3733 = vpop.f32.mrf.mxu0
    %v3734 = vadd.f32 %v3653, %v3733
    %v3735 = vpop.f32.mrf.mxu0
    %v3736 = vadd.f32 %v3655, %v3735
    %v3737 = vpop.f32.mrf.mxu0
    %v3738 = vadd.f32 %v3657, %v3737
    %3739 = vmatprep.mubr.bf16.mxu0 %v131
    %3740 = vmatmul.mubr.bf16.gmra.mxu0 %v130
    %v3741 = vpop.f32.mrf.mxu0
    %v3742 = vadd.f32 %v3661, %v3741
    %v3743 = vpop.f32.mrf.mxu0
    %v3744 = vadd.f32 %v3663, %v3743
    %v3745 = vpop.f32.mrf.mxu0
    %v3746 = vadd.f32 %v3665, %v3745
    %v3747 = vpop.f32.mrf.mxu0
    %v3748 = vadd.f32 %v3667, %v3747
    %3749 = vmatprep.mubr.bf16.mxu0 %v138
    %3750 = vmatmul.mubr.bf16.gmra.mxu0 %v137
    %v3751 = vpop.f32.mrf.mxu0
    %v3752 = vadd.f32 %v3671, %v3751
    %v3753 = vpop.f32.mrf.mxu0
    %v3754 = vadd.f32 %v3673, %v3753
    %v3755 = vpop.f32.mrf.mxu0
    %v3756 = vadd.f32 %v3675, %v3755
    %v3757 = vpop.f32.mrf.mxu0
    %v3758 = vadd.f32 %v3677, %v3757
    %3759 = vmatprep.mubr.bf16.mxu0 %v145
    %3760 = vmatmul.mubr.bf16.gmra.mxu0 %v144
    %v3761 = vpop.f32.mrf.mxu0
    %v3762 = vadd.f32 %v3681, %v3761
    %v3763 = vpop.f32.mrf.mxu0
    %v3764 = vadd.f32 %v3683, %v3763
    %v3765 = vpop.f32.mrf.mxu0
    %v3766 = vpop.f32.mrf.mxu0
    %3767 = vdwg.mxu0
    %3768 = vmatprep.subr.bf16.mxu0 %v2426
    %3769 = vmatpush1.bf16.msra.mxu0 %v2425
    %3770 = vmatprep.subr.bf16.mxu0 %v2418
    %3771 = vmatpush1.bf16.msra.mxu0 %v2417
    %3772 = vmatprep.subr.bf16.mxu0 %v2410
    %3773 = vmatpush1.bf16.msra.mxu0 %v2409
    %3774 = vmatprep.subr.bf16.mxu0 %v2402
    %3775 = vmatpush1.bf16.msra.mxu0 %v2401
    %3776 = vmatprep.subr.bf16.mxu0 %v2394
    %3777 = vmatpush1.bf16.msra.mxu0 %v2393
    %3778 = vmatprep.subr.bf16.mxu0 %v2386
    %3779 = vmatpush1.bf16.msra.mxu0 %v2385
    %3780 = vmatprep.subr.bf16.mxu0 %v2378
    %3781 = vmatpush1.bf16.msra.mxu0 %v2377
    %3782 = vmatprep.subr.bf16.mxu0 %v2370
    %3783 = vmatpush1.bf16.msra.mxu0 %v2369
    %3784 = vmatprep.subr.bf16.mxu0 0
    %3785 = vmatpush2.bf16.msra.mxu0 0
    %3786 = vmatprep.subr.bf16.mxu0 0
    %3787 = vmatpush2.bf16.msra.mxu0 0
    %3788 = vmatprep.subr.bf16.mxu0 0
    %3789 = vmatpush2.bf16.msra.mxu0 0
    %3790 = vmatprep.subr.bf16.mxu0 0
    %3791 = vmatpush2.bf16.msra.mxu0 0
    %3792 = vmatprep.subr.bf16.mxu0 0
    %3793 = vmatpush2.bf16.msra.mxu0 0
    %3794 = vmatprep.subr.bf16.mxu0 0
    %3795 = vmatpush2.bf16.msra.mxu0 0
    %3796 = vmatprep.subr.bf16.mxu0 0
    %3797 = vmatpush2.bf16.msra.mxu0 0
    %3798 = vmatprep.subr.bf16.mxu0 0
    %3799 = vmatpush2.bf16.msra.mxu0 0
    %3800 = vmatprep.mubr.bf16.mxu0 0
    %3801 = vmatmul.mubr.bf16.gmra.mxu0 %v118
    %v3802 = vpop.f32.mrf.mxu0
    %v3803 = vadd.f32 %v3722, %v3802
    %v3804 = vpop.f32.mrf.mxu0
    %v3805 = vadd.f32 %v3724, %v3804
    %v3806 = vpop.f32.mrf.mxu0
    %v3807 = vadd.f32 %v3726, %v3806
    %v3808 = vpop.f32.mrf.mxu0
    %v3809 = vadd.f32 %v3728, %v3808
    %3810 = vmatprep.mubr.bf16.mxu0 0
    %3811 = vmatmul.mubr.bf16.gmra.mxu0 %v125
    %v3812 = vpop.f32.mrf.mxu0
    %v3813 = vadd.f32 %v3732, %v3812
    %v3814 = vpop.f32.mrf.mxu0
    %v3815 = vadd.f32 %v3734, %v3814
    %v3816 = vpop.f32.mrf.mxu0
    %v3817 = vadd.f32 %v3736, %v3816
    %v3818 = vpop.f32.mrf.mxu0
    %v3819 = vadd.f32 %v3738, %v3818
    %3820 = vmatprep.mubr.bf16.mxu0 0
    %3821 = vmatmul.mubr.bf16.gmra.mxu0 %v132
    %v3822 = vpop.f32.mrf.mxu0
    %v3823 = vadd.f32 %v3742, %v3822
    %v3824 = vpop.f32.mrf.mxu0
    %v3825 = vadd.f32 %v3744, %v3824
    %v3826 = vpop.f32.mrf.mxu0
    %v3827 = vadd.f32 %v3746, %v3826
    %v3828 = vpop.f32.mrf.mxu0
    %v3829 = vadd.f32 %v3748, %v3828
    %3830 = vmatprep.mubr.bf16.mxu0 0
    %3831 = vmatmul.mubr.bf16.gmra.mxu0 %v139
    %v3832 = vpop.f32.mrf.mxu0
    %v3833 = vadd.f32 %v3752, %v3832
    %v3834 = vpop.f32.mrf.mxu0
    %v3835 = vadd.f32 %v3754, %v3834
    %v3836 = vpop.f32.mrf.mxu0
    %v3837 = vadd.f32 %v3756, %v3836
    %v3838 = vpop.f32.mrf.mxu0
    %v3839 = vadd.f32 %v3758, %v3838
    %3840 = vmatprep.mubr.bf16.mxu0 0
    %3841 = vmatmul.mubr.bf16.gmra.mxu0 %v146
    %v3842 = vpop.f32.mrf.mxu0
    %v3843 = vadd.f32 %v3762, %v3842
    %v3844 = vpop.f32.mrf.mxu0
    %v3845 = vadd.f32 %v3764, %v3844
    %v3846 = vpop.f32.mrf.mxu0
    %v3847 = vpop.f32.mrf.mxu0
    %3848 = vdwg.mxu0
    %3849 = vmatprep.subr.bf16.mxu0 %v2044
    %3850 = vmatpush1.bf16.msra.mxu0 %v2043
    %3851 = vmatprep.subr.bf16.mxu0 %v2036
    %3852 = vmatpush1.bf16.msra.mxu0 %v2035
    %3853 = vmatprep.subr.bf16.mxu0 %v2028
    %3854 = vmatpush1.bf16.msra.mxu0 %v2027
    %3855 = vmatprep.subr.bf16.mxu0 %v2020
    %3856 = vmatpush1.bf16.msra.mxu0 %v2019
    %3857 = vmatprep.subr.bf16.mxu0 %v2012
    %3858 = vmatpush1.bf16.msra.mxu0 %v2011
    %3859 = vmatprep.subr.bf16.mxu0 %v2004
    %3860 = vmatpush1.bf16.msra.mxu0 %v2003
    %3861 = vmatprep.subr.bf16.mxu0 %v1996
    %3862 = vmatpush1.bf16.msra.mxu0 %v1995
    %3863 = vmatprep.subr.bf16.mxu0 %v1988
    %3864 = vmatpush1.bf16.msra.mxu0 %v1987
    %3865 = vmatprep.subr.bf16.mxu0 %v2108
    %3866 = vmatpush2.bf16.msra.mxu0 %v2107
    %3867 = vmatprep.subr.bf16.mxu0 %v2100
    %3868 = vmatpush2.bf16.msra.mxu0 %v2099
    %3869 = vmatprep.subr.bf16.mxu0 %v2092
    %3870 = vmatpush2.bf16.msra.mxu0 %v2091
    %3871 = vmatprep.subr.bf16.mxu0 %v2084
    %3872 = vmatpush2.bf16.msra.mxu0 %v2083
    %3873 = vmatprep.subr.bf16.mxu0 %v2076
    %3874 = vmatpush2.bf16.msra.mxu0 %v2075
    %3875 = vmatprep.subr.bf16.mxu0 %v2068
    %3876 = vmatpush2.bf16.msra.mxu0 %v2067
    %3877 = vmatprep.subr.bf16.mxu0 %v2060
    %3878 = vmatpush2.bf16.msra.mxu0 %v2059
    %3879 = vmatprep.subr.bf16.mxu0 %v2052
    %3880 = vmatpush2.bf16.msra.mxu0 %v2051
    %3881 = vmatprep.mubr.bf16.mxu0 %v113
    %3882 = vmatmul.mubr.bf16.gmra.mxu0 %v112
    %v3883 = vpop.f32.mrf.mxu0
    %v3884 = vadd.f32 %v624, %v3883
    %v3885 = vpop.f32.mrf.mxu0
    %v3886 = vadd.f32 %v628, %v3885
    %v3887 = vpop.f32.mrf.mxu0
    %v3888 = vadd.f32 %v624, %v3887
    %v3889 = vpop.f32.mrf.mxu0
    %v3890 = vadd.f32 %v628, %v3889
    %3891 = vmatprep.mubr.bf16.mxu0 %v120
    %3892 = vmatmul.mubr.bf16.gmra.mxu0 %v119
    %v3893 = vpop.f32.mrf.mxu0
    %v3894 = vadd.f32 %v624, %v3893
    %v3895 = vpop.f32.mrf.mxu0
    %v3896 = vadd.f32 %v628, %v3895
    %v3897 = vpop.f32.mrf.mxu0
    %v3898 = vadd.f32 %v624, %v3897
    %v3899 = vpop.f32.mrf.mxu0
    %v3900 = vadd.f32 %v628, %v3899
    %3901 = vmatprep.mubr.bf16.mxu0 %v127
    %3902 = vmatmul.mubr.bf16.gmra.mxu0 %v126
    %v3903 = vpop.f32.mrf.mxu0
    %v3904 = vadd.f32 %v624, %v3903
    %v3905 = vpop.f32.mrf.mxu0
    %v3906 = vadd.f32 %v628, %v3905
    %v3907 = vpop.f32.mrf.mxu0
    %v3908 = vadd.f32 %v624, %v3907
    %v3909 = vpop.f32.mrf.mxu0
    %v3910 = vadd.f32 %v628, %v3909
    %3911 = vmatprep.mubr.bf16.mxu0 %v134
    %3912 = vmatmul.mubr.bf16.gmra.mxu0 %v133
    %v3913 = vpop.f32.mrf.mxu0
    %v3914 = vadd.f32 %v624, %v3913
    %v3915 = vpop.f32.mrf.mxu0
    %v3916 = vadd.f32 %v628, %v3915
    %v3917 = vpop.f32.mrf.mxu0
    %v3918 = vadd.f32 %v624, %v3917
    %v3919 = vpop.f32.mrf.mxu0
    %v3920 = vadd.f32 %v628, %v3919
    %3921 = vmatprep.mubr.bf16.mxu0 %v141
    %3922 = vmatmul.mubr.bf16.gmra.mxu0 %v140
    %v3923 = vpop.f32.mrf.mxu0
    %v3924 = vadd.f32 %v624, %v3923
    %v3925 = vpop.f32.mrf.mxu0
    %v3926 = vadd.f32 %v628, %v3925
    %v3927 = vpop.f32.mrf.mxu0
    %v3928 = vpop.f32.mrf.mxu0
    %3929 = vdwg.mxu0
    %3930 = vmatprep.subr.bf16.mxu0 %v2172
    %3931 = vmatpush1.bf16.msra.mxu0 %v2171
    %3932 = vmatprep.subr.bf16.mxu0 %v2164
    %3933 = vmatpush1.bf16.msra.mxu0 %v2163
    %3934 = vmatprep.subr.bf16.mxu0 %v2156
    %3935 = vmatpush1.bf16.msra.mxu0 %v2155
    %3936 = vmatprep.subr.bf16.mxu0 %v2148
    %3937 = vmatpush1.bf16.msra.mxu0 %v2147
    %3938 = vmatprep.subr.bf16.mxu0 %v2140
    %3939 = vmatpush1.bf16.msra.mxu0 %v2139
    %3940 = vmatprep.subr.bf16.mxu0 %v2132
    %3941 = vmatpush1.bf16.msra.mxu0 %v2131
    %3942 = vmatprep.subr.bf16.mxu0 %v2124
    %3943 = vmatpush1.bf16.msra.mxu0 %v2123
    %3944 = vmatprep.subr.bf16.mxu0 %v2116
    %3945 = vmatpush1.bf16.msra.mxu0 %v2115
    %3946 = vmatprep.subr.bf16.mxu0 %v2236
    %3947 = vmatpush2.bf16.msra.mxu0 %v2235
    %3948 = vmatprep.subr.bf16.mxu0 %v2228
    %3949 = vmatpush2.bf16.msra.mxu0 %v2227
    %3950 = vmatprep.subr.bf16.mxu0 %v2220
    %3951 = vmatpush2.bf16.msra.mxu0 %v2219
    %3952 = vmatprep.subr.bf16.mxu0 %v2212
    %3953 = vmatpush2.bf16.msra.mxu0 %v2211
    %3954 = vmatprep.subr.bf16.mxu0 %v2204
    %3955 = vmatpush2.bf16.msra.mxu0 %v2203
    %3956 = vmatprep.subr.bf16.mxu0 %v2196
    %3957 = vmatpush2.bf16.msra.mxu0 %v2195
    %3958 = vmatprep.subr.bf16.mxu0 %v2188
    %3959 = vmatpush2.bf16.msra.mxu0 %v2187
    %3960 = vmatprep.subr.bf16.mxu0 %v2180
    %3961 = vmatpush2.bf16.msra.mxu0 %v2179
    %3962 = vmatprep.mubr.bf16.mxu0 %v115
    %3963 = vmatmul.mubr.bf16.gmra.mxu0 %v114
    %v3964 = vpop.f32.mrf.mxu0
    %v3965 = vadd.f32 %v3884, %v3964
    %v3966 = vpop.f32.mrf.mxu0
    %v3967 = vadd.f32 %v3886, %v3966
    %v3968 = vpop.f32.mrf.mxu0
    %v3969 = vadd.f32 %v3888, %v3968
    %v3970 = vpop.f32.mrf.mxu0
    %v3971 = vadd.f32 %v3890, %v3970
    %3972 = vmatprep.mubr.bf16.mxu0 %v122
    %3973 = vmatmul.mubr.bf16.gmra.mxu0 %v121
    %v3974 = vpop.f32.mrf.mxu0
    %v3975 = vadd.f32 %v3894, %v3974
    %v3976 = vpop.f32.mrf.mxu0
    %v3977 = vadd.f32 %v3896, %v3976
    %v3978 = vpop.f32.mrf.mxu0
    %v3979 = vadd.f32 %v3898, %v3978
    %v3980 = vpop.f32.mrf.mxu0
    %v3981 = vadd.f32 %v3900, %v3980
    %3982 = vmatprep.mubr.bf16.mxu0 %v129
    %3983 = vmatmul.mubr.bf16.gmra.mxu0 %v128
    %v3984 = vpop.f32.mrf.mxu0
    %v3985 = vadd.f32 %v3904, %v3984
    %v3986 = vpop.f32.mrf.mxu0
    %v3987 = vadd.f32 %v3906, %v3986
    %v3988 = vpop.f32.mrf.mxu0
    %v3989 = vadd.f32 %v3908, %v3988
    %v3990 = vpop.f32.mrf.mxu0
    %v3991 = vadd.f32 %v3910, %v3990
    %3992 = vmatprep.mubr.bf16.mxu0 %v136
    %3993 = vmatmul.mubr.bf16.gmra.mxu0 %v135
    %v3994 = vpop.f32.mrf.mxu0
    %v3995 = vadd.f32 %v3914, %v3994
    %v3996 = vpop.f32.mrf.mxu0
    %v3997 = vadd.f32 %v3916, %v3996
    %v3998 = vpop.f32.mrf.mxu0
    %v3999 = vadd.f32 %v3918, %v3998
    %v4000 = vpop.f32.mrf.mxu0
    %v4001 = vadd.f32 %v3920, %v4000
    %4002 = vmatprep.mubr.bf16.mxu0 %v143
    %4003 = vmatmul.mubr.bf16.gmra.mxu0 %v142
    %v4004 = vpop.f32.mrf.mxu0
    %v4005 = vadd.f32 %v3924, %v4004
    %v4006 = vpop.f32.mrf.mxu0
    %v4007 = vadd.f32 %v3926, %v4006
    %v4008 = vpop.f32.mrf.mxu0
    %v4009 = vpop.f32.mrf.mxu0
    %4010 = vdwg.mxu0
    %4011 = vmatprep.subr.bf16.mxu0 %v2300
    %4012 = vmatpush1.bf16.msra.mxu0 %v2299
    %4013 = vmatprep.subr.bf16.mxu0 %v2292
    %4014 = vmatpush1.bf16.msra.mxu0 %v2291
    %4015 = vmatprep.subr.bf16.mxu0 %v2284
    %4016 = vmatpush1.bf16.msra.mxu0 %v2283
    %4017 = vmatprep.subr.bf16.mxu0 %v2276
    %4018 = vmatpush1.bf16.msra.mxu0 %v2275
    %4019 = vmatprep.subr.bf16.mxu0 %v2268
    %4020 = vmatpush1.bf16.msra.mxu0 %v2267
    %4021 = vmatprep.subr.bf16.mxu0 %v2260
    %4022 = vmatpush1.bf16.msra.mxu0 %v2259
    %4023 = vmatprep.subr.bf16.mxu0 %v2252
    %4024 = vmatpush1.bf16.msra.mxu0 %v2251
    %4025 = vmatprep.subr.bf16.mxu0 %v2244
    %4026 = vmatpush1.bf16.msra.mxu0 %v2243
    %4027 = vmatprep.subr.bf16.mxu0 %v2364
    %4028 = vmatpush2.bf16.msra.mxu0 %v2363
    %4029 = vmatprep.subr.bf16.mxu0 %v2356
    %4030 = vmatpush2.bf16.msra.mxu0 %v2355
    %4031 = vmatprep.subr.bf16.mxu0 %v2348
    %4032 = vmatpush2.bf16.msra.mxu0 %v2347
    %4033 = vmatprep.subr.bf16.mxu0 %v2340
    %4034 = vmatpush2.bf16.msra.mxu0 %v2339
    %4035 = vmatprep.subr.bf16.mxu0 %v2332
    %4036 = vmatpush2.bf16.msra.mxu0 %v2331
    %4037 = vmatprep.subr.bf16.mxu0 %v2324
    %4038 = vmatpush2.bf16.msra.mxu0 %v2323
    %4039 = vmatprep.subr.bf16.mxu0 %v2316
    %4040 = vmatpush2.bf16.msra.mxu0 %v2315
    %4041 = vmatprep.subr.bf16.mxu0 %v2308
    %4042 = vmatpush2.bf16.msra.mxu0 %v2307
    %4043 = vmatprep.mubr.bf16.mxu0 %v117
    %4044 = vmatmul.mubr.bf16.gmra.mxu0 %v116
    %v4045 = vpop.f32.mrf.mxu0
    %v4046 = vadd.f32 %v3965, %v4045
    %v4047 = vpop.f32.mrf.mxu0
    %v4048 = vadd.f32 %v3967, %v4047
    %v4049 = vpop.f32.mrf.mxu0
    %v4050 = vadd.f32 %v3969, %v4049
    %v4051 = vpop.f32.mrf.mxu0
    %v4052 = vadd.f32 %v3971, %v4051
    %4053 = vmatprep.mubr.bf16.mxu0 %v124
    %4054 = vmatmul.mubr.bf16.gmra.mxu0 %v123
    %v4055 = vpop.f32.mrf.mxu0
    %v4056 = vadd.f32 %v3975, %v4055
    %v4057 = vpop.f32.mrf.mxu0
    %v4058 = vadd.f32 %v3977, %v4057
    %v4059 = vpop.f32.mrf.mxu0
    %v4060 = vadd.f32 %v3979, %v4059
    %v4061 = vpop.f32.mrf.mxu0
    %v4062 = vadd.f32 %v3981, %v4061
    %4063 = vmatprep.mubr.bf16.mxu0 %v131
    %4064 = vmatmul.mubr.bf16.gmra.mxu0 %v130
    %v4065 = vpop.f32.mrf.mxu0
    %v4066 = vadd.f32 %v3985, %v4065
    %v4067 = vpop.f32.mrf.mxu0
    %v4068 = vadd.f32 %v3987, %v4067
    %v4069 = vpop.f32.mrf.mxu0
    %v4070 = vadd.f32 %v3989, %v4069
    %v4071 = vpop.f32.mrf.mxu0
    %v4072 = vadd.f32 %v3991, %v4071
    %4073 = vmatprep.mubr.bf16.mxu0 %v138
    %4074 = vmatmul.mubr.bf16.gmra.mxu0 %v137
    %v4075 = vpop.f32.mrf.mxu0
    %v4076 = vadd.f32 %v3995, %v4075
    %v4077 = vpop.f32.mrf.mxu0
    %v4078 = vadd.f32 %v3997, %v4077
    %v4079 = vpop.f32.mrf.mxu0
    %v4080 = vadd.f32 %v3999, %v4079
    %v4081 = vpop.f32.mrf.mxu0
    %v4082 = vadd.f32 %v4001, %v4081
    %4083 = vmatprep.mubr.bf16.mxu0 %v145
    %4084 = vmatmul.mubr.bf16.gmra.mxu0 %v144
    %v4085 = vpop.f32.mrf.mxu0
    %v4086 = vadd.f32 %v4005, %v4085
    %v4087 = vpop.f32.mrf.mxu0
    %v4088 = vadd.f32 %v4007, %v4087
    %v4089 = vpop.f32.mrf.mxu0
    %v4090 = vpop.f32.mrf.mxu0
    %4091 = vdwg.mxu0
    %4092 = vmatprep.subr.bf16.mxu0 %v2428
    %4093 = vmatpush1.bf16.msra.mxu0 %v2427
    %4094 = vmatprep.subr.bf16.mxu0 %v2420
    %4095 = vmatpush1.bf16.msra.mxu0 %v2419
    %4096 = vmatprep.subr.bf16.mxu0 %v2412
    %4097 = vmatpush1.bf16.msra.mxu0 %v2411
    %4098 = vmatprep.subr.bf16.mxu0 %v2404
    %4099 = vmatpush1.bf16.msra.mxu0 %v2403
    %4100 = vmatprep.subr.bf16.mxu0 %v2396
    %4101 = vmatpush1.bf16.msra.mxu0 %v2395
    %4102 = vmatprep.subr.bf16.mxu0 %v2388
    %4103 = vmatpush1.bf16.msra.mxu0 %v2387
    %4104 = vmatprep.subr.bf16.mxu0 %v2380
    %4105 = vmatpush1.bf16.msra.mxu0 %v2379
    %4106 = vmatprep.subr.bf16.mxu0 %v2372
    %4107 = vmatpush1.bf16.msra.mxu0 %v2371
    %4108 = vmatprep.subr.bf16.mxu0 0
    %4109 = vmatpush2.bf16.msra.mxu0 0
    %4110 = vmatprep.subr.bf16.mxu0 0
    %4111 = vmatpush2.bf16.msra.mxu0 0
    %4112 = vmatprep.subr.bf16.mxu0 0
    %4113 = vmatpush2.bf16.msra.mxu0 0
    %4114 = vmatprep.subr.bf16.mxu0 0
    %4115 = vmatpush2.bf16.msra.mxu0 0
    %4116 = vmatprep.subr.bf16.mxu0 0
    %4117 = vmatpush2.bf16.msra.mxu0 0
    %4118 = vmatprep.subr.bf16.mxu0 0
    %4119 = vmatpush2.bf16.msra.mxu0 0
    %4120 = vmatprep.subr.bf16.mxu0 0
    %4121 = vmatpush2.bf16.msra.mxu0 0
    %4122 = vmatprep.subr.bf16.mxu0 0
    %4123 = vmatpush2.bf16.msra.mxu0 0
    %4124 = vmatprep.mubr.bf16.mxu0 0
    %4125 = vmatmul.mubr.bf16.gmra.mxu0 %v118
    %v4126 = vpop.f32.mrf.mxu0
    %v4127 = vadd.f32 %v4046, %v4126
    %v4128 = vpop.f32.mrf.mxu0
    %v4129 = vadd.f32 %v4048, %v4128
    %v4130 = vpop.f32.mrf.mxu0
    %v4131 = vadd.f32 %v4050, %v4130
    %v4132 = vpop.f32.mrf.mxu0
    %v4133 = vadd.f32 %v4052, %v4132
    %4134 = vmatprep.mubr.bf16.mxu0 0
    %4135 = vmatmul.mubr.bf16.gmra.mxu0 %v125
    %v4136 = vpop.f32.mrf.mxu0
    %v4137 = vadd.f32 %v4056, %v4136
    %v4138 = vpop.f32.mrf.mxu0
    %v4139 = vadd.f32 %v4058, %v4138
    %v4140 = vpop.f32.mrf.mxu0
    %v4141 = vadd.f32 %v4060, %v4140
    %v4142 = vpop.f32.mrf.mxu0
    %v4143 = vadd.f32 %v4062, %v4142
    %4144 = vmatprep.mubr.bf16.mxu0 0
    %4145 = vmatmul.mubr.bf16.gmra.mxu0 %v132
    %v4146 = vpop.f32.mrf.mxu0
    %v4147 = vadd.f32 %v4066, %v4146
    %v4148 = vpop.f32.mrf.mxu0
    %v4149 = vadd.f32 %v4068, %v4148
    %v4150 = vpop.f32.mrf.mxu0
    %v4151 = vadd.f32 %v4070, %v4150
    %v4152 = vpop.f32.mrf.mxu0
    %v4153 = vadd.f32 %v4072, %v4152
    %4154 = vmatprep.mubr.bf16.mxu0 0
    %4155 = vmatmul.mubr.bf16.gmra.mxu0 %v139
    %v4156 = vpop.f32.mrf.mxu0
    %v4157 = vadd.f32 %v4076, %v4156
    %v4158 = vpop.f32.mrf.mxu0
    %v4159 = vadd.f32 %v4078, %v4158
    %v4160 = vpop.f32.mrf.mxu0
    %v4161 = vadd.f32 %v4080, %v4160
    %v4162 = vpop.f32.mrf.mxu0
    %v4163 = vadd.f32 %v4082, %v4162
    %4164 = vmatprep.mubr.bf16.mxu0 0
    %4165 = vmatmul.mubr.bf16.gmra.mxu0 %v146
    %v4166 = vpop.f32.mrf.mxu0
    %v4167 = vadd.f32 %v4086, %v4166
    %v4168 = vpop.f32.mrf.mxu0
    %v4169 = vadd.f32 %v4088, %v4168
    %v4170 = vpop.f32.mrf.mxu0
    %v4171 = vpop.f32.mrf.mxu0
    %4172 = vdwg.mxu0
    %v4173 = vmax.f32 %v3155, 0.0
    %v4174 = vmax.f32 %v3157, 0.0
    %v4175 = vmax.f32 %v3479, 0.0
    %v4176 = vmax.f32 %v3481, 0.0
    %v4177 = vmax.f32 %v3803, 0.0
    %v4178 = vmax.f32 %v3805, 0.0
    %v4179 = vmax.f32 %v4127, 0.0
    %v4180 = vmax.f32 %v4129, 0.0
    %v4181 = vmax.f32 %v3159, 0.0
    %v4182 = vmax.f32 %v3161, 0.0
    %v4183 = vmax.f32 %v3483, 0.0
    %v4184 = vmax.f32 %v3485, 0.0
    %v4185 = vmax.f32 %v3807, 0.0
    %v4186 = vmax.f32 %v3809, 0.0
    %v4187 = vmax.f32 %v4131, 0.0
    %v4188 = vmax.f32 %v4133, 0.0
    %v4189 = vmax.f32 %v3165, 0.0
    %v4190 = vmax.f32 %v3167, 0.0
    %v4191 = vmax.f32 %v3489, 0.0
    %v4192 = vmax.f32 %v3491, 0.0
    %v4193 = vmax.f32 %v3813, 0.0
    %v4194 = vmax.f32 %v3815, 0.0
    %v4195 = vmax.f32 %v4137, 0.0
    %v4196 = vmax.f32 %v4139, 0.0
    %v4197 = vmax.f32 %v3169, 0.0
    %v4198 = vmax.f32 %v3171, 0.0
    %v4199 = vmax.f32 %v3493, 0.0
    %v4200 = vmax.f32 %v3495, 0.0
    %v4201 = vmax.f32 %v3817, 0.0
    %v4202 = vmax.f32 %v3819, 0.0
    %v4203 = vmax.f32 %v4141, 0.0
    %v4204 = vmax.f32 %v4143, 0.0
    %v4205 = vmax.f32 %v3175, 0.0
    %v4206 = vmax.f32 %v3177, 0.0
    %v4207 = vmax.f32 %v3499, 0.0
    %v4208 = vmax.f32 %v3501, 0.0
    %v4209 = vmax.f32 %v3823, 0.0
    %v4210 = vmax.f32 %v3825, 0.0
    %v4211 = vmax.f32 %v4147, 0.0
    %v4212 = vmax.f32 %v4149, 0.0
    %v4213 = vmax.f32 %v3179, 0.0
    %v4214 = vmax.f32 %v3181, 0.0
    %v4215 = vmax.f32 %v3503, 0.0
    %v4216 = vmax.f32 %v3505, 0.0
    %v4217 = vmax.f32 %v3827, 0.0
    %v4218 = vmax.f32 %v3829, 0.0
    %v4219 = vmax.f32 %v4151, 0.0
    %v4220 = vmax.f32 %v4153, 0.0
    %v4221 = vmax.f32 %v3185, 0.0
    %v4222 = vmax.f32 %v3187, 0.0
    %v4223 = vmax.f32 %v3509, 0.0
    %v4224 = vmax.f32 %v3511, 0.0
    %v4225 = vmax.f32 %v3833, 0.0
    %v4226 = vmax.f32 %v3835, 0.0
    %v4227 = vmax.f32 %v4157, 0.0
    %v4228 = vmax.f32 %v4159, 0.0
    %v4229 = vmax.f32 %v3189, 0.0
    %v4230 = vmax.f32 %v3191, 0.0
    %v4231 = vmax.f32 %v3513, 0.0
    %v4232 = vmax.f32 %v3515, 0.0
    %v4233 = vmax.f32 %v3837, 0.0
    %v4234 = vmax.f32 %v3839, 0.0
    %v4235 = vmax.f32 %v4161, 0.0
    %v4236 = vmax.f32 %v4163, 0.0
    %v4237 = vmax.f32 %v3195, 0.0
    %v4238 = vmax.f32 %v3197, 0.0
    %v4239 = vmax.f32 %v3519, 0.0
    %v4240 = vmax.f32 %v3521, 0.0
    %v4241 = vmax.f32 %v3843, 0.0
    %v4242 = vmax.f32 %v3845, 0.0
    %v4243 = vmax.f32 %v4167, 0.0
    %v4244 = vmax.f32 %v4169, 0.0
    %v4245 = vpack.c.bf16 %v4181, %v4173
    %v4246 = vpack.c.bf16 %v4182, %v4174
    %v4247 = vpack.c.bf16 %v4183, %v4175
    %v4248 = vpack.c.bf16 %v4184, %v4176
    %v4249 = vpack.c.bf16 %v4185, %v4177
    %v4250 = vpack.c.bf16 %v4186, %v4178
    %v4251 = vpack.c.bf16 %v4187, %v4179
    %v4252 = vpack.c.bf16 %v4188, %v4180
    %v4253 = vpack.c.bf16 %v4197, %v4189
    %v4254 = vpack.c.bf16 %v4198, %v4190
    %v4255 = vpack.c.bf16 %v4199, %v4191
    %v4256 = vpack.c.bf16 %v4200, %v4192
    %v4257 = vpack.c.bf16 %v4201, %v4193
    %v4258 = vpack.c.bf16 %v4202, %v4194
    %v4259 = vpack.c.bf16 %v4203, %v4195
    %v4260 = vpack.c.bf16 %v4204, %v4196
    %v4261 = vpack.c.bf16 %v4213, %v4205
    %v4262 = vpack.c.bf16 %v4214, %v4206
    %v4263 = vpack.c.bf16 %v4215, %v4207
    %v4264 = vpack.c.bf16 %v4216, %v4208
    %v4265 = vpack.c.bf16 %v4217, %v4209
    %v4266 = vpack.c.bf16 %v4218, %v4210
    %v4267 = vpack.c.bf16 %v4219, %v4211
    %v4268 = vpack.c.bf16 %v4220, %v4212
    %v4269 = vpack.c.bf16 %v4229, %v4221
    %v4270 = vpack.c.bf16 %v4230, %v4222
    %v4271 = vpack.c.bf16 %v4231, %v4223
    %v4272 = vpack.c.bf16 %v4232, %v4224
    %v4273 = vpack.c.bf16 %v4233, %v4225
    %v4274 = vpack.c.bf16 %v4234, %v4226
    %v4275 = vpack.c.bf16 %v4235, %v4227
    %v4276 = vpack.c.bf16 %v4236, %v4228
    %v4277 = vpack.c.bf16 %v4237, %v4237
    %v4278 = vpack.c.bf16 %v4238, %v4238
    %v4279 = vpack.c.bf16 %v4239, %v4239
    %v4280 = vpack.c.bf16 %v4240, %v4240
    %v4281 = vpack.c.bf16 %v4241, %v4241
    %v4282 = vpack.c.bf16 %v4242, %v4242
    %v4283 = vpack.c.bf16 %v4243, %v4243
    %v4284 = vpack.c.bf16 %v4244, %v4244
    %v4285 = vld [vmem:[%s3] sm:$0xff]
    %v4286 = vld [vmem:[%s3 + $0x8] sm:$0xff]
    %v4287 = vld [vmem:[%s3 + $0x10] sm:$0xff]
    %v4288 = vld [vmem:[%s3 + $0x18] sm:$0xff]
    %v4289 = vld [vmem:[%s3 + $0x20] sm:$0xff]
    %v4290 = vld [vmem:[%s3 + $0x28] sm:$0xff]
    %v4291 = vld [vmem:[%s3 + $0x30] sm:$0xff]
    %v4292 = vld [vmem:[%s3 + $0x38] sm:$0xff]
    %v4293 = vld [vmem:[%s3 + $0x40] sm:$0xff]
    %v4294 = vld [vmem:[%s3 + $0x48] sm:$0xff]
    %v4295 = vld [vmem:[%s3 + $0x50] sm:$0xff]
    %v4296 = vld [vmem:[%s3 + $0x58] sm:$0xff]
    %v4297 = vld [vmem:[%s3 + $0x60] sm:$0xff]
    %v4298 = vld [vmem:[%s3 + $0x68] sm:$0xff]
    %v4299 = vld [vmem:[%s3 + $0x70] sm:$0xff]
    %v4300 = vld [vmem:[%s3 + $0x78] sm:$0xff]
    %v4301 = vld [vmem:[%s3 + $0x80] sm:$0xff]
    %v4302 = vld [vmem:[%s3 + $0x88] sm:$0xff]
    %v4303 = vld [vmem:[%s3 + $0x90] sm:$0xff]
    %v4304 = vld [vmem:[%s3 + $0x98] sm:$0xff]
    %v4305 = vld [vmem:[%s3 + $0xa0] sm:$0xff]
    %v4306 = vld [vmem:[%s3 + $0xa8] sm:$0xff]
    %v4307 = vld [vmem:[%s3 + $0xb0] sm:$0xff]
    %v4308 = vld [vmem:[%s3 + $0xb8] sm:$0xff]
    %v4309 = vld [vmem:[%s3 + $0xc0] sm:$0xff]
    %v4310 = vld [vmem:[%s3 + $0xc8] sm:$0xff]
    %v4311 = vld [vmem:[%s3 + $0xd0] sm:$0xff]
    %v4312 = vld [vmem:[%s3 + $0xd8] sm:$0xff]
    %v4313 = vld [vmem:[%s3 + $0xe0] sm:$0xff]
    %v4314 = vld [vmem:[%s3 + $0xe8] sm:$0xff]
    %v4315 = vld [vmem:[%s3 + $0xf0] sm:$0xff]
    %v4316 = vld [vmem:[%s3 + $0xf8] sm:$0xff]
    %v4317 = vld [vmem:[%s3 + $0x100] sm:$0xff]
    %v4318 = vld [vmem:[%s3 + $0x108] sm:$0xff]
    %v4319 = vld [vmem:[%s3 + $0x110] sm:$0xff]
    %v4320 = vld [vmem:[%s3 + $0x118] sm:$0xff]
    %v4321 = vld [vmem:[%s3 + $0x120] sm:$0xff]
    %v4322 = vld [vmem:[%s3 + $0x128] sm:$0xff]
    %v4323 = vld [vmem:[%s3 + $0x130] sm:$0xff]
    %v4324 = vld [vmem:[%s3 + $0x138] sm:$0xff]
    %v4325 = vld [vmem:[%s3 + $0x140] sm:$0xff]
    %v4326 = vld [vmem:[%s3 + $0x148] sm:$0xff]
    %v4327 = vld [vmem:[%s3 + $0x150] sm:$0xff]
    %v4328 = vld [vmem:[%s3 + $0x158] sm:$0xff]
    %v4329 = vld [vmem:[%s3 + $0x160] sm:$0xff]
    %v4330 = vld [vmem:[%s3 + $0x168] sm:$0xff]
    %v4331 = vld [vmem:[%s3 + $0x170] sm:$0xff]
    %v4332 = vld [vmem:[%s3 + $0x178] sm:$0xff]
    %v4333 = vld [vmem:[%s3 + $0x180] sm:$0xff]
    %v4334 = vld [vmem:[%s3 + $0x188] sm:$0xff]
    %v4335 = vld [vmem:[%s3 + $0x190] sm:$0xff]
    %v4336 = vld [vmem:[%s3 + $0x198] sm:$0xff]
    %v4337 = vld [vmem:[%s3 + $0x1a0] sm:$0xff]
    %v4338 = vld [vmem:[%s3 + $0x1a8] sm:$0xff]
    %v4339 = vld [vmem:[%s3 + $0x1b0] sm:$0xff]
    %v4340 = vld [vmem:[%s3 + $0x1b8] sm:$0xff]
    %v4341 = vld [vmem:[%s3 + $0x1c0] sm:$0xff]
    %v4342 = vld [vmem:[%s3 + $0x1c8] sm:$0xff]
    %v4343 = vld [vmem:[%s3 + $0x1d0] sm:$0xff]
    %v4344 = vld [vmem:[%s3 + $0x1d8] sm:$0xff]
    %v4345 = vld [vmem:[%s3 + $0x1e0] sm:$0xff]
    %v4346 = vld [vmem:[%s3 + $0x1e8] sm:$0xff]
    %v4347 = vld [vmem:[%s3 + $0x1f0] sm:$0xff]
    %v4348 = vld [vmem:[%s3 + $0x1f8] sm:$0xff]
    %v4349 = vld [vmem:[%s3 + $0x200] sm:$0xff]
    %v4350 = vld [vmem:[%s3 + $0x208] sm:$0xff]
    %v4351 = vld [vmem:[%s3 + $0x210] sm:$0xff]
    %v4352 = vld [vmem:[%s3 + $0x218] sm:$0xff]
    %v4353 = vld [vmem:[%s3 + $0x220] sm:$0xff]
    %v4354 = vld [vmem:[%s3 + $0x228] sm:$0xff]
    %v4355 = vld [vmem:[%s3 + $0x230] sm:$0xff]
    %v4356 = vld [vmem:[%s3 + $0x238] sm:$0xff]
    %v4357 = vld [vmem:[%s3 + $0x240] sm:$0xff]
    %v4358 = vld [vmem:[%s3 + $0x248] sm:$0xff]
    %v4359 = vld [vmem:[%s3 + $0x250] sm:$0xff]
    %v4360 = vld [vmem:[%s3 + $0x258] sm:$0xff]
    %v4361 = vld [vmem:[%s3 + $0x260] sm:$0xff]
    %v4362 = vld [vmem:[%s3 + $0x268] sm:$0xff]
    %v4363 = vld [vmem:[%s3 + $0x270] sm:$0xff]
    %v4364 = vld [vmem:[%s3 + $0x278] sm:$0xff]
    %v4365 = vld [vmem:[%s3 + $0x280] sm:$0xff]
    %v4366 = vld [vmem:[%s3 + $0x288] sm:$0xff]
    %v4367 = vld [vmem:[%s3 + $0x290] sm:$0xff]
    %v4368 = vld [vmem:[%s3 + $0x298] sm:$0xff]
    %v4369 = vld [vmem:[%s3 + $0x2a0] sm:$0xff]
    %v4370 = vld [vmem:[%s3 + $0x2a8] sm:$0xff]
    %v4371 = vld [vmem:[%s3 + $0x2b0] sm:$0xff]
    %v4372 = vld [vmem:[%s3 + $0x2b8] sm:$0xff]
    %v4373 = vld [vmem:[%s3 + $0x2c0] sm:$0xff]
    %v4374 = vld [vmem:[%s3 + $0x2c8] sm:$0xff]
    %v4375 = vld [vmem:[%s3 + $0x2d0] sm:$0xff]
    %v4376 = vld [vmem:[%s3 + $0x2d8] sm:$0xff]
    %v4377 = vld [vmem:[%s3 + $0x2e0] sm:$0xff]
    %v4378 = vld [vmem:[%s3 + $0x2e8] sm:$0xff]
    %v4379 = vld [vmem:[%s3 + $0x2f0] sm:$0xff]
    %v4380 = vld [vmem:[%s3 + $0x2f8] sm:$0xff]
    %v4381 = vld [vmem:[%s3 + $0x300] sm:$0xff]
    %v4382 = vld [vmem:[%s3 + $0x308] sm:$0xff]
    %v4383 = vld [vmem:[%s3 + $0x310] sm:$0xff]
    %v4384 = vld [vmem:[%s3 + $0x318] sm:$0xff]
    %v4385 = vld [vmem:[%s3 + $0x320] sm:$0xff]
    %v4386 = vld [vmem:[%s3 + $0x328] sm:$0xff]
    %v4387 = vld [vmem:[%s3 + $0x330] sm:$0xff]
    %v4388 = vld [vmem:[%s3 + $0x338] sm:$0xff]
    %v4389 = vld [vmem:[%s3 + $0x340] sm:$0xff]
    %v4390 = vld [vmem:[%s3 + $0x348] sm:$0xff]
    %v4391 = vld [vmem:[%s3 + $0x350] sm:$0xff]
    %v4392 = vld [vmem:[%s3 + $0x358] sm:$0xff]
    %v4393 = vld [vmem:[%s3 + $0x360] sm:$0xff]
    %v4394 = vld [vmem:[%s3 + $0x368] sm:$0xff]
    %v4395 = vld [vmem:[%s3 + $0x370] sm:$0xff]
    %v4396 = vld [vmem:[%s3 + $0x378] sm:$0xff]
    %v4397 = vld [vmem:[%s3 + $0x380] sm:$0xff]
    %v4398 = vld [vmem:[%s3 + $0x388] sm:$0xff]
    %v4399 = vld [vmem:[%s3 + $0x390] sm:$0xff]
    %v4400 = vld [vmem:[%s3 + $0x398] sm:$0xff]
    %v4401 = vld [vmem:[%s3 + $0x3a0] sm:$0xff]
    %v4402 = vld [vmem:[%s3 + $0x3a8] sm:$0xff]
    %v4403 = vld [vmem:[%s3 + $0x3b0] sm:$0xff]
    %v4404 = vld [vmem:[%s3 + $0x3b8] sm:$0xff]
    %v4405 = vld [vmem:[%s3 + $0x3c0] sm:$0xff]
    %v4406 = vld [vmem:[%s3 + $0x3c8] sm:$0xff]
    %v4407 = vld [vmem:[%s3 + $0x3d0] sm:$0xff]
    %v4408 = vld [vmem:[%s3 + $0x3d8] sm:$0xff]
    %v4409 = vld [vmem:[%s3 + $0x3e0] sm:$0xff]
    %v4410 = vld [vmem:[%s3 + $0x3e8] sm:$0xff]
    %v4411 = vld [vmem:[%s3 + $0x3f0] sm:$0xff]
    %v4412 = vld [vmem:[%s3 + $0x3f8] sm:$0xff]
    %v4413 = vld [vmem:[%s3 + $0x400] sm:$0xff]
    %v4414 = vld [vmem:[%s3 + $0x408] sm:$0xff]
    %v4415 = vld [vmem:[%s3 + $0x410] sm:$0xff]
    %v4416 = vld [vmem:[%s3 + $0x418] sm:$0xff]
    %v4417 = vld [vmem:[%s3 + $0x420] sm:$0xff]
    %v4418 = vld [vmem:[%s3 + $0x428] sm:$0xff]
    %v4419 = vld [vmem:[%s3 + $0x430] sm:$0xff]
    %v4420 = vld [vmem:[%s3 + $0x438] sm:$0xff]
    %v4421 = vld [vmem:[%s3 + $0x440] sm:$0xff]
    %v4422 = vld [vmem:[%s3 + $0x448] sm:$0xff]
    %v4423 = vld [vmem:[%s3 + $0x450] sm:$0xff]
    %v4424 = vld [vmem:[%s3 + $0x458] sm:$0xff]
    %v4425 = vld [vmem:[%s3 + $0x460] sm:$0xff]
    %v4426 = vld [vmem:[%s3 + $0x468] sm:$0xff]
    %v4427 = vld [vmem:[%s3 + $0x470] sm:$0xff]
    %v4428 = vld [vmem:[%s3 + $0x478] sm:$0xff]
    %v4429 = vld [vmem:[%s3 + $0x480] sm:$0xff]
    %v4430 = vld [vmem:[%s3 + $0x488] sm:$0xff]
    %v4431 = vld [vmem:[%s3 + $0x490] sm:$0xff]
    %v4432 = vld [vmem:[%s3 + $0x498] sm:$0xff]
    %v4433 = vld [vmem:[%s3 + $0x4a0] sm:$0xff]
    %v4434 = vld [vmem:[%s3 + $0x4a8] sm:$0xff]
    %v4435 = vld [vmem:[%s3 + $0x4b0] sm:$0xff]
    %v4436 = vld [vmem:[%s3 + $0x4b8] sm:$0xff]
    %v4437 = vld [vmem:[%s3 + $0x4c0] sm:$0xff]
    %v4438 = vld [vmem:[%s3 + $0x4c8] sm:$0xff]
    %v4439 = vld [vmem:[%s3 + $0x4d0] sm:$0xff]
    %v4440 = vld [vmem:[%s3 + $0x4d8] sm:$0xff]
    %v4441 = vld [vmem:[%s3 + $0x4e0] sm:$0xff]
    %v4442 = vld [vmem:[%s3 + $0x4e8] sm:$0xff]
    %v4443 = vld [vmem:[%s3 + $0x4f0] sm:$0xff]
    %v4444 = vld [vmem:[%s3 + $0x4f8] sm:$0xff]
    %v4445 = vld [vmem:[%s3 + $0x500] sm:$0xff]
    %v4446 = vld [vmem:[%s3 + $0x508] sm:$0xff]
    %v4447 = vld [vmem:[%s3 + $0x510] sm:$0xff]
    %v4448 = vld [vmem:[%s3 + $0x518] sm:$0xff]
    %v4449 = vld [vmem:[%s3 + $0x520] sm:$0xff]
    %v4450 = vld [vmem:[%s3 + $0x528] sm:$0xff]
    %v4451 = vld [vmem:[%s3 + $0x530] sm:$0xff]
    %v4452 = vld [vmem:[%s3 + $0x538] sm:$0xff]
    %v4453 = vld [vmem:[%s3 + $0x540] sm:$0xff]
    %v4454 = vld [vmem:[%s3 + $0x548] sm:$0xff]
    %v4455 = vld [vmem:[%s3 + $0x550] sm:$0xff]
    %v4456 = vld [vmem:[%s3 + $0x558] sm:$0xff]
    %v4457 = vld [vmem:[%s3 + $0x560] sm:$0xff]
    %v4458 = vld [vmem:[%s3 + $0x568] sm:$0xff]
    %v4459 = vld [vmem:[%s3 + $0x570] sm:$0xff]
    %v4460 = vld [vmem:[%s3 + $0x578] sm:$0xff]
    %v4461 = vld [vmem:[%s3 + $0x580] sm:$0xff]
    %v4462 = vld [vmem:[%s3 + $0x588] sm:$0xff]
    %v4463 = vld [vmem:[%s3 + $0x590] sm:$0xff]
    %v4464 = vld [vmem:[%s3 + $0x598] sm:$0xff]
    %v4465 = vld [vmem:[%s3 + $0x5a0] sm:$0xff]
    %v4466 = vld [vmem:[%s3 + $0x5a8] sm:$0xff]
    %v4467 = vld [vmem:[%s3 + $0x5b0] sm:$0xff]
    %v4468 = vld [vmem:[%s3 + $0x5b8] sm:$0xff]
    %v4469 = vld [vmem:[%s3 + $0x5c0] sm:$0xff]
    %v4470 = vld [vmem:[%s3 + $0x5c8] sm:$0xff]
    %v4471 = vld [vmem:[%s3 + $0x5d0] sm:$0xff]
    %v4472 = vld [vmem:[%s3 + $0x5d8] sm:$0xff]
    %v4473 = vld [vmem:[%s3 + $0x5e0] sm:$0xff]
    %v4474 = vld [vmem:[%s3 + $0x5e8] sm:$0xff]
    %v4475 = vld [vmem:[%s3 + $0x5f0] sm:$0xff]
    %v4476 = vld [vmem:[%s3 + $0x5f8] sm:$0xff]
    %v4477 = vld [vmem:[%s3 + $0x600] sm:$0xff]
    %v4478 = vld [vmem:[%s3 + $0x608] sm:$0xff]
    %v4479 = vld [vmem:[%s3 + $0x610] sm:$0xff]
    %v4480 = vld [vmem:[%s3 + $0x618] sm:$0xff]
    %v4481 = vld [vmem:[%s3 + $0x620] sm:$0xff]
    %v4482 = vld [vmem:[%s3 + $0x628] sm:$0xff]
    %v4483 = vld [vmem:[%s3 + $0x630] sm:$0xff]
    %v4484 = vld [vmem:[%s3 + $0x638] sm:$0xff]
    %v4485 = vld [vmem:[%s3 + $0x640] sm:$0xff]
    %v4486 = vld [vmem:[%s3 + $0x648] sm:$0xff]
    %v4487 = vld [vmem:[%s3 + $0x650] sm:$0xff]
    %v4488 = vld [vmem:[%s3 + $0x658] sm:$0xff]
    %v4489 = vld [vmem:[%s3 + $0x660] sm:$0xff]
    %v4490 = vld [vmem:[%s3 + $0x668] sm:$0xff]
    %v4491 = vld [vmem:[%s3 + $0x670] sm:$0xff]
    %v4492 = vld [vmem:[%s3 + $0x678] sm:$0xff]
    %v4493 = vld [vmem:[%s3 + $0x680] sm:$0xff]
    %v4494 = vld [vmem:[%s3 + $0x688] sm:$0xff]
    %v4495 = vld [vmem:[%s3 + $0x690] sm:$0xff]
    %v4496 = vld [vmem:[%s3 + $0x698] sm:$0xff]
    %v4497 = vld [vmem:[%s3 + $0x6a0] sm:$0xff]
    %v4498 = vld [vmem:[%s3 + $0x6a8] sm:$0xff]
    %v4499 = vld [vmem:[%s3 + $0x6b0] sm:$0xff]
    %v4500 = vld [vmem:[%s3 + $0x6b8] sm:$0xff]
    %v4501 = vld [vmem:[%s3 + $0x6c0] sm:$0xff]
    %v4502 = vld [vmem:[%s3 + $0x6c8] sm:$0xff]
    %v4503 = vld [vmem:[%s3 + $0x6d0] sm:$0xff]
    %v4504 = vld [vmem:[%s3 + $0x6d8] sm:$0xff]
    %v4505 = vld [vmem:[%s3 + $0x6e0] sm:$0xff]
    %v4506 = vld [vmem:[%s3 + $0x6e8] sm:$0xff]
    %v4507 = vld [vmem:[%s3 + $0x6f0] sm:$0xff]
    %v4508 = vld [vmem:[%s3 + $0x6f8] sm:$0xff]
    %v4509 = vld [vmem:[%s3 + $0x700] sm:$0xff]
    %v4510 = vld [vmem:[%s3 + $0x708] sm:$0xff]
    %v4511 = vld [vmem:[%s3 + $0x710] sm:$0xff]
    %v4512 = vld [vmem:[%s3 + $0x718] sm:$0xff]
    %v4513 = vld [vmem:[%s3 + $0x720] sm:$0xff]
    %v4514 = vld [vmem:[%s3 + $0x728] sm:$0xff]
    %v4515 = vld [vmem:[%s3 + $0x730] sm:$0xff]
    %v4516 = vld [vmem:[%s3 + $0x738] sm:$0xff]
    %v4517 = vld [vmem:[%s3 + $0x740] sm:$0xff]
    %v4518 = vld [vmem:[%s3 + $0x748] sm:$0xff]
    %v4519 = vld [vmem:[%s3 + $0x750] sm:$0xff]
    %v4520 = vld [vmem:[%s3 + $0x758] sm:$0xff]
    %v4521 = vld [vmem:[%s3 + $0x760] sm:$0xff]
    %v4522 = vld [vmem:[%s3 + $0x768] sm:$0xff]
    %v4523 = vld [vmem:[%s3 + $0x770] sm:$0xff]
    %v4524 = vld [vmem:[%s3 + $0x778] sm:$0xff]
    %v4525 = vld [vmem:[%s3 + $0x780] sm:$0xff]
    %v4526 = vld [vmem:[%s3 + $0x788] sm:$0xff]
    %v4527 = vld [vmem:[%s3 + $0x790] sm:$0xff]
    %v4528 = vld [vmem:[%s3 + $0x798] sm:$0xff]
    %v4529 = vld [vmem:[%s3 + $0x7a0] sm:$0xff]
    %v4530 = vld [vmem:[%s3 + $0x7a8] sm:$0xff]
    %v4531 = vld [vmem:[%s3 + $0x7b0] sm:$0xff]
    %v4532 = vld [vmem:[%s3 + $0x7b8] sm:$0xff]
    %v4533 = vld [vmem:[%s3 + $0x7c0] sm:$0xff]
    %v4534 = vld [vmem:[%s3 + $0x7c8] sm:$0xff]
    %v4535 = vld [vmem:[%s3 + $0x7d0] sm:$0xff]
    %v4536 = vld [vmem:[%s3 + $0x7d8] sm:$0xff]
    %v4537 = vld [vmem:[%s3 + $0x7e0] sm:$0xff]
    %v4538 = vld [vmem:[%s3 + $0x7e8] sm:$0xff]
    %v4539 = vld [vmem:[%s3 + $0x7f0] sm:$0xff]
    %v4540 = vld [vmem:[%s3 + $0x7f8] sm:$0xff]
    %v4541 = vld [vmem:[%s3 + $0x800] sm:$0xff]
    %v4542 = vld [vmem:[%s3 + $0x808] sm:$0xff]
    %v4543 = vld [vmem:[%s3 + $0x810] sm:$0xff]
    %v4544 = vld [vmem:[%s3 + $0x818] sm:$0xff]
    %v4545 = vld [vmem:[%s3 + $0x820] sm:$0xff]
    %v4546 = vld [vmem:[%s3 + $0x828] sm:$0xff]
    %v4547 = vld [vmem:[%s3 + $0x830] sm:$0xff]
    %v4548 = vld [vmem:[%s3 + $0x838] sm:$0xff]
    %v4549 = vld [vmem:[%s3 + $0x840] sm:$0xff]
    %v4550 = vld [vmem:[%s3 + $0x848] sm:$0xff]
    %v4551 = vld [vmem:[%s3 + $0x850] sm:$0xff]
    %v4552 = vld [vmem:[%s3 + $0x858] sm:$0xff]
    %v4553 = vld [vmem:[%s3 + $0x860] sm:$0xff]
    %v4554 = vld [vmem:[%s3 + $0x868] sm:$0xff]
    %v4555 = vld [vmem:[%s3 + $0x870] sm:$0xff]
    %v4556 = vld [vmem:[%s3 + $0x878] sm:$0xff]
    %v4557 = vld [vmem:[%s3 + $0x880] sm:$0xff]
    %v4558 = vld [vmem:[%s3 + $0x888] sm:$0xff]
    %v4559 = vld [vmem:[%s3 + $0x890] sm:$0xff]
    %v4560 = vld [vmem:[%s3 + $0x898] sm:$0xff]
    %v4561 = vld [vmem:[%s3 + $0x8a0] sm:$0xff]
    %v4562 = vld [vmem:[%s3 + $0x8a8] sm:$0xff]
    %v4563 = vld [vmem:[%s3 + $0x8b0] sm:$0xff]
    %v4564 = vld [vmem:[%s3 + $0x8b8] sm:$0xff]
    %v4565 = vld [vmem:[%s3 + $0x8c0] sm:$0xff]
    %v4566 = vld [vmem:[%s3 + $0x8c8] sm:$0xff]
    %v4567 = vld [vmem:[%s3 + $0x8d0] sm:$0xff]
    %v4568 = vld [vmem:[%s3 + $0x8d8] sm:$0xff]
    %v4569 = vld [vmem:[%s3 + $0x8e0] sm:$0xff]
    %v4570 = vld [vmem:[%s3 + $0x8e8] sm:$0xff]
    %v4571 = vld [vmem:[%s3 + $0x8f0] sm:$0xff]
    %v4572 = vld [vmem:[%s3 + $0x8f8] sm:$0xff]
    %v4573 = vld [vmem:[%s3 + $0x900] sm:$0xff]
    %v4574 = vld [vmem:[%s3 + $0x908] sm:$0xff]
    %v4575 = vld [vmem:[%s3 + $0x910] sm:$0xff]
    %v4576 = vld [vmem:[%s3 + $0x918] sm:$0xff]
    %v4577 = vld [vmem:[%s3 + $0x920] sm:$0xff]
    %v4578 = vld [vmem:[%s3 + $0x928] sm:$0xff]
    %v4579 = vld [vmem:[%s3 + $0x930] sm:$0xff]
    %v4580 = vld [vmem:[%s3 + $0x938] sm:$0xff]
    %v4581 = vld [vmem:[%s3 + $0x940] sm:$0xff]
    %v4582 = vld [vmem:[%s3 + $0x948] sm:$0xff]
    %v4583 = vld [vmem:[%s3 + $0x950] sm:$0xff]
    %v4584 = vld [vmem:[%s3 + $0x958] sm:$0xff]
    %v4585 = vld [vmem:[%s3 + $0x960] sm:$0xff]
    %v4586 = vld [vmem:[%s3 + $0x968] sm:$0xff]
    %v4587 = vld [vmem:[%s3 + $0x970] sm:$0xff]
    %v4588 = vld [vmem:[%s3 + $0x978] sm:$0xff]
    %v4589 = vld [vmem:[%s3 + $0x980] sm:$0xff]
    %v4590 = vld [vmem:[%s3 + $0x988] sm:$0xff]
    %v4591 = vld [vmem:[%s3 + $0x990] sm:$0xff]
    %v4592 = vld [vmem:[%s3 + $0x998] sm:$0xff]
    %v4593 = vld [vmem:[%s3 + $0x9a0] sm:$0xff]
    %v4594 = vld [vmem:[%s3 + $0x9a8] sm:$0xff]
    %v4595 = vld [vmem:[%s3 + $0x9b0] sm:$0xff]
    %v4596 = vld [vmem:[%s3 + $0x9b8] sm:$0xff]
    %v4597 = vld [vmem:[%s3 + $0x9c0] sm:$0xff]
    %v4598 = vld [vmem:[%s3 + $0x9c8] sm:$0xff]
    %v4599 = vld [vmem:[%s3 + $0x9d0] sm:$0xff]
    %v4600 = vld [vmem:[%s3 + $0x9d8] sm:$0xff]
    %v4601 = vld [vmem:[%s3 + $0x9e0] sm:$0xff]
    %v4602 = vld [vmem:[%s3 + $0x9e8] sm:$0xff]
    %v4603 = vld [vmem:[%s3 + $0x9f0] sm:$0xff]
    %v4604 = vld [vmem:[%s3 + $0x9f8] sm:$0xff]
    %v4605 = vld [vmem:[%s3 + $0xa00] sm:$0xff]
    %v4606 = vld [vmem:[%s3 + $0xa08] sm:$0xff]
    %v4607 = vld [vmem:[%s3 + $0xa10] sm:$0xff]
    %v4608 = vld [vmem:[%s3 + $0xa18] sm:$0xff]
    %v4609 = vld [vmem:[%s3 + $0xa20] sm:$0xff]
    %v4610 = vld [vmem:[%s3 + $0xa28] sm:$0xff]
    %v4611 = vld [vmem:[%s3 + $0xa30] sm:$0xff]
    %v4612 = vld [vmem:[%s3 + $0xa38] sm:$0xff]
    %v4613 = vld [vmem:[%s3 + $0xa40] sm:$0xff]
    %v4614 = vld [vmem:[%s3 + $0xa48] sm:$0xff]
    %v4615 = vld [vmem:[%s3 + $0xa50] sm:$0xff]
    %v4616 = vld [vmem:[%s3 + $0xa58] sm:$0xff]
    %v4617 = vld [vmem:[%s3 + $0xa60] sm:$0xff]
    %v4618 = vld [vmem:[%s3 + $0xa68] sm:$0xff]
    %v4619 = vld [vmem:[%s3 + $0xa70] sm:$0xff]
    %v4620 = vld [vmem:[%s3 + $0xa78] sm:$0xff]
    %v4621 = vld [vmem:[%s3 + $0xa80] sm:$0xff]
    %v4622 = vld [vmem:[%s3 + $0xa88] sm:$0xff]
    %v4623 = vld [vmem:[%s3 + $0xa90] sm:$0xff]
    %v4624 = vld [vmem:[%s3 + $0xa98] sm:$0xff]
    %v4625 = vld [vmem:[%s3 + $0xaa0] sm:$0xff]
    %v4626 = vld [vmem:[%s3 + $0xaa8] sm:$0xff]
    %v4627 = vld [vmem:[%s3 + $0xab0] sm:$0xff]
    %v4628 = vld [vmem:[%s3 + $0xab8] sm:$0xff]
    %v4629 = vld [vmem:[%s3 + $0xac0] sm:$0xff]
    %v4630 = vld [vmem:[%s3 + $0xac8] sm:$0xff]
    %v4631 = vld [vmem:[%s3 + $0xad0] sm:$0xff]
    %v4632 = vld [vmem:[%s3 + $0xad8] sm:$0xff]
    %v4633 = vld [vmem:[%s3 + $0xae0] sm:$0xff]
    %v4634 = vld [vmem:[%s3 + $0xae8] sm:$0xff]
    %v4635 = vld [vmem:[%s3 + $0xaf0] sm:$0xff]
    %v4636 = vld [vmem:[%s3 + $0xaf8] sm:$0xff]
    %v4637 = vld [vmem:[%s3 + $0xb00] sm:$0xff]
    %v4638 = vld [vmem:[%s3 + $0xb08] sm:$0xff]
    %v4639 = vld [vmem:[%s3 + $0xb10] sm:$0xff]
    %v4640 = vld [vmem:[%s3 + $0xb18] sm:$0xff]
    %v4641 = vld [vmem:[%s3 + $0xb20] sm:$0xff]
    %v4642 = vld [vmem:[%s3 + $0xb28] sm:$0xff]
    %v4643 = vld [vmem:[%s3 + $0xb30] sm:$0xff]
    %v4644 = vld [vmem:[%s3 + $0xb38] sm:$0xff]
    %v4645 = vld [vmem:[%s3 + $0xb40] sm:$0xff]
    %v4646 = vld [vmem:[%s3 + $0xb48] sm:$0xff]
    %v4647 = vld [vmem:[%s3 + $0xb50] sm:$0xff]
    %v4648 = vld [vmem:[%s3 + $0xb58] sm:$0xff]
    %v4649 = vld [vmem:[%s3 + $0xb60] sm:$0xff]
    %v4650 = vld [vmem:[%s3 + $0xb68] sm:$0xff]
    %v4651 = vld [vmem:[%s3 + $0xb70] sm:$0xff]
    %v4652 = vld [vmem:[%s3 + $0xb78] sm:$0xff]
    %v4653 = vld [vmem:[%s3 + $0xb80] sm:$0xff]
    %v4654 = vld [vmem:[%s3 + $0xb88] sm:$0xff]
    %v4655 = vld [vmem:[%s3 + $0xb90] sm:$0xff]
    %v4656 = vld [vmem:[%s3 + $0xb98] sm:$0xff]
    %v4657 = vld [vmem:[%s3 + $0xba0] sm:$0xff]
    %v4658 = vld [vmem:[%s3 + $0xba8] sm:$0xff]
    %v4659 = vld [vmem:[%s3 + $0xbb0] sm:$0xff]
    %v4660 = vld [vmem:[%s3 + $0xbb8] sm:$0xff]
    %v4661 = vld [vmem:[%s3 + $0xbc0] sm:$0xff]
    %v4662 = vld [vmem:[%s3 + $0xbc8] sm:$0xff]
    %v4663 = vld [vmem:[%s3 + $0xbd0] sm:$0xff]
    %v4664 = vld [vmem:[%s3 + $0xbd8] sm:$0xff]
    %v4665 = vld [vmem:[%s3 + $0xbe0] sm:$0xff]
    %v4666 = vld [vmem:[%s3 + $0xbe8] sm:$0xff]
    %v4667 = vld [vmem:[%s3 + $0xbf0] sm:$0xff]
    %v4668 = vld [vmem:[%s3 + $0xbf8] sm:$0xff]
    %v4669 = vld [vmem:[%s3 + $0xc00] sm:$0xff]
    %v4670 = vld [vmem:[%s3 + $0xc08] sm:$0xff]
    %v4671 = vld [vmem:[%s3 + $0xc10] sm:$0xff]
    %v4672 = vld [vmem:[%s3 + $0xc18] sm:$0xff]
    %v4673 = vld [vmem:[%s3 + $0xc20] sm:$0xff]
    %v4674 = vld [vmem:[%s3 + $0xc28] sm:$0xff]
    %v4675 = vld [vmem:[%s3 + $0xc30] sm:$0xff]
    %v4676 = vld [vmem:[%s3 + $0xc38] sm:$0xff]
    %v4677 = vld [vmem:[%s3 + $0xc40] sm:$0xff]
    %v4678 = vld [vmem:[%s3 + $0xc48] sm:$0xff]
    %v4679 = vld [vmem:[%s3 + $0xc50] sm:$0xff]
    %v4680 = vld [vmem:[%s3 + $0xc58] sm:$0xff]
    %v4681 = vld [vmem:[%s3 + $0xc60] sm:$0xff]
    %v4682 = vld [vmem:[%s3 + $0xc68] sm:$0xff]
    %v4683 = vld [vmem:[%s3 + $0xc70] sm:$0xff]
    %v4684 = vld [vmem:[%s3 + $0xc78] sm:$0xff]
    %v4685 = vld [vmem:[%s3 + $0xc80] sm:$0xff]
    %v4686 = vld [vmem:[%s3 + $0xc88] sm:$0xff]
    %v4687 = vld [vmem:[%s3 + $0xc90] sm:$0xff]
    %v4688 = vld [vmem:[%s3 + $0xc98] sm:$0xff]
    %v4689 = vld [vmem:[%s3 + $0xca0] sm:$0xff]
    %v4690 = vld [vmem:[%s3 + $0xca8] sm:$0xff]
    %v4691 = vld [vmem:[%s3 + $0xcb0] sm:$0xff]
    %v4692 = vld [vmem:[%s3 + $0xcb8] sm:$0xff]
    %v4693 = vld [vmem:[%s3 + $0xcc0] sm:$0xff]
    %v4694 = vld [vmem:[%s3 + $0xcc8] sm:$0xff]
    %v4695 = vld [vmem:[%s3 + $0xcd0] sm:$0xff]
    %v4696 = vld [vmem:[%s3 + $0xcd8] sm:$0xff]
    %v4697 = vld [vmem:[%s3 + $0xce0] sm:$0xff]
    %v4698 = vld [vmem:[%s3 + $0xce8] sm:$0xff]
    %v4699 = vld [vmem:[%s3 + $0xcf0] sm:$0xff]
    %v4700 = vld [vmem:[%s3 + $0xcf8] sm:$0xff]
    %v4701 = vld [vmem:[%s3 + $0xd00] sm:$0xff]
    %v4702 = vld [vmem:[%s3 + $0xd08] sm:$0xff]
    %v4703 = vld [vmem:[%s3 + $0xd10] sm:$0xff]
    %v4704 = vld [vmem:[%s3 + $0xd18] sm:$0xff]
    %v4705 = vld [vmem:[%s3 + $0xd20] sm:$0xff]
    %v4706 = vld [vmem:[%s3 + $0xd28] sm:$0xff]
    %v4707 = vld [vmem:[%s3 + $0xd30] sm:$0xff]
    %v4708 = vld [vmem:[%s3 + $0xd38] sm:$0xff]
    %v4709 = vld [vmem:[%s3 + $0xd40] sm:$0xff]
    %v4710 = vld [vmem:[%s3 + $0xd48] sm:$0xff]
    %v4711 = vld [vmem:[%s3 + $0xd50] sm:$0xff]
    %v4712 = vld [vmem:[%s3 + $0xd58] sm:$0xff]
    %v4713 = vld [vmem:[%s3 + $0xd60] sm:$0xff]
    %v4714 = vld [vmem:[%s3 + $0xd68] sm:$0xff]
    %v4715 = vld [vmem:[%s3 + $0xd70] sm:$0xff]
    %v4716 = vld [vmem:[%s3 + $0xd78] sm:$0xff]
    %v4717 = vld [vmem:[%s3 + $0xd80] sm:$0xff]
    %v4718 = vld [vmem:[%s3 + $0xd88] sm:$0xff]
    %v4719 = vld [vmem:[%s3 + $0xd90] sm:$0xff]
    %v4720 = vld [vmem:[%s3 + $0xd98] sm:$0xff]
    %v4721 = vld [vmem:[%s3 + $0xda0] sm:$0xff]
    %v4722 = vld [vmem:[%s3 + $0xda8] sm:$0xff]
    %v4723 = vld [vmem:[%s3 + $0xdb0] sm:$0xff]
    %v4724 = vld [vmem:[%s3 + $0xdb8] sm:$0xff]
    %v4725 = vld [vmem:[%s3 + $0xdc0] sm:$0xff]
    %v4726 = vld [vmem:[%s3 + $0xdc8] sm:$0xff]
    %v4727 = vld [vmem:[%s3 + $0xdd0] sm:$0xff]
    %v4728 = vld [vmem:[%s3 + $0xdd8] sm:$0xff]
    %v4729 = vld [vmem:[%s3 + $0xde0] sm:$0xff]
    %v4730 = vld [vmem:[%s3 + $0xde8] sm:$0xff]
    %v4731 = vld [vmem:[%s3 + $0xdf0] sm:$0xff]
    %v4732 = vld [vmem:[%s3 + $0xdf8] sm:$0xff]
    %v4733 = vld [vmem:[%s3 + $0xe00] sm:$0xff]
    %v4734 = vld [vmem:[%s3 + $0xe08] sm:$0xff]
    %v4735 = vld [vmem:[%s3 + $0xe10] sm:$0xff]
    %v4736 = vld [vmem:[%s3 + $0xe18] sm:$0xff]
    %v4737 = vld [vmem:[%s3 + $0xe20] sm:$0xff]
    %v4738 = vld [vmem:[%s3 + $0xe28] sm:$0xff]
    %v4739 = vld [vmem:[%s3 + $0xe30] sm:$0xff]
    %v4740 = vld [vmem:[%s3 + $0xe38] sm:$0xff]
    %v4741 = vld [vmem:[%s3 + $0xe40] sm:$0xff]
    %v4742 = vld [vmem:[%s3 + $0xe48] sm:$0xff]
    %v4743 = vld [vmem:[%s3 + $0xe50] sm:$0xff]
    %v4744 = vld [vmem:[%s3 + $0xe58] sm:$0xff]
    %v4745 = vld [vmem:[%s3 + $0xe60] sm:$0xff]
    %v4746 = vld [vmem:[%s3 + $0xe68] sm:$0xff]
    %v4747 = vld [vmem:[%s3 + $0xe70] sm:$0xff]
    %v4748 = vld [vmem:[%s3 + $0xe78] sm:$0xff]
    %v4749 = vld [vmem:[%s3 + $0xe80] sm:$0xff]
    %v4750 = vld [vmem:[%s3 + $0xe88] sm:$0xff]
    %v4751 = vld [vmem:[%s3 + $0xe90] sm:$0xff]
    %v4752 = vld [vmem:[%s3 + $0xe98] sm:$0xff]
    %v4753 = vld [vmem:[%s3 + $0xea0] sm:$0xff]
    %v4754 = vld [vmem:[%s3 + $0xea8] sm:$0xff]
    %v4755 = vld [vmem:[%s3 + $0xeb0] sm:$0xff]
    %v4756 = vld [vmem:[%s3 + $0xeb8] sm:$0xff]
    %v4757 = vld [vmem:[%s3 + $0xec0] sm:$0xff]
    %v4758 = vld [vmem:[%s3 + $0xec8] sm:$0xff]
    %v4759 = vld [vmem:[%s3 + $0xed0] sm:$0xff]
    %v4760 = vld [vmem:[%s3 + $0xed8] sm:$0xff]
    %v4761 = vld [vmem:[%s3 + $0xee0] sm:$0xff]
    %v4762 = vld [vmem:[%s3 + $0xee8] sm:$0xff]
    %v4763 = vld [vmem:[%s3 + $0xef0] sm:$0xff]
    %v4764 = vld [vmem:[%s3 + $0xef8] sm:$0xff]
    %v4765 = vld [vmem:[%s3 + $0xf00] sm:$0xff]
    %v4766 = vld [vmem:[%s3 + $0xf08] sm:$0xff]
    %v4767 = vld [vmem:[%s3 + $0xf10] sm:$0xff]
    %v4768 = vld [vmem:[%s3 + $0xf18] sm:$0xff]
    %v4769 = vld [vmem:[%s3 + $0xf20] sm:$0xff]
    %v4770 = vld [vmem:[%s3 + $0xf28] sm:$0xff]
    %v4771 = vld [vmem:[%s3 + $0xf30] sm:$0xff]
    %v4772 = vld [vmem:[%s3 + $0xf38] sm:$0xff]
    %v4773 = vld [vmem:[%s3 + $0xf40] sm:$0xff]
    %v4774 = vld [vmem:[%s3 + $0xf48] sm:$0xff]
    %v4775 = vld [vmem:[%s3 + $0xf50] sm:$0xff]
    %v4776 = vld [vmem:[%s3 + $0xf58] sm:$0xff]
    %v4777 = vld [vmem:[%s3 + $0xf60] sm:$0xff]
    %v4778 = vld [vmem:[%s3 + $0xf68] sm:$0xff]
    %v4779 = vld [vmem:[%s3 + $0xf70] sm:$0xff]
    %v4780 = vld [vmem:[%s3 + $0xf78] sm:$0xff]
    %v4781 = vld [vmem:[%s3 + $0xf80] sm:$0xff]
    %v4782 = vld [vmem:[%s3 + $0xf88] sm:$0xff]
    %v4783 = vld [vmem:[%s3 + $0xf90] sm:$0xff]
    %v4784 = vld [vmem:[%s3 + $0xf98] sm:$0xff]
    %v4785 = vld [vmem:[%s3 + $0xfa0] sm:$0xff]
    %v4786 = vld [vmem:[%s3 + $0xfa8] sm:$0xff]
    %v4787 = vld [vmem:[%s3 + $0xfb0] sm:$0xff]
    %v4788 = vld [vmem:[%s3 + $0xfb8] sm:$0xff]
    %v4789 = vld [vmem:[%s3 + $0xfc0] sm:$0xff]
    %v4790 = vld [vmem:[%s3 + $0xfc8] sm:$0xff]
    %v4791 = vld [vmem:[%s3 + $0xfd0] sm:$0xff]
    %v4792 = vld [vmem:[%s3 + $0xfd8] sm:$0xff]
    %v4793 = vld [vmem:[%s3 + $0xfe0] sm:$0xff]
    %v4794 = vld [vmem:[%s3 + $0xfe8] sm:$0xff]
    %v4795 = vld [vmem:[%s3 + $0xff0] sm:$0xff]
    %v4796 = vld [vmem:[%s3 + $0xff8] sm:$0xff]
    %v4797 = vld [vmem:[%s4] sm:$0xff]
    %v4799 = vlaneseq
    %v4800 = vshrl.u32 %v4799, 7
    %v4801 = vsub.s32 0, %v4800
    %v4802 = vrot.slane %v4797, %v4801
    %v4803 = vlaneseq
    %v4804 = vshrl.u32 %v4803, 7
    %v4805 = vsub.s32 1, %v4804
    %v4806 = vrot.slane %v4797, %v4805
    %v4807 = vlaneseq
    %v4808 = vshrl.u32 %v4807, 7
    %v4809 = vsub.s32 2, %v4808
    %v4810 = vrot.slane %v4797, %v4809
    %v4811 = vlaneseq
    %v4812 = vshrl.u32 %v4811, 7
    %v4813 = vsub.s32 3, %v4812
    %v4814 = vrot.slane %v4797, %v4813
    %v4815 = vlaneseq
    %v4816 = vshrl.u32 %v4815, 7
    %v4817 = vsub.s32 4, %v4816
    %v4818 = vrot.slane %v4797, %v4817
    %v4819 = vlaneseq
    %v4820 = vshrl.u32 %v4819, 7
    %v4821 = vsub.s32 5, %v4820
    %v4822 = vrot.slane %v4797, %v4821
    %v4823 = vlaneseq
    %v4824 = vshrl.u32 %v4823, 7
    %v4825 = vsub.s32 6, %v4824
    %v4826 = vrot.slane %v4797, %v4825
    %v4827 = vlaneseq
    %v4828 = vshrl.u32 %v4827, 7
    %v4829 = vsub.s32 7, %v4828
    %v4830 = vrot.slane %v4797, %v4829
    %v5351 = vunpack.c.l.b16 %v4285
    %v5352 = vunpack.c.h.b16 %v4285
    %v5353 = vunpack.c.l.b16 %v4286
    %v5354 = vunpack.c.h.b16 %v4286
    %v5355 = vunpack.c.l.b16 %v4287
    %v5356 = vunpack.c.h.b16 %v4287
    %v5357 = vunpack.c.l.b16 %v4288
    %v5358 = vunpack.c.h.b16 %v4288
    %v5359 = vunpack.c.l.b16 %v4289
    %v5360 = vunpack.c.h.b16 %v4289
    %v5361 = vunpack.c.l.b16 %v4290
    %v5362 = vunpack.c.h.b16 %v4290
    %v5363 = vunpack.c.l.b16 %v4291
    %v5364 = vunpack.c.h.b16 %v4291
    %v5365 = vunpack.c.l.b16 %v4292
    %v5366 = vunpack.c.h.b16 %v4292
    %v5367 = vunpack.c.l.b16 %v4293
    %v5368 = vunpack.c.h.b16 %v4293
    %v5369 = vunpack.c.l.b16 %v4294
    %v5370 = vunpack.c.h.b16 %v4294
    %v5371 = vunpack.c.l.b16 %v4295
    %v5372 = vunpack.c.h.b16 %v4295
    %v5373 = vunpack.c.l.b16 %v4296
    %v5374 = vunpack.c.h.b16 %v4296
    %v5375 = vunpack.c.l.b16 %v4297
    %v5376 = vunpack.c.h.b16 %v4297
    %v5377 = vunpack.c.l.b16 %v4298
    %v5378 = vunpack.c.h.b16 %v4298
    %v5379 = vunpack.c.l.b16 %v4299
    %v5380 = vunpack.c.h.b16 %v4299
    %v5381 = vunpack.c.l.b16 %v4300
    %v5382 = vunpack.c.h.b16 %v4300
    %v5383 = vunpack.c.l.b16 %v4301
    %v5384 = vunpack.c.h.b16 %v4301
    %v5385 = vunpack.c.l.b16 %v4302
    %v5386 = vunpack.c.h.b16 %v4302
    %v5387 = vunpack.c.l.b16 %v4303
    %v5388 = vunpack.c.h.b16 %v4303
    %v5389 = vunpack.c.l.b16 %v4304
    %v5390 = vunpack.c.h.b16 %v4304
    %v5391 = vunpack.c.l.b16 %v4305
    %v5392 = vunpack.c.h.b16 %v4305
    %v5393 = vunpack.c.l.b16 %v4306
    %v5394 = vunpack.c.h.b16 %v4306
    %v5395 = vunpack.c.l.b16 %v4307
    %v5396 = vunpack.c.h.b16 %v4307
    %v5397 = vunpack.c.l.b16 %v4308
    %v5398 = vunpack.c.h.b16 %v4308
    %v5399 = vunpack.c.l.b16 %v4309
    %v5400 = vunpack.c.h.b16 %v4309
    %v5401 = vunpack.c.l.b16 %v4310
    %v5402 = vunpack.c.h.b16 %v4310
    %v5403 = vunpack.c.l.b16 %v4311
    %v5404 = vunpack.c.h.b16 %v4311
    %v5405 = vunpack.c.l.b16 %v4312
    %v5406 = vunpack.c.h.b16 %v4312
    %v5407 = vunpack.c.l.b16 %v4313
    %v5408 = vunpack.c.h.b16 %v4313
    %v5409 = vunpack.c.l.b16 %v4314
    %v5410 = vunpack.c.h.b16 %v4314
    %v5411 = vunpack.c.l.b16 %v4315
    %v5412 = vunpack.c.h.b16 %v4315
    %v5413 = vunpack.c.l.b16 %v4316
    %v5414 = vunpack.c.h.b16 %v4316
    %v5415 = vunpack.c.l.b16 %v4317
    %v5416 = vunpack.c.h.b16 %v4317
    %v5417 = vunpack.c.l.b16 %v4318
    %v5418 = vunpack.c.h.b16 %v4318
    %v5419 = vunpack.c.l.b16 %v4319
    %v5420 = vunpack.c.h.b16 %v4319
    %v5421 = vunpack.c.l.b16 %v4320
    %v5422 = vunpack.c.h.b16 %v4320
    %v5423 = vunpack.c.l.b16 %v4321
    %v5424 = vunpack.c.h.b16 %v4321
    %v5425 = vunpack.c.l.b16 %v4322
    %v5426 = vunpack.c.h.b16 %v4322
    %v5427 = vunpack.c.l.b16 %v4323
    %v5428 = vunpack.c.h.b16 %v4323
    %v5429 = vunpack.c.l.b16 %v4324
    %v5430 = vunpack.c.h.b16 %v4324
    %v5431 = vunpack.c.l.b16 %v4325
    %v5432 = vunpack.c.h.b16 %v4325
    %v5433 = vunpack.c.l.b16 %v4326
    %v5434 = vunpack.c.h.b16 %v4326
    %v5435 = vunpack.c.l.b16 %v4327
    %v5436 = vunpack.c.h.b16 %v4327
    %v5437 = vunpack.c.l.b16 %v4328
    %v5438 = vunpack.c.h.b16 %v4328
    %v5439 = vunpack.c.l.b16 %v4329
    %v5440 = vunpack.c.h.b16 %v4329
    %v5441 = vunpack.c.l.b16 %v4330
    %v5442 = vunpack.c.h.b16 %v4330
    %v5443 = vunpack.c.l.b16 %v4331
    %v5444 = vunpack.c.h.b16 %v4331
    %v5445 = vunpack.c.l.b16 %v4332
    %v5446 = vunpack.c.h.b16 %v4332
    %v5447 = vunpack.c.l.b16 %v4333
    %v5448 = vunpack.c.h.b16 %v4333
    %v5449 = vunpack.c.l.b16 %v4334
    %v5450 = vunpack.c.h.b16 %v4334
    %v5451 = vunpack.c.l.b16 %v4335
    %v5452 = vunpack.c.h.b16 %v4335
    %v5453 = vunpack.c.l.b16 %v4336
    %v5454 = vunpack.c.h.b16 %v4336
    %v5455 = vunpack.c.l.b16 %v4337
    %v5456 = vunpack.c.h.b16 %v4337
    %v5457 = vunpack.c.l.b16 %v4338
    %v5458 = vunpack.c.h.b16 %v4338
    %v5459 = vunpack.c.l.b16 %v4339
    %v5460 = vunpack.c.h.b16 %v4339
    %v5461 = vunpack.c.l.b16 %v4340
    %v5462 = vunpack.c.h.b16 %v4340
    %v5463 = vunpack.c.l.b16 %v4341
    %v5464 = vunpack.c.h.b16 %v4341
    %v5465 = vunpack.c.l.b16 %v4342
    %v5466 = vunpack.c.h.b16 %v4342
    %v5467 = vunpack.c.l.b16 %v4343
    %v5468 = vunpack.c.h.b16 %v4343
    %v5469 = vunpack.c.l.b16 %v4344
    %v5470 = vunpack.c.h.b16 %v4344
    %v5471 = vunpack.c.l.b16 %v4345
    %v5472 = vunpack.c.h.b16 %v4345
    %v5473 = vunpack.c.l.b16 %v4346
    %v5474 = vunpack.c.h.b16 %v4346
    %v5475 = vunpack.c.l.b16 %v4347
    %v5476 = vunpack.c.h.b16 %v4347
    %v5477 = vunpack.c.l.b16 %v4348
    %v5478 = vunpack.c.h.b16 %v4348
    %v5479 = vunpack.c.l.b16 %v4349
    %v5480 = vunpack.c.h.b16 %v4349
    %v5481 = vunpack.c.l.b16 %v4350
    %v5482 = vunpack.c.h.b16 %v4350
    %v5483 = vunpack.c.l.b16 %v4351
    %v5484 = vunpack.c.h.b16 %v4351
    %v5485 = vunpack.c.l.b16 %v4352
    %v5486 = vunpack.c.h.b16 %v4352
    %v5487 = vunpack.c.l.b16 %v4353
    %v5488 = vunpack.c.h.b16 %v4353
    %v5489 = vunpack.c.l.b16 %v4354
    %v5490 = vunpack.c.h.b16 %v4354
    %v5491 = vunpack.c.l.b16 %v4355
    %v5492 = vunpack.c.h.b16 %v4355
    %v5493 = vunpack.c.l.b16 %v4356
    %v5494 = vunpack.c.h.b16 %v4356
    %v5495 = vunpack.c.l.b16 %v4357
    %v5496 = vunpack.c.h.b16 %v4357
    %v5497 = vunpack.c.l.b16 %v4358
    %v5498 = vunpack.c.h.b16 %v4358
    %v5499 = vunpack.c.l.b16 %v4359
    %v5500 = vunpack.c.h.b16 %v4359
    %v5501 = vunpack.c.l.b16 %v4360
    %v5502 = vunpack.c.h.b16 %v4360
    %v5503 = vunpack.c.l.b16 %v4361
    %v5504 = vunpack.c.h.b16 %v4361
    %v5505 = vunpack.c.l.b16 %v4362
    %v5506 = vunpack.c.h.b16 %v4362
    %v5507 = vunpack.c.l.b16 %v4363
    %v5508 = vunpack.c.h.b16 %v4363
    %v5509 = vunpack.c.l.b16 %v4364
    %v5510 = vunpack.c.h.b16 %v4364
    %v5511 = vunpack.c.l.b16 %v4365
    %v5512 = vunpack.c.h.b16 %v4365
    %v5513 = vunpack.c.l.b16 %v4366
    %v5514 = vunpack.c.h.b16 %v4366
    %v5515 = vunpack.c.l.b16 %v4367
    %v5516 = vunpack.c.h.b16 %v4367
    %v5517 = vunpack.c.l.b16 %v4368
    %v5518 = vunpack.c.h.b16 %v4368
    %v5519 = vunpack.c.l.b16 %v4369
    %v5520 = vunpack.c.h.b16 %v4369
    %v5521 = vunpack.c.l.b16 %v4370
    %v5522 = vunpack.c.h.b16 %v4370
    %v5523 = vunpack.c.l.b16 %v4371
    %v5524 = vunpack.c.h.b16 %v4371
    %v5525 = vunpack.c.l.b16 %v4372
    %v5526 = vunpack.c.h.b16 %v4372
    %v5527 = vunpack.c.l.b16 %v4373
    %v5528 = vunpack.c.h.b16 %v4373
    %v5529 = vunpack.c.l.b16 %v4374
    %v5530 = vunpack.c.h.b16 %v4374
    %v5531 = vunpack.c.l.b16 %v4375
    %v5532 = vunpack.c.h.b16 %v4375
    %v5533 = vunpack.c.l.b16 %v4376
    %v5534 = vunpack.c.h.b16 %v4376
    %v5535 = vunpack.c.l.b16 %v4377
    %v5536 = vunpack.c.h.b16 %v4377
    %v5537 = vunpack.c.l.b16 %v4378
    %v5538 = vunpack.c.h.b16 %v4378
    %v5539 = vunpack.c.l.b16 %v4379
    %v5540 = vunpack.c.h.b16 %v4379
    %v5541 = vunpack.c.l.b16 %v4380
    %v5542 = vunpack.c.h.b16 %v4380
    %v5543 = vunpack.c.l.b16 %v4381
    %v5544 = vunpack.c.h.b16 %v4381
    %v5545 = vunpack.c.l.b16 %v4382
    %v5546 = vunpack.c.h.b16 %v4382
    %v5547 = vunpack.c.l.b16 %v4383
    %v5548 = vunpack.c.h.b16 %v4383
    %v5549 = vunpack.c.l.b16 %v4384
    %v5550 = vunpack.c.h.b16 %v4384
    %v5551 = vunpack.c.l.b16 %v4385
    %v5552 = vunpack.c.h.b16 %v4385
    %v5553 = vunpack.c.l.b16 %v4386
    %v5554 = vunpack.c.h.b16 %v4386
    %v5555 = vunpack.c.l.b16 %v4387
    %v5556 = vunpack.c.h.b16 %v4387
    %v5557 = vunpack.c.l.b16 %v4388
    %v5558 = vunpack.c.h.b16 %v4388
    %v5559 = vunpack.c.l.b16 %v4389
    %v5560 = vunpack.c.h.b16 %v4389
    %v5561 = vunpack.c.l.b16 %v4390
    %v5562 = vunpack.c.h.b16 %v4390
    %v5563 = vunpack.c.l.b16 %v4391
    %v5564 = vunpack.c.h.b16 %v4391
    %v5565 = vunpack.c.l.b16 %v4392
    %v5566 = vunpack.c.h.b16 %v4392
    %v5567 = vunpack.c.l.b16 %v4393
    %v5568 = vunpack.c.h.b16 %v4393
    %v5569 = vunpack.c.l.b16 %v4394
    %v5570 = vunpack.c.h.b16 %v4394
    %v5571 = vunpack.c.l.b16 %v4395
    %v5572 = vunpack.c.h.b16 %v4395
    %v5573 = vunpack.c.l.b16 %v4396
    %v5574 = vunpack.c.h.b16 %v4396
    %v5575 = vunpack.c.l.b16 %v4397
    %v5576 = vunpack.c.h.b16 %v4397
    %v5577 = vunpack.c.l.b16 %v4398
    %v5578 = vunpack.c.h.b16 %v4398
    %v5579 = vunpack.c.l.b16 %v4399
    %v5580 = vunpack.c.h.b16 %v4399
    %v5581 = vunpack.c.l.b16 %v4400
    %v5582 = vunpack.c.h.b16 %v4400
    %v5583 = vunpack.c.l.b16 %v4401
    %v5584 = vunpack.c.h.b16 %v4401
    %v5585 = vunpack.c.l.b16 %v4402
    %v5586 = vunpack.c.h.b16 %v4402
    %v5587 = vunpack.c.l.b16 %v4403
    %v5588 = vunpack.c.h.b16 %v4403
    %v5589 = vunpack.c.l.b16 %v4404
    %v5590 = vunpack.c.h.b16 %v4404
    %v5591 = vunpack.c.l.b16 %v4405
    %v5592 = vunpack.c.h.b16 %v4405
    %v5593 = vunpack.c.l.b16 %v4406
    %v5594 = vunpack.c.h.b16 %v4406
    %v5595 = vunpack.c.l.b16 %v4407
    %v5596 = vunpack.c.h.b16 %v4407
    %v5597 = vunpack.c.l.b16 %v4408
    %v5598 = vunpack.c.h.b16 %v4408
    %v5599 = vunpack.c.l.b16 %v4409
    %v5600 = vunpack.c.h.b16 %v4409
    %v5601 = vunpack.c.l.b16 %v4410
    %v5602 = vunpack.c.h.b16 %v4410
    %v5603 = vunpack.c.l.b16 %v4411
    %v5604 = vunpack.c.h.b16 %v4411
    %v5605 = vunpack.c.l.b16 %v4412
    %v5606 = vunpack.c.h.b16 %v4412
    %v5607 = vunpack.c.l.b16 %v4413
    %v5608 = vunpack.c.h.b16 %v4413
    %v5609 = vunpack.c.l.b16 %v4414
    %v5610 = vunpack.c.h.b16 %v4414
    %v5611 = vunpack.c.l.b16 %v4415
    %v5612 = vunpack.c.h.b16 %v4415
    %v5613 = vunpack.c.l.b16 %v4416
    %v5614 = vunpack.c.h.b16 %v4416
    %v5615 = vunpack.c.l.b16 %v4417
    %v5616 = vunpack.c.h.b16 %v4417
    %v5617 = vunpack.c.l.b16 %v4418
    %v5618 = vunpack.c.h.b16 %v4418
    %v5619 = vunpack.c.l.b16 %v4419
    %v5620 = vunpack.c.h.b16 %v4419
    %v5621 = vunpack.c.l.b16 %v4420
    %v5622 = vunpack.c.h.b16 %v4420
    %v5623 = vunpack.c.l.b16 %v4421
    %v5624 = vunpack.c.h.b16 %v4421
    %v5625 = vunpack.c.l.b16 %v4422
    %v5626 = vunpack.c.h.b16 %v4422
    %v5627 = vunpack.c.l.b16 %v4423
    %v5628 = vunpack.c.h.b16 %v4423
    %v5629 = vunpack.c.l.b16 %v4424
    %v5630 = vunpack.c.h.b16 %v4424
    %v5631 = vunpack.c.l.b16 %v4425
    %v5632 = vunpack.c.h.b16 %v4425
    %v5633 = vunpack.c.l.b16 %v4426
    %v5634 = vunpack.c.h.b16 %v4426
    %v5635 = vunpack.c.l.b16 %v4427
    %v5636 = vunpack.c.h.b16 %v4427
    %v5637 = vunpack.c.l.b16 %v4428
    %v5638 = vunpack.c.h.b16 %v4428
    %v5639 = vunpack.c.l.b16 %v4429
    %v5640 = vunpack.c.h.b16 %v4429
    %v5641 = vunpack.c.l.b16 %v4430
    %v5642 = vunpack.c.h.b16 %v4430
    %v5643 = vunpack.c.l.b16 %v4431
    %v5644 = vunpack.c.h.b16 %v4431
    %v5645 = vunpack.c.l.b16 %v4432
    %v5646 = vunpack.c.h.b16 %v4432
    %v5647 = vunpack.c.l.b16 %v4433
    %v5648 = vunpack.c.h.b16 %v4433
    %v5649 = vunpack.c.l.b16 %v4434
    %v5650 = vunpack.c.h.b16 %v4434
    %v5651 = vunpack.c.l.b16 %v4435
    %v5652 = vunpack.c.h.b16 %v4435
    %v5653 = vunpack.c.l.b16 %v4436
    %v5654 = vunpack.c.h.b16 %v4436
    %v5655 = vunpack.c.l.b16 %v4437
    %v5656 = vunpack.c.h.b16 %v4437
    %v5657 = vunpack.c.l.b16 %v4438
    %v5658 = vunpack.c.h.b16 %v4438
    %v5659 = vunpack.c.l.b16 %v4439
    %v5660 = vunpack.c.h.b16 %v4439
    %v5661 = vunpack.c.l.b16 %v4440
    %v5662 = vunpack.c.h.b16 %v4440
    %v5663 = vunpack.c.l.b16 %v4441
    %v5664 = vunpack.c.h.b16 %v4441
    %v5665 = vunpack.c.l.b16 %v4442
    %v5666 = vunpack.c.h.b16 %v4442
    %v5667 = vunpack.c.l.b16 %v4443
    %v5668 = vunpack.c.h.b16 %v4443
    %v5669 = vunpack.c.l.b16 %v4444
    %v5670 = vunpack.c.h.b16 %v4444
    %v5671 = vunpack.c.l.b16 %v4445
    %v5672 = vunpack.c.h.b16 %v4445
    %v5673 = vunpack.c.l.b16 %v4446
    %v5674 = vunpack.c.h.b16 %v4446
    %v5675 = vunpack.c.l.b16 %v4447
    %v5676 = vunpack.c.h.b16 %v4447
    %v5677 = vunpack.c.l.b16 %v4448
    %v5678 = vunpack.c.h.b16 %v4448
    %v5679 = vunpack.c.l.b16 %v4449
    %v5680 = vunpack.c.h.b16 %v4449
    %v5681 = vunpack.c.l.b16 %v4450
    %v5682 = vunpack.c.h.b16 %v4450
    %v5683 = vunpack.c.l.b16 %v4451
    %v5684 = vunpack.c.h.b16 %v4451
    %v5685 = vunpack.c.l.b16 %v4452
    %v5686 = vunpack.c.h.b16 %v4452
    %v5687 = vunpack.c.l.b16 %v4453
    %v5688 = vunpack.c.h.b16 %v4453
    %v5689 = vunpack.c.l.b16 %v4454
    %v5690 = vunpack.c.h.b16 %v4454
    %v5691 = vunpack.c.l.b16 %v4455
    %v5692 = vunpack.c.h.b16 %v4455
    %v5693 = vunpack.c.l.b16 %v4456
    %v5694 = vunpack.c.h.b16 %v4456
    %v5695 = vunpack.c.l.b16 %v4457
    %v5696 = vunpack.c.h.b16 %v4457
    %v5697 = vunpack.c.l.b16 %v4458
    %v5698 = vunpack.c.h.b16 %v4458
    %v5699 = vunpack.c.l.b16 %v4459
    %v5700 = vunpack.c.h.b16 %v4459
    %v5701 = vunpack.c.l.b16 %v4460
    %v5702 = vunpack.c.h.b16 %v4460
    %v5703 = vunpack.c.l.b16 %v4461
    %v5704 = vunpack.c.h.b16 %v4461
    %v5705 = vunpack.c.l.b16 %v4462
    %v5706 = vunpack.c.h.b16 %v4462
    %v5707 = vunpack.c.l.b16 %v4463
    %v5708 = vunpack.c.h.b16 %v4463
    %v5709 = vunpack.c.l.b16 %v4464
    %v5710 = vunpack.c.h.b16 %v4464
    %v5711 = vunpack.c.l.b16 %v4465
    %v5712 = vunpack.c.h.b16 %v4465
    %v5713 = vunpack.c.l.b16 %v4466
    %v5714 = vunpack.c.h.b16 %v4466
    %v5715 = vunpack.c.l.b16 %v4467
    %v5716 = vunpack.c.h.b16 %v4467
    %v5717 = vunpack.c.l.b16 %v4468
    %v5718 = vunpack.c.h.b16 %v4468
    %v5719 = vunpack.c.l.b16 %v4469
    %v5720 = vunpack.c.h.b16 %v4469
    %v5721 = vunpack.c.l.b16 %v4470
    %v5722 = vunpack.c.h.b16 %v4470
    %v5723 = vunpack.c.l.b16 %v4471
    %v5724 = vunpack.c.h.b16 %v4471
    %v5725 = vunpack.c.l.b16 %v4472
    %v5726 = vunpack.c.h.b16 %v4472
    %v5727 = vunpack.c.l.b16 %v4473
    %v5728 = vunpack.c.h.b16 %v4473
    %v5729 = vunpack.c.l.b16 %v4474
    %v5730 = vunpack.c.h.b16 %v4474
    %v5731 = vunpack.c.l.b16 %v4475
    %v5732 = vunpack.c.h.b16 %v4475
    %v5733 = vunpack.c.l.b16 %v4476
    %v5734 = vunpack.c.h.b16 %v4476
    %v5735 = vunpack.c.l.b16 %v4477
    %v5736 = vunpack.c.h.b16 %v4477
    %v5737 = vunpack.c.l.b16 %v4478
    %v5738 = vunpack.c.h.b16 %v4478
    %v5739 = vunpack.c.l.b16 %v4479
    %v5740 = vunpack.c.h.b16 %v4479
    %v5741 = vunpack.c.l.b16 %v4480
    %v5742 = vunpack.c.h.b16 %v4480
    %v5743 = vunpack.c.l.b16 %v4481
    %v5744 = vunpack.c.h.b16 %v4481
    %v5745 = vunpack.c.l.b16 %v4482
    %v5746 = vunpack.c.h.b16 %v4482
    %v5747 = vunpack.c.l.b16 %v4483
    %v5748 = vunpack.c.h.b16 %v4483
    %v5749 = vunpack.c.l.b16 %v4484
    %v5750 = vunpack.c.h.b16 %v4484
    %v5751 = vunpack.c.l.b16 %v4485
    %v5752 = vunpack.c.h.b16 %v4485
    %v5753 = vunpack.c.l.b16 %v4486
    %v5754 = vunpack.c.h.b16 %v4486
    %v5755 = vunpack.c.l.b16 %v4487
    %v5756 = vunpack.c.h.b16 %v4487
    %v5757 = vunpack.c.l.b16 %v4488
    %v5758 = vunpack.c.h.b16 %v4488
    %v5759 = vunpack.c.l.b16 %v4489
    %v5760 = vunpack.c.h.b16 %v4489
    %v5761 = vunpack.c.l.b16 %v4490
    %v5762 = vunpack.c.h.b16 %v4490
    %v5763 = vunpack.c.l.b16 %v4491
    %v5764 = vunpack.c.h.b16 %v4491
    %v5765 = vunpack.c.l.b16 %v4492
    %v5766 = vunpack.c.h.b16 %v4492
    %v5767 = vunpack.c.l.b16 %v4493
    %v5768 = vunpack.c.h.b16 %v4493
    %v5769 = vunpack.c.l.b16 %v4494
    %v5770 = vunpack.c.h.b16 %v4494
    %v5771 = vunpack.c.l.b16 %v4495
    %v5772 = vunpack.c.h.b16 %v4495
    %v5773 = vunpack.c.l.b16 %v4496
    %v5774 = vunpack.c.h.b16 %v4496
    %v5775 = vunpack.c.l.b16 %v4497
    %v5776 = vunpack.c.h.b16 %v4497
    %v5777 = vunpack.c.l.b16 %v4498
    %v5778 = vunpack.c.h.b16 %v4498
    %v5779 = vunpack.c.l.b16 %v4499
    %v5780 = vunpack.c.h.b16 %v4499
    %v5781 = vunpack.c.l.b16 %v4500
    %v5782 = vunpack.c.h.b16 %v4500
    %v5783 = vunpack.c.l.b16 %v4501
    %v5784 = vunpack.c.h.b16 %v4501
    %v5785 = vunpack.c.l.b16 %v4502
    %v5786 = vunpack.c.h.b16 %v4502
    %v5787 = vunpack.c.l.b16 %v4503
    %v5788 = vunpack.c.h.b16 %v4503
    %v5789 = vunpack.c.l.b16 %v4504
    %v5790 = vunpack.c.h.b16 %v4504
    %v5791 = vunpack.c.l.b16 %v4505
    %v5792 = vunpack.c.h.b16 %v4505
    %v5793 = vunpack.c.l.b16 %v4506
    %v5794 = vunpack.c.h.b16 %v4506
    %v5795 = vunpack.c.l.b16 %v4507
    %v5796 = vunpack.c.h.b16 %v4507
    %v5797 = vunpack.c.l.b16 %v4508
    %v5798 = vunpack.c.h.b16 %v4508
    %v5799 = vunpack.c.l.b16 %v4509
    %v5800 = vunpack.c.h.b16 %v4509
    %v5801 = vunpack.c.l.b16 %v4510
    %v5802 = vunpack.c.h.b16 %v4510
    %v5803 = vunpack.c.l.b16 %v4511
    %v5804 = vunpack.c.h.b16 %v4511
    %v5805 = vunpack.c.l.b16 %v4512
    %v5806 = vunpack.c.h.b16 %v4512
    %v5807 = vunpack.c.l.b16 %v4513
    %v5808 = vunpack.c.h.b16 %v4513
    %v5809 = vunpack.c.l.b16 %v4514
    %v5810 = vunpack.c.h.b16 %v4514
    %v5811 = vunpack.c.l.b16 %v4515
    %v5812 = vunpack.c.h.b16 %v4515
    %v5813 = vunpack.c.l.b16 %v4516
    %v5814 = vunpack.c.h.b16 %v4516
    %v5815 = vunpack.c.l.b16 %v4517
    %v5816 = vunpack.c.h.b16 %v4517
    %v5817 = vunpack.c.l.b16 %v4518
    %v5818 = vunpack.c.h.b16 %v4518
    %v5819 = vunpack.c.l.b16 %v4519
    %v5820 = vunpack.c.h.b16 %v4519
    %v5821 = vunpack.c.l.b16 %v4520
    %v5822 = vunpack.c.h.b16 %v4520
    %v5823 = vunpack.c.l.b16 %v4521
    %v5824 = vunpack.c.h.b16 %v4521
    %v5825 = vunpack.c.l.b16 %v4522
    %v5826 = vunpack.c.h.b16 %v4522
    %v5827 = vunpack.c.l.b16 %v4523
    %v5828 = vunpack.c.h.b16 %v4523
    %v5829 = vunpack.c.l.b16 %v4524
    %v5830 = vunpack.c.h.b16 %v4524
    %v5831 = vunpack.c.l.b16 %v4525
    %v5832 = vunpack.c.h.b16 %v4525
    %v5833 = vunpack.c.l.b16 %v4526
    %v5834 = vunpack.c.h.b16 %v4526
    %v5835 = vunpack.c.l.b16 %v4527
    %v5836 = vunpack.c.h.b16 %v4527
    %v5837 = vunpack.c.l.b16 %v4528
    %v5838 = vunpack.c.h.b16 %v4528
    %v5839 = vunpack.c.l.b16 %v4529
    %v5840 = vunpack.c.h.b16 %v4529
    %v5841 = vunpack.c.l.b16 %v4530
    %v5842 = vunpack.c.h.b16 %v4530
    %v5843 = vunpack.c.l.b16 %v4531
    %v5844 = vunpack.c.h.b16 %v4531
    %v5845 = vunpack.c.l.b16 %v4532
    %v5846 = vunpack.c.h.b16 %v4532
    %v5847 = vunpack.c.l.b16 %v4533
    %v5848 = vunpack.c.h.b16 %v4533
    %v5849 = vunpack.c.l.b16 %v4534
    %v5850 = vunpack.c.h.b16 %v4534
    %v5851 = vunpack.c.l.b16 %v4535
    %v5852 = vunpack.c.h.b16 %v4535
    %v5853 = vunpack.c.l.b16 %v4536
    %v5854 = vunpack.c.h.b16 %v4536
    %v5855 = vunpack.c.l.b16 %v4537
    %v5856 = vunpack.c.h.b16 %v4537
    %v5857 = vunpack.c.l.b16 %v4538
    %v5858 = vunpack.c.h.b16 %v4538
    %v5859 = vunpack.c.l.b16 %v4539
    %v5860 = vunpack.c.h.b16 %v4539
    %v5861 = vunpack.c.l.b16 %v4540
    %v5862 = vunpack.c.h.b16 %v4540
    %v5863 = vunpack.c.l.b16 %v4541
    %v5864 = vunpack.c.h.b16 %v4541
    %v5865 = vunpack.c.l.b16 %v4542
    %v5866 = vunpack.c.h.b16 %v4542
    %v5867 = vunpack.c.l.b16 %v4543
    %v5868 = vunpack.c.h.b16 %v4543
    %v5869 = vunpack.c.l.b16 %v4544
    %v5870 = vunpack.c.h.b16 %v4544
    %v5871 = vunpack.c.l.b16 %v4545
    %v5872 = vunpack.c.h.b16 %v4545
    %v5873 = vunpack.c.l.b16 %v4546
    %v5874 = vunpack.c.h.b16 %v4546
    %v5875 = vunpack.c.l.b16 %v4547
    %v5876 = vunpack.c.h.b16 %v4547
    %v5877 = vunpack.c.l.b16 %v4548
    %v5878 = vunpack.c.h.b16 %v4548
    %v5879 = vunpack.c.l.b16 %v4549
    %v5880 = vunpack.c.h.b16 %v4549
    %v5881 = vunpack.c.l.b16 %v4550
    %v5882 = vunpack.c.h.b16 %v4550
    %v5883 = vunpack.c.l.b16 %v4551
    %v5884 = vunpack.c.h.b16 %v4551
    %v5885 = vunpack.c.l.b16 %v4552
    %v5886 = vunpack.c.h.b16 %v4552
    %v5887 = vunpack.c.l.b16 %v4553
    %v5888 = vunpack.c.h.b16 %v4553
    %v5889 = vunpack.c.l.b16 %v4554
    %v5890 = vunpack.c.h.b16 %v4554
    %v5891 = vunpack.c.l.b16 %v4555
    %v5892 = vunpack.c.h.b16 %v4555
    %v5893 = vunpack.c.l.b16 %v4556
    %v5894 = vunpack.c.h.b16 %v4556
    %v5895 = vunpack.c.l.b16 %v4557
    %v5896 = vunpack.c.h.b16 %v4557
    %v5897 = vunpack.c.l.b16 %v4558
    %v5898 = vunpack.c.h.b16 %v4558
    %v5899 = vunpack.c.l.b16 %v4559
    %v5900 = vunpack.c.h.b16 %v4559
    %v5901 = vunpack.c.l.b16 %v4560
    %v5902 = vunpack.c.h.b16 %v4560
    %v5903 = vunpack.c.l.b16 %v4561
    %v5904 = vunpack.c.h.b16 %v4561
    %v5905 = vunpack.c.l.b16 %v4562
    %v5906 = vunpack.c.h.b16 %v4562
    %v5907 = vunpack.c.l.b16 %v4563
    %v5908 = vunpack.c.h.b16 %v4563
    %v5909 = vunpack.c.l.b16 %v4564
    %v5910 = vunpack.c.h.b16 %v4564
    %v5911 = vunpack.c.l.b16 %v4565
    %v5912 = vunpack.c.h.b16 %v4565
    %v5913 = vunpack.c.l.b16 %v4566
    %v5914 = vunpack.c.h.b16 %v4566
    %v5915 = vunpack.c.l.b16 %v4567
    %v5916 = vunpack.c.h.b16 %v4567
    %v5917 = vunpack.c.l.b16 %v4568
    %v5918 = vunpack.c.h.b16 %v4568
    %v5919 = vunpack.c.l.b16 %v4569
    %v5920 = vunpack.c.h.b16 %v4569
    %v5921 = vunpack.c.l.b16 %v4570
    %v5922 = vunpack.c.h.b16 %v4570
    %v5923 = vunpack.c.l.b16 %v4571
    %v5924 = vunpack.c.h.b16 %v4571
    %v5925 = vunpack.c.l.b16 %v4572
    %v5926 = vunpack.c.h.b16 %v4572
    %v5927 = vunpack.c.l.b16 %v4573
    %v5928 = vunpack.c.h.b16 %v4573
    %v5929 = vunpack.c.l.b16 %v4574
    %v5930 = vunpack.c.h.b16 %v4574
    %v5931 = vunpack.c.l.b16 %v4575
    %v5932 = vunpack.c.h.b16 %v4575
    %v5933 = vunpack.c.l.b16 %v4576
    %v5934 = vunpack.c.h.b16 %v4576
    %v5935 = vunpack.c.l.b16 %v4577
    %v5936 = vunpack.c.h.b16 %v4577
    %v5937 = vunpack.c.l.b16 %v4578
    %v5938 = vunpack.c.h.b16 %v4578
    %v5939 = vunpack.c.l.b16 %v4579
    %v5940 = vunpack.c.h.b16 %v4579
    %v5941 = vunpack.c.l.b16 %v4580
    %v5942 = vunpack.c.h.b16 %v4580
    %v5943 = vunpack.c.l.b16 %v4581
    %v5944 = vunpack.c.h.b16 %v4581
    %v5945 = vunpack.c.l.b16 %v4582
    %v5946 = vunpack.c.h.b16 %v4582
    %v5947 = vunpack.c.l.b16 %v4583
    %v5948 = vunpack.c.h.b16 %v4583
    %v5949 = vunpack.c.l.b16 %v4584
    %v5950 = vunpack.c.h.b16 %v4584
    %v5951 = vunpack.c.l.b16 %v4585
    %v5952 = vunpack.c.h.b16 %v4585
    %v5953 = vunpack.c.l.b16 %v4586
    %v5954 = vunpack.c.h.b16 %v4586
    %v5955 = vunpack.c.l.b16 %v4587
    %v5956 = vunpack.c.h.b16 %v4587
    %v5957 = vunpack.c.l.b16 %v4588
    %v5958 = vunpack.c.h.b16 %v4588
    %v5959 = vunpack.c.l.b16 %v4589
    %v5960 = vunpack.c.h.b16 %v4589
    %v5961 = vunpack.c.l.b16 %v4590
    %v5962 = vunpack.c.h.b16 %v4590
    %v5963 = vunpack.c.l.b16 %v4591
    %v5964 = vunpack.c.h.b16 %v4591
    %v5965 = vunpack.c.l.b16 %v4592
    %v5966 = vunpack.c.h.b16 %v4592
    %v5967 = vunpack.c.l.b16 %v4593
    %v5968 = vunpack.c.h.b16 %v4593
    %v5969 = vunpack.c.l.b16 %v4594
    %v5970 = vunpack.c.h.b16 %v4594
    %v5971 = vunpack.c.l.b16 %v4595
    %v5972 = vunpack.c.h.b16 %v4595
    %v5973 = vunpack.c.l.b16 %v4596
    %v5974 = vunpack.c.h.b16 %v4596
    %v5975 = vunpack.c.l.b16 %v4597
    %v5976 = vunpack.c.h.b16 %v4597
    %v5977 = vunpack.c.l.b16 %v4598
    %v5978 = vunpack.c.h.b16 %v4598
    %v5979 = vunpack.c.l.b16 %v4599
    %v5980 = vunpack.c.h.b16 %v4599
    %v5981 = vunpack.c.l.b16 %v4600
    %v5982 = vunpack.c.h.b16 %v4600
    %v5983 = vunpack.c.l.b16 %v4601
    %v5984 = vunpack.c.h.b16 %v4601
    %v5985 = vunpack.c.l.b16 %v4602
    %v5986 = vunpack.c.h.b16 %v4602
    %v5987 = vunpack.c.l.b16 %v4603
    %v5988 = vunpack.c.h.b16 %v4603
    %v5989 = vunpack.c.l.b16 %v4604
    %v5990 = vunpack.c.h.b16 %v4604
    %v5991 = vunpack.c.l.b16 %v4605
    %v5992 = vunpack.c.h.b16 %v4605
    %v5993 = vunpack.c.l.b16 %v4606
    %v5994 = vunpack.c.h.b16 %v4606
    %v5995 = vunpack.c.l.b16 %v4607
    %v5996 = vunpack.c.h.b16 %v4607
    %v5997 = vunpack.c.l.b16 %v4608
    %v5998 = vunpack.c.h.b16 %v4608
    %v5999 = vunpack.c.l.b16 %v4609
    %v6000 = vunpack.c.h.b16 %v4609
    %v6001 = vunpack.c.l.b16 %v4610
    %v6002 = vunpack.c.h.b16 %v4610
    %v6003 = vunpack.c.l.b16 %v4611
    %v6004 = vunpack.c.h.b16 %v4611
    %v6005 = vunpack.c.l.b16 %v4612
    %v6006 = vunpack.c.h.b16 %v4612
    %v6007 = vunpack.c.l.b16 %v4613
    %v6008 = vunpack.c.h.b16 %v4613
    %v6009 = vunpack.c.l.b16 %v4614
    %v6010 = vunpack.c.h.b16 %v4614
    %v6011 = vunpack.c.l.b16 %v4615
    %v6012 = vunpack.c.h.b16 %v4615
    %v6013 = vunpack.c.l.b16 %v4616
    %v6014 = vunpack.c.h.b16 %v4616
    %v6015 = vunpack.c.l.b16 %v4617
    %v6016 = vunpack.c.h.b16 %v4617
    %v6017 = vunpack.c.l.b16 %v4618
    %v6018 = vunpack.c.h.b16 %v4618
    %v6019 = vunpack.c.l.b16 %v4619
    %v6020 = vunpack.c.h.b16 %v4619
    %v6021 = vunpack.c.l.b16 %v4620
    %v6022 = vunpack.c.h.b16 %v4620
    %v6023 = vunpack.c.l.b16 %v4621
    %v6024 = vunpack.c.h.b16 %v4621
    %v6025 = vunpack.c.l.b16 %v4622
    %v6026 = vunpack.c.h.b16 %v4622
    %v6027 = vunpack.c.l.b16 %v4623
    %v6028 = vunpack.c.h.b16 %v4623
    %v6029 = vunpack.c.l.b16 %v4624
    %v6030 = vunpack.c.h.b16 %v4624
    %v6031 = vunpack.c.l.b16 %v4625
    %v6032 = vunpack.c.h.b16 %v4625
    %v6033 = vunpack.c.l.b16 %v4626
    %v6034 = vunpack.c.h.b16 %v4626
    %v6035 = vunpack.c.l.b16 %v4627
    %v6036 = vunpack.c.h.b16 %v4627
    %v6037 = vunpack.c.l.b16 %v4628
    %v6038 = vunpack.c.h.b16 %v4628
    %v6039 = vunpack.c.l.b16 %v4629
    %v6040 = vunpack.c.h.b16 %v4629
    %v6041 = vunpack.c.l.b16 %v4630
    %v6042 = vunpack.c.h.b16 %v4630
    %v6043 = vunpack.c.l.b16 %v4631
    %v6044 = vunpack.c.h.b16 %v4631
    %v6045 = vunpack.c.l.b16 %v4632
    %v6046 = vunpack.c.h.b16 %v4632
    %v6047 = vunpack.c.l.b16 %v4633
    %v6048 = vunpack.c.h.b16 %v4633
    %v6049 = vunpack.c.l.b16 %v4634
    %v6050 = vunpack.c.h.b16 %v4634
    %v6051 = vunpack.c.l.b16 %v4635
    %v6052 = vunpack.c.h.b16 %v4635
    %v6053 = vunpack.c.l.b16 %v4636
    %v6054 = vunpack.c.h.b16 %v4636
    %v6055 = vunpack.c.l.b16 %v4637
    %v6056 = vunpack.c.h.b16 %v4637
    %v6057 = vunpack.c.l.b16 %v4638
    %v6058 = vunpack.c.h.b16 %v4638
    %v6059 = vunpack.c.l.b16 %v4639
    %v6060 = vunpack.c.h.b16 %v4639
    %v6061 = vunpack.c.l.b16 %v4640
    %v6062 = vunpack.c.h.b16 %v4640
    %v6063 = vunpack.c.l.b16 %v4641
    %v6064 = vunpack.c.h.b16 %v4641
    %v6065 = vunpack.c.l.b16 %v4642
    %v6066 = vunpack.c.h.b16 %v4642
    %v6067 = vunpack.c.l.b16 %v4643
    %v6068 = vunpack.c.h.b16 %v4643
    %v6069 = vunpack.c.l.b16 %v4644
    %v6070 = vunpack.c.h.b16 %v4644
    %v6071 = vunpack.c.l.b16 %v4645
    %v6072 = vunpack.c.h.b16 %v4645
    %v6073 = vunpack.c.l.b16 %v4646
    %v6074 = vunpack.c.h.b16 %v4646
    %v6075 = vunpack.c.l.b16 %v4647
    %v6076 = vunpack.c.h.b16 %v4647
    %v6077 = vunpack.c.l.b16 %v4648
    %v6078 = vunpack.c.h.b16 %v4648
    %v6079 = vunpack.c.l.b16 %v4649
    %v6080 = vunpack.c.h.b16 %v4649
    %v6081 = vunpack.c.l.b16 %v4650
    %v6082 = vunpack.c.h.b16 %v4650
    %v6083 = vunpack.c.l.b16 %v4651
    %v6084 = vunpack.c.h.b16 %v4651
    %v6085 = vunpack.c.l.b16 %v4652
    %v6086 = vunpack.c.h.b16 %v4652
    %v6087 = vunpack.c.l.b16 %v4653
    %v6088 = vunpack.c.h.b16 %v4653
    %v6089 = vunpack.c.l.b16 %v4654
    %v6090 = vunpack.c.h.b16 %v4654
    %v6091 = vunpack.c.l.b16 %v4655
    %v6092 = vunpack.c.h.b16 %v4655
    %v6093 = vunpack.c.l.b16 %v4656
    %v6094 = vunpack.c.h.b16 %v4656
    %v6095 = vunpack.c.l.b16 %v4657
    %v6096 = vunpack.c.h.b16 %v4657
    %v6097 = vunpack.c.l.b16 %v4658
    %v6098 = vunpack.c.h.b16 %v4658
    %v6099 = vunpack.c.l.b16 %v4659
    %v6100 = vunpack.c.h.b16 %v4659
    %v6101 = vunpack.c.l.b16 %v4660
    %v6102 = vunpack.c.h.b16 %v4660
    %v6103 = vunpack.c.l.b16 %v4661
    %v6104 = vunpack.c.h.b16 %v4661
    %v6105 = vunpack.c.l.b16 %v4662
    %v6106 = vunpack.c.h.b16 %v4662
    %v6107 = vunpack.c.l.b16 %v4663
    %v6108 = vunpack.c.h.b16 %v4663
    %v6109 = vunpack.c.l.b16 %v4664
    %v6110 = vunpack.c.h.b16 %v4664
    %v6111 = vunpack.c.l.b16 %v4665
    %v6112 = vunpack.c.h.b16 %v4665
    %v6113 = vunpack.c.l.b16 %v4666
    %v6114 = vunpack.c.h.b16 %v4666
    %v6115 = vunpack.c.l.b16 %v4667
    %v6116 = vunpack.c.h.b16 %v4667
    %v6117 = vunpack.c.l.b16 %v4668
    %v6118 = vunpack.c.h.b16 %v4668
    %v6119 = vunpack.c.l.b16 %v4669
    %v6120 = vunpack.c.h.b16 %v4669
    %v6121 = vunpack.c.l.b16 %v4670
    %v6122 = vunpack.c.h.b16 %v4670
    %v6123 = vunpack.c.l.b16 %v4671
    %v6124 = vunpack.c.h.b16 %v4671
    %v6125 = vunpack.c.l.b16 %v4672
    %v6126 = vunpack.c.h.b16 %v4672
    %v6127 = vunpack.c.l.b16 %v4673
    %v6128 = vunpack.c.h.b16 %v4673
    %v6129 = vunpack.c.l.b16 %v4674
    %v6130 = vunpack.c.h.b16 %v4674
    %v6131 = vunpack.c.l.b16 %v4675
    %v6132 = vunpack.c.h.b16 %v4675
    %v6133 = vunpack.c.l.b16 %v4676
    %v6134 = vunpack.c.h.b16 %v4676
    %v6135 = vunpack.c.l.b16 %v4677
    %v6136 = vunpack.c.h.b16 %v4677
    %v6137 = vunpack.c.l.b16 %v4678
    %v6138 = vunpack.c.h.b16 %v4678
    %v6139 = vunpack.c.l.b16 %v4679
    %v6140 = vunpack.c.h.b16 %v4679
    %v6141 = vunpack.c.l.b16 %v4680
    %v6142 = vunpack.c.h.b16 %v4680
    %v6143 = vunpack.c.l.b16 %v4681
    %v6144 = vunpack.c.h.b16 %v4681
    %v6145 = vunpack.c.l.b16 %v4682
    %v6146 = vunpack.c.h.b16 %v4682
    %v6147 = vunpack.c.l.b16 %v4683
    %v6148 = vunpack.c.h.b16 %v4683
    %v6149 = vunpack.c.l.b16 %v4684
    %v6150 = vunpack.c.h.b16 %v4684
    %v6151 = vunpack.c.l.b16 %v4685
    %v6152 = vunpack.c.h.b16 %v4685
    %v6153 = vunpack.c.l.b16 %v4686
    %v6154 = vunpack.c.h.b16 %v4686
    %v6155 = vunpack.c.l.b16 %v4687
    %v6156 = vunpack.c.h.b16 %v4687
    %v6157 = vunpack.c.l.b16 %v4688
    %v6158 = vunpack.c.h.b16 %v4688
    %v6159 = vunpack.c.l.b16 %v4689
    %v6160 = vunpack.c.h.b16 %v4689
    %v6161 = vunpack.c.l.b16 %v4690
    %v6162 = vunpack.c.h.b16 %v4690
    %v6163 = vunpack.c.l.b16 %v4691
    %v6164 = vunpack.c.h.b16 %v4691
    %v6165 = vunpack.c.l.b16 %v4692
    %v6166 = vunpack.c.h.b16 %v4692
    %v6167 = vunpack.c.l.b16 %v4693
    %v6168 = vunpack.c.h.b16 %v4693
    %v6169 = vunpack.c.l.b16 %v4694
    %v6170 = vunpack.c.h.b16 %v4694
    %v6171 = vunpack.c.l.b16 %v4695
    %v6172 = vunpack.c.h.b16 %v4695
    %v6173 = vunpack.c.l.b16 %v4696
    %v6174 = vunpack.c.h.b16 %v4696
    %v6175 = vunpack.c.l.b16 %v4697
    %v6176 = vunpack.c.h.b16 %v4697
    %v6177 = vunpack.c.l.b16 %v4698
    %v6178 = vunpack.c.h.b16 %v4698
    %v6179 = vunpack.c.l.b16 %v4699
    %v6180 = vunpack.c.h.b16 %v4699
    %v6181 = vunpack.c.l.b16 %v4700
    %v6182 = vunpack.c.h.b16 %v4700
    %v6183 = vunpack.c.l.b16 %v4701
    %v6184 = vunpack.c.h.b16 %v4701
    %v6185 = vunpack.c.l.b16 %v4702
    %v6186 = vunpack.c.h.b16 %v4702
    %v6187 = vunpack.c.l.b16 %v4703
    %v6188 = vunpack.c.h.b16 %v4703
    %v6189 = vunpack.c.l.b16 %v4704
    %v6190 = vunpack.c.h.b16 %v4704
    %v6191 = vunpack.c.l.b16 %v4705
    %v6192 = vunpack.c.h.b16 %v4705
    %v6193 = vunpack.c.l.b16 %v4706
    %v6194 = vunpack.c.h.b16 %v4706
    %v6195 = vunpack.c.l.b16 %v4707
    %v6196 = vunpack.c.h.b16 %v4707
    %v6197 = vunpack.c.l.b16 %v4708
    %v6198 = vunpack.c.h.b16 %v4708
    %v6199 = vunpack.c.l.b16 %v4709
    %v6200 = vunpack.c.h.b16 %v4709
    %v6201 = vunpack.c.l.b16 %v4710
    %v6202 = vunpack.c.h.b16 %v4710
    %v6203 = vunpack.c.l.b16 %v4711
    %v6204 = vunpack.c.h.b16 %v4711
    %v6205 = vunpack.c.l.b16 %v4712
    %v6206 = vunpack.c.h.b16 %v4712
    %v6207 = vunpack.c.l.b16 %v4713
    %v6208 = vunpack.c.h.b16 %v4713
    %v6209 = vunpack.c.l.b16 %v4714
    %v6210 = vunpack.c.h.b16 %v4714
    %v6211 = vunpack.c.l.b16 %v4715
    %v6212 = vunpack.c.h.b16 %v4715
    %v6213 = vunpack.c.l.b16 %v4716
    %v6214 = vunpack.c.h.b16 %v4716
    %v6215 = vunpack.c.l.b16 %v4717
    %v6216 = vunpack.c.h.b16 %v4717
    %v6217 = vunpack.c.l.b16 %v4718
    %v6218 = vunpack.c.h.b16 %v4718
    %v6219 = vunpack.c.l.b16 %v4719
    %v6220 = vunpack.c.h.b16 %v4719
    %v6221 = vunpack.c.l.b16 %v4720
    %v6222 = vunpack.c.h.b16 %v4720
    %v6223 = vunpack.c.l.b16 %v4721
    %v6224 = vunpack.c.h.b16 %v4721
    %v6225 = vunpack.c.l.b16 %v4722
    %v6226 = vunpack.c.h.b16 %v4722
    %v6227 = vunpack.c.l.b16 %v4723
    %v6228 = vunpack.c.h.b16 %v4723
    %v6229 = vunpack.c.l.b16 %v4724
    %v6230 = vunpack.c.h.b16 %v4724
    %v6231 = vunpack.c.l.b16 %v4725
    %v6232 = vunpack.c.h.b16 %v4725
    %v6233 = vunpack.c.l.b16 %v4726
    %v6234 = vunpack.c.h.b16 %v4726
    %v6235 = vunpack.c.l.b16 %v4727
    %v6236 = vunpack.c.h.b16 %v4727
    %v6237 = vunpack.c.l.b16 %v4728
    %v6238 = vunpack.c.h.b16 %v4728
    %v6239 = vunpack.c.l.b16 %v4729
    %v6240 = vunpack.c.h.b16 %v4729
    %v6241 = vunpack.c.l.b16 %v4730
    %v6242 = vunpack.c.h.b16 %v4730
    %v6243 = vunpack.c.l.b16 %v4731
    %v6244 = vunpack.c.h.b16 %v4731
    %v6245 = vunpack.c.l.b16 %v4732
    %v6246 = vunpack.c.h.b16 %v4732
    %v6247 = vunpack.c.l.b16 %v4733
    %v6248 = vunpack.c.h.b16 %v4733
    %v6249 = vunpack.c.l.b16 %v4734
    %v6250 = vunpack.c.h.b16 %v4734
    %v6251 = vunpack.c.l.b16 %v4735
    %v6252 = vunpack.c.h.b16 %v4735
    %v6253 = vunpack.c.l.b16 %v4736
    %v6254 = vunpack.c.h.b16 %v4736
    %v6255 = vunpack.c.l.b16 %v4737
    %v6256 = vunpack.c.h.b16 %v4737
    %v6257 = vunpack.c.l.b16 %v4738
    %v6258 = vunpack.c.h.b16 %v4738
    %v6259 = vunpack.c.l.b16 %v4739
    %v6260 = vunpack.c.h.b16 %v4739
    %v6261 = vunpack.c.l.b16 %v4740
    %v6262 = vunpack.c.h.b16 %v4740
    %v6263 = vunpack.c.l.b16 %v4741
    %v6264 = vunpack.c.h.b16 %v4741
    %v6265 = vunpack.c.l.b16 %v4742
    %v6266 = vunpack.c.h.b16 %v4742
    %v6267 = vunpack.c.l.b16 %v4743
    %v6268 = vunpack.c.h.b16 %v4743
    %v6269 = vunpack.c.l.b16 %v4744
    %v6270 = vunpack.c.h.b16 %v4744
    %v6271 = vunpack.c.l.b16 %v4745
    %v6272 = vunpack.c.h.b16 %v4745
    %v6273 = vunpack.c.l.b16 %v4746
    %v6274 = vunpack.c.h.b16 %v4746
    %v6275 = vunpack.c.l.b16 %v4747
    %v6276 = vunpack.c.h.b16 %v4747
    %v6277 = vunpack.c.l.b16 %v4748
    %v6278 = vunpack.c.h.b16 %v4748
    %v6279 = vunpack.c.l.b16 %v4749
    %v6280 = vunpack.c.h.b16 %v4749
    %v6281 = vunpack.c.l.b16 %v4750
    %v6282 = vunpack.c.h.b16 %v4750
    %v6283 = vunpack.c.l.b16 %v4751
    %v6284 = vunpack.c.h.b16 %v4751
    %v6285 = vunpack.c.l.b16 %v4752
    %v6286 = vunpack.c.h.b16 %v4752
    %v6287 = vunpack.c.l.b16 %v4753
    %v6288 = vunpack.c.h.b16 %v4753
    %v6289 = vunpack.c.l.b16 %v4754
    %v6290 = vunpack.c.h.b16 %v4754
    %v6291 = vunpack.c.l.b16 %v4755
    %v6292 = vunpack.c.h.b16 %v4755
    %v6293 = vunpack.c.l.b16 %v4756
    %v6294 = vunpack.c.h.b16 %v4756
    %v6295 = vunpack.c.l.b16 %v4757
    %v6296 = vunpack.c.h.b16 %v4757
    %v6297 = vunpack.c.l.b16 %v4758
    %v6298 = vunpack.c.h.b16 %v4758
    %v6299 = vunpack.c.l.b16 %v4759
    %v6300 = vunpack.c.h.b16 %v4759
    %v6301 = vunpack.c.l.b16 %v4760
    %v6302 = vunpack.c.h.b16 %v4760
    %v6303 = vunpack.c.l.b16 %v4761
    %v6304 = vunpack.c.h.b16 %v4761
    %v6305 = vunpack.c.l.b16 %v4762
    %v6306 = vunpack.c.h.b16 %v4762
    %v6307 = vunpack.c.l.b16 %v4763
    %v6308 = vunpack.c.h.b16 %v4763
    %v6309 = vunpack.c.l.b16 %v4764
    %v6310 = vunpack.c.h.b16 %v4764
    %v6311 = vunpack.c.l.b16 %v4765
    %v6312 = vunpack.c.h.b16 %v4765
    %v6313 = vunpack.c.l.b16 %v4766
    %v6314 = vunpack.c.h.b16 %v4766
    %v6315 = vunpack.c.l.b16 %v4767
    %v6316 = vunpack.c.h.b16 %v4767
    %v6317 = vunpack.c.l.b16 %v4768
    %v6318 = vunpack.c.h.b16 %v4768
    %v6319 = vunpack.c.l.b16 %v4769
    %v6320 = vunpack.c.h.b16 %v4769
    %v6321 = vunpack.c.l.b16 %v4770
    %v6322 = vunpack.c.h.b16 %v4770
    %v6323 = vunpack.c.l.b16 %v4771
    %v6324 = vunpack.c.h.b16 %v4771
    %v6325 = vunpack.c.l.b16 %v4772
    %v6326 = vunpack.c.h.b16 %v4772
    %v6327 = vunpack.c.l.b16 %v4773
    %v6328 = vunpack.c.h.b16 %v4773
    %v6329 = vunpack.c.l.b16 %v4774
    %v6330 = vunpack.c.h.b16 %v4774
    %v6331 = vunpack.c.l.b16 %v4775
    %v6332 = vunpack.c.h.b16 %v4775
    %v6333 = vunpack.c.l.b16 %v4776
    %v6334 = vunpack.c.h.b16 %v4776
    %v6335 = vunpack.c.l.b16 %v4777
    %v6336 = vunpack.c.h.b16 %v4777
    %v6337 = vunpack.c.l.b16 %v4778
    %v6338 = vunpack.c.h.b16 %v4778
    %v6339 = vunpack.c.l.b16 %v4779
    %v6340 = vunpack.c.h.b16 %v4779
    %v6341 = vunpack.c.l.b16 %v4780
    %v6342 = vunpack.c.h.b16 %v4780
    %v6343 = vunpack.c.l.b16 %v4781
    %v6344 = vunpack.c.h.b16 %v4781
    %v6345 = vunpack.c.l.b16 %v4782
    %v6346 = vunpack.c.h.b16 %v4782
    %v6347 = vunpack.c.l.b16 %v4783
    %v6348 = vunpack.c.h.b16 %v4783
    %v6349 = vunpack.c.l.b16 %v4784
    %v6350 = vunpack.c.h.b16 %v4784
    %v6351 = vunpack.c.l.b16 %v4785
    %v6352 = vunpack.c.h.b16 %v4785
    %v6353 = vunpack.c.l.b16 %v4786
    %v6354 = vunpack.c.h.b16 %v4786
    %v6355 = vunpack.c.l.b16 %v4787
    %v6356 = vunpack.c.h.b16 %v4787
    %v6357 = vunpack.c.l.b16 %v4788
    %v6358 = vunpack.c.h.b16 %v4788
    %v6359 = vunpack.c.l.b16 %v4789
    %v6360 = vunpack.c.h.b16 %v4789
    %v6361 = vunpack.c.l.b16 %v4790
    %v6362 = vunpack.c.h.b16 %v4790
    %v6363 = vunpack.c.l.b16 %v4791
    %v6364 = vunpack.c.h.b16 %v4791
    %v6365 = vunpack.c.l.b16 %v4792
    %v6366 = vunpack.c.h.b16 %v4792
    %v6367 = vunpack.c.l.b16 %v4793
    %v6368 = vunpack.c.h.b16 %v4793
    %v6369 = vunpack.c.l.b16 %v4794
    %v6370 = vunpack.c.h.b16 %v4794
    %v6371 = vunpack.c.l.b16 %v4795
    %v6372 = vunpack.c.h.b16 %v4795
    %v6373 = vunpack.c.l.b16 %v4796
    %v6374 = vunpack.c.h.b16 %v4796
    %v6375 = vpack.c.b16 %v5359, %v5351
    %v6376 = vpack.c.b16 %v5360, %v5352
    %v6377 = vpack.c.b16 %v5361, %v5353
    %v6378 = vpack.c.b16 %v5362, %v5354
    %v6379 = vpack.c.b16 %v5363, %v5355
    %v6380 = vpack.c.b16 %v5364, %v5356
    %v6381 = vpack.c.b16 %v5365, %v5357
    %v6382 = vpack.c.b16 %v5366, %v5358
    %v6383 = vpack.c.b16 %v5375, %v5367
    %v6384 = vpack.c.b16 %v5376, %v5368
    %v6385 = vpack.c.b16 %v5377, %v5369
    %v6386 = vpack.c.b16 %v5378, %v5370
    %v6387 = vpack.c.b16 %v5379, %v5371
    %v6388 = vpack.c.b16 %v5380, %v5372
    %v6389 = vpack.c.b16 %v5381, %v5373
    %v6390 = vpack.c.b16 %v5382, %v5374
    %v6391 = vpack.c.b16 %v5391, %v5383
    %v6392 = vpack.c.b16 %v5392, %v5384
    %v6393 = vpack.c.b16 %v5393, %v5385
    %v6394 = vpack.c.b16 %v5394, %v5386
    %v6395 = vpack.c.b16 %v5395, %v5387
    %v6396 = vpack.c.b16 %v5396, %v5388
    %v6397 = vpack.c.b16 %v5397, %v5389
    %v6398 = vpack.c.b16 %v5398, %v5390
    %v6399 = vpack.c.b16 %v5407, %v5399
    %v6400 = vpack.c.b16 %v5408, %v5400
    %v6401 = vpack.c.b16 %v5409, %v5401
    %v6402 = vpack.c.b16 %v5410, %v5402
    %v6403 = vpack.c.b16 %v5411, %v5403
    %v6404 = vpack.c.b16 %v5412, %v5404
    %v6405 = vpack.c.b16 %v5413, %v5405
    %v6406 = vpack.c.b16 %v5414, %v5406
    %v6407 = vpack.c.b16 %v5423, %v5415
    %v6408 = vpack.c.b16 %v5424, %v5416
    %v6409 = vpack.c.b16 %v5425, %v5417
    %v6410 = vpack.c.b16 %v5426, %v5418
    %v6411 = vpack.c.b16 %v5427, %v5419
    %v6412 = vpack.c.b16 %v5428, %v5420
    %v6413 = vpack.c.b16 %v5429, %v5421
    %v6414 = vpack.c.b16 %v5430, %v5422
    %v6415 = vpack.c.b16 %v5439, %v5431
    %v6416 = vpack.c.b16 %v5440, %v5432
    %v6417 = vpack.c.b16 %v5441, %v5433
    %v6418 = vpack.c.b16 %v5442, %v5434
    %v6419 = vpack.c.b16 %v5443, %v5435
    %v6420 = vpack.c.b16 %v5444, %v5436
    %v6421 = vpack.c.b16 %v5445, %v5437
    %v6422 = vpack.c.b16 %v5446, %v5438
    %v6423 = vpack.c.b16 %v5455, %v5447
    %v6424 = vpack.c.b16 %v5456, %v5448
    %v6425 = vpack.c.b16 %v5457, %v5449
    %v6426 = vpack.c.b16 %v5458, %v5450
    %v6427 = vpack.c.b16 %v5459, %v5451
    %v6428 = vpack.c.b16 %v5460, %v5452
    %v6429 = vpack.c.b16 %v5461, %v5453
    %v6430 = vpack.c.b16 %v5462, %v5454
    %v6431 = vpack.c.b16 %v5471, %v5463
    %v6432 = vpack.c.b16 %v5472, %v5464
    %v6433 = vpack.c.b16 %v5473, %v5465
    %v6434 = vpack.c.b16 %v5474, %v5466
    %v6435 = vpack.c.b16 %v5475, %v5467
    %v6436 = vpack.c.b16 %v5476, %v5468
    %v6437 = vpack.c.b16 %v5477, %v5469
    %v6438 = vpack.c.b16 %v5478, %v5470
    %v6439 = vpack.c.b16 %v5487, %v5479
    %v6440 = vpack.c.b16 %v5488, %v5480
    %v6441 = vpack.c.b16 %v5489, %v5481
    %v6442 = vpack.c.b16 %v5490, %v5482
    %v6443 = vpack.c.b16 %v5491, %v5483
    %v6444 = vpack.c.b16 %v5492, %v5484
    %v6445 = vpack.c.b16 %v5493, %v5485
    %v6446 = vpack.c.b16 %v5494, %v5486
    %v6447 = vpack.c.b16 %v5503, %v5495
    %v6448 = vpack.c.b16 %v5504, %v5496
    %v6449 = vpack.c.b16 %v5505, %v5497
    %v6450 = vpack.c.b16 %v5506, %v5498
    %v6451 = vpack.c.b16 %v5507, %v5499
    %v6452 = vpack.c.b16 %v5508, %v5500
    %v6453 = vpack.c.b16 %v5509, %v5501
    %v6454 = vpack.c.b16 %v5510, %v5502
    %v6455 = vpack.c.b16 %v5519, %v5511
    %v6456 = vpack.c.b16 %v5520, %v5512
    %v6457 = vpack.c.b16 %v5521, %v5513
    %v6458 = vpack.c.b16 %v5522, %v5514
    %v6459 = vpack.c.b16 %v5523, %v5515
    %v6460 = vpack.c.b16 %v5524, %v5516
    %v6461 = vpack.c.b16 %v5525, %v5517
    %v6462 = vpack.c.b16 %v5526, %v5518
    %v6463 = vpack.c.b16 %v5535, %v5527
    %v6464 = vpack.c.b16 %v5536, %v5528
    %v6465 = vpack.c.b16 %v5537, %v5529
    %v6466 = vpack.c.b16 %v5538, %v5530
    %v6467 = vpack.c.b16 %v5539, %v5531
    %v6468 = vpack.c.b16 %v5540, %v5532
    %v6469 = vpack.c.b16 %v5541, %v5533
    %v6470 = vpack.c.b16 %v5542, %v5534
    %v6471 = vpack.c.b16 %v5551, %v5543
    %v6472 = vpack.c.b16 %v5552, %v5544
    %v6473 = vpack.c.b16 %v5553, %v5545
    %v6474 = vpack.c.b16 %v5554, %v5546
    %v6475 = vpack.c.b16 %v5555, %v5547
    %v6476 = vpack.c.b16 %v5556, %v5548
    %v6477 = vpack.c.b16 %v5557, %v5549
    %v6478 = vpack.c.b16 %v5558, %v5550
    %v6479 = vpack.c.b16 %v5567, %v5559
    %v6480 = vpack.c.b16 %v5568, %v5560
    %v6481 = vpack.c.b16 %v5569, %v5561
    %v6482 = vpack.c.b16 %v5570, %v5562
    %v6483 = vpack.c.b16 %v5571, %v5563
    %v6484 = vpack.c.b16 %v5572, %v5564
    %v6485 = vpack.c.b16 %v5573, %v5565
    %v6486 = vpack.c.b16 %v5574, %v5566
    %v6487 = vpack.c.b16 %v5583, %v5575
    %v6488 = vpack.c.b16 %v5584, %v5576
    %v6489 = vpack.c.b16 %v5585, %v5577
    %v6490 = vpack.c.b16 %v5586, %v5578
    %v6491 = vpack.c.b16 %v5587, %v5579
    %v6492 = vpack.c.b16 %v5588, %v5580
    %v6493 = vpack.c.b16 %v5589, %v5581
    %v6494 = vpack.c.b16 %v5590, %v5582
    %v6495 = vpack.c.b16 %v5599, %v5591
    %v6496 = vpack.c.b16 %v5600, %v5592
    %v6497 = vpack.c.b16 %v5601, %v5593
    %v6498 = vpack.c.b16 %v5602, %v5594
    %v6499 = vpack.c.b16 %v5603, %v5595
    %v6500 = vpack.c.b16 %v5604, %v5596
    %v6501 = vpack.c.b16 %v5605, %v5597
    %v6502 = vpack.c.b16 %v5606, %v5598
    %v6503 = vpack.c.b16 %v5615, %v5607
    %v6504 = vpack.c.b16 %v5616, %v5608
    %v6505 = vpack.c.b16 %v5617, %v5609
    %v6506 = vpack.c.b16 %v5618, %v5610
    %v6507 = vpack.c.b16 %v5619, %v5611
    %v6508 = vpack.c.b16 %v5620, %v5612
    %v6509 = vpack.c.b16 %v5621, %v5613
    %v6510 = vpack.c.b16 %v5622, %v5614
    %v6511 = vpack.c.b16 %v5631, %v5623
    %v6512 = vpack.c.b16 %v5632, %v5624
    %v6513 = vpack.c.b16 %v5633, %v5625
    %v6514 = vpack.c.b16 %v5634, %v5626
    %v6515 = vpack.c.b16 %v5635, %v5627
    %v6516 = vpack.c.b16 %v5636, %v5628
    %v6517 = vpack.c.b16 %v5637, %v5629
    %v6518 = vpack.c.b16 %v5638, %v5630
    %v6519 = vpack.c.b16 %v5647, %v5639
    %v6520 = vpack.c.b16 %v5648, %v5640
    %v6521 = vpack.c.b16 %v5649, %v5641
    %v6522 = vpack.c.b16 %v5650, %v5642
    %v6523 = vpack.c.b16 %v5651, %v5643
    %v6524 = vpack.c.b16 %v5652, %v5644
    %v6525 = vpack.c.b16 %v5653, %v5645
    %v6526 = vpack.c.b16 %v5654, %v5646
    %v6527 = vpack.c.b16 %v5663, %v5655
    %v6528 = vpack.c.b16 %v5664, %v5656
    %v6529 = vpack.c.b16 %v5665, %v5657
    %v6530 = vpack.c.b16 %v5666, %v5658
    %v6531 = vpack.c.b16 %v5667, %v5659
    %v6532 = vpack.c.b16 %v5668, %v5660
    %v6533 = vpack.c.b16 %v5669, %v5661
    %v6534 = vpack.c.b16 %v5670, %v5662
    %v6535 = vpack.c.b16 %v5679, %v5671
    %v6536 = vpack.c.b16 %v5680, %v5672
    %v6537 = vpack.c.b16 %v5681, %v5673
    %v6538 = vpack.c.b16 %v5682, %v5674
    %v6539 = vpack.c.b16 %v5683, %v5675
    %v6540 = vpack.c.b16 %v5684, %v5676
    %v6541 = vpack.c.b16 %v5685, %v5677
    %v6542 = vpack.c.b16 %v5686, %v5678
    %v6543 = vpack.c.b16 %v5695, %v5687
    %v6544 = vpack.c.b16 %v5696, %v5688
    %v6545 = vpack.c.b16 %v5697, %v5689
    %v6546 = vpack.c.b16 %v5698, %v5690
    %v6547 = vpack.c.b16 %v5699, %v5691
    %v6548 = vpack.c.b16 %v5700, %v5692
    %v6549 = vpack.c.b16 %v5701, %v5693
    %v6550 = vpack.c.b16 %v5702, %v5694
    %v6551 = vpack.c.b16 %v5711, %v5703
    %v6552 = vpack.c.b16 %v5712, %v5704
    %v6553 = vpack.c.b16 %v5713, %v5705
    %v6554 = vpack.c.b16 %v5714, %v5706
    %v6555 = vpack.c.b16 %v5715, %v5707
    %v6556 = vpack.c.b16 %v5716, %v5708
    %v6557 = vpack.c.b16 %v5717, %v5709
    %v6558 = vpack.c.b16 %v5718, %v5710
    %v6559 = vpack.c.b16 %v5727, %v5719
    %v6560 = vpack.c.b16 %v5728, %v5720
    %v6561 = vpack.c.b16 %v5729, %v5721
    %v6562 = vpack.c.b16 %v5730, %v5722
    %v6563 = vpack.c.b16 %v5731, %v5723
    %v6564 = vpack.c.b16 %v5732, %v5724
    %v6565 = vpack.c.b16 %v5733, %v5725
    %v6566 = vpack.c.b16 %v5734, %v5726
    %v6567 = vpack.c.b16 %v5743, %v5735
    %v6568 = vpack.c.b16 %v5744, %v5736
    %v6569 = vpack.c.b16 %v5745, %v5737
    %v6570 = vpack.c.b16 %v5746, %v5738
    %v6571 = vpack.c.b16 %v5747, %v5739
    %v6572 = vpack.c.b16 %v5748, %v5740
    %v6573 = vpack.c.b16 %v5749, %v5741
    %v6574 = vpack.c.b16 %v5750, %v5742
    %v6575 = vpack.c.b16 %v5759, %v5751
    %v6576 = vpack.c.b16 %v5760, %v5752
    %v6577 = vpack.c.b16 %v5761, %v5753
    %v6578 = vpack.c.b16 %v5762, %v5754
    %v6579 = vpack.c.b16 %v5763, %v5755
    %v6580 = vpack.c.b16 %v5764, %v5756
    %v6581 = vpack.c.b16 %v5765, %v5757
    %v6582 = vpack.c.b16 %v5766, %v5758
    %v6583 = vpack.c.b16 %v5775, %v5767
    %v6584 = vpack.c.b16 %v5776, %v5768
    %v6585 = vpack.c.b16 %v5777, %v5769
    %v6586 = vpack.c.b16 %v5778, %v5770
    %v6587 = vpack.c.b16 %v5779, %v5771
    %v6588 = vpack.c.b16 %v5780, %v5772
    %v6589 = vpack.c.b16 %v5781, %v5773
    %v6590 = vpack.c.b16 %v5782, %v5774
    %v6591 = vpack.c.b16 %v5791, %v5783
    %v6592 = vpack.c.b16 %v5792, %v5784
    %v6593 = vpack.c.b16 %v5793, %v5785
    %v6594 = vpack.c.b16 %v5794, %v5786
    %v6595 = vpack.c.b16 %v5795, %v5787
    %v6596 = vpack.c.b16 %v5796, %v5788
    %v6597 = vpack.c.b16 %v5797, %v5789
    %v6598 = vpack.c.b16 %v5798, %v5790
    %v6599 = vpack.c.b16 %v5807, %v5799
    %v6600 = vpack.c.b16 %v5808, %v5800
    %v6601 = vpack.c.b16 %v5809, %v5801
    %v6602 = vpack.c.b16 %v5810, %v5802
    %v6603 = vpack.c.b16 %v5811, %v5803
    %v6604 = vpack.c.b16 %v5812, %v5804
    %v6605 = vpack.c.b16 %v5813, %v5805
    %v6606 = vpack.c.b16 %v5814, %v5806
    %v6607 = vpack.c.b16 %v5823, %v5815
    %v6608 = vpack.c.b16 %v5824, %v5816
    %v6609 = vpack.c.b16 %v5825, %v5817
    %v6610 = vpack.c.b16 %v5826, %v5818
    %v6611 = vpack.c.b16 %v5827, %v5819
    %v6612 = vpack.c.b16 %v5828, %v5820
    %v6613 = vpack.c.b16 %v5829, %v5821
    %v6614 = vpack.c.b16 %v5830, %v5822
    %v6615 = vpack.c.b16 %v5839, %v5831
    %v6616 = vpack.c.b16 %v5840, %v5832
    %v6617 = vpack.c.b16 %v5841, %v5833
    %v6618 = vpack.c.b16 %v5842, %v5834
    %v6619 = vpack.c.b16 %v5843, %v5835
    %v6620 = vpack.c.b16 %v5844, %v5836
    %v6621 = vpack.c.b16 %v5845, %v5837
    %v6622 = vpack.c.b16 %v5846, %v5838
    %v6623 = vpack.c.b16 %v5855, %v5847
    %v6624 = vpack.c.b16 %v5856, %v5848
    %v6625 = vpack.c.b16 %v5857, %v5849
    %v6626 = vpack.c.b16 %v5858, %v5850
    %v6627 = vpack.c.b16 %v5859, %v5851
    %v6628 = vpack.c.b16 %v5860, %v5852
    %v6629 = vpack.c.b16 %v5861, %v5853
    %v6630 = vpack.c.b16 %v5862, %v5854
    %v6631 = vpack.c.b16 %v5871, %v5863
    %v6632 = vpack.c.b16 %v5872, %v5864
    %v6633 = vpack.c.b16 %v5873, %v5865
    %v6634 = vpack.c.b16 %v5874, %v5866
    %v6635 = vpack.c.b16 %v5875, %v5867
    %v6636 = vpack.c.b16 %v5876, %v5868
    %v6637 = vpack.c.b16 %v5877, %v5869
    %v6638 = vpack.c.b16 %v5878, %v5870
    %v6639 = vpack.c.b16 %v5887, %v5879
    %v6640 = vpack.c.b16 %v5888, %v5880
    %v6641 = vpack.c.b16 %v5889, %v5881
    %v6642 = vpack.c.b16 %v5890, %v5882
    %v6643 = vpack.c.b16 %v5891, %v5883
    %v6644 = vpack.c.b16 %v5892, %v5884
    %v6645 = vpack.c.b16 %v5893, %v5885
    %v6646 = vpack.c.b16 %v5894, %v5886
    %v6647 = vpack.c.b16 %v5903, %v5895
    %v6648 = vpack.c.b16 %v5904, %v5896
    %v6649 = vpack.c.b16 %v5905, %v5897
    %v6650 = vpack.c.b16 %v5906, %v5898
    %v6651 = vpack.c.b16 %v5907, %v5899
    %v6652 = vpack.c.b16 %v5908, %v5900
    %v6653 = vpack.c.b16 %v5909, %v5901
    %v6654 = vpack.c.b16 %v5910, %v5902
    %v6655 = vpack.c.b16 %v5919, %v5911
    %v6656 = vpack.c.b16 %v5920, %v5912
    %v6657 = vpack.c.b16 %v5921, %v5913
    %v6658 = vpack.c.b16 %v5922, %v5914
    %v6659 = vpack.c.b16 %v5923, %v5915
    %v6660 = vpack.c.b16 %v5924, %v5916
    %v6661 = vpack.c.b16 %v5925, %v5917
    %v6662 = vpack.c.b16 %v5926, %v5918
    %v6663 = vpack.c.b16 %v5935, %v5927
    %v6664 = vpack.c.b16 %v5936, %v5928
    %v6665 = vpack.c.b16 %v5937, %v5929
    %v6666 = vpack.c.b16 %v5938, %v5930
    %v6667 = vpack.c.b16 %v5939, %v5931
    %v6668 = vpack.c.b16 %v5940, %v5932
    %v6669 = vpack.c.b16 %v5941, %v5933
    %v6670 = vpack.c.b16 %v5942, %v5934
    %v6671 = vpack.c.b16 %v5951, %v5943
    %v6672 = vpack.c.b16 %v5952, %v5944
    %v6673 = vpack.c.b16 %v5953, %v5945
    %v6674 = vpack.c.b16 %v5954, %v5946
    %v6675 = vpack.c.b16 %v5955, %v5947
    %v6676 = vpack.c.b16 %v5956, %v5948
    %v6677 = vpack.c.b16 %v5957, %v5949
    %v6678 = vpack.c.b16 %v5958, %v5950
    %v6679 = vpack.c.b16 %v5967, %v5959
    %v6680 = vpack.c.b16 %v5968, %v5960
    %v6681 = vpack.c.b16 %v5969, %v5961
    %v6682 = vpack.c.b16 %v5970, %v5962
    %v6683 = vpack.c.b16 %v5971, %v5963
    %v6684 = vpack.c.b16 %v5972, %v5964
    %v6685 = vpack.c.b16 %v5973, %v5965
    %v6686 = vpack.c.b16 %v5974, %v5966
    %v6687 = vpack.c.b16 %v5983, %v5975
    %v6688 = vpack.c.b16 %v5984, %v5976
    %v6689 = vpack.c.b16 %v5985, %v5977
    %v6690 = vpack.c.b16 %v5986, %v5978
    %v6691 = vpack.c.b16 %v5987, %v5979
    %v6692 = vpack.c.b16 %v5988, %v5980
    %v6693 = vpack.c.b16 %v5989, %v5981
    %v6694 = vpack.c.b16 %v5990, %v5982
    %v6695 = vpack.c.b16 %v5999, %v5991
    %v6696 = vpack.c.b16 %v6000, %v5992
    %v6697 = vpack.c.b16 %v6001, %v5993
    %v6698 = vpack.c.b16 %v6002, %v5994
    %v6699 = vpack.c.b16 %v6003, %v5995
    %v6700 = vpack.c.b16 %v6004, %v5996
    %v6701 = vpack.c.b16 %v6005, %v5997
    %v6702 = vpack.c.b16 %v6006, %v5998
    %v6703 = vpack.c.b16 %v6015, %v6007
    %v6704 = vpack.c.b16 %v6016, %v6008
    %v6705 = vpack.c.b16 %v6017, %v6009
    %v6706 = vpack.c.b16 %v6018, %v6010
    %v6707 = vpack.c.b16 %v6019, %v6011
    %v6708 = vpack.c.b16 %v6020, %v6012
    %v6709 = vpack.c.b16 %v6021, %v6013
    %v6710 = vpack.c.b16 %v6022, %v6014
    %v6711 = vpack.c.b16 %v6031, %v6023
    %v6712 = vpack.c.b16 %v6032, %v6024
    %v6713 = vpack.c.b16 %v6033, %v6025
    %v6714 = vpack.c.b16 %v6034, %v6026
    %v6715 = vpack.c.b16 %v6035, %v6027
    %v6716 = vpack.c.b16 %v6036, %v6028
    %v6717 = vpack.c.b16 %v6037, %v6029
    %v6718 = vpack.c.b16 %v6038, %v6030
    %v6719 = vpack.c.b16 %v6047, %v6039
    %v6720 = vpack.c.b16 %v6048, %v6040
    %v6721 = vpack.c.b16 %v6049, %v6041
    %v6722 = vpack.c.b16 %v6050, %v6042
    %v6723 = vpack.c.b16 %v6051, %v6043
    %v6724 = vpack.c.b16 %v6052, %v6044
    %v6725 = vpack.c.b16 %v6053, %v6045
    %v6726 = vpack.c.b16 %v6054, %v6046
    %v6727 = vpack.c.b16 %v6063, %v6055
    %v6728 = vpack.c.b16 %v6064, %v6056
    %v6729 = vpack.c.b16 %v6065, %v6057
    %v6730 = vpack.c.b16 %v6066, %v6058
    %v6731 = vpack.c.b16 %v6067, %v6059
    %v6732 = vpack.c.b16 %v6068, %v6060
    %v6733 = vpack.c.b16 %v6069, %v6061
    %v6734 = vpack.c.b16 %v6070, %v6062
    %v6735 = vpack.c.b16 %v6079, %v6071
    %v6736 = vpack.c.b16 %v6080, %v6072
    %v6737 = vpack.c.b16 %v6081, %v6073
    %v6738 = vpack.c.b16 %v6082, %v6074
    %v6739 = vpack.c.b16 %v6083, %v6075
    %v6740 = vpack.c.b16 %v6084, %v6076
    %v6741 = vpack.c.b16 %v6085, %v6077
    %v6742 = vpack.c.b16 %v6086, %v6078
    %v6743 = vpack.c.b16 %v6095, %v6087
    %v6744 = vpack.c.b16 %v6096, %v6088
    %v6745 = vpack.c.b16 %v6097, %v6089
    %v6746 = vpack.c.b16 %v6098, %v6090
    %v6747 = vpack.c.b16 %v6099, %v6091
    %v6748 = vpack.c.b16 %v6100, %v6092
    %v6749 = vpack.c.b16 %v6101, %v6093
    %v6750 = vpack.c.b16 %v6102, %v6094
    %v6751 = vpack.c.b16 %v6111, %v6103
    %v6752 = vpack.c.b16 %v6112, %v6104
    %v6753 = vpack.c.b16 %v6113, %v6105
    %v6754 = vpack.c.b16 %v6114, %v6106
    %v6755 = vpack.c.b16 %v6115, %v6107
    %v6756 = vpack.c.b16 %v6116, %v6108
    %v6757 = vpack.c.b16 %v6117, %v6109
    %v6758 = vpack.c.b16 %v6118, %v6110
    %v6759 = vpack.c.b16 %v6127, %v6119
    %v6760 = vpack.c.b16 %v6128, %v6120
    %v6761 = vpack.c.b16 %v6129, %v6121
    %v6762 = vpack.c.b16 %v6130, %v6122
    %v6763 = vpack.c.b16 %v6131, %v6123
    %v6764 = vpack.c.b16 %v6132, %v6124
    %v6765 = vpack.c.b16 %v6133, %v6125
    %v6766 = vpack.c.b16 %v6134, %v6126
    %v6767 = vpack.c.b16 %v6143, %v6135
    %v6768 = vpack.c.b16 %v6144, %v6136
    %v6769 = vpack.c.b16 %v6145, %v6137
    %v6770 = vpack.c.b16 %v6146, %v6138
    %v6771 = vpack.c.b16 %v6147, %v6139
    %v6772 = vpack.c.b16 %v6148, %v6140
    %v6773 = vpack.c.b16 %v6149, %v6141
    %v6774 = vpack.c.b16 %v6150, %v6142
    %v6775 = vpack.c.b16 %v6159, %v6151
    %v6776 = vpack.c.b16 %v6160, %v6152
    %v6777 = vpack.c.b16 %v6161, %v6153
    %v6778 = vpack.c.b16 %v6162, %v6154
    %v6779 = vpack.c.b16 %v6163, %v6155
    %v6780 = vpack.c.b16 %v6164, %v6156
    %v6781 = vpack.c.b16 %v6165, %v6157
    %v6782 = vpack.c.b16 %v6166, %v6158
    %v6783 = vpack.c.b16 %v6175, %v6167
    %v6784 = vpack.c.b16 %v6176, %v6168
    %v6785 = vpack.c.b16 %v6177, %v6169
    %v6786 = vpack.c.b16 %v6178, %v6170
    %v6787 = vpack.c.b16 %v6179, %v6171
    %v6788 = vpack.c.b16 %v6180, %v6172
    %v6789 = vpack.c.b16 %v6181, %v6173
    %v6790 = vpack.c.b16 %v6182, %v6174
    %v6791 = vpack.c.b16 %v6191, %v6183
    %v6792 = vpack.c.b16 %v6192, %v6184
    %v6793 = vpack.c.b16 %v6193, %v6185
    %v6794 = vpack.c.b16 %v6194, %v6186
    %v6795 = vpack.c.b16 %v6195, %v6187
    %v6796 = vpack.c.b16 %v6196, %v6188
    %v6797 = vpack.c.b16 %v6197, %v6189
    %v6798 = vpack.c.b16 %v6198, %v6190
    %v6799 = vpack.c.b16 %v6207, %v6199
    %v6800 = vpack.c.b16 %v6208, %v6200
    %v6801 = vpack.c.b16 %v6209, %v6201
    %v6802 = vpack.c.b16 %v6210, %v6202
    %v6803 = vpack.c.b16 %v6211, %v6203
    %v6804 = vpack.c.b16 %v6212, %v6204
    %v6805 = vpack.c.b16 %v6213, %v6205
    %v6806 = vpack.c.b16 %v6214, %v6206
    %v6807 = vpack.c.b16 %v6223, %v6215
    %v6808 = vpack.c.b16 %v6224, %v6216
    %v6809 = vpack.c.b16 %v6225, %v6217
    %v6810 = vpack.c.b16 %v6226, %v6218
    %v6811 = vpack.c.b16 %v6227, %v6219
    %v6812 = vpack.c.b16 %v6228, %v6220
    %v6813 = vpack.c.b16 %v6229, %v6221
    %v6814 = vpack.c.b16 %v6230, %v6222
    %v6815 = vpack.c.b16 %v6239, %v6231
    %v6816 = vpack.c.b16 %v6240, %v6232
    %v6817 = vpack.c.b16 %v6241, %v6233
    %v6818 = vpack.c.b16 %v6242, %v6234
    %v6819 = vpack.c.b16 %v6243, %v6235
    %v6820 = vpack.c.b16 %v6244, %v6236
    %v6821 = vpack.c.b16 %v6245, %v6237
    %v6822 = vpack.c.b16 %v6246, %v6238
    %v6823 = vpack.c.b16 %v6255, %v6247
    %v6824 = vpack.c.b16 %v6256, %v6248
    %v6825 = vpack.c.b16 %v6257, %v6249
    %v6826 = vpack.c.b16 %v6258, %v6250
    %v6827 = vpack.c.b16 %v6259, %v6251
    %v6828 = vpack.c.b16 %v6260, %v6252
    %v6829 = vpack.c.b16 %v6261, %v6253
    %v6830 = vpack.c.b16 %v6262, %v6254
    %v6831 = vpack.c.b16 %v6271, %v6263
    %v6832 = vpack.c.b16 %v6272, %v6264
    %v6833 = vpack.c.b16 %v6273, %v6265
    %v6834 = vpack.c.b16 %v6274, %v6266
    %v6835 = vpack.c.b16 %v6275, %v6267
    %v6836 = vpack.c.b16 %v6276, %v6268
    %v6837 = vpack.c.b16 %v6277, %v6269
    %v6838 = vpack.c.b16 %v6278, %v6270
    %v6839 = vpack.c.b16 %v6287, %v6279
    %v6840 = vpack.c.b16 %v6288, %v6280
    %v6841 = vpack.c.b16 %v6289, %v6281
    %v6842 = vpack.c.b16 %v6290, %v6282
    %v6843 = vpack.c.b16 %v6291, %v6283
    %v6844 = vpack.c.b16 %v6292, %v6284
    %v6845 = vpack.c.b16 %v6293, %v6285
    %v6846 = vpack.c.b16 %v6294, %v6286
    %v6847 = vpack.c.b16 %v6303, %v6295
    %v6848 = vpack.c.b16 %v6304, %v6296
    %v6849 = vpack.c.b16 %v6305, %v6297
    %v6850 = vpack.c.b16 %v6306, %v6298
    %v6851 = vpack.c.b16 %v6307, %v6299
    %v6852 = vpack.c.b16 %v6308, %v6300
    %v6853 = vpack.c.b16 %v6309, %v6301
    %v6854 = vpack.c.b16 %v6310, %v6302
    %v6855 = vpack.c.b16 %v6319, %v6311
    %v6856 = vpack.c.b16 %v6320, %v6312
    %v6857 = vpack.c.b16 %v6321, %v6313
    %v6858 = vpack.c.b16 %v6322, %v6314
    %v6859 = vpack.c.b16 %v6323, %v6315
    %v6860 = vpack.c.b16 %v6324, %v6316
    %v6861 = vpack.c.b16 %v6325, %v6317
    %v6862 = vpack.c.b16 %v6326, %v6318
    %v6863 = vpack.c.b16 %v6335, %v6327
    %v6864 = vpack.c.b16 %v6336, %v6328
    %v6865 = vpack.c.b16 %v6337, %v6329
    %v6866 = vpack.c.b16 %v6338, %v6330
    %v6867 = vpack.c.b16 %v6339, %v6331
    %v6868 = vpack.c.b16 %v6340, %v6332
    %v6869 = vpack.c.b16 %v6341, %v6333
    %v6870 = vpack.c.b16 %v6342, %v6334
    %v6871 = vpack.c.b16 %v6351, %v6343
    %v6872 = vpack.c.b16 %v6352, %v6344
    %v6873 = vpack.c.b16 %v6353, %v6345
    %v6874 = vpack.c.b16 %v6354, %v6346
    %v6875 = vpack.c.b16 %v6355, %v6347
    %v6876 = vpack.c.b16 %v6356, %v6348
    %v6877 = vpack.c.b16 %v6357, %v6349
    %v6878 = vpack.c.b16 %v6358, %v6350
    %v6879 = vpack.c.b16 %v6367, %v6359
    %v6880 = vpack.c.b16 %v6368, %v6360
    %v6881 = vpack.c.b16 %v6369, %v6361
    %v6882 = vpack.c.b16 %v6370, %v6362
    %v6883 = vpack.c.b16 %v6371, %v6363
    %v6884 = vpack.c.b16 %v6372, %v6364
    %v6885 = vpack.c.b16 %v6373, %v6365
    %v6886 = vpack.c.b16 %v6374, %v6366
    %7399 = vmatprep.subr.bf16.mxu0 %v6432
    %7400 = vmatpush1.bf16.msra.mxu0 %v6431
    %7401 = vmatprep.subr.bf16.mxu0 %v6424
    %7402 = vmatpush1.bf16.msra.mxu0 %v6423
    %7403 = vmatprep.subr.bf16.mxu0 %v6416
    %7404 = vmatpush1.bf16.msra.mxu0 %v6415
    %7405 = vmatprep.subr.bf16.mxu0 %v6408
    %7406 = vmatpush1.bf16.msra.mxu0 %v6407
    %7407 = vmatprep.subr.bf16.mxu0 %v6400
    %7408 = vmatpush1.bf16.msra.mxu0 %v6399
    %7409 = vmatprep.subr.bf16.mxu0 %v6392
    %7410 = vmatpush1.bf16.msra.mxu0 %v6391
    %7411 = vmatprep.subr.bf16.mxu0 %v6384
    %7412 = vmatpush1.bf16.msra.mxu0 %v6383
    %7413 = vmatprep.subr.bf16.mxu0 %v6376
    %7414 = vmatpush1.bf16.msra.mxu0 %v6375
    %7415 = vmatprep.subr.bf16.mxu0 %v6496
    %7416 = vmatpush2.bf16.msra.mxu0 %v6495
    %7417 = vmatprep.subr.bf16.mxu0 %v6488
    %7418 = vmatpush2.bf16.msra.mxu0 %v6487
    %7419 = vmatprep.subr.bf16.mxu0 %v6480
    %7420 = vmatpush2.bf16.msra.mxu0 %v6479
    %7421 = vmatprep.subr.bf16.mxu0 %v6472
    %7422 = vmatpush2.bf16.msra.mxu0 %v6471
    %7423 = vmatprep.subr.bf16.mxu0 %v6464
    %7424 = vmatpush2.bf16.msra.mxu0 %v6463
    %7425 = vmatprep.subr.bf16.mxu0 %v6456
    %7426 = vmatpush2.bf16.msra.mxu0 %v6455
    %7427 = vmatprep.subr.bf16.mxu0 %v6448
    %7428 = vmatpush2.bf16.msra.mxu0 %v6447
    %7429 = vmatprep.subr.bf16.mxu0 %v6440
    %7430 = vmatpush2.bf16.msra.mxu0 %v6439
    %7431 = vmatprep.mubr.bf16.mxu0 %v4246
    %7432 = vmatmul.mubr.bf16.gmra.mxu0 %v4245
    %v7433 = vpop.f32.mrf.mxu0
    %v7434 = vadd.f32 %v4802, %v7433
    %v7435 = vpop.f32.mrf.mxu0
    %v7436 = vadd.f32 %v4806, %v7435
    %v7437 = vpop.f32.mrf.mxu0
    %v7438 = vadd.f32 %v4802, %v7437
    %v7439 = vpop.f32.mrf.mxu0
    %v7440 = vadd.f32 %v4806, %v7439
    %7441 = vmatprep.mubr.bf16.mxu0 %v4254
    %7442 = vmatmul.mubr.bf16.gmra.mxu0 %v4253
    %v7443 = vpop.f32.mrf.mxu0
    %v7444 = vadd.f32 %v4802, %v7443
    %v7445 = vpop.f32.mrf.mxu0
    %v7446 = vadd.f32 %v4806, %v7445
    %v7447 = vpop.f32.mrf.mxu0
    %v7448 = vadd.f32 %v4802, %v7447
    %v7449 = vpop.f32.mrf.mxu0
    %v7450 = vadd.f32 %v4806, %v7449
    %7451 = vmatprep.mubr.bf16.mxu0 %v4262
    %7452 = vmatmul.mubr.bf16.gmra.mxu0 %v4261
    %v7453 = vpop.f32.mrf.mxu0
    %v7454 = vadd.f32 %v4802, %v7453
    %v7455 = vpop.f32.mrf.mxu0
    %v7456 = vadd.f32 %v4806, %v7455
    %v7457 = vpop.f32.mrf.mxu0
    %v7458 = vadd.f32 %v4802, %v7457
    %v7459 = vpop.f32.mrf.mxu0
    %v7460 = vadd.f32 %v4806, %v7459
    %7461 = vmatprep.mubr.bf16.mxu0 %v4270
    %7462 = vmatmul.mubr.bf16.gmra.mxu0 %v4269
    %v7463 = vpop.f32.mrf.mxu0
    %v7464 = vadd.f32 %v4802, %v7463
    %v7465 = vpop.f32.mrf.mxu0
    %v7466 = vadd.f32 %v4806, %v7465
    %v7467 = vpop.f32.mrf.mxu0
    %v7468 = vadd.f32 %v4802, %v7467
    %v7469 = vpop.f32.mrf.mxu0
    %v7470 = vadd.f32 %v4806, %v7469
    %7471 = vmatprep.mubr.bf16.mxu0 %v4278
    %7472 = vmatmul.mubr.bf16.gmra.mxu0 %v4277
    %v7473 = vpop.f32.mrf.mxu0
    %v7474 = vadd.f32 %v4802, %v7473
    %v7475 = vpop.f32.mrf.mxu0
    %v7476 = vadd.f32 %v4806, %v7475
    %v7477 = vpop.f32.mrf.mxu0
    %v7478 = vpop.f32.mrf.mxu0
    %7479 = vdwg.mxu0
    %7480 = vmatprep.subr.bf16.mxu0 %v6560
    %7481 = vmatpush1.bf16.msra.mxu0 %v6559
    %7482 = vmatprep.subr.bf16.mxu0 %v6552
    %7483 = vmatpush1.bf16.msra.mxu0 %v6551
    %7484 = vmatprep.subr.bf16.mxu0 %v6544
    %7485 = vmatpush1.bf16.msra.mxu0 %v6543
    %7486 = vmatprep.subr.bf16.mxu0 %v6536
    %7487 = vmatpush1.bf16.msra.mxu0 %v6535
    %7488 = vmatprep.subr.bf16.mxu0 %v6528
    %7489 = vmatpush1.bf16.msra.mxu0 %v6527
    %7490 = vmatprep.subr.bf16.mxu0 %v6520
    %7491 = vmatpush1.bf16.msra.mxu0 %v6519
    %7492 = vmatprep.subr.bf16.mxu0 %v6512
    %7493 = vmatpush1.bf16.msra.mxu0 %v6511
    %7494 = vmatprep.subr.bf16.mxu0 %v6504
    %7495 = vmatpush1.bf16.msra.mxu0 %v6503
    %7496 = vmatprep.subr.bf16.mxu0 %v6624
    %7497 = vmatpush2.bf16.msra.mxu0 %v6623
    %7498 = vmatprep.subr.bf16.mxu0 %v6616
    %7499 = vmatpush2.bf16.msra.mxu0 %v6615
    %7500 = vmatprep.subr.bf16.mxu0 %v6608
    %7501 = vmatpush2.bf16.msra.mxu0 %v6607
    %7502 = vmatprep.subr.bf16.mxu0 %v6600
    %7503 = vmatpush2.bf16.msra.mxu0 %v6599
    %7504 = vmatprep.subr.bf16.mxu0 %v6592
    %7505 = vmatpush2.bf16.msra.mxu0 %v6591
    %7506 = vmatprep.subr.bf16.mxu0 %v6584
    %7507 = vmatpush2.bf16.msra.mxu0 %v6583
    %7508 = vmatprep.subr.bf16.mxu0 %v6576
    %7509 = vmatpush2.bf16.msra.mxu0 %v6575
    %7510 = vmatprep.subr.bf16.mxu0 %v6568
    %7511 = vmatpush2.bf16.msra.mxu0 %v6567
    %7512 = vmatprep.mubr.bf16.mxu0 %v4248
    %7513 = vmatmul.mubr.bf16.gmra.mxu0 %v4247
    %v7514 = vpop.f32.mrf.mxu0
    %v7515 = vadd.f32 %v7434, %v7514
    %v7516 = vpop.f32.mrf.mxu0
    %v7517 = vadd.f32 %v7436, %v7516
    %v7518 = vpop.f32.mrf.mxu0
    %v7519 = vadd.f32 %v7438, %v7518
    %v7520 = vpop.f32.mrf.mxu0
    %v7521 = vadd.f32 %v7440, %v7520
    %7522 = vmatprep.mubr.bf16.mxu0 %v4256
    %7523 = vmatmul.mubr.bf16.gmra.mxu0 %v4255
    %v7524 = vpop.f32.mrf.mxu0
    %v7525 = vadd.f32 %v7444, %v7524
    %v7526 = vpop.f32.mrf.mxu0
    %v7527 = vadd.f32 %v7446, %v7526
    %v7528 = vpop.f32.mrf.mxu0
    %v7529 = vadd.f32 %v7448, %v7528
    %v7530 = vpop.f32.mrf.mxu0
    %v7531 = vadd.f32 %v7450, %v7530
    %7532 = vmatprep.mubr.bf16.mxu0 %v4264
    %7533 = vmatmul.mubr.bf16.gmra.mxu0 %v4263
    %v7534 = vpop.f32.mrf.mxu0
    %v7535 = vadd.f32 %v7454, %v7534
    %v7536 = vpop.f32.mrf.mxu0
    %v7537 = vadd.f32 %v7456, %v7536
    %v7538 = vpop.f32.mrf.mxu0
    %v7539 = vadd.f32 %v7458, %v7538
    %v7540 = vpop.f32.mrf.mxu0
    %v7541 = vadd.f32 %v7460, %v7540
    %7542 = vmatprep.mubr.bf16.mxu0 %v4272
    %7543 = vmatmul.mubr.bf16.gmra.mxu0 %v4271
    %v7544 = vpop.f32.mrf.mxu0
    %v7545 = vadd.f32 %v7464, %v7544
    %v7546 = vpop.f32.mrf.mxu0
    %v7547 = vadd.f32 %v7466, %v7546
    %v7548 = vpop.f32.mrf.mxu0
    %v7549 = vadd.f32 %v7468, %v7548
    %v7550 = vpop.f32.mrf.mxu0
    %v7551 = vadd.f32 %v7470, %v7550
    %7552 = vmatprep.mubr.bf16.mxu0 %v4280
    %7553 = vmatmul.mubr.bf16.gmra.mxu0 %v4279
    %v7554 = vpop.f32.mrf.mxu0
    %v7555 = vadd.f32 %v7474, %v7554
    %v7556 = vpop.f32.mrf.mxu0
    %v7557 = vadd.f32 %v7476, %v7556
    %v7558 = vpop.f32.mrf.mxu0
    %v7559 = vpop.f32.mrf.mxu0
    %7560 = vdwg.mxu0
    %7561 = vmatprep.subr.bf16.mxu0 %v6688
    %7562 = vmatpush1.bf16.msra.mxu0 %v6687
    %7563 = vmatprep.subr.bf16.mxu0 %v6680
    %7564 = vmatpush1.bf16.msra.mxu0 %v6679
    %7565 = vmatprep.subr.bf16.mxu0 %v6672
    %7566 = vmatpush1.bf16.msra.mxu0 %v6671
    %7567 = vmatprep.subr.bf16.mxu0 %v6664
    %7568 = vmatpush1.bf16.msra.mxu0 %v6663
    %7569 = vmatprep.subr.bf16.mxu0 %v6656
    %7570 = vmatpush1.bf16.msra.mxu0 %v6655
    %7571 = vmatprep.subr.bf16.mxu0 %v6648
    %7572 = vmatpush1.bf16.msra.mxu0 %v6647
    %7573 = vmatprep.subr.bf16.mxu0 %v6640
    %7574 = vmatpush1.bf16.msra.mxu0 %v6639
    %7575 = vmatprep.subr.bf16.mxu0 %v6632
    %7576 = vmatpush1.bf16.msra.mxu0 %v6631
    %7577 = vmatprep.subr.bf16.mxu0 %v6752
    %7578 = vmatpush2.bf16.msra.mxu0 %v6751
    %7579 = vmatprep.subr.bf16.mxu0 %v6744
    %7580 = vmatpush2.bf16.msra.mxu0 %v6743
    %7581 = vmatprep.subr.bf16.mxu0 %v6736
    %7582 = vmatpush2.bf16.msra.mxu0 %v6735
    %7583 = vmatprep.subr.bf16.mxu0 %v6728
    %7584 = vmatpush2.bf16.msra.mxu0 %v6727
    %7585 = vmatprep.subr.bf16.mxu0 %v6720
    %7586 = vmatpush2.bf16.msra.mxu0 %v6719
    %7587 = vmatprep.subr.bf16.mxu0 %v6712
    %7588 = vmatpush2.bf16.msra.mxu0 %v6711
    %7589 = vmatprep.subr.bf16.mxu0 %v6704
    %7590 = vmatpush2.bf16.msra.mxu0 %v6703
    %7591 = vmatprep.subr.bf16.mxu0 %v6696
    %7592 = vmatpush2.bf16.msra.mxu0 %v6695
    %7593 = vmatprep.mubr.bf16.mxu0 %v4250
    %7594 = vmatmul.mubr.bf16.gmra.mxu0 %v4249
    %v7595 = vpop.f32.mrf.mxu0
    %v7596 = vadd.f32 %v7515, %v7595
    %v7597 = vpop.f32.mrf.mxu0
    %v7598 = vadd.f32 %v7517, %v7597
    %v7599 = vpop.f32.mrf.mxu0
    %v7600 = vadd.f32 %v7519, %v7599
    %v7601 = vpop.f32.mrf.mxu0
    %v7602 = vadd.f32 %v7521, %v7601
    %7603 = vmatprep.mubr.bf16.mxu0 %v4258
    %7604 = vmatmul.mubr.bf16.gmra.mxu0 %v4257
    %v7605 = vpop.f32.mrf.mxu0
    %v7606 = vadd.f32 %v7525, %v7605
    %v7607 = vpop.f32.mrf.mxu0
    %v7608 = vadd.f32 %v7527, %v7607
    %v7609 = vpop.f32.mrf.mxu0
    %v7610 = vadd.f32 %v7529, %v7609
    %v7611 = vpop.f32.mrf.mxu0
    %v7612 = vadd.f32 %v7531, %v7611
    %7613 = vmatprep.mubr.bf16.mxu0 %v4266
    %7614 = vmatmul.mubr.bf16.gmra.mxu0 %v4265
    %v7615 = vpop.f32.mrf.mxu0
    %v7616 = vadd.f32 %v7535, %v7615
    %v7617 = vpop.f32.mrf.mxu0
    %v7618 = vadd.f32 %v7537, %v7617
    %v7619 = vpop.f32.mrf.mxu0
    %v7620 = vadd.f32 %v7539, %v7619
    %v7621 = vpop.f32.mrf.mxu0
    %v7622 = vadd.f32 %v7541, %v7621
    %7623 = vmatprep.mubr.bf16.mxu0 %v4274
    %7624 = vmatmul.mubr.bf16.gmra.mxu0 %v4273
    %v7625 = vpop.f32.mrf.mxu0
    %v7626 = vadd.f32 %v7545, %v7625
    %v7627 = vpop.f32.mrf.mxu0
    %v7628 = vadd.f32 %v7547, %v7627
    %v7629 = vpop.f32.mrf.mxu0
    %v7630 = vadd.f32 %v7549, %v7629
    %v7631 = vpop.f32.mrf.mxu0
    %v7632 = vadd.f32 %v7551, %v7631
    %7633 = vmatprep.mubr.bf16.mxu0 %v4282
    %7634 = vmatmul.mubr.bf16.gmra.mxu0 %v4281
    %v7635 = vpop.f32.mrf.mxu0
    %v7636 = vadd.f32 %v7555, %v7635
    %v7637 = vpop.f32.mrf.mxu0
    %v7638 = vadd.f32 %v7557, %v7637
    %v7639 = vpop.f32.mrf.mxu0
    %v7640 = vpop.f32.mrf.mxu0
    %7641 = vdwg.mxu0
    %7642 = vmatprep.subr.bf16.mxu0 %v6816
    %7643 = vmatpush1.bf16.msra.mxu0 %v6815
    %7644 = vmatprep.subr.bf16.mxu0 %v6808
    %7645 = vmatpush1.bf16.msra.mxu0 %v6807
    %7646 = vmatprep.subr.bf16.mxu0 %v6800
    %7647 = vmatpush1.bf16.msra.mxu0 %v6799
    %7648 = vmatprep.subr.bf16.mxu0 %v6792
    %7649 = vmatpush1.bf16.msra.mxu0 %v6791
    %7650 = vmatprep.subr.bf16.mxu0 %v6784
    %7651 = vmatpush1.bf16.msra.mxu0 %v6783
    %7652 = vmatprep.subr.bf16.mxu0 %v6776
    %7653 = vmatpush1.bf16.msra.mxu0 %v6775
    %7654 = vmatprep.subr.bf16.mxu0 %v6768
    %7655 = vmatpush1.bf16.msra.mxu0 %v6767
    %7656 = vmatprep.subr.bf16.mxu0 %v6760
    %7657 = vmatpush1.bf16.msra.mxu0 %v6759
    %7658 = vmatprep.subr.bf16.mxu0 %v6880
    %7659 = vmatpush2.bf16.msra.mxu0 %v6879
    %7660 = vmatprep.subr.bf16.mxu0 %v6872
    %7661 = vmatpush2.bf16.msra.mxu0 %v6871
    %7662 = vmatprep.subr.bf16.mxu0 %v6864
    %7663 = vmatpush2.bf16.msra.mxu0 %v6863
    %7664 = vmatprep.subr.bf16.mxu0 %v6856
    %7665 = vmatpush2.bf16.msra.mxu0 %v6855
    %7666 = vmatprep.subr.bf16.mxu0 %v6848
    %7667 = vmatpush2.bf16.msra.mxu0 %v6847
    %7668 = vmatprep.subr.bf16.mxu0 %v6840
    %7669 = vmatpush2.bf16.msra.mxu0 %v6839
    %7670 = vmatprep.subr.bf16.mxu0 %v6832
    %7671 = vmatpush2.bf16.msra.mxu0 %v6831
    %7672 = vmatprep.subr.bf16.mxu0 %v6824
    %7673 = vmatpush2.bf16.msra.mxu0 %v6823
    %7674 = vmatprep.mubr.bf16.mxu0 %v4252
    %7675 = vmatmul.mubr.bf16.gmra.mxu0 %v4251
    %v7676 = vpop.f32.mrf.mxu0
    %v7677 = vadd.f32 %v7596, %v7676
    %v7678 = vpop.f32.mrf.mxu0
    %v7679 = vadd.f32 %v7598, %v7678
    %v7680 = vpop.f32.mrf.mxu0
    %v7681 = vadd.f32 %v7600, %v7680
    %v7682 = vpop.f32.mrf.mxu0
    %v7683 = vadd.f32 %v7602, %v7682
    %7684 = vmatprep.mubr.bf16.mxu0 %v4260
    %7685 = vmatmul.mubr.bf16.gmra.mxu0 %v4259
    %v7686 = vpop.f32.mrf.mxu0
    %v7687 = vadd.f32 %v7606, %v7686
    %v7688 = vpop.f32.mrf.mxu0
    %v7689 = vadd.f32 %v7608, %v7688
    %v7690 = vpop.f32.mrf.mxu0
    %v7691 = vadd.f32 %v7610, %v7690
    %v7692 = vpop.f32.mrf.mxu0
    %v7693 = vadd.f32 %v7612, %v7692
    %7694 = vmatprep.mubr.bf16.mxu0 %v4268
    %7695 = vmatmul.mubr.bf16.gmra.mxu0 %v4267
    %v7696 = vpop.f32.mrf.mxu0
    %v7697 = vadd.f32 %v7616, %v7696
    %v7698 = vpop.f32.mrf.mxu0
    %v7699 = vadd.f32 %v7618, %v7698
    %v7700 = vpop.f32.mrf.mxu0
    %v7701 = vadd.f32 %v7620, %v7700
    %v7702 = vpop.f32.mrf.mxu0
    %v7703 = vadd.f32 %v7622, %v7702
    %7704 = vmatprep.mubr.bf16.mxu0 %v4276
    %7705 = vmatmul.mubr.bf16.gmra.mxu0 %v4275
    %v7706 = vpop.f32.mrf.mxu0
    %v7707 = vadd.f32 %v7626, %v7706
    %v7708 = vpop.f32.mrf.mxu0
    %v7709 = vadd.f32 %v7628, %v7708
    %v7710 = vpop.f32.mrf.mxu0
    %v7711 = vadd.f32 %v7630, %v7710
    %v7712 = vpop.f32.mrf.mxu0
    %v7713 = vadd.f32 %v7632, %v7712
    %7714 = vmatprep.mubr.bf16.mxu0 %v4284
    %7715 = vmatmul.mubr.bf16.gmra.mxu0 %v4283
    %v7716 = vpop.f32.mrf.mxu0
    %v7717 = vadd.f32 %v7636, %v7716
    %v7718 = vpop.f32.mrf.mxu0
    %v7719 = vadd.f32 %v7638, %v7718
    %v7720 = vpop.f32.mrf.mxu0
    %v7721 = vpop.f32.mrf.mxu0
    %7722 = vdwg.mxu0
    %7723 = vmatprep.subr.bf16.mxu0 %v6434
    %7724 = vmatpush1.bf16.msra.mxu0 %v6433
    %7725 = vmatprep.subr.bf16.mxu0 %v6426
    %7726 = vmatpush1.bf16.msra.mxu0 %v6425
    %7727 = vmatprep.subr.bf16.mxu0 %v6418
    %7728 = vmatpush1.bf16.msra.mxu0 %v6417
    %7729 = vmatprep.subr.bf16.mxu0 %v6410
    %7730 = vmatpush1.bf16.msra.mxu0 %v6409
    %7731 = vmatprep.subr.bf16.mxu0 %v6402
    %7732 = vmatpush1.bf16.msra.mxu0 %v6401
    %7733 = vmatprep.subr.bf16.mxu0 %v6394
    %7734 = vmatpush1.bf16.msra.mxu0 %v6393
    %7735 = vmatprep.subr.bf16.mxu0 %v6386
    %7736 = vmatpush1.bf16.msra.mxu0 %v6385
    %7737 = vmatprep.subr.bf16.mxu0 %v6378
    %7738 = vmatpush1.bf16.msra.mxu0 %v6377
    %7739 = vmatprep.subr.bf16.mxu0 %v6498
    %7740 = vmatpush2.bf16.msra.mxu0 %v6497
    %7741 = vmatprep.subr.bf16.mxu0 %v6490
    %7742 = vmatpush2.bf16.msra.mxu0 %v6489
    %7743 = vmatprep.subr.bf16.mxu0 %v6482
    %7744 = vmatpush2.bf16.msra.mxu0 %v6481
    %7745 = vmatprep.subr.bf16.mxu0 %v6474
    %7746 = vmatpush2.bf16.msra.mxu0 %v6473
    %7747 = vmatprep.subr.bf16.mxu0 %v6466
    %7748 = vmatpush2.bf16.msra.mxu0 %v6465
    %7749 = vmatprep.subr.bf16.mxu0 %v6458
    %7750 = vmatpush2.bf16.msra.mxu0 %v6457
    %7751 = vmatprep.subr.bf16.mxu0 %v6450
    %7752 = vmatpush2.bf16.msra.mxu0 %v6449
    %7753 = vmatprep.subr.bf16.mxu0 %v6442
    %7754 = vmatpush2.bf16.msra.mxu0 %v6441
    %7755 = vmatprep.mubr.bf16.mxu0 %v4246
    %7756 = vmatmul.mubr.bf16.gmra.mxu0 %v4245
    %v7757 = vpop.f32.mrf.mxu0
    %v7758 = vadd.f32 %v4810, %v7757
    %v7759 = vpop.f32.mrf.mxu0
    %v7760 = vadd.f32 %v4814, %v7759
    %v7761 = vpop.f32.mrf.mxu0
    %v7762 = vadd.f32 %v4810, %v7761
    %v7763 = vpop.f32.mrf.mxu0
    %v7764 = vadd.f32 %v4814, %v7763
    %7765 = vmatprep.mubr.bf16.mxu0 %v4254
    %7766 = vmatmul.mubr.bf16.gmra.mxu0 %v4253
    %v7767 = vpop.f32.mrf.mxu0
    %v7768 = vadd.f32 %v4810, %v7767
    %v7769 = vpop.f32.mrf.mxu0
    %v7770 = vadd.f32 %v4814, %v7769
    %v7771 = vpop.f32.mrf.mxu0
    %v7772 = vadd.f32 %v4810, %v7771
    %v7773 = vpop.f32.mrf.mxu0
    %v7774 = vadd.f32 %v4814, %v7773
    %7775 = vmatprep.mubr.bf16.mxu0 %v4262
    %7776 = vmatmul.mubr.bf16.gmra.mxu0 %v4261
    %v7777 = vpop.f32.mrf.mxu0
    %v7778 = vadd.f32 %v4810, %v7777
    %v7779 = vpop.f32.mrf.mxu0
    %v7780 = vadd.f32 %v4814, %v7779
    %v7781 = vpop.f32.mrf.mxu0
    %v7782 = vadd.f32 %v4810, %v7781
    %v7783 = vpop.f32.mrf.mxu0
    %v7784 = vadd.f32 %v4814, %v7783
    %7785 = vmatprep.mubr.bf16.mxu0 %v4270
    %7786 = vmatmul.mubr.bf16.gmra.mxu0 %v4269
    %v7787 = vpop.f32.mrf.mxu0
    %v7788 = vadd.f32 %v4810, %v7787
    %v7789 = vpop.f32.mrf.mxu0
    %v7790 = vadd.f32 %v4814, %v7789
    %v7791 = vpop.f32.mrf.mxu0
    %v7792 = vadd.f32 %v4810, %v7791
    %v7793 = vpop.f32.mrf.mxu0
    %v7794 = vadd.f32 %v4814, %v7793
    %7795 = vmatprep.mubr.bf16.mxu0 %v4278
    %7796 = vmatmul.mubr.bf16.gmra.mxu0 %v4277
    %v7797 = vpop.f32.mrf.mxu0
    %v7798 = vadd.f32 %v4810, %v7797
    %v7799 = vpop.f32.mrf.mxu0
    %v7800 = vadd.f32 %v4814, %v7799
    %v7801 = vpop.f32.mrf.mxu0
    %v7802 = vpop.f32.mrf.mxu0
    %7803 = vdwg.mxu0
    %7804 = vmatprep.subr.bf16.mxu0 %v6562
    %7805 = vmatpush1.bf16.msra.mxu0 %v6561
    %7806 = vmatprep.subr.bf16.mxu0 %v6554
    %7807 = vmatpush1.bf16.msra.mxu0 %v6553
    %7808 = vmatprep.subr.bf16.mxu0 %v6546
    %7809 = vmatpush1.bf16.msra.mxu0 %v6545
    %7810 = vmatprep.subr.bf16.mxu0 %v6538
    %7811 = vmatpush1.bf16.msra.mxu0 %v6537
    %7812 = vmatprep.subr.bf16.mxu0 %v6530
    %7813 = vmatpush1.bf16.msra.mxu0 %v6529
    %7814 = vmatprep.subr.bf16.mxu0 %v6522
    %7815 = vmatpush1.bf16.msra.mxu0 %v6521
    %7816 = vmatprep.subr.bf16.mxu0 %v6514
    %7817 = vmatpush1.bf16.msra.mxu0 %v6513
    %7818 = vmatprep.subr.bf16.mxu0 %v6506
    %7819 = vmatpush1.bf16.msra.mxu0 %v6505
    %7820 = vmatprep.subr.bf16.mxu0 %v6626
    %7821 = vmatpush2.bf16.msra.mxu0 %v6625
    %7822 = vmatprep.subr.bf16.mxu0 %v6618
    %7823 = vmatpush2.bf16.msra.mxu0 %v6617
    %7824 = vmatprep.subr.bf16.mxu0 %v6610
    %7825 = vmatpush2.bf16.msra.mxu0 %v6609
    %7826 = vmatprep.subr.bf16.mxu0 %v6602
    %7827 = vmatpush2.bf16.msra.mxu0 %v6601
    %7828 = vmatprep.subr.bf16.mxu0 %v6594
    %7829 = vmatpush2.bf16.msra.mxu0 %v6593
    %7830 = vmatprep.subr.bf16.mxu0 %v6586
    %7831 = vmatpush2.bf16.msra.mxu0 %v6585
    %7832 = vmatprep.subr.bf16.mxu0 %v6578
    %7833 = vmatpush2.bf16.msra.mxu0 %v6577
    %7834 = vmatprep.subr.bf16.mxu0 %v6570
    %7835 = vmatpush2.bf16.msra.mxu0 %v6569
    %7836 = vmatprep.mubr.bf16.mxu0 %v4248
    %7837 = vmatmul.mubr.bf16.gmra.mxu0 %v4247
    %v7838 = vpop.f32.mrf.mxu0
    %v7839 = vadd.f32 %v7758, %v7838
    %v7840 = vpop.f32.mrf.mxu0
    %v7841 = vadd.f32 %v7760, %v7840
    %v7842 = vpop.f32.mrf.mxu0
    %v7843 = vadd.f32 %v7762, %v7842
    %v7844 = vpop.f32.mrf.mxu0
    %v7845 = vadd.f32 %v7764, %v7844
    %7846 = vmatprep.mubr.bf16.mxu0 %v4256
    %7847 = vmatmul.mubr.bf16.gmra.mxu0 %v4255
    %v7848 = vpop.f32.mrf.mxu0
    %v7849 = vadd.f32 %v7768, %v7848
    %v7850 = vpop.f32.mrf.mxu0
    %v7851 = vadd.f32 %v7770, %v7850
    %v7852 = vpop.f32.mrf.mxu0
    %v7853 = vadd.f32 %v7772, %v7852
    %v7854 = vpop.f32.mrf.mxu0
    %v7855 = vadd.f32 %v7774, %v7854
    %7856 = vmatprep.mubr.bf16.mxu0 %v4264
    %7857 = vmatmul.mubr.bf16.gmra.mxu0 %v4263
    %v7858 = vpop.f32.mrf.mxu0
    %v7859 = vadd.f32 %v7778, %v7858
    %v7860 = vpop.f32.mrf.mxu0
    %v7861 = vadd.f32 %v7780, %v7860
    %v7862 = vpop.f32.mrf.mxu0
    %v7863 = vadd.f32 %v7782, %v7862
    %v7864 = vpop.f32.mrf.mxu0
    %v7865 = vadd.f32 %v7784, %v7864
    %7866 = vmatprep.mubr.bf16.mxu0 %v4272
    %7867 = vmatmul.mubr.bf16.gmra.mxu0 %v4271
    %v7868 = vpop.f32.mrf.mxu0
    %v7869 = vadd.f32 %v7788, %v7868
    %v7870 = vpop.f32.mrf.mxu0
    %v7871 = vadd.f32 %v7790, %v7870
    %v7872 = vpop.f32.mrf.mxu0
    %v7873 = vadd.f32 %v7792, %v7872
    %v7874 = vpop.f32.mrf.mxu0
    %v7875 = vadd.f32 %v7794, %v7874
    %7876 = vmatprep.mubr.bf16.mxu0 %v4280
    %7877 = vmatmul.mubr.bf16.gmra.mxu0 %v4279
    %v7878 = vpop.f32.mrf.mxu0
    %v7879 = vadd.f32 %v7798, %v7878
    %v7880 = vpop.f32.mrf.mxu0
    %v7881 = vadd.f32 %v7800, %v7880
    %v7882 = vpop.f32.mrf.mxu0
    %v7883 = vpop.f32.mrf.mxu0
    %7884 = vdwg.mxu0
    %7885 = vmatprep.subr.bf16.mxu0 %v6690
    %7886 = vmatpush1.bf16.msra.mxu0 %v6689
    %7887 = vmatprep.subr.bf16.mxu0 %v6682
    %7888 = vmatpush1.bf16.msra.mxu0 %v6681
    %7889 = vmatprep.subr.bf16.mxu0 %v6674
    %7890 = vmatpush1.bf16.msra.mxu0 %v6673
    %7891 = vmatprep.subr.bf16.mxu0 %v6666
    %7892 = vmatpush1.bf16.msra.mxu0 %v6665
    %7893 = vmatprep.subr.bf16.mxu0 %v6658
    %7894 = vmatpush1.bf16.msra.mxu0 %v6657
    %7895 = vmatprep.subr.bf16.mxu0 %v6650
    %7896 = vmatpush1.bf16.msra.mxu0 %v6649
    %7897 = vmatprep.subr.bf16.mxu0 %v6642
    %7898 = vmatpush1.bf16.msra.mxu0 %v6641
    %7899 = vmatprep.subr.bf16.mxu0 %v6634
    %7900 = vmatpush1.bf16.msra.mxu0 %v6633
    %7901 = vmatprep.subr.bf16.mxu0 %v6754
    %7902 = vmatpush2.bf16.msra.mxu0 %v6753
    %7903 = vmatprep.subr.bf16.mxu0 %v6746
    %7904 = vmatpush2.bf16.msra.mxu0 %v6745
    %7905 = vmatprep.subr.bf16.mxu0 %v6738
    %7906 = vmatpush2.bf16.msra.mxu0 %v6737
    %7907 = vmatprep.subr.bf16.mxu0 %v6730
    %7908 = vmatpush2.bf16.msra.mxu0 %v6729
    %7909 = vmatprep.subr.bf16.mxu0 %v6722
    %7910 = vmatpush2.bf16.msra.mxu0 %v6721
    %7911 = vmatprep.subr.bf16.mxu0 %v6714
    %7912 = vmatpush2.bf16.msra.mxu0 %v6713
    %7913 = vmatprep.subr.bf16.mxu0 %v6706
    %7914 = vmatpush2.bf16.msra.mxu0 %v6705
    %7915 = vmatprep.subr.bf16.mxu0 %v6698
    %7916 = vmatpush2.bf16.msra.mxu0 %v6697
    %7917 = vmatprep.mubr.bf16.mxu0 %v4250
    %7918 = vmatmul.mubr.bf16.gmra.mxu0 %v4249
    %v7919 = vpop.f32.mrf.mxu0
    %v7920 = vadd.f32 %v7839, %v7919
    %v7921 = vpop.f32.mrf.mxu0
    %v7922 = vadd.f32 %v7841, %v7921
    %v7923 = vpop.f32.mrf.mxu0
    %v7924 = vadd.f32 %v7843, %v7923
    %v7925 = vpop.f32.mrf.mxu0
    %v7926 = vadd.f32 %v7845, %v7925
    %7927 = vmatprep.mubr.bf16.mxu0 %v4258
    %7928 = vmatmul.mubr.bf16.gmra.mxu0 %v4257
    %v7929 = vpop.f32.mrf.mxu0
    %v7930 = vadd.f32 %v7849, %v7929
    %v7931 = vpop.f32.mrf.mxu0
    %v7932 = vadd.f32 %v7851, %v7931
    %v7933 = vpop.f32.mrf.mxu0
    %v7934 = vadd.f32 %v7853, %v7933
    %v7935 = vpop.f32.mrf.mxu0
    %v7936 = vadd.f32 %v7855, %v7935
    %7937 = vmatprep.mubr.bf16.mxu0 %v4266
    %7938 = vmatmul.mubr.bf16.gmra.mxu0 %v4265
    %v7939 = vpop.f32.mrf.mxu0
    %v7940 = vadd.f32 %v7859, %v7939
    %v7941 = vpop.f32.mrf.mxu0
    %v7942 = vadd.f32 %v7861, %v7941
    %v7943 = vpop.f32.mrf.mxu0
    %v7944 = vadd.f32 %v7863, %v7943
    %v7945 = vpop.f32.mrf.mxu0
    %v7946 = vadd.f32 %v7865, %v7945
    %7947 = vmatprep.mubr.bf16.mxu0 %v4274
    %7948 = vmatmul.mubr.bf16.gmra.mxu0 %v4273
    %v7949 = vpop.f32.mrf.mxu0
    %v7950 = vadd.f32 %v7869, %v7949
    %v7951 = vpop.f32.mrf.mxu0
    %v7952 = vadd.f32 %v7871, %v7951
    %v7953 = vpop.f32.mrf.mxu0
    %v7954 = vadd.f32 %v7873, %v7953
    %v7955 = vpop.f32.mrf.mxu0
    %v7956 = vadd.f32 %v7875, %v7955
    %7957 = vmatprep.mubr.bf16.mxu0 %v4282
    %7958 = vmatmul.mubr.bf16.gmra.mxu0 %v4281
    %v7959 = vpop.f32.mrf.mxu0
    %v7960 = vadd.f32 %v7879, %v7959
    %v7961 = vpop.f32.mrf.mxu0
    %v7962 = vadd.f32 %v7881, %v7961
    %v7963 = vpop.f32.mrf.mxu0
    %v7964 = vpop.f32.mrf.mxu0
    %7965 = vdwg.mxu0
    %7966 = vmatprep.subr.bf16.mxu0 %v6818
    %7967 = vmatpush1.bf16.msra.mxu0 %v6817
    %7968 = vmatprep.subr.bf16.mxu0 %v6810
    %7969 = vmatpush1.bf16.msra.mxu0 %v6809
    %7970 = vmatprep.subr.bf16.mxu0 %v6802
    %7971 = vmatpush1.bf16.msra.mxu0 %v6801
    %7972 = vmatprep.subr.bf16.mxu0 %v6794
    %7973 = vmatpush1.bf16.msra.mxu0 %v6793
    %7974 = vmatprep.subr.bf16.mxu0 %v6786
    %7975 = vmatpush1.bf16.msra.mxu0 %v6785
    %7976 = vmatprep.subr.bf16.mxu0 %v6778
    %7977 = vmatpush1.bf16.msra.mxu0 %v6777
    %7978 = vmatprep.subr.bf16.mxu0 %v6770
    %7979 = vmatpush1.bf16.msra.mxu0 %v6769
    %7980 = vmatprep.subr.bf16.mxu0 %v6762
    %7981 = vmatpush1.bf16.msra.mxu0 %v6761
    %7982 = vmatprep.subr.bf16.mxu0 %v6882
    %7983 = vmatpush2.bf16.msra.mxu0 %v6881
    %7984 = vmatprep.subr.bf16.mxu0 %v6874
    %7985 = vmatpush2.bf16.msra.mxu0 %v6873
    %7986 = vmatprep.subr.bf16.mxu0 %v6866
    %7987 = vmatpush2.bf16.msra.mxu0 %v6865
    %7988 = vmatprep.subr.bf16.mxu0 %v6858
    %7989 = vmatpush2.bf16.msra.mxu0 %v6857
    %7990 = vmatprep.subr.bf16.mxu0 %v6850
    %7991 = vmatpush2.bf16.msra.mxu0 %v6849
    %7992 = vmatprep.subr.bf16.mxu0 %v6842
    %7993 = vmatpush2.bf16.msra.mxu0 %v6841
    %7994 = vmatprep.subr.bf16.mxu0 %v6834
    %7995 = vmatpush2.bf16.msra.mxu0 %v6833
    %7996 = vmatprep.subr.bf16.mxu0 %v6826
    %7997 = vmatpush2.bf16.msra.mxu0 %v6825
    %7998 = vmatprep.mubr.bf16.mxu0 %v4252
    %7999 = vmatmul.mubr.bf16.gmra.mxu0 %v4251
    %v8000 = vpop.f32.mrf.mxu0
    %v8001 = vadd.f32 %v7920, %v8000
    %v8002 = vpop.f32.mrf.mxu0
    %v8003 = vadd.f32 %v7922, %v8002
    %v8004 = vpop.f32.mrf.mxu0
    %v8005 = vadd.f32 %v7924, %v8004
    %v8006 = vpop.f32.mrf.mxu0
    %v8007 = vadd.f32 %v7926, %v8006
    %8008 = vmatprep.mubr.bf16.mxu0 %v4260
    %8009 = vmatmul.mubr.bf16.gmra.mxu0 %v4259
    %v8010 = vpop.f32.mrf.mxu0
    %v8011 = vadd.f32 %v7930, %v8010
    %v8012 = vpop.f32.mrf.mxu0
    %v8013 = vadd.f32 %v7932, %v8012
    %v8014 = vpop.f32.mrf.mxu0
    %v8015 = vadd.f32 %v7934, %v8014
    %v8016 = vpop.f32.mrf.mxu0
    %v8017 = vadd.f32 %v7936, %v8016
    %8018 = vmatprep.mubr.bf16.mxu0 %v4268
    %8019 = vmatmul.mubr.bf16.gmra.mxu0 %v4267
    %v8020 = vpop.f32.mrf.mxu0
    %v8021 = vadd.f32 %v7940, %v8020
    %v8022 = vpop.f32.mrf.mxu0
    %v8023 = vadd.f32 %v7942, %v8022
    %v8024 = vpop.f32.mrf.mxu0
    %v8025 = vadd.f32 %v7944, %v8024
    %v8026 = vpop.f32.mrf.mxu0
    %v8027 = vadd.f32 %v7946, %v8026
    %8028 = vmatprep.mubr.bf16.mxu0 %v4276
    %8029 = vmatmul.mubr.bf16.gmra.mxu0 %v4275
    %v8030 = vpop.f32.mrf.mxu0
    %v8031 = vadd.f32 %v7950, %v8030
    %v8032 = vpop.f32.mrf.mxu0
    %v8033 = vadd.f32 %v7952, %v8032
    %v8034 = vpop.f32.mrf.mxu0
    %v8035 = vadd.f32 %v7954, %v8034
    %v8036 = vpop.f32.mrf.mxu0
    %v8037 = vadd.f32 %v7956, %v8036
    %8038 = vmatprep.mubr.bf16.mxu0 %v4284
    %8039 = vmatmul.mubr.bf16.gmra.mxu0 %v4283
    %v8040 = vpop.f32.mrf.mxu0
    %v8041 = vadd.f32 %v7960, %v8040
    %v8042 = vpop.f32.mrf.mxu0
    %v8043 = vadd.f32 %v7962, %v8042
    %v8044 = vpop.f32.mrf.mxu0
    %v8045 = vpop.f32.mrf.mxu0
    %8046 = vdwg.mxu0
    %8047 = vmatprep.subr.bf16.mxu0 %v6436
    %8048 = vmatpush1.bf16.msra.mxu0 %v6435
    %8049 = vmatprep.subr.bf16.mxu0 %v6428
    %8050 = vmatpush1.bf16.msra.mxu0 %v6427
    %8051 = vmatprep.subr.bf16.mxu0 %v6420
    %8052 = vmatpush1.bf16.msra.mxu0 %v6419
    %8053 = vmatprep.subr.bf16.mxu0 %v6412
    %8054 = vmatpush1.bf16.msra.mxu0 %v6411
    %8055 = vmatprep.subr.bf16.mxu0 %v6404
    %8056 = vmatpush1.bf16.msra.mxu0 %v6403
    %8057 = vmatprep.subr.bf16.mxu0 %v6396
    %8058 = vmatpush1.bf16.msra.mxu0 %v6395
    %8059 = vmatprep.subr.bf16.mxu0 %v6388
    %8060 = vmatpush1.bf16.msra.mxu0 %v6387
    %8061 = vmatprep.subr.bf16.mxu0 %v6380
    %8062 = vmatpush1.bf16.msra.mxu0 %v6379
    %8063 = vmatprep.subr.bf16.mxu0 %v6500
    %8064 = vmatpush2.bf16.msra.mxu0 %v6499
    %8065 = vmatprep.subr.bf16.mxu0 %v6492
    %8066 = vmatpush2.bf16.msra.mxu0 %v6491
    %8067 = vmatprep.subr.bf16.mxu0 %v6484
    %8068 = vmatpush2.bf16.msra.mxu0 %v6483
    %8069 = vmatprep.subr.bf16.mxu0 %v6476
    %8070 = vmatpush2.bf16.msra.mxu0 %v6475
    %8071 = vmatprep.subr.bf16.mxu0 %v6468
    %8072 = vmatpush2.bf16.msra.mxu0 %v6467
    %8073 = vmatprep.subr.bf16.mxu0 %v6460
    %8074 = vmatpush2.bf16.msra.mxu0 %v6459
    %8075 = vmatprep.subr.bf16.mxu0 %v6452
    %8076 = vmatpush2.bf16.msra.mxu0 %v6451
    %8077 = vmatprep.subr.bf16.mxu0 %v6444
    %8078 = vmatpush2.bf16.msra.mxu0 %v6443
    %8079 = vmatprep.mubr.bf16.mxu0 %v4246
    %8080 = vmatmul.mubr.bf16.gmra.mxu0 %v4245
    %v8081 = vpop.f32.mrf.mxu0
    %v8082 = vadd.f32 %v4818, %v8081
    %v8083 = vpop.f32.mrf.mxu0
    %v8084 = vadd.f32 %v4822, %v8083
    %v8085 = vpop.f32.mrf.mxu0
    %v8086 = vadd.f32 %v4818, %v8085
    %v8087 = vpop.f32.mrf.mxu0
    %v8088 = vadd.f32 %v4822, %v8087
    %8089 = vmatprep.mubr.bf16.mxu0 %v4254
    %8090 = vmatmul.mubr.bf16.gmra.mxu0 %v4253
    %v8091 = vpop.f32.mrf.mxu0
    %v8092 = vadd.f32 %v4818, %v8091
    %v8093 = vpop.f32.mrf.mxu0
    %v8094 = vadd.f32 %v4822, %v8093
    %v8095 = vpop.f32.mrf.mxu0
    %v8096 = vadd.f32 %v4818, %v8095
    %v8097 = vpop.f32.mrf.mxu0
    %v8098 = vadd.f32 %v4822, %v8097
    %8099 = vmatprep.mubr.bf16.mxu0 %v4262
    %8100 = vmatmul.mubr.bf16.gmra.mxu0 %v4261
    %v8101 = vpop.f32.mrf.mxu0
    %v8102 = vadd.f32 %v4818, %v8101
    %v8103 = vpop.f32.mrf.mxu0
    %v8104 = vadd.f32 %v4822, %v8103
    %v8105 = vpop.f32.mrf.mxu0
    %v8106 = vadd.f32 %v4818, %v8105
    %v8107 = vpop.f32.mrf.mxu0
    %v8108 = vadd.f32 %v4822, %v8107
    %8109 = vmatprep.mubr.bf16.mxu0 %v4270
    %8110 = vmatmul.mubr.bf16.gmra.mxu0 %v4269
    %v8111 = vpop.f32.mrf.mxu0
    %v8112 = vadd.f32 %v4818, %v8111
    %v8113 = vpop.f32.mrf.mxu0
    %v8114 = vadd.f32 %v4822, %v8113
    %v8115 = vpop.f32.mrf.mxu0
    %v8116 = vadd.f32 %v4818, %v8115
    %v8117 = vpop.f32.mrf.mxu0
    %v8118 = vadd.f32 %v4822, %v8117
    %8119 = vmatprep.mubr.bf16.mxu0 %v4278
    %8120 = vmatmul.mubr.bf16.gmra.mxu0 %v4277
    %v8121 = vpop.f32.mrf.mxu0
    %v8122 = vadd.f32 %v4818, %v8121
    %v8123 = vpop.f32.mrf.mxu0
    %v8124 = vadd.f32 %v4822, %v8123
    %v8125 = vpop.f32.mrf.mxu0
    %v8126 = vpop.f32.mrf.mxu0
    %8127 = vdwg.mxu0
    %8128 = vmatprep.subr.bf16.mxu0 %v6564
    %8129 = vmatpush1.bf16.msra.mxu0 %v6563
    %8130 = vmatprep.subr.bf16.mxu0 %v6556
    %8131 = vmatpush1.bf16.msra.mxu0 %v6555
    %8132 = vmatprep.subr.bf16.mxu0 %v6548
    %8133 = vmatpush1.bf16.msra.mxu0 %v6547
    %8134 = vmatprep.subr.bf16.mxu0 %v6540
    %8135 = vmatpush1.bf16.msra.mxu0 %v6539
    %8136 = vmatprep.subr.bf16.mxu0 %v6532
    %8137 = vmatpush1.bf16.msra.mxu0 %v6531
    %8138 = vmatprep.subr.bf16.mxu0 %v6524
    %8139 = vmatpush1.bf16.msra.mxu0 %v6523
    %8140 = vmatprep.subr.bf16.mxu0 %v6516
    %8141 = vmatpush1.bf16.msra.mxu0 %v6515
    %8142 = vmatprep.subr.bf16.mxu0 %v6508
    %8143 = vmatpush1.bf16.msra.mxu0 %v6507
    %8144 = vmatprep.subr.bf16.mxu0 %v6628
    %8145 = vmatpush2.bf16.msra.mxu0 %v6627
    %8146 = vmatprep.subr.bf16.mxu0 %v6620
    %8147 = vmatpush2.bf16.msra.mxu0 %v6619
    %8148 = vmatprep.subr.bf16.mxu0 %v6612
    %8149 = vmatpush2.bf16.msra.mxu0 %v6611
    %8150 = vmatprep.subr.bf16.mxu0 %v6604
    %8151 = vmatpush2.bf16.msra.mxu0 %v6603
    %8152 = vmatprep.subr.bf16.mxu0 %v6596
    %8153 = vmatpush2.bf16.msra.mxu0 %v6595
    %8154 = vmatprep.subr.bf16.mxu0 %v6588
    %8155 = vmatpush2.bf16.msra.mxu0 %v6587
    %8156 = vmatprep.subr.bf16.mxu0 %v6580
    %8157 = vmatpush2.bf16.msra.mxu0 %v6579
    %8158 = vmatprep.subr.bf16.mxu0 %v6572
    %8159 = vmatpush2.bf16.msra.mxu0 %v6571
    %8160 = vmatprep.mubr.bf16.mxu0 %v4248
    %8161 = vmatmul.mubr.bf16.gmra.mxu0 %v4247
    %v8162 = vpop.f32.mrf.mxu0
    %v8163 = vadd.f32 %v8082, %v8162
    %v8164 = vpop.f32.mrf.mxu0
    %v8165 = vadd.f32 %v8084, %v8164
    %v8166 = vpop.f32.mrf.mxu0
    %v8167 = vadd.f32 %v8086, %v8166
    %v8168 = vpop.f32.mrf.mxu0
    %v8169 = vadd.f32 %v8088, %v8168
    %8170 = vmatprep.mubr.bf16.mxu0 %v4256
    %8171 = vmatmul.mubr.bf16.gmra.mxu0 %v4255
    %v8172 = vpop.f32.mrf.mxu0
    %v8173 = vadd.f32 %v8092, %v8172
    %v8174 = vpop.f32.mrf.mxu0
    %v8175 = vadd.f32 %v8094, %v8174
    %v8176 = vpop.f32.mrf.mxu0
    %v8177 = vadd.f32 %v8096, %v8176
    %v8178 = vpop.f32.mrf.mxu0
    %v8179 = vadd.f32 %v8098, %v8178
    %8180 = vmatprep.mubr.bf16.mxu0 %v4264
    %8181 = vmatmul.mubr.bf16.gmra.mxu0 %v4263
    %v8182 = vpop.f32.mrf.mxu0
    %v8183 = vadd.f32 %v8102, %v8182
    %v8184 = vpop.f32.mrf.mxu0
    %v8185 = vadd.f32 %v8104, %v8184
    %v8186 = vpop.f32.mrf.mxu0
    %v8187 = vadd.f32 %v8106, %v8186
    %v8188 = vpop.f32.mrf.mxu0
    %v8189 = vadd.f32 %v8108, %v8188
    %8190 = vmatprep.mubr.bf16.mxu0 %v4272
    %8191 = vmatmul.mubr.bf16.gmra.mxu0 %v4271
    %v8192 = vpop.f32.mrf.mxu0
    %v8193 = vadd.f32 %v8112, %v8192
    %v8194 = vpop.f32.mrf.mxu0
    %v8195 = vadd.f32 %v8114, %v8194
    %v8196 = vpop.f32.mrf.mxu0
    %v8197 = vadd.f32 %v8116, %v8196
    %v8198 = vpop.f32.mrf.mxu0
    %v8199 = vadd.f32 %v8118, %v8198
    %8200 = vmatprep.mubr.bf16.mxu0 %v4280
    %8201 = vmatmul.mubr.bf16.gmra.mxu0 %v4279
    %v8202 = vpop.f32.mrf.mxu0
    %v8203 = vadd.f32 %v8122, %v8202
    %v8204 = vpop.f32.mrf.mxu0
    %v8205 = vadd.f32 %v8124, %v8204
    %v8206 = vpop.f32.mrf.mxu0
    %v8207 = vpop.f32.mrf.mxu0
    %8208 = vdwg.mxu0
    %8209 = vmatprep.subr.bf16.mxu0 %v6692
    %8210 = vmatpush1.bf16.msra.mxu0 %v6691
    %8211 = vmatprep.subr.bf16.mxu0 %v6684
    %8212 = vmatpush1.bf16.msra.mxu0 %v6683
    %8213 = vmatprep.subr.bf16.mxu0 %v6676
    %8214 = vmatpush1.bf16.msra.mxu0 %v6675
    %8215 = vmatprep.subr.bf16.mxu0 %v6668
    %8216 = vmatpush1.bf16.msra.mxu0 %v6667
    %8217 = vmatprep.subr.bf16.mxu0 %v6660
    %8218 = vmatpush1.bf16.msra.mxu0 %v6659
    %8219 = vmatprep.subr.bf16.mxu0 %v6652
    %8220 = vmatpush1.bf16.msra.mxu0 %v6651
    %8221 = vmatprep.subr.bf16.mxu0 %v6644
    %8222 = vmatpush1.bf16.msra.mxu0 %v6643
    %8223 = vmatprep.subr.bf16.mxu0 %v6636
    %8224 = vmatpush1.bf16.msra.mxu0 %v6635
    %8225 = vmatprep.subr.bf16.mxu0 %v6756
    %8226 = vmatpush2.bf16.msra.mxu0 %v6755
    %8227 = vmatprep.subr.bf16.mxu0 %v6748
    %8228 = vmatpush2.bf16.msra.mxu0 %v6747
    %8229 = vmatprep.subr.bf16.mxu0 %v6740
    %8230 = vmatpush2.bf16.msra.mxu0 %v6739
    %8231 = vmatprep.subr.bf16.mxu0 %v6732
    %8232 = vmatpush2.bf16.msra.mxu0 %v6731
    %8233 = vmatprep.subr.bf16.mxu0 %v6724
    %8234 = vmatpush2.bf16.msra.mxu0 %v6723
    %8235 = vmatprep.subr.bf16.mxu0 %v6716
    %8236 = vmatpush2.bf16.msra.mxu0 %v6715
    %8237 = vmatprep.subr.bf16.mxu0 %v6708
    %8238 = vmatpush2.bf16.msra.mxu0 %v6707
    %8239 = vmatprep.subr.bf16.mxu0 %v6700
    %8240 = vmatpush2.bf16.msra.mxu0 %v6699
    %8241 = vmatprep.mubr.bf16.mxu0 %v4250
    %8242 = vmatmul.mubr.bf16.gmra.mxu0 %v4249
    %v8243 = vpop.f32.mrf.mxu0
    %v8244 = vadd.f32 %v8163, %v8243
    %v8245 = vpop.f32.mrf.mxu0
    %v8246 = vadd.f32 %v8165, %v8245
    %v8247 = vpop.f32.mrf.mxu0
    %v8248 = vadd.f32 %v8167, %v8247
    %v8249 = vpop.f32.mrf.mxu0
    %v8250 = vadd.f32 %v8169, %v8249
    %8251 = vmatprep.mubr.bf16.mxu0 %v4258
    %8252 = vmatmul.mubr.bf16.gmra.mxu0 %v4257
    %v8253 = vpop.f32.mrf.mxu0
    %v8254 = vadd.f32 %v8173, %v8253
    %v8255 = vpop.f32.mrf.mxu0
    %v8256 = vadd.f32 %v8175, %v8255
    %v8257 = vpop.f32.mrf.mxu0
    %v8258 = vadd.f32 %v8177, %v8257
    %v8259 = vpop.f32.mrf.mxu0
    %v8260 = vadd.f32 %v8179, %v8259
    %8261 = vmatprep.mubr.bf16.mxu0 %v4266
    %8262 = vmatmul.mubr.bf16.gmra.mxu0 %v4265
    %v8263 = vpop.f32.mrf.mxu0
    %v8264 = vadd.f32 %v8183, %v8263
    %v8265 = vpop.f32.mrf.mxu0
    %v8266 = vadd.f32 %v8185, %v8265
    %v8267 = vpop.f32.mrf.mxu0
    %v8268 = vadd.f32 %v8187, %v8267
    %v8269 = vpop.f32.mrf.mxu0
    %v8270 = vadd.f32 %v8189, %v8269
    %8271 = vmatprep.mubr.bf16.mxu0 %v4274
    %8272 = vmatmul.mubr.bf16.gmra.mxu0 %v4273
    %v8273 = vpop.f32.mrf.mxu0
    %v8274 = vadd.f32 %v8193, %v8273
    %v8275 = vpop.f32.mrf.mxu0
    %v8276 = vadd.f32 %v8195, %v8275
    %v8277 = vpop.f32.mrf.mxu0
    %v8278 = vadd.f32 %v8197, %v8277
    %v8279 = vpop.f32.mrf.mxu0
    %v8280 = vadd.f32 %v8199, %v8279
    %8281 = vmatprep.mubr.bf16.mxu0 %v4282
    %8282 = vmatmul.mubr.bf16.gmra.mxu0 %v4281
    %v8283 = vpop.f32.mrf.mxu0
    %v8284 = vadd.f32 %v8203, %v8283
    %v8285 = vpop.f32.mrf.mxu0
    %v8286 = vadd.f32 %v8205, %v8285
    %v8287 = vpop.f32.mrf.mxu0
    %v8288 = vpop.f32.mrf.mxu0
    %8289 = vdwg.mxu0
    %8290 = vmatprep.subr.bf16.mxu0 %v6820
    %8291 = vmatpush1.bf16.msra.mxu0 %v6819
    %8292 = vmatprep.subr.bf16.mxu0 %v6812
    %8293 = vmatpush1.bf16.msra.mxu0 %v6811
    %8294 = vmatprep.subr.bf16.mxu0 %v6804
    %8295 = vmatpush1.bf16.msra.mxu0 %v6803
    %8296 = vmatprep.subr.bf16.mxu0 %v6796
    %8297 = vmatpush1.bf16.msra.mxu0 %v6795
    %8298 = vmatprep.subr.bf16.mxu0 %v6788
    %8299 = vmatpush1.bf16.msra.mxu0 %v6787
    %8300 = vmatprep.subr.bf16.mxu0 %v6780
    %8301 = vmatpush1.bf16.msra.mxu0 %v6779
    %8302 = vmatprep.subr.bf16.mxu0 %v6772
    %8303 = vmatpush1.bf16.msra.mxu0 %v6771
    %8304 = vmatprep.subr.bf16.mxu0 %v6764
    %8305 = vmatpush1.bf16.msra.mxu0 %v6763
    %8306 = vmatprep.subr.bf16.mxu0 %v6884
    %8307 = vmatpush2.bf16.msra.mxu0 %v6883
    %8308 = vmatprep.subr.bf16.mxu0 %v6876
    %8309 = vmatpush2.bf16.msra.mxu0 %v6875
    %8310 = vmatprep.subr.bf16.mxu0 %v6868
    %8311 = vmatpush2.bf16.msra.mxu0 %v6867
    %8312 = vmatprep.subr.bf16.mxu0 %v6860
    %8313 = vmatpush2.bf16.msra.mxu0 %v6859
    %8314 = vmatprep.subr.bf16.mxu0 %v6852
    %8315 = vmatpush2.bf16.msra.mxu0 %v6851
    %8316 = vmatprep.subr.bf16.mxu0 %v6844
    %8317 = vmatpush2.bf16.msra.mxu0 %v6843
    %8318 = vmatprep.subr.bf16.mxu0 %v6836
    %8319 = vmatpush2.bf16.msra.mxu0 %v6835
    %8320 = vmatprep.subr.bf16.mxu0 %v6828
    %8321 = vmatpush2.bf16.msra.mxu0 %v6827
    %8322 = vmatprep.mubr.bf16.mxu0 %v4252
    %8323 = vmatmul.mubr.bf16.gmra.mxu0 %v4251
    %v8324 = vpop.f32.mrf.mxu0
    %v8325 = vadd.f32 %v8244, %v8324
    %v8326 = vpop.f32.mrf.mxu0
    %v8327 = vadd.f32 %v8246, %v8326
    %v8328 = vpop.f32.mrf.mxu0
    %v8329 = vadd.f32 %v8248, %v8328
    %v8330 = vpop.f32.mrf.mxu0
    %v8331 = vadd.f32 %v8250, %v8330
    %8332 = vmatprep.mubr.bf16.mxu0 %v4260
    %8333 = vmatmul.mubr.bf16.gmra.mxu0 %v4259
    %v8334 = vpop.f32.mrf.mxu0
    %v8335 = vadd.f32 %v8254, %v8334
    %v8336 = vpop.f32.mrf.mxu0
    %v8337 = vadd.f32 %v8256, %v8336
    %v8338 = vpop.f32.mrf.mxu0
    %v8339 = vadd.f32 %v8258, %v8338
    %v8340 = vpop.f32.mrf.mxu0
    %v8341 = vadd.f32 %v8260, %v8340
    %8342 = vmatprep.mubr.bf16.mxu0 %v4268
    %8343 = vmatmul.mubr.bf16.gmra.mxu0 %v4267
    %v8344 = vpop.f32.mrf.mxu0
    %v8345 = vadd.f32 %v8264, %v8344
    %v8346 = vpop.f32.mrf.mxu0
    %v8347 = vadd.f32 %v8266, %v8346
    %v8348 = vpop.f32.mrf.mxu0
    %v8349 = vadd.f32 %v8268, %v8348
    %v8350 = vpop.f32.mrf.mxu0
    %v8351 = vadd.f32 %v8270, %v8350
    %8352 = vmatprep.mubr.bf16.mxu0 %v4276
    %8353 = vmatmul.mubr.bf16.gmra.mxu0 %v4275
    %v8354 = vpop.f32.mrf.mxu0
    %v8355 = vadd.f32 %v8274, %v8354
    %v8356 = vpop.f32.mrf.mxu0
    %v8357 = vadd.f32 %v8276, %v8356
    %v8358 = vpop.f32.mrf.mxu0
    %v8359 = vadd.f32 %v8278, %v8358
    %v8360 = vpop.f32.mrf.mxu0
    %v8361 = vadd.f32 %v8280, %v8360
    %8362 = vmatprep.mubr.bf16.mxu0 %v4284
    %8363 = vmatmul.mubr.bf16.gmra.mxu0 %v4283
    %v8364 = vpop.f32.mrf.mxu0
    %v8365 = vadd.f32 %v8284, %v8364
    %v8366 = vpop.f32.mrf.mxu0
    %v8367 = vadd.f32 %v8286, %v8366
    %v8368 = vpop.f32.mrf.mxu0
    %v8369 = vpop.f32.mrf.mxu0
    %8370 = vdwg.mxu0
    %8371 = vmatprep.subr.bf16.mxu0 %v6438
    %8372 = vmatpush1.bf16.msra.mxu0 %v6437
    %8373 = vmatprep.subr.bf16.mxu0 %v6430
    %8374 = vmatpush1.bf16.msra.mxu0 %v6429
    %8375 = vmatprep.subr.bf16.mxu0 %v6422
    %8376 = vmatpush1.bf16.msra.mxu0 %v6421
    %8377 = vmatprep.subr.bf16.mxu0 %v6414
    %8378 = vmatpush1.bf16.msra.mxu0 %v6413
    %8379 = vmatprep.subr.bf16.mxu0 %v6406
    %8380 = vmatpush1.bf16.msra.mxu0 %v6405
    %8381 = vmatprep.subr.bf16.mxu0 %v6398
    %8382 = vmatpush1.bf16.msra.mxu0 %v6397
    %8383 = vmatprep.subr.bf16.mxu0 %v6390
    %8384 = vmatpush1.bf16.msra.mxu0 %v6389
    %8385 = vmatprep.subr.bf16.mxu0 %v6382
    %8386 = vmatpush1.bf16.msra.mxu0 %v6381
    %8387 = vmatprep.subr.bf16.mxu0 %v6502
    %8388 = vmatpush2.bf16.msra.mxu0 %v6501
    %8389 = vmatprep.subr.bf16.mxu0 %v6494
    %8390 = vmatpush2.bf16.msra.mxu0 %v6493
    %8391 = vmatprep.subr.bf16.mxu0 %v6486
    %8392 = vmatpush2.bf16.msra.mxu0 %v6485
    %8393 = vmatprep.subr.bf16.mxu0 %v6478
    %8394 = vmatpush2.bf16.msra.mxu0 %v6477
    %8395 = vmatprep.subr.bf16.mxu0 %v6470
    %8396 = vmatpush2.bf16.msra.mxu0 %v6469
    %8397 = vmatprep.subr.bf16.mxu0 %v6462
    %8398 = vmatpush2.bf16.msra.mxu0 %v6461
    %8399 = vmatprep.subr.bf16.mxu0 %v6454
    %8400 = vmatpush2.bf16.msra.mxu0 %v6453
    %8401 = vmatprep.subr.bf16.mxu0 %v6446
    %8402 = vmatpush2.bf16.msra.mxu0 %v6445
    %8403 = vmatprep.mubr.bf16.mxu0 %v4246
    %8404 = vmatmul.mubr.bf16.gmra.mxu0 %v4245
    %v8405 = vpop.f32.mrf.mxu0
    %v8406 = vadd.f32 %v4826, %v8405
    %v8407 = vpop.f32.mrf.mxu0
    %v8408 = vadd.f32 %v4830, %v8407
    %v8409 = vpop.f32.mrf.mxu0
    %v8410 = vadd.f32 %v4826, %v8409
    %v8411 = vpop.f32.mrf.mxu0
    %v8412 = vadd.f32 %v4830, %v8411
    %8413 = vmatprep.mubr.bf16.mxu0 %v4254
    %8414 = vmatmul.mubr.bf16.gmra.mxu0 %v4253
    %v8415 = vpop.f32.mrf.mxu0
    %v8416 = vadd.f32 %v4826, %v8415
    %v8417 = vpop.f32.mrf.mxu0
    %v8418 = vadd.f32 %v4830, %v8417
    %v8419 = vpop.f32.mrf.mxu0
    %v8420 = vadd.f32 %v4826, %v8419
    %v8421 = vpop.f32.mrf.mxu0
    %v8422 = vadd.f32 %v4830, %v8421
    %8423 = vmatprep.mubr.bf16.mxu0 %v4262
    %8424 = vmatmul.mubr.bf16.gmra.mxu0 %v4261
    %v8425 = vpop.f32.mrf.mxu0
    %v8426 = vadd.f32 %v4826, %v8425
    %v8427 = vpop.f32.mrf.mxu0
    %v8428 = vadd.f32 %v4830, %v8427
    %v8429 = vpop.f32.mrf.mxu0
    %v8430 = vadd.f32 %v4826, %v8429
    %v8431 = vpop.f32.mrf.mxu0
    %v8432 = vadd.f32 %v4830, %v8431
    %8433 = vmatprep.mubr.bf16.mxu0 %v4270
    %8434 = vmatmul.mubr.bf16.gmra.mxu0 %v4269
    %v8435 = vpop.f32.mrf.mxu0
    %v8436 = vadd.f32 %v4826, %v8435
    %v8437 = vpop.f32.mrf.mxu0
    %v8438 = vadd.f32 %v4830, %v8437
    %v8439 = vpop.f32.mrf.mxu0
    %v8440 = vadd.f32 %v4826, %v8439
    %v8441 = vpop.f32.mrf.mxu0
    %v8442 = vadd.f32 %v4830, %v8441
    %8443 = vmatprep.mubr.bf16.mxu0 %v4278
    %8444 = vmatmul.mubr.bf16.gmra.mxu0 %v4277
    %v8445 = vpop.f32.mrf.mxu0
    %v8446 = vadd.f32 %v4826, %v8445
    %v8447 = vpop.f32.mrf.mxu0
    %v8448 = vadd.f32 %v4830, %v8447
    %v8449 = vpop.f32.mrf.mxu0
    %v8450 = vpop.f32.mrf.mxu0
    %8451 = vdwg.mxu0
    %8452 = vmatprep.subr.bf16.mxu0 %v6566
    %8453 = vmatpush1.bf16.msra.mxu0 %v6565
    %8454 = vmatprep.subr.bf16.mxu0 %v6558
    %8455 = vmatpush1.bf16.msra.mxu0 %v6557
    %8456 = vmatprep.subr.bf16.mxu0 %v6550
    %8457 = vmatpush1.bf16.msra.mxu0 %v6549
    %8458 = vmatprep.subr.bf16.mxu0 %v6542
    %8459 = vmatpush1.bf16.msra.mxu0 %v6541
    %8460 = vmatprep.subr.bf16.mxu0 %v6534
    %8461 = vmatpush1.bf16.msra.mxu0 %v6533
    %8462 = vmatprep.subr.bf16.mxu0 %v6526
    %8463 = vmatpush1.bf16.msra.mxu0 %v6525
    %8464 = vmatprep.subr.bf16.mxu0 %v6518
    %8465 = vmatpush1.bf16.msra.mxu0 %v6517
    %8466 = vmatprep.subr.bf16.mxu0 %v6510
    %8467 = vmatpush1.bf16.msra.mxu0 %v6509
    %8468 = vmatprep.subr.bf16.mxu0 %v6630
    %8469 = vmatpush2.bf16.msra.mxu0 %v6629
    %8470 = vmatprep.subr.bf16.mxu0 %v6622
    %8471 = vmatpush2.bf16.msra.mxu0 %v6621
    %8472 = vmatprep.subr.bf16.mxu0 %v6614
    %8473 = vmatpush2.bf16.msra.mxu0 %v6613
    %8474 = vmatprep.subr.bf16.mxu0 %v6606
    %8475 = vmatpush2.bf16.msra.mxu0 %v6605
    %8476 = vmatprep.subr.bf16.mxu0 %v6598
    %8477 = vmatpush2.bf16.msra.mxu0 %v6597
    %8478 = vmatprep.subr.bf16.mxu0 %v6590
    %8479 = vmatpush2.bf16.msra.mxu0 %v6589
    %8480 = vmatprep.subr.bf16.mxu0 %v6582
    %8481 = vmatpush2.bf16.msra.mxu0 %v6581
    %8482 = vmatprep.subr.bf16.mxu0 %v6574
    %8483 = vmatpush2.bf16.msra.mxu0 %v6573
    %8484 = vmatprep.mubr.bf16.mxu0 %v4248
    %8485 = vmatmul.mubr.bf16.gmra.mxu0 %v4247
    %v8486 = vpop.f32.mrf.mxu0
    %v8487 = vadd.f32 %v8406, %v8486
    %v8488 = vpop.f32.mrf.mxu0
    %v8489 = vadd.f32 %v8408, %v8488
    %v8490 = vpop.f32.mrf.mxu0
    %v8491 = vadd.f32 %v8410, %v8490
    %v8492 = vpop.f32.mrf.mxu0
    %v8493 = vadd.f32 %v8412, %v8492
    %8494 = vmatprep.mubr.bf16.mxu0 %v4256
    %8495 = vmatmul.mubr.bf16.gmra.mxu0 %v4255
    %v8496 = vpop.f32.mrf.mxu0
    %v8497 = vadd.f32 %v8416, %v8496
    %v8498 = vpop.f32.mrf.mxu0
    %v8499 = vadd.f32 %v8418, %v8498
    %v8500 = vpop.f32.mrf.mxu0
    %v8501 = vadd.f32 %v8420, %v8500
    %v8502 = vpop.f32.mrf.mxu0
    %v8503 = vadd.f32 %v8422, %v8502
    %8504 = vmatprep.mubr.bf16.mxu0 %v4264
    %8505 = vmatmul.mubr.bf16.gmra.mxu0 %v4263
    %v8506 = vpop.f32.mrf.mxu0
    %v8507 = vadd.f32 %v8426, %v8506
    %v8508 = vpop.f32.mrf.mxu0
    %v8509 = vadd.f32 %v8428, %v8508
    %v8510 = vpop.f32.mrf.mxu0
    %v8511 = vadd.f32 %v8430, %v8510
    %v8512 = vpop.f32.mrf.mxu0
    %v8513 = vadd.f32 %v8432, %v8512
    %8514 = vmatprep.mubr.bf16.mxu0 %v4272
    %8515 = vmatmul.mubr.bf16.gmra.mxu0 %v4271
    %v8516 = vpop.f32.mrf.mxu0
    %v8517 = vadd.f32 %v8436, %v8516
    %v8518 = vpop.f32.mrf.mxu0
    %v8519 = vadd.f32 %v8438, %v8518
    %v8520 = vpop.f32.mrf.mxu0
    %v8521 = vadd.f32 %v8440, %v8520
    %v8522 = vpop.f32.mrf.mxu0
    %v8523 = vadd.f32 %v8442, %v8522
    %8524 = vmatprep.mubr.bf16.mxu0 %v4280
    %8525 = vmatmul.mubr.bf16.gmra.mxu0 %v4279
    %v8526 = vpop.f32.mrf.mxu0
    %v8527 = vadd.f32 %v8446, %v8526
    %v8528 = vpop.f32.mrf.mxu0
    %v8529 = vadd.f32 %v8448, %v8528
    %v8530 = vpop.f32.mrf.mxu0
    %v8531 = vpop.f32.mrf.mxu0
    %8532 = vdwg.mxu0
    %8533 = vmatprep.subr.bf16.mxu0 %v6694
    %8534 = vmatpush1.bf16.msra.mxu0 %v6693
    %8535 = vmatprep.subr.bf16.mxu0 %v6686
    %8536 = vmatpush1.bf16.msra.mxu0 %v6685
    %8537 = vmatprep.subr.bf16.mxu0 %v6678
    %8538 = vmatpush1.bf16.msra.mxu0 %v6677
    %8539 = vmatprep.subr.bf16.mxu0 %v6670
    %8540 = vmatpush1.bf16.msra.mxu0 %v6669
    %8541 = vmatprep.subr.bf16.mxu0 %v6662
    %8542 = vmatpush1.bf16.msra.mxu0 %v6661
    %8543 = vmatprep.subr.bf16.mxu0 %v6654
    %8544 = vmatpush1.bf16.msra.mxu0 %v6653
    %8545 = vmatprep.subr.bf16.mxu0 %v6646
    %8546 = vmatpush1.bf16.msra.mxu0 %v6645
    %8547 = vmatprep.subr.bf16.mxu0 %v6638
    %8548 = vmatpush1.bf16.msra.mxu0 %v6637
    %8549 = vmatprep.subr.bf16.mxu0 %v6758
    %8550 = vmatpush2.bf16.msra.mxu0 %v6757
    %8551 = vmatprep.subr.bf16.mxu0 %v6750
    %8552 = vmatpush2.bf16.msra.mxu0 %v6749
    %8553 = vmatprep.subr.bf16.mxu0 %v6742
    %8554 = vmatpush2.bf16.msra.mxu0 %v6741
    %8555 = vmatprep.subr.bf16.mxu0 %v6734
    %8556 = vmatpush2.bf16.msra.mxu0 %v6733
    %8557 = vmatprep.subr.bf16.mxu0 %v6726
    %8558 = vmatpush2.bf16.msra.mxu0 %v6725
    %8559 = vmatprep.subr.bf16.mxu0 %v6718
    %8560 = vmatpush2.bf16.msra.mxu0 %v6717
    %8561 = vmatprep.subr.bf16.mxu0 %v6710
    %8562 = vmatpush2.bf16.msra.mxu0 %v6709
    %8563 = vmatprep.subr.bf16.mxu0 %v6702
    %8564 = vmatpush2.bf16.msra.mxu0 %v6701
    %8565 = vmatprep.mubr.bf16.mxu0 %v4250
    %8566 = vmatmul.mubr.bf16.gmra.mxu0 %v4249
    %v8567 = vpop.f32.mrf.mxu0
    %v8568 = vadd.f32 %v8487, %v8567
    %v8569 = vpop.f32.mrf.mxu0
    %v8570 = vadd.f32 %v8489, %v8569
    %v8571 = vpop.f32.mrf.mxu0
    %v8572 = vadd.f32 %v8491, %v8571
    %v8573 = vpop.f32.mrf.mxu0
    %v8574 = vadd.f32 %v8493, %v8573
    %8575 = vmatprep.mubr.bf16.mxu0 %v4258
    %8576 = vmatmul.mubr.bf16.gmra.mxu0 %v4257
    %v8577 = vpop.f32.mrf.mxu0
    %v8578 = vadd.f32 %v8497, %v8577
    %v8579 = vpop.f32.mrf.mxu0
    %v8580 = vadd.f32 %v8499, %v8579
    %v8581 = vpop.f32.mrf.mxu0
    %v8582 = vadd.f32 %v8501, %v8581
    %v8583 = vpop.f32.mrf.mxu0
    %v8584 = vadd.f32 %v8503, %v8583
    %8585 = vmatprep.mubr.bf16.mxu0 %v4266
    %8586 = vmatmul.mubr.bf16.gmra.mxu0 %v4265
    %v8587 = vpop.f32.mrf.mxu0
    %v8588 = vadd.f32 %v8507, %v8587
    %v8589 = vpop.f32.mrf.mxu0
    %v8590 = vadd.f32 %v8509, %v8589
    %v8591 = vpop.f32.mrf.mxu0
    %v8592 = vadd.f32 %v8511, %v8591
    %v8593 = vpop.f32.mrf.mxu0
    %v8594 = vadd.f32 %v8513, %v8593
    %8595 = vmatprep.mubr.bf16.mxu0 %v4274
    %8596 = vmatmul.mubr.bf16.gmra.mxu0 %v4273
    %v8597 = vpop.f32.mrf.mxu0
    %v8598 = vadd.f32 %v8517, %v8597
    %v8599 = vpop.f32.mrf.mxu0
    %v8600 = vadd.f32 %v8519, %v8599
    %v8601 = vpop.f32.mrf.mxu0
    %v8602 = vadd.f32 %v8521, %v8601
    %v8603 = vpop.f32.mrf.mxu0
    %v8604 = vadd.f32 %v8523, %v8603
    %8605 = vmatprep.mubr.bf16.mxu0 %v4282
    %8606 = vmatmul.mubr.bf16.gmra.mxu0 %v4281
    %v8607 = vpop.f32.mrf.mxu0
    %v8608 = vadd.f32 %v8527, %v8607
    %v8609 = vpop.f32.mrf.mxu0
    %v8610 = vadd.f32 %v8529, %v8609
    %v8611 = vpop.f32.mrf.mxu0
    %v8612 = vpop.f32.mrf.mxu0
    %8613 = vdwg.mxu0
    %8614 = vmatprep.subr.bf16.mxu0 %v6822
    %8615 = vmatpush1.bf16.msra.mxu0 %v6821
    %8616 = vmatprep.subr.bf16.mxu0 %v6814
    %8617 = vmatpush1.bf16.msra.mxu0 %v6813
    %8618 = vmatprep.subr.bf16.mxu0 %v6806
    %8619 = vmatpush1.bf16.msra.mxu0 %v6805
    %8620 = vmatprep.subr.bf16.mxu0 %v6798
    %8621 = vmatpush1.bf16.msra.mxu0 %v6797
    %8622 = vmatprep.subr.bf16.mxu0 %v6790
    %8623 = vmatpush1.bf16.msra.mxu0 %v6789
    %8624 = vmatprep.subr.bf16.mxu0 %v6782
    %8625 = vmatpush1.bf16.msra.mxu0 %v6781
    %8626 = vmatprep.subr.bf16.mxu0 %v6774
    %8627 = vmatpush1.bf16.msra.mxu0 %v6773
    %8628 = vmatprep.subr.bf16.mxu0 %v6766
    %8629 = vmatpush1.bf16.msra.mxu0 %v6765
    %8630 = vmatprep.subr.bf16.mxu0 %v6886
    %8631 = vmatpush2.bf16.msra.mxu0 %v6885
    %8632 = vmatprep.subr.bf16.mxu0 %v6878
    %8633 = vmatpush2.bf16.msra.mxu0 %v6877
    %8634 = vmatprep.subr.bf16.mxu0 %v6870
    %8635 = vmatpush2.bf16.msra.mxu0 %v6869
    %8636 = vmatprep.subr.bf16.mxu0 %v6862
    %8637 = vmatpush2.bf16.msra.mxu0 %v6861
    %8638 = vmatprep.subr.bf16.mxu0 %v6854
    %8639 = vmatpush2.bf16.msra.mxu0 %v6853
    %8640 = vmatprep.subr.bf16.mxu0 %v6846
    %8641 = vmatpush2.bf16.msra.mxu0 %v6845
    %8642 = vmatprep.subr.bf16.mxu0 %v6838
    %8643 = vmatpush2.bf16.msra.mxu0 %v6837
    %8644 = vmatprep.subr.bf16.mxu0 %v6830
    %8645 = vmatpush2.bf16.msra.mxu0 %v6829
    %8646 = vmatprep.mubr.bf16.mxu0 %v4252
    %8647 = vmatmul.mubr.bf16.gmra.mxu0 %v4251
    %v8648 = vpop.f32.mrf.mxu0
    %v8649 = vadd.f32 %v8568, %v8648
    %v8650 = vpop.f32.mrf.mxu0
    %v8651 = vadd.f32 %v8570, %v8650
    %v8652 = vpop.f32.mrf.mxu0
    %v8653 = vadd.f32 %v8572, %v8652
    %v8654 = vpop.f32.mrf.mxu0
    %v8655 = vadd.f32 %v8574, %v8654
    %8656 = vmatprep.mubr.bf16.mxu0 %v4260
    %8657 = vmatmul.mubr.bf16.gmra.mxu0 %v4259
    %v8658 = vpop.f32.mrf.mxu0
    %v8659 = vadd.f32 %v8578, %v8658
    %v8660 = vpop.f32.mrf.mxu0
    %v8661 = vadd.f32 %v8580, %v8660
    %v8662 = vpop.f32.mrf.mxu0
    %v8663 = vadd.f32 %v8582, %v8662
    %v8664 = vpop.f32.mrf.mxu0
    %v8665 = vadd.f32 %v8584, %v8664
    %8666 = vmatprep.mubr.bf16.mxu0 %v4268
    %8667 = vmatmul.mubr.bf16.gmra.mxu0 %v4267
    %v8668 = vpop.f32.mrf.mxu0
    %v8669 = vadd.f32 %v8588, %v8668
    %v8670 = vpop.f32.mrf.mxu0
    %v8671 = vadd.f32 %v8590, %v8670
    %v8672 = vpop.f32.mrf.mxu0
    %v8673 = vadd.f32 %v8592, %v8672
    %v8674 = vpop.f32.mrf.mxu0
    %v8675 = vadd.f32 %v8594, %v8674
    %8676 = vmatprep.mubr.bf16.mxu0 %v4276
    %8677 = vmatmul.mubr.bf16.gmra.mxu0 %v4275
    %v8678 = vpop.f32.mrf.mxu0
    %v8679 = vadd.f32 %v8598, %v8678
    %v8680 = vpop.f32.mrf.mxu0
    %v8681 = vadd.f32 %v8600, %v8680
    %v8682 = vpop.f32.mrf.mxu0
    %v8683 = vadd.f32 %v8602, %v8682
    %v8684 = vpop.f32.mrf.mxu0
    %v8685 = vadd.f32 %v8604, %v8684
    %8686 = vmatprep.mubr.bf16.mxu0 %v4284
    %8687 = vmatmul.mubr.bf16.gmra.mxu0 %v4283
    %v8688 = vpop.f32.mrf.mxu0
    %v8689 = vadd.f32 %v8608, %v8688
    %v8690 = vpop.f32.mrf.mxu0
    %v8691 = vadd.f32 %v8610, %v8690
    %v8692 = vpop.f32.mrf.mxu0
    %v8693 = vpop.f32.mrf.mxu0
    %8694 = vdwg.mxu0
    %v8695 = vmax.f32 %v7677, 0.0
    %v8696 = vmax.f32 %v7679, 0.0
    %v8697 = vmax.f32 %v8001, 0.0
    %v8698 = vmax.f32 %v8003, 0.0
    %v8699 = vmax.f32 %v8325, 0.0
    %v8700 = vmax.f32 %v8327, 0.0
    %v8701 = vmax.f32 %v8649, 0.0
    %v8702 = vmax.f32 %v8651, 0.0
    %v8703 = vmax.f32 %v7681, 0.0
    %v8704 = vmax.f32 %v7683, 0.0
    %v8705 = vmax.f32 %v8005, 0.0
    %v8706 = vmax.f32 %v8007, 0.0
    %v8707 = vmax.f32 %v8329, 0.0
    %v8708 = vmax.f32 %v8331, 0.0
    %v8709 = vmax.f32 %v8653, 0.0
    %v8710 = vmax.f32 %v8655, 0.0
    %v8711 = vmax.f32 %v7687, 0.0
    %v8712 = vmax.f32 %v7689, 0.0
    %v8713 = vmax.f32 %v8011, 0.0
    %v8714 = vmax.f32 %v8013, 0.0
    %v8715 = vmax.f32 %v8335, 0.0
    %v8716 = vmax.f32 %v8337, 0.0
    %v8717 = vmax.f32 %v8659, 0.0
    %v8718 = vmax.f32 %v8661, 0.0
    %v8719 = vmax.f32 %v7691, 0.0
    %v8720 = vmax.f32 %v7693, 0.0
    %v8721 = vmax.f32 %v8015, 0.0
    %v8722 = vmax.f32 %v8017, 0.0
    %v8723 = vmax.f32 %v8339, 0.0
    %v8724 = vmax.f32 %v8341, 0.0
    %v8725 = vmax.f32 %v8663, 0.0
    %v8726 = vmax.f32 %v8665, 0.0
    %v8727 = vmax.f32 %v7697, 0.0
    %v8728 = vmax.f32 %v7699, 0.0
    %v8729 = vmax.f32 %v8021, 0.0
    %v8730 = vmax.f32 %v8023, 0.0
    %v8731 = vmax.f32 %v8345, 0.0
    %v8732 = vmax.f32 %v8347, 0.0
    %v8733 = vmax.f32 %v8669, 0.0
    %v8734 = vmax.f32 %v8671, 0.0
    %v8735 = vmax.f32 %v7701, 0.0
    %v8736 = vmax.f32 %v7703, 0.0
    %v8737 = vmax.f32 %v8025, 0.0
    %v8738 = vmax.f32 %v8027, 0.0
    %v8739 = vmax.f32 %v8349, 0.0
    %v8740 = vmax.f32 %v8351, 0.0
    %v8741 = vmax.f32 %v8673, 0.0
    %v8742 = vmax.f32 %v8675, 0.0
    %v8743 = vmax.f32 %v7707, 0.0
    %v8744 = vmax.f32 %v7709, 0.0
    %v8745 = vmax.f32 %v8031, 0.0
    %v8746 = vmax.f32 %v8033, 0.0
    %v8747 = vmax.f32 %v8355, 0.0
    %v8748 = vmax.f32 %v8357, 0.0
    %v8749 = vmax.f32 %v8679, 0.0
    %v8750 = vmax.f32 %v8681, 0.0
    %v8751 = vmax.f32 %v7711, 0.0
    %v8752 = vmax.f32 %v7713, 0.0
    %v8753 = vmax.f32 %v8035, 0.0
    %v8754 = vmax.f32 %v8037, 0.0
    %v8755 = vmax.f32 %v8359, 0.0
    %v8756 = vmax.f32 %v8361, 0.0
    %v8757 = vmax.f32 %v8683, 0.0
    %v8758 = vmax.f32 %v8685, 0.0
    %v8759 = vmax.f32 %v7717, 0.0
    %v8760 = vmax.f32 %v7719, 0.0
    %v8761 = vmax.f32 %v8041, 0.0
    %v8762 = vmax.f32 %v8043, 0.0
    %v8763 = vmax.f32 %v8365, 0.0
    %v8764 = vmax.f32 %v8367, 0.0
    %v8765 = vmax.f32 %v8689, 0.0
    %v8766 = vmax.f32 %v8691, 0.0
    %v8767 = vpack.c.bf16 %v8703, %v8695
    %v8768 = vpack.c.bf16 %v8704, %v8696
    %v8769 = vpack.c.bf16 %v8705, %v8697
    %v8770 = vpack.c.bf16 %v8706, %v8698
    %v8771 = vpack.c.bf16 %v8707, %v8699
    %v8772 = vpack.c.bf16 %v8708, %v8700
    %v8773 = vpack.c.bf16 %v8709, %v8701
    %v8774 = vpack.c.bf16 %v8710, %v8702
    %v8775 = vpack.c.bf16 %v8719, %v8711
    %v8776 = vpack.c.bf16 %v8720, %v8712
    %v8777 = vpack.c.bf16 %v8721, %v8713
    %v8778 = vpack.c.bf16 %v8722, %v8714
    %v8779 = vpack.c.bf16 %v8723, %v8715
    %v8780 = vpack.c.bf16 %v8724, %v8716
    %v8781 = vpack.c.bf16 %v8725, %v8717
    %v8782 = vpack.c.bf16 %v8726, %v8718
    %v8783 = vpack.c.bf16 %v8735, %v8727
    %v8784 = vpack.c.bf16 %v8736, %v8728
    %v8785 = vpack.c.bf16 %v8737, %v8729
    %v8786 = vpack.c.bf16 %v8738, %v8730
    %v8787 = vpack.c.bf16 %v8739, %v8731
    %v8788 = vpack.c.bf16 %v8740, %v8732
    %v8789 = vpack.c.bf16 %v8741, %v8733
    %v8790 = vpack.c.bf16 %v8742, %v8734
    %v8791 = vpack.c.bf16 %v8751, %v8743
    %v8792 = vpack.c.bf16 %v8752, %v8744
    %v8793 = vpack.c.bf16 %v8753, %v8745
    %v8794 = vpack.c.bf16 %v8754, %v8746
    %v8795 = vpack.c.bf16 %v8755, %v8747
    %v8796 = vpack.c.bf16 %v8756, %v8748
    %v8797 = vpack.c.bf16 %v8757, %v8749
    %v8798 = vpack.c.bf16 %v8758, %v8750
    %v8799 = vpack.c.bf16 %v8759, %v8759
    %v8800 = vpack.c.bf16 %v8760, %v8760
    %v8801 = vpack.c.bf16 %v8761, %v8761
    %v8802 = vpack.c.bf16 %v8762, %v8762
    %v8803 = vpack.c.bf16 %v8763, %v8763
    %v8804 = vpack.c.bf16 %v8764, %v8764
    %v8805 = vpack.c.bf16 %v8765, %v8765
    %v8806 = vpack.c.bf16 %v8766, %v8766
    %v8807 = vld [vmem:[%s5] sm:$0xff]
    %v8808 = vld [vmem:[%s5 + $0x8] sm:$0xff]
    %v8809 = vld [vmem:[%s5 + $0x10] sm:$0xff]
    %v8810 = vld [vmem:[%s5 + $0x18] sm:$0xff]
    %v8811 = vld [vmem:[%s5 + $0x20] sm:$0xff]
    %v8812 = vld [vmem:[%s5 + $0x28] sm:$0xff]
    %v8813 = vld [vmem:[%s5 + $0x30] sm:$0xff]
    %v8814 = vld [vmem:[%s5 + $0x38] sm:$0xff]
    %v8815 = vld [vmem:[%s5 + $0x40] sm:$0xff]
    %v8816 = vld [vmem:[%s5 + $0x48] sm:$0xff]
    %v8817 = vld [vmem:[%s5 + $0x50] sm:$0xff]
    %v8818 = vld [vmem:[%s5 + $0x58] sm:$0xff]
    %v8819 = vld [vmem:[%s5 + $0x60] sm:$0xff]
    %v8820 = vld [vmem:[%s5 + $0x68] sm:$0xff]
    %v8821 = vld [vmem:[%s5 + $0x70] sm:$0xff]
    %v8822 = vld [vmem:[%s5 + $0x78] sm:$0xff]
    %v8823 = vld [vmem:[%s5 + $0x80] sm:$0xff]
    %v8824 = vld [vmem:[%s5 + $0x88] sm:$0xff]
    %v8825 = vld [vmem:[%s5 + $0x90] sm:$0xff]
    %v8826 = vld [vmem:[%s5 + $0x98] sm:$0xff]
    %v8827 = vld [vmem:[%s5 + $0xa0] sm:$0xff]
    %v8828 = vld [vmem:[%s5 + $0xa8] sm:$0xff]
    %v8829 = vld [vmem:[%s5 + $0xb0] sm:$0xff]
    %v8830 = vld [vmem:[%s5 + $0xb8] sm:$0xff]
    %v8831 = vld [vmem:[%s5 + $0xc0] sm:$0xff]
    %v8832 = vld [vmem:[%s5 + $0xc8] sm:$0xff]
    %v8833 = vld [vmem:[%s5 + $0xd0] sm:$0xff]
    %v8834 = vld [vmem:[%s5 + $0xd8] sm:$0xff]
    %v8835 = vld [vmem:[%s5 + $0xe0] sm:$0xff]
    %v8836 = vld [vmem:[%s5 + $0xe8] sm:$0xff]
    %v8837 = vld [vmem:[%s5 + $0xf0] sm:$0xff]
    %v8838 = vld [vmem:[%s5 + $0xf8] sm:$0xff]
    %v8839 = vld [vmem:[%s5 + $0x100] sm:$0xff]
    %v8840 = vld [vmem:[%s5 + $0x108] sm:$0xff]
    %v8841 = vld [vmem:[%s5 + $0x110] sm:$0xff]
    %v8842 = vld [vmem:[%s5 + $0x118] sm:$0xff]
    %v8843 = vld [vmem:[%s5 + $0x120] sm:$0xff]
    %v8844 = vld [vmem:[%s5 + $0x128] sm:$0xff]
    %v8845 = vld [vmem:[%s5 + $0x130] sm:$0xff]
    %v8846 = vld [vmem:[%s5 + $0x138] sm:$0xff]
    %v8847 = vld [vmem:[%s5 + $0x140] sm:$0xff]
    %v8848 = vld [vmem:[%s5 + $0x148] sm:$0xff]
    %v8849 = vld [vmem:[%s5 + $0x150] sm:$0xff]
    %v8850 = vld [vmem:[%s5 + $0x158] sm:$0xff]
    %v8851 = vld [vmem:[%s5 + $0x160] sm:$0xff]
    %v8852 = vld [vmem:[%s5 + $0x168] sm:$0xff]
    %v8853 = vld [vmem:[%s5 + $0x170] sm:$0xff]
    %v8854 = vld [vmem:[%s5 + $0x178] sm:$0xff]
    %v8855 = vld [vmem:[%s5 + $0x180] sm:$0xff]
    %v8856 = vld [vmem:[%s5 + $0x188] sm:$0xff]
    %v8857 = vld [vmem:[%s5 + $0x190] sm:$0xff]
    %v8858 = vld [vmem:[%s5 + $0x198] sm:$0xff]
    %v8859 = vld [vmem:[%s5 + $0x1a0] sm:$0xff]
    %v8860 = vld [vmem:[%s5 + $0x1a8] sm:$0xff]
    %v8861 = vld [vmem:[%s5 + $0x1b0] sm:$0xff]
    %v8862 = vld [vmem:[%s5 + $0x1b8] sm:$0xff]
    %v8863 = vld [vmem:[%s5 + $0x1c0] sm:$0xff]
    %v8864 = vld [vmem:[%s5 + $0x1c8] sm:$0xff]
    %v8865 = vld [vmem:[%s5 + $0x1d0] sm:$0xff]
    %v8866 = vld [vmem:[%s5 + $0x1d8] sm:$0xff]
    %v8867 = vld [vmem:[%s5 + $0x1e0] sm:$0xff]
    %v8868 = vld [vmem:[%s5 + $0x1e8] sm:$0xff]
    %v8869 = vld [vmem:[%s5 + $0x1f0] sm:$0xff]
    %v8870 = vld [vmem:[%s5 + $0x1f8] sm:$0xff]
    %v8871 = vld [vmem:[%s5 + $0x200] sm:$0xff]
    %v8872 = vld [vmem:[%s5 + $0x208] sm:$0xff]
    %v8873 = vld [vmem:[%s5 + $0x210] sm:$0xff]
    %v8874 = vld [vmem:[%s5 + $0x218] sm:$0xff]
    %v8875 = vld [vmem:[%s5 + $0x220] sm:$0xff]
    %v8876 = vld [vmem:[%s5 + $0x228] sm:$0xff]
    %v8877 = vld [vmem:[%s5 + $0x230] sm:$0xff]
    %v8878 = vld [vmem:[%s5 + $0x238] sm:$0xff]
    %v8879 = vld [vmem:[%s5 + $0x240] sm:$0xff]
    %v8880 = vld [vmem:[%s5 + $0x248] sm:$0xff]
    %v8881 = vld [vmem:[%s5 + $0x250] sm:$0xff]
    %v8882 = vld [vmem:[%s5 + $0x258] sm:$0xff]
    %v8883 = vld [vmem:[%s5 + $0x260] sm:$0xff]
    %v8884 = vld [vmem:[%s5 + $0x268] sm:$0xff]
    %v8885 = vld [vmem:[%s5 + $0x270] sm:$0xff]
    %v8886 = vld [vmem:[%s5 + $0x278] sm:$0xff]
    %v8887 = vld [vmem:[%s5 + $0x280] sm:$0xff]
    %v8888 = vld [vmem:[%s5 + $0x288] sm:$0xff]
    %v8889 = vld [vmem:[%s5 + $0x290] sm:$0xff]
    %v8890 = vld [vmem:[%s5 + $0x298] sm:$0xff]
    %v8891 = vld [vmem:[%s5 + $0x2a0] sm:$0xff]
    %v8892 = vld [vmem:[%s5 + $0x2a8] sm:$0xff]
    %v8893 = vld [vmem:[%s5 + $0x2b0] sm:$0xff]
    %v8894 = vld [vmem:[%s5 + $0x2b8] sm:$0xff]
    %v8895 = vld [vmem:[%s5 + $0x2c0] sm:$0xff]
    %v8896 = vld [vmem:[%s5 + $0x2c8] sm:$0xff]
    %v8897 = vld [vmem:[%s5 + $0x2d0] sm:$0xff]
    %v8898 = vld [vmem:[%s5 + $0x2d8] sm:$0xff]
    %v8899 = vld [vmem:[%s5 + $0x2e0] sm:$0xff]
    %v8900 = vld [vmem:[%s5 + $0x2e8] sm:$0xff]
    %v8901 = vld [vmem:[%s5 + $0x2f0] sm:$0xff]
    %v8902 = vld [vmem:[%s5 + $0x2f8] sm:$0xff]
    %v8903 = vld [vmem:[%s5 + $0x300] sm:$0xff]
    %v8904 = vld [vmem:[%s5 + $0x308] sm:$0xff]
    %v8905 = vld [vmem:[%s5 + $0x310] sm:$0xff]
    %v8906 = vld [vmem:[%s5 + $0x318] sm:$0xff]
    %v8907 = vld [vmem:[%s5 + $0x320] sm:$0xff]
    %v8908 = vld [vmem:[%s5 + $0x328] sm:$0xff]
    %v8909 = vld [vmem:[%s5 + $0x330] sm:$0xff]
    %v8910 = vld [vmem:[%s5 + $0x338] sm:$0xff]
    %v8911 = vld [vmem:[%s5 + $0x340] sm:$0xff]
    %v8912 = vld [vmem:[%s5 + $0x348] sm:$0xff]
    %v8913 = vld [vmem:[%s5 + $0x350] sm:$0xff]
    %v8914 = vld [vmem:[%s5 + $0x358] sm:$0xff]
    %v8915 = vld [vmem:[%s5 + $0x360] sm:$0xff]
    %v8916 = vld [vmem:[%s5 + $0x368] sm:$0xff]
    %v8917 = vld [vmem:[%s5 + $0x370] sm:$0xff]
    %v8918 = vld [vmem:[%s5 + $0x378] sm:$0xff]
    %v8919 = vld [vmem:[%s5 + $0x380] sm:$0xff]
    %v8920 = vld [vmem:[%s5 + $0x388] sm:$0xff]
    %v8921 = vld [vmem:[%s5 + $0x390] sm:$0xff]
    %v8922 = vld [vmem:[%s5 + $0x398] sm:$0xff]
    %v8923 = vld [vmem:[%s5 + $0x3a0] sm:$0xff]
    %v8924 = vld [vmem:[%s5 + $0x3a8] sm:$0xff]
    %v8925 = vld [vmem:[%s5 + $0x3b0] sm:$0xff]
    %v8926 = vld [vmem:[%s5 + $0x3b8] sm:$0xff]
    %v8927 = vld [vmem:[%s5 + $0x3c0] sm:$0xff]
    %v8928 = vld [vmem:[%s5 + $0x3c8] sm:$0xff]
    %v8929 = vld [vmem:[%s5 + $0x3d0] sm:$0xff]
    %v8930 = vld [vmem:[%s5 + $0x3d8] sm:$0xff]
    %v8931 = vld [vmem:[%s5 + $0x3e0] sm:$0xff]
    %v8932 = vld [vmem:[%s5 + $0x3e8] sm:$0xff]
    %v8933 = vld [vmem:[%s5 + $0x3f0] sm:$0xff]
    %v8934 = vld [vmem:[%s5 + $0x3f8] sm:$0xff]
    %v8935 = vld [vmem:[%s6] sm:$0x3]
    %v8937 = vlaneseq
    %v8938 = vshrl.u32 %v8937, 7
    %v8939 = vsub.s32 0, %v8938
    %v8940 = vrot.slane %v8935, %v8939
    %v8941 = vlaneseq
    %v8942 = vshrl.u32 %v8941, 7
    %v8943 = vsub.s32 1, %v8942
    %v8944 = vrot.slane %v8935, %v8943
    %v9075 = vunpack.c.l.b16 %v8807
    %v9076 = vunpack.c.h.b16 %v8807
    %v9077 = vunpack.c.l.b16 %v8808
    %v9078 = vunpack.c.h.b16 %v8808
    %v9079 = vunpack.c.l.b16 %v8809
    %v9080 = vunpack.c.h.b16 %v8809
    %v9081 = vunpack.c.l.b16 %v8810
    %v9082 = vunpack.c.h.b16 %v8810
    %v9083 = vunpack.c.l.b16 %v8811
    %v9084 = vunpack.c.h.b16 %v8811
    %v9085 = vunpack.c.l.b16 %v8812
    %v9086 = vunpack.c.h.b16 %v8812
    %v9087 = vunpack.c.l.b16 %v8813
    %v9088 = vunpack.c.h.b16 %v8813
    %v9089 = vunpack.c.l.b16 %v8814
    %v9090 = vunpack.c.h.b16 %v8814
    %v9091 = vunpack.c.l.b16 %v8815
    %v9092 = vunpack.c.h.b16 %v8815
    %v9093 = vunpack.c.l.b16 %v8816
    %v9094 = vunpack.c.h.b16 %v8816
    %v9095 = vunpack.c.l.b16 %v8817
    %v9096 = vunpack.c.h.b16 %v8817
    %v9097 = vunpack.c.l.b16 %v8818
    %v9098 = vunpack.c.h.b16 %v8818
    %v9099 = vunpack.c.l.b16 %v8819
    %v9100 = vunpack.c.h.b16 %v8819
    %v9101 = vunpack.c.l.b16 %v8820
    %v9102 = vunpack.c.h.b16 %v8820
    %v9103 = vunpack.c.l.b16 %v8821
    %v9104 = vunpack.c.h.b16 %v8821
    %v9105 = vunpack.c.l.b16 %v8822
    %v9106 = vunpack.c.h.b16 %v8822
    %v9107 = vunpack.c.l.b16 %v8823
    %v9108 = vunpack.c.h.b16 %v8823
    %v9109 = vunpack.c.l.b16 %v8824
    %v9110 = vunpack.c.h.b16 %v8824
    %v9111 = vunpack.c.l.b16 %v8825
    %v9112 = vunpack.c.h.b16 %v8825
    %v9113 = vunpack.c.l.b16 %v8826
    %v9114 = vunpack.c.h.b16 %v8826
    %v9115 = vunpack.c.l.b16 %v8827
    %v9116 = vunpack.c.h.b16 %v8827
    %v9117 = vunpack.c.l.b16 %v8828
    %v9118 = vunpack.c.h.b16 %v8828
    %v9119 = vunpack.c.l.b16 %v8829
    %v9120 = vunpack.c.h.b16 %v8829
    %v9121 = vunpack.c.l.b16 %v8830
    %v9122 = vunpack.c.h.b16 %v8830
    %v9123 = vunpack.c.l.b16 %v8831
    %v9124 = vunpack.c.h.b16 %v8831
    %v9125 = vunpack.c.l.b16 %v8832
    %v9126 = vunpack.c.h.b16 %v8832
    %v9127 = vunpack.c.l.b16 %v8833
    %v9128 = vunpack.c.h.b16 %v8833
    %v9129 = vunpack.c.l.b16 %v8834
    %v9130 = vunpack.c.h.b16 %v8834
    %v9131 = vunpack.c.l.b16 %v8835
    %v9132 = vunpack.c.h.b16 %v8835
    %v9133 = vunpack.c.l.b16 %v8836
    %v9134 = vunpack.c.h.b16 %v8836
    %v9135 = vunpack.c.l.b16 %v8837
    %v9136 = vunpack.c.h.b16 %v8837
    %v9137 = vunpack.c.l.b16 %v8838
    %v9138 = vunpack.c.h.b16 %v8838
    %v9139 = vunpack.c.l.b16 %v8839
    %v9140 = vunpack.c.h.b16 %v8839
    %v9141 = vunpack.c.l.b16 %v8840
    %v9142 = vunpack.c.h.b16 %v8840
    %v9143 = vunpack.c.l.b16 %v8841
    %v9144 = vunpack.c.h.b16 %v8841
    %v9145 = vunpack.c.l.b16 %v8842
    %v9146 = vunpack.c.h.b16 %v8842
    %v9147 = vunpack.c.l.b16 %v8843
    %v9148 = vunpack.c.h.b16 %v8843
    %v9149 = vunpack.c.l.b16 %v8844
    %v9150 = vunpack.c.h.b16 %v8844
    %v9151 = vunpack.c.l.b16 %v8845
    %v9152 = vunpack.c.h.b16 %v8845
    %v9153 = vunpack.c.l.b16 %v8846
    %v9154 = vunpack.c.h.b16 %v8846
    %v9155 = vunpack.c.l.b16 %v8847
    %v9156 = vunpack.c.h.b16 %v8847
    %v9157 = vunpack.c.l.b16 %v8848
    %v9158 = vunpack.c.h.b16 %v8848
    %v9159 = vunpack.c.l.b16 %v8849
    %v9160 = vunpack.c.h.b16 %v8849
    %v9161 = vunpack.c.l.b16 %v8850
    %v9162 = vunpack.c.h.b16 %v8850
    %v9163 = vunpack.c.l.b16 %v8851
    %v9164 = vunpack.c.h.b16 %v8851
    %v9165 = vunpack.c.l.b16 %v8852
    %v9166 = vunpack.c.h.b16 %v8852
    %v9167 = vunpack.c.l.b16 %v8853
    %v9168 = vunpack.c.h.b16 %v8853
    %v9169 = vunpack.c.l.b16 %v8854
    %v9170 = vunpack.c.h.b16 %v8854
    %v9171 = vunpack.c.l.b16 %v8855
    %v9172 = vunpack.c.h.b16 %v8855
    %v9173 = vunpack.c.l.b16 %v8856
    %v9174 = vunpack.c.h.b16 %v8856
    %v9175 = vunpack.c.l.b16 %v8857
    %v9176 = vunpack.c.h.b16 %v8857
    %v9177 = vunpack.c.l.b16 %v8858
    %v9178 = vunpack.c.h.b16 %v8858
    %v9179 = vunpack.c.l.b16 %v8859
    %v9180 = vunpack.c.h.b16 %v8859
    %v9181 = vunpack.c.l.b16 %v8860
    %v9182 = vunpack.c.h.b16 %v8860
    %v9183 = vunpack.c.l.b16 %v8861
    %v9184 = vunpack.c.h.b16 %v8861
    %v9185 = vunpack.c.l.b16 %v8862
    %v9186 = vunpack.c.h.b16 %v8862
    %v9187 = vunpack.c.l.b16 %v8863
    %v9188 = vunpack.c.h.b16 %v8863
    %v9189 = vunpack.c.l.b16 %v8864
    %v9190 = vunpack.c.h.b16 %v8864
    %v9191 = vunpack.c.l.b16 %v8865
    %v9192 = vunpack.c.h.b16 %v8865
    %v9193 = vunpack.c.l.b16 %v8866
    %v9194 = vunpack.c.h.b16 %v8866
    %v9195 = vunpack.c.l.b16 %v8867
    %v9196 = vunpack.c.h.b16 %v8867
    %v9197 = vunpack.c.l.b16 %v8868
    %v9198 = vunpack.c.h.b16 %v8868
    %v9199 = vunpack.c.l.b16 %v8869
    %v9200 = vunpack.c.h.b16 %v8869
    %v9201 = vunpack.c.l.b16 %v8870
    %v9202 = vunpack.c.h.b16 %v8870
    %v9203 = vunpack.c.l.b16 %v8871
    %v9204 = vunpack.c.h.b16 %v8871
    %v9205 = vunpack.c.l.b16 %v8872
    %v9206 = vunpack.c.h.b16 %v8872
    %v9207 = vunpack.c.l.b16 %v8873
    %v9208 = vunpack.c.h.b16 %v8873
    %v9209 = vunpack.c.l.b16 %v8874
    %v9210 = vunpack.c.h.b16 %v8874
    %v9211 = vunpack.c.l.b16 %v8875
    %v9212 = vunpack.c.h.b16 %v8875
    %v9213 = vunpack.c.l.b16 %v8876
    %v9214 = vunpack.c.h.b16 %v8876
    %v9215 = vunpack.c.l.b16 %v8877
    %v9216 = vunpack.c.h.b16 %v8877
    %v9217 = vunpack.c.l.b16 %v8878
    %v9218 = vunpack.c.h.b16 %v8878
    %v9219 = vunpack.c.l.b16 %v8879
    %v9220 = vunpack.c.h.b16 %v8879
    %v9221 = vunpack.c.l.b16 %v8880
    %v9222 = vunpack.c.h.b16 %v8880
    %v9223 = vunpack.c.l.b16 %v8881
    %v9224 = vunpack.c.h.b16 %v8881
    %v9225 = vunpack.c.l.b16 %v8882
    %v9226 = vunpack.c.h.b16 %v8882
    %v9227 = vunpack.c.l.b16 %v8883
    %v9228 = vunpack.c.h.b16 %v8883
    %v9229 = vunpack.c.l.b16 %v8884
    %v9230 = vunpack.c.h.b16 %v8884
    %v9231 = vunpack.c.l.b16 %v8885
    %v9232 = vunpack.c.h.b16 %v8885
    %v9233 = vunpack.c.l.b16 %v8886
    %v9234 = vunpack.c.h.b16 %v8886
    %v9235 = vunpack.c.l.b16 %v8887
    %v9236 = vunpack.c.h.b16 %v8887
    %v9237 = vunpack.c.l.b16 %v8888
    %v9238 = vunpack.c.h.b16 %v8888
    %v9239 = vunpack.c.l.b16 %v8889
    %v9240 = vunpack.c.h.b16 %v8889
    %v9241 = vunpack.c.l.b16 %v8890
    %v9242 = vunpack.c.h.b16 %v8890
    %v9243 = vunpack.c.l.b16 %v8891
    %v9244 = vunpack.c.h.b16 %v8891
    %v9245 = vunpack.c.l.b16 %v8892
    %v9246 = vunpack.c.h.b16 %v8892
    %v9247 = vunpack.c.l.b16 %v8893
    %v9248 = vunpack.c.h.b16 %v8893
    %v9249 = vunpack.c.l.b16 %v8894
    %v9250 = vunpack.c.h.b16 %v8894
    %v9251 = vunpack.c.l.b16 %v8895
    %v9252 = vunpack.c.h.b16 %v8895
    %v9253 = vunpack.c.l.b16 %v8896
    %v9254 = vunpack.c.h.b16 %v8896
    %v9255 = vunpack.c.l.b16 %v8897
    %v9256 = vunpack.c.h.b16 %v8897
    %v9257 = vunpack.c.l.b16 %v8898
    %v9258 = vunpack.c.h.b16 %v8898
    %v9259 = vunpack.c.l.b16 %v8899
    %v9260 = vunpack.c.h.b16 %v8899
    %v9261 = vunpack.c.l.b16 %v8900
    %v9262 = vunpack.c.h.b16 %v8900
    %v9263 = vunpack.c.l.b16 %v8901
    %v9264 = vunpack.c.h.b16 %v8901
    %v9265 = vunpack.c.l.b16 %v8902
    %v9266 = vunpack.c.h.b16 %v8902
    %v9267 = vunpack.c.l.b16 %v8903
    %v9268 = vunpack.c.h.b16 %v8903
    %v9269 = vunpack.c.l.b16 %v8904
    %v9270 = vunpack.c.h.b16 %v8904
    %v9271 = vunpack.c.l.b16 %v8905
    %v9272 = vunpack.c.h.b16 %v8905
    %v9273 = vunpack.c.l.b16 %v8906
    %v9274 = vunpack.c.h.b16 %v8906
    %v9275 = vunpack.c.l.b16 %v8907
    %v9276 = vunpack.c.h.b16 %v8907
    %v9277 = vunpack.c.l.b16 %v8908
    %v9278 = vunpack.c.h.b16 %v8908
    %v9279 = vunpack.c.l.b16 %v8909
    %v9280 = vunpack.c.h.b16 %v8909
    %v9281 = vunpack.c.l.b16 %v8910
    %v9282 = vunpack.c.h.b16 %v8910
    %v9283 = vunpack.c.l.b16 %v8911
    %v9284 = vunpack.c.h.b16 %v8911
    %v9285 = vunpack.c.l.b16 %v8912
    %v9286 = vunpack.c.h.b16 %v8912
    %v9287 = vunpack.c.l.b16 %v8913
    %v9288 = vunpack.c.h.b16 %v8913
    %v9289 = vunpack.c.l.b16 %v8914
    %v9290 = vunpack.c.h.b16 %v8914
    %v9291 = vunpack.c.l.b16 %v8915
    %v9292 = vunpack.c.h.b16 %v8915
    %v9293 = vunpack.c.l.b16 %v8916
    %v9294 = vunpack.c.h.b16 %v8916
    %v9295 = vunpack.c.l.b16 %v8917
    %v9296 = vunpack.c.h.b16 %v8917
    %v9297 = vunpack.c.l.b16 %v8918
    %v9298 = vunpack.c.h.b16 %v8918
    %v9299 = vunpack.c.l.b16 %v8919
    %v9300 = vunpack.c.h.b16 %v8919
    %v9301 = vunpack.c.l.b16 %v8920
    %v9302 = vunpack.c.h.b16 %v8920
    %v9303 = vunpack.c.l.b16 %v8921
    %v9304 = vunpack.c.h.b16 %v8921
    %v9305 = vunpack.c.l.b16 %v8922
    %v9306 = vunpack.c.h.b16 %v8922
    %v9307 = vunpack.c.l.b16 %v8923
    %v9308 = vunpack.c.h.b16 %v8923
    %v9309 = vunpack.c.l.b16 %v8924
    %v9310 = vunpack.c.h.b16 %v8924
    %v9311 = vunpack.c.l.b16 %v8925
    %v9312 = vunpack.c.h.b16 %v8925
    %v9313 = vunpack.c.l.b16 %v8926
    %v9314 = vunpack.c.h.b16 %v8926
    %v9315 = vunpack.c.l.b16 %v8927
    %v9316 = vunpack.c.h.b16 %v8927
    %v9317 = vunpack.c.l.b16 %v8928
    %v9318 = vunpack.c.h.b16 %v8928
    %v9319 = vunpack.c.l.b16 %v8929
    %v9320 = vunpack.c.h.b16 %v8929
    %v9321 = vunpack.c.l.b16 %v8930
    %v9322 = vunpack.c.h.b16 %v8930
    %v9323 = vunpack.c.l.b16 %v8931
    %v9324 = vunpack.c.h.b16 %v8931
    %v9325 = vunpack.c.l.b16 %v8932
    %v9326 = vunpack.c.h.b16 %v8932
    %v9327 = vunpack.c.l.b16 %v8933
    %v9328 = vunpack.c.h.b16 %v8933
    %v9329 = vunpack.c.l.b16 %v8934
    %v9330 = vunpack.c.h.b16 %v8934
    %v9331 = vpack.c.b16 %v9077, %v9075
    %v9332 = vpack.c.b16 %v9078, %v9076
    %v9333 = vpack.c.b16 %v9081, %v9079
    %v9334 = vpack.c.b16 %v9082, %v9080
    %v9335 = vpack.c.b16 %v9085, %v9083
    %v9336 = vpack.c.b16 %v9086, %v9084
    %v9337 = vpack.c.b16 %v9089, %v9087
    %v9338 = vpack.c.b16 %v9090, %v9088
    %v9339 = vpack.c.b16 %v9093, %v9091
    %v9340 = vpack.c.b16 %v9094, %v9092
    %v9341 = vpack.c.b16 %v9097, %v9095
    %v9342 = vpack.c.b16 %v9098, %v9096
    %v9343 = vpack.c.b16 %v9101, %v9099
    %v9344 = vpack.c.b16 %v9102, %v9100
    %v9345 = vpack.c.b16 %v9105, %v9103
    %v9346 = vpack.c.b16 %v9106, %v9104
    %v9347 = vpack.c.b16 %v9109, %v9107
    %v9348 = vpack.c.b16 %v9110, %v9108
    %v9349 = vpack.c.b16 %v9113, %v9111
    %v9350 = vpack.c.b16 %v9114, %v9112
    %v9351 = vpack.c.b16 %v9117, %v9115
    %v9352 = vpack.c.b16 %v9118, %v9116
    %v9353 = vpack.c.b16 %v9121, %v9119
    %v9354 = vpack.c.b16 %v9122, %v9120
    %v9355 = vpack.c.b16 %v9125, %v9123
    %v9356 = vpack.c.b16 %v9126, %v9124
    %v9357 = vpack.c.b16 %v9129, %v9127
    %v9358 = vpack.c.b16 %v9130, %v9128
    %v9359 = vpack.c.b16 %v9133, %v9131
    %v9360 = vpack.c.b16 %v9134, %v9132
    %v9361 = vpack.c.b16 %v9137, %v9135
    %v9362 = vpack.c.b16 %v9138, %v9136
    %v9363 = vpack.c.b16 %v9141, %v9139
    %v9364 = vpack.c.b16 %v9142, %v9140
    %v9365 = vpack.c.b16 %v9145, %v9143
    %v9366 = vpack.c.b16 %v9146, %v9144
    %v9367 = vpack.c.b16 %v9149, %v9147
    %v9368 = vpack.c.b16 %v9150, %v9148
    %v9369 = vpack.c.b16 %v9153, %v9151
    %v9370 = vpack.c.b16 %v9154, %v9152
    %v9371 = vpack.c.b16 %v9157, %v9155
    %v9372 = vpack.c.b16 %v9158, %v9156
    %v9373 = vpack.c.b16 %v9161, %v9159
    %v9374 = vpack.c.b16 %v9162, %v9160
    %v9375 = vpack.c.b16 %v9165, %v9163
    %v9376 = vpack.c.b16 %v9166, %v9164
    %v9377 = vpack.c.b16 %v9169, %v9167
    %v9378 = vpack.c.b16 %v9170, %v9168
    %v9379 = vpack.c.b16 %v9173, %v9171
    %v9380 = vpack.c.b16 %v9174, %v9172
    %v9381 = vpack.c.b16 %v9177, %v9175
    %v9382 = vpack.c.b16 %v9178, %v9176
    %v9383 = vpack.c.b16 %v9181, %v9179
    %v9384 = vpack.c.b16 %v9182, %v9180
    %v9385 = vpack.c.b16 %v9185, %v9183
    %v9386 = vpack.c.b16 %v9186, %v9184
    %v9387 = vpack.c.b16 %v9189, %v9187
    %v9388 = vpack.c.b16 %v9190, %v9188
    %v9389 = vpack.c.b16 %v9193, %v9191
    %v9390 = vpack.c.b16 %v9194, %v9192
    %v9391 = vpack.c.b16 %v9197, %v9195
    %v9392 = vpack.c.b16 %v9198, %v9196
    %v9393 = vpack.c.b16 %v9201, %v9199
    %v9394 = vpack.c.b16 %v9202, %v9200
    %v9395 = vpack.c.b16 %v9205, %v9203
    %v9396 = vpack.c.b16 %v9206, %v9204
    %v9397 = vpack.c.b16 %v9209, %v9207
    %v9398 = vpack.c.b16 %v9210, %v9208
    %v9399 = vpack.c.b16 %v9213, %v9211
    %v9400 = vpack.c.b16 %v9214, %v9212
    %v9401 = vpack.c.b16 %v9217, %v9215
    %v9402 = vpack.c.b16 %v9218, %v9216
    %v9403 = vpack.c.b16 %v9221, %v9219
    %v9404 = vpack.c.b16 %v9222, %v9220
    %v9405 = vpack.c.b16 %v9225, %v9223
    %v9406 = vpack.c.b16 %v9226, %v9224
    %v9407 = vpack.c.b16 %v9229, %v9227
    %v9408 = vpack.c.b16 %v9230, %v9228
    %v9409 = vpack.c.b16 %v9233, %v9231
    %v9410 = vpack.c.b16 %v9234, %v9232
    %v9411 = vpack.c.b16 %v9237, %v9235
    %v9412 = vpack.c.b16 %v9238, %v9236
    %v9413 = vpack.c.b16 %v9241, %v9239
    %v9414 = vpack.c.b16 %v9242, %v9240
    %v9415 = vpack.c.b16 %v9245, %v9243
    %v9416 = vpack.c.b16 %v9246, %v9244
    %v9417 = vpack.c.b16 %v9249, %v9247
    %v9418 = vpack.c.b16 %v9250, %v9248
    %v9419 = vpack.c.b16 %v9253, %v9251
    %v9420 = vpack.c.b16 %v9254, %v9252
    %v9421 = vpack.c.b16 %v9257, %v9255
    %v9422 = vpack.c.b16 %v9258, %v9256
    %v9423 = vpack.c.b16 %v9261, %v9259
    %v9424 = vpack.c.b16 %v9262, %v9260
    %v9425 = vpack.c.b16 %v9265, %v9263
    %v9426 = vpack.c.b16 %v9266, %v9264
    %v9427 = vpack.c.b16 %v9269, %v9267
    %v9428 = vpack.c.b16 %v9270, %v9268
    %v9429 = vpack.c.b16 %v9273, %v9271
    %v9430 = vpack.c.b16 %v9274, %v9272
    %v9431 = vpack.c.b16 %v9277, %v9275
    %v9432 = vpack.c.b16 %v9278, %v9276
    %v9433 = vpack.c.b16 %v9281, %v9279
    %v9434 = vpack.c.b16 %v9282, %v9280
    %v9435 = vpack.c.b16 %v9285, %v9283
    %v9436 = vpack.c.b16 %v9286, %v9284
    %v9437 = vpack.c.b16 %v9289, %v9287
    %v9438 = vpack.c.b16 %v9290, %v9288
    %v9439 = vpack.c.b16 %v9293, %v9291
    %v9440 = vpack.c.b16 %v9294, %v9292
    %v9441 = vpack.c.b16 %v9297, %v9295
    %v9442 = vpack.c.b16 %v9298, %v9296
    %v9443 = vpack.c.b16 %v9301, %v9299
    %v9444 = vpack.c.b16 %v9302, %v9300
    %v9445 = vpack.c.b16 %v9305, %v9303
    %v9446 = vpack.c.b16 %v9306, %v9304
    %v9447 = vpack.c.b16 %v9309, %v9307
    %v9448 = vpack.c.b16 %v9310, %v9308
    %v9449 = vpack.c.b16 %v9313, %v9311
    %v9450 = vpack.c.b16 %v9314, %v9312
    %v9451 = vpack.c.b16 %v9317, %v9315
    %v9452 = vpack.c.b16 %v9318, %v9316
    %v9453 = vpack.c.b16 %v9321, %v9319
    %v9454 = vpack.c.b16 %v9322, %v9320
    %v9455 = vpack.c.b16 %v9325, %v9323
    %v9456 = vpack.c.b16 %v9326, %v9324
    %v9457 = vpack.c.b16 %v9329, %v9327
    %v9458 = vpack.c.b16 %v9330, %v9328
    %9587 = vmatprep.subr.bf16.mxu0 %v9346
    %9588 = vmatpush1.bf16.msra.mxu0 %v9345
    %9589 = vmatprep.subr.bf16.mxu0 %v9344
    %9590 = vmatpush1.bf16.msra.mxu0 %v9343
    %9591 = vmatprep.subr.bf16.mxu0 %v9342
    %9592 = vmatpush1.bf16.msra.mxu0 %v9341
    %9593 = vmatprep.subr.bf16.mxu0 %v9340
    %9594 = vmatpush1.bf16.msra.mxu0 %v9339
    %9595 = vmatprep.subr.bf16.mxu0 %v9338
    %9596 = vmatpush1.bf16.msra.mxu0 %v9337
    %9597 = vmatprep.subr.bf16.mxu0 %v9336
    %9598 = vmatpush1.bf16.msra.mxu0 %v9335
    %9599 = vmatprep.subr.bf16.mxu0 %v9334
    %9600 = vmatpush1.bf16.msra.mxu0 %v9333
    %9601 = vmatprep.subr.bf16.mxu0 %v9332
    %9602 = vmatpush1.bf16.msra.mxu0 %v9331
    %9603 = vmatprep.subr.bf16.mxu0 %v9362
    %9604 = vmatpush2.bf16.msra.mxu0 %v9361
    %9605 = vmatprep.subr.bf16.mxu0 %v9360
    %9606 = vmatpush2.bf16.msra.mxu0 %v9359
    %9607 = vmatprep.subr.bf16.mxu0 %v9358
    %9608 = vmatpush2.bf16.msra.mxu0 %v9357
    %9609 = vmatprep.subr.bf16.mxu0 %v9356
    %9610 = vmatpush2.bf16.msra.mxu0 %v9355
    %9611 = vmatprep.subr.bf16.mxu0 %v9354
    %9612 = vmatpush2.bf16.msra.mxu0 %v9353
    %9613 = vmatprep.subr.bf16.mxu0 %v9352
    %9614 = vmatpush2.bf16.msra.mxu0 %v9351
    %9615 = vmatprep.subr.bf16.mxu0 %v9350
    %9616 = vmatpush2.bf16.msra.mxu0 %v9349
    %9617 = vmatprep.subr.bf16.mxu0 %v9348
    %9618 = vmatpush2.bf16.msra.mxu0 %v9347
    %9619 = vmatprep.mubr.bf16.mxu0 %v8768
    %9620 = vmatmul.mubr.bf16.gmra.mxu0 %v8767
    %v9621 = vpop.f32.mrf.mxu0
    %v9622 = vadd.f32 %v8940, %v9621
    %v9623 = vpop.f32.mrf.mxu0
    %v9624 = vadd.f32 %v8944, %v9623
    %v9625 = vpop.f32.mrf.mxu0
    %v9626 = vadd.f32 %v8940, %v9625
    %v9627 = vpop.f32.mrf.mxu0
    %v9628 = vadd.f32 %v8944, %v9627
    %9629 = vmatprep.mubr.bf16.mxu0 %v8776
    %9630 = vmatmul.mubr.bf16.gmra.mxu0 %v8775
    %v9631 = vpop.f32.mrf.mxu0
    %v9632 = vadd.f32 %v8940, %v9631
    %v9633 = vpop.f32.mrf.mxu0
    %v9634 = vadd.f32 %v8944, %v9633
    %v9635 = vpop.f32.mrf.mxu0
    %v9636 = vadd.f32 %v8940, %v9635
    %v9637 = vpop.f32.mrf.mxu0
    %v9638 = vadd.f32 %v8944, %v9637
    %9639 = vmatprep.mubr.bf16.mxu0 %v8784
    %9640 = vmatmul.mubr.bf16.gmra.mxu0 %v8783
    %v9641 = vpop.f32.mrf.mxu0
    %v9642 = vadd.f32 %v8940, %v9641
    %v9643 = vpop.f32.mrf.mxu0
    %v9644 = vadd.f32 %v8944, %v9643
    %v9645 = vpop.f32.mrf.mxu0
    %v9646 = vadd.f32 %v8940, %v9645
    %v9647 = vpop.f32.mrf.mxu0
    %v9648 = vadd.f32 %v8944, %v9647
    %9649 = vmatprep.mubr.bf16.mxu0 %v8792
    %9650 = vmatmul.mubr.bf16.gmra.mxu0 %v8791
    %v9651 = vpop.f32.mrf.mxu0
    %v9652 = vadd.f32 %v8940, %v9651
    %v9653 = vpop.f32.mrf.mxu0
    %v9654 = vadd.f32 %v8944, %v9653
    %v9655 = vpop.f32.mrf.mxu0
    %v9656 = vadd.f32 %v8940, %v9655
    %v9657 = vpop.f32.mrf.mxu0
    %v9658 = vadd.f32 %v8944, %v9657
    %9659 = vmatprep.mubr.bf16.mxu0 %v8800
    %9660 = vmatmul.mubr.bf16.gmra.mxu0 %v8799
    %v9661 = vpop.f32.mrf.mxu0
    %v9662 = vadd.f32 %v8940, %v9661
    %v9663 = vpop.f32.mrf.mxu0
    %v9664 = vadd.f32 %v8944, %v9663
    %v9665 = vpop.f32.mrf.mxu0
    %v9666 = vpop.f32.mrf.mxu0
    %9667 = vdwg.mxu0
    %9668 = vmatprep.subr.bf16.mxu0 %v9378
    %9669 = vmatpush1.bf16.msra.mxu0 %v9377
    %9670 = vmatprep.subr.bf16.mxu0 %v9376
    %9671 = vmatpush1.bf16.msra.mxu0 %v9375
    %9672 = vmatprep.subr.bf16.mxu0 %v9374
    %9673 = vmatpush1.bf16.msra.mxu0 %v9373
    %9674 = vmatprep.subr.bf16.mxu0 %v9372
    %9675 = vmatpush1.bf16.msra.mxu0 %v9371
    %9676 = vmatprep.subr.bf16.mxu0 %v9370
    %9677 = vmatpush1.bf16.msra.mxu0 %v9369
    %9678 = vmatprep.subr.bf16.mxu0 %v9368
    %9679 = vmatpush1.bf16.msra.mxu0 %v9367
    %9680 = vmatprep.subr.bf16.mxu0 %v9366
    %9681 = vmatpush1.bf16.msra.mxu0 %v9365
    %9682 = vmatprep.subr.bf16.mxu0 %v9364
    %9683 = vmatpush1.bf16.msra.mxu0 %v9363
    %9684 = vmatprep.subr.bf16.mxu0 %v9394
    %9685 = vmatpush2.bf16.msra.mxu0 %v9393
    %9686 = vmatprep.subr.bf16.mxu0 %v9392
    %9687 = vmatpush2.bf16.msra.mxu0 %v9391
    %9688 = vmatprep.subr.bf16.mxu0 %v9390
    %9689 = vmatpush2.bf16.msra.mxu0 %v9389
    %9690 = vmatprep.subr.bf16.mxu0 %v9388
    %9691 = vmatpush2.bf16.msra.mxu0 %v9387
    %9692 = vmatprep.subr.bf16.mxu0 %v9386
    %9693 = vmatpush2.bf16.msra.mxu0 %v9385
    %9694 = vmatprep.subr.bf16.mxu0 %v9384
    %9695 = vmatpush2.bf16.msra.mxu0 %v9383
    %9696 = vmatprep.subr.bf16.mxu0 %v9382
    %9697 = vmatpush2.bf16.msra.mxu0 %v9381
    %9698 = vmatprep.subr.bf16.mxu0 %v9380
    %9699 = vmatpush2.bf16.msra.mxu0 %v9379
    %9700 = vmatprep.mubr.bf16.mxu0 %v8770
    %9701 = vmatmul.mubr.bf16.gmra.mxu0 %v8769
    %v9702 = vpop.f32.mrf.mxu0
    %v9703 = vadd.f32 %v9622, %v9702
    %v9704 = vpop.f32.mrf.mxu0
    %v9705 = vadd.f32 %v9624, %v9704
    %v9706 = vpop.f32.mrf.mxu0
    %v9707 = vadd.f32 %v9626, %v9706
    %v9708 = vpop.f32.mrf.mxu0
    %v9709 = vadd.f32 %v9628, %v9708
    %9710 = vmatprep.mubr.bf16.mxu0 %v8778
    %9711 = vmatmul.mubr.bf16.gmra.mxu0 %v8777
    %v9712 = vpop.f32.mrf.mxu0
    %v9713 = vadd.f32 %v9632, %v9712
    %v9714 = vpop.f32.mrf.mxu0
    %v9715 = vadd.f32 %v9634, %v9714
    %v9716 = vpop.f32.mrf.mxu0
    %v9717 = vadd.f32 %v9636, %v9716
    %v9718 = vpop.f32.mrf.mxu0
    %v9719 = vadd.f32 %v9638, %v9718
    %9720 = vmatprep.mubr.bf16.mxu0 %v8786
    %9721 = vmatmul.mubr.bf16.gmra.mxu0 %v8785
    %v9722 = vpop.f32.mrf.mxu0
    %v9723 = vadd.f32 %v9642, %v9722
    %v9724 = vpop.f32.mrf.mxu0
    %v9725 = vadd.f32 %v9644, %v9724
    %v9726 = vpop.f32.mrf.mxu0
    %v9727 = vadd.f32 %v9646, %v9726
    %v9728 = vpop.f32.mrf.mxu0
    %v9729 = vadd.f32 %v9648, %v9728
    %9730 = vmatprep.mubr.bf16.mxu0 %v8794
    %9731 = vmatmul.mubr.bf16.gmra.mxu0 %v8793
    %v9732 = vpop.f32.mrf.mxu0
    %v9733 = vadd.f32 %v9652, %v9732
    %v9734 = vpop.f32.mrf.mxu0
    %v9735 = vadd.f32 %v9654, %v9734
    %v9736 = vpop.f32.mrf.mxu0
    %v9737 = vadd.f32 %v9656, %v9736
    %v9738 = vpop.f32.mrf.mxu0
    %v9739 = vadd.f32 %v9658, %v9738
    %9740 = vmatprep.mubr.bf16.mxu0 %v8802
    %9741 = vmatmul.mubr.bf16.gmra.mxu0 %v8801
    %v9742 = vpop.f32.mrf.mxu0
    %v9743 = vadd.f32 %v9662, %v9742
    %v9744 = vpop.f32.mrf.mxu0
    %v9745 = vadd.f32 %v9664, %v9744
    %v9746 = vpop.f32.mrf.mxu0
    %v9747 = vpop.f32.mrf.mxu0
    %9748 = vdwg.mxu0
    %9749 = vmatprep.subr.bf16.mxu0 %v9410
    %9750 = vmatpush1.bf16.msra.mxu0 %v9409
    %9751 = vmatprep.subr.bf16.mxu0 %v9408
    %9752 = vmatpush1.bf16.msra.mxu0 %v9407
    %9753 = vmatprep.subr.bf16.mxu0 %v9406
    %9754 = vmatpush1.bf16.msra.mxu0 %v9405
    %9755 = vmatprep.subr.bf16.mxu0 %v9404
    %9756 = vmatpush1.bf16.msra.mxu0 %v9403
    %9757 = vmatprep.subr.bf16.mxu0 %v9402
    %9758 = vmatpush1.bf16.msra.mxu0 %v9401
    %9759 = vmatprep.subr.bf16.mxu0 %v9400
    %9760 = vmatpush1.bf16.msra.mxu0 %v9399
    %9761 = vmatprep.subr.bf16.mxu0 %v9398
    %9762 = vmatpush1.bf16.msra.mxu0 %v9397
    %9763 = vmatprep.subr.bf16.mxu0 %v9396
    %9764 = vmatpush1.bf16.msra.mxu0 %v9395
    %9765 = vmatprep.subr.bf16.mxu0 %v9426
    %9766 = vmatpush2.bf16.msra.mxu0 %v9425
    %9767 = vmatprep.subr.bf16.mxu0 %v9424
    %9768 = vmatpush2.bf16.msra.mxu0 %v9423
    %9769 = vmatprep.subr.bf16.mxu0 %v9422
    %9770 = vmatpush2.bf16.msra.mxu0 %v9421
    %9771 = vmatprep.subr.bf16.mxu0 %v9420
    %9772 = vmatpush2.bf16.msra.mxu0 %v9419
    %9773 = vmatprep.subr.bf16.mxu0 %v9418
    %9774 = vmatpush2.bf16.msra.mxu0 %v9417
    %9775 = vmatprep.subr.bf16.mxu0 %v9416
    %9776 = vmatpush2.bf16.msra.mxu0 %v9415
    %9777 = vmatprep.subr.bf16.mxu0 %v9414
    %9778 = vmatpush2.bf16.msra.mxu0 %v9413
    %9779 = vmatprep.subr.bf16.mxu0 %v9412
    %9780 = vmatpush2.bf16.msra.mxu0 %v9411
    %9781 = vmatprep.mubr.bf16.mxu0 %v8772
    %9782 = vmatmul.mubr.bf16.gmra.mxu0 %v8771
    %v9783 = vpop.f32.mrf.mxu0
    %v9784 = vadd.f32 %v9703, %v9783
    %v9785 = vpop.f32.mrf.mxu0
    %v9786 = vadd.f32 %v9705, %v9785
    %v9787 = vpop.f32.mrf.mxu0
    %v9788 = vadd.f32 %v9707, %v9787
    %v9789 = vpop.f32.mrf.mxu0
    %v9790 = vadd.f32 %v9709, %v9789
    %9791 = vmatprep.mubr.bf16.mxu0 %v8780
    %9792 = vmatmul.mubr.bf16.gmra.mxu0 %v8779
    %v9793 = vpop.f32.mrf.mxu0
    %v9794 = vadd.f32 %v9713, %v9793
    %v9795 = vpop.f32.mrf.mxu0
    %v9796 = vadd.f32 %v9715, %v9795
    %v9797 = vpop.f32.mrf.mxu0
    %v9798 = vadd.f32 %v9717, %v9797
    %v9799 = vpop.f32.mrf.mxu0
    %v9800 = vadd.f32 %v9719, %v9799
    %9801 = vmatprep.mubr.bf16.mxu0 %v8788
    %9802 = vmatmul.mubr.bf16.gmra.mxu0 %v8787
    %v9803 = vpop.f32.mrf.mxu0
    %v9804 = vadd.f32 %v9723, %v9803
    %v9805 = vpop.f32.mrf.mxu0
    %v9806 = vadd.f32 %v9725, %v9805
    %v9807 = vpop.f32.mrf.mxu0
    %v9808 = vadd.f32 %v9727, %v9807
    %v9809 = vpop.f32.mrf.mxu0
    %v9810 = vadd.f32 %v9729, %v9809
    %9811 = vmatprep.mubr.bf16.mxu0 %v8796
    %9812 = vmatmul.mubr.bf16.gmra.mxu0 %v8795
    %v9813 = vpop.f32.mrf.mxu0
    %v9814 = vadd.f32 %v9733, %v9813
    %v9815 = vpop.f32.mrf.mxu0
    %v9816 = vadd.f32 %v9735, %v9815
    %v9817 = vpop.f32.mrf.mxu0
    %v9818 = vadd.f32 %v9737, %v9817
    %v9819 = vpop.f32.mrf.mxu0
    %v9820 = vadd.f32 %v9739, %v9819
    %9821 = vmatprep.mubr.bf16.mxu0 %v8804
    %9822 = vmatmul.mubr.bf16.gmra.mxu0 %v8803
    %v9823 = vpop.f32.mrf.mxu0
    %v9824 = vadd.f32 %v9743, %v9823
    %v9825 = vpop.f32.mrf.mxu0
    %v9826 = vadd.f32 %v9745, %v9825
    %v9827 = vpop.f32.mrf.mxu0
    %v9828 = vpop.f32.mrf.mxu0
    %9829 = vdwg.mxu0
    %9830 = vmatprep.subr.bf16.mxu0 %v9442
    %9831 = vmatpush1.bf16.msra.mxu0 %v9441
    %9832 = vmatprep.subr.bf16.mxu0 %v9440
    %9833 = vmatpush1.bf16.msra.mxu0 %v9439
    %9834 = vmatprep.subr.bf16.mxu0 %v9438
    %9835 = vmatpush1.bf16.msra.mxu0 %v9437
    %9836 = vmatprep.subr.bf16.mxu0 %v9436
    %9837 = vmatpush1.bf16.msra.mxu0 %v9435
    %9838 = vmatprep.subr.bf16.mxu0 %v9434
    %9839 = vmatpush1.bf16.msra.mxu0 %v9433
    %9840 = vmatprep.subr.bf16.mxu0 %v9432
    %9841 = vmatpush1.bf16.msra.mxu0 %v9431
    %9842 = vmatprep.subr.bf16.mxu0 %v9430
    %9843 = vmatpush1.bf16.msra.mxu0 %v9429
    %9844 = vmatprep.subr.bf16.mxu0 %v9428
    %9845 = vmatpush1.bf16.msra.mxu0 %v9427
    %9846 = vmatprep.subr.bf16.mxu0 %v9458
    %9847 = vmatpush2.bf16.msra.mxu0 %v9457
    %9848 = vmatprep.subr.bf16.mxu0 %v9456
    %9849 = vmatpush2.bf16.msra.mxu0 %v9455
    %9850 = vmatprep.subr.bf16.mxu0 %v9454
    %9851 = vmatpush2.bf16.msra.mxu0 %v9453
    %9852 = vmatprep.subr.bf16.mxu0 %v9452
    %9853 = vmatpush2.bf16.msra.mxu0 %v9451
    %9854 = vmatprep.subr.bf16.mxu0 %v9450
    %9855 = vmatpush2.bf16.msra.mxu0 %v9449
    %9856 = vmatprep.subr.bf16.mxu0 %v9448
    %9857 = vmatpush2.bf16.msra.mxu0 %v9447
    %9858 = vmatprep.subr.bf16.mxu0 %v9446
    %9859 = vmatpush2.bf16.msra.mxu0 %v9445
    %9860 = vmatprep.subr.bf16.mxu0 %v9444
    %9861 = vmatpush2.bf16.msra.mxu0 %v9443
    %9862 = vmatprep.mubr.bf16.mxu0 %v8774
    %9863 = vmatmul.mubr.bf16.gmra.mxu0 %v8773
    %v9864 = vpop.f32.mrf.mxu0
    %v9865 = vadd.f32 %v9784, %v9864
    %v9866 = vpop.f32.mrf.mxu0
    %v9867 = vadd.f32 %v9786, %v9866
    %v9868 = vpop.f32.mrf.mxu0
    %v9869 = vadd.f32 %v9788, %v9868
    %v9870 = vpop.f32.mrf.mxu0
    %v9871 = vadd.f32 %v9790, %v9870
    %9872 = vmatprep.mubr.bf16.mxu0 %v8782
    %9873 = vmatmul.mubr.bf16.gmra.mxu0 %v8781
    %v9874 = vpop.f32.mrf.mxu0
    %v9875 = vadd.f32 %v9794, %v9874
    %v9876 = vpop.f32.mrf.mxu0
    %v9877 = vadd.f32 %v9796, %v9876
    %v9878 = vpop.f32.mrf.mxu0
    %v9879 = vadd.f32 %v9798, %v9878
    %v9880 = vpop.f32.mrf.mxu0
    %v9881 = vadd.f32 %v9800, %v9880
    %9882 = vmatprep.mubr.bf16.mxu0 %v8790
    %9883 = vmatmul.mubr.bf16.gmra.mxu0 %v8789
    %v9884 = vpop.f32.mrf.mxu0
    %v9885 = vadd.f32 %v9804, %v9884
    %v9886 = vpop.f32.mrf.mxu0
    %v9887 = vadd.f32 %v9806, %v9886
    %v9888 = vpop.f32.mrf.mxu0
    %v9889 = vadd.f32 %v9808, %v9888
    %v9890 = vpop.f32.mrf.mxu0
    %v9891 = vadd.f32 %v9810, %v9890
    %9892 = vmatprep.mubr.bf16.mxu0 %v8798
    %9893 = vmatmul.mubr.bf16.gmra.mxu0 %v8797
    %v9894 = vpop.f32.mrf.mxu0
    %v9895 = vadd.f32 %v9814, %v9894
    %v9896 = vpop.f32.mrf.mxu0
    %v9897 = vadd.f32 %v9816, %v9896
    %v9898 = vpop.f32.mrf.mxu0
    %v9899 = vadd.f32 %v9818, %v9898
    %v9900 = vpop.f32.mrf.mxu0
    %v9901 = vadd.f32 %v9820, %v9900
    %9902 = vmatprep.mubr.bf16.mxu0 %v8806
    %9903 = vmatmul.mubr.bf16.gmra.mxu0 %v8805
    %v9904 = vpop.f32.mrf.mxu0
    %v9905 = vadd.f32 %v9824, %v9904
    %v9906 = vpop.f32.mrf.mxu0
    %v9907 = vadd.f32 %v9826, %v9906
    %v9908 = vpop.f32.mrf.mxu0
    %v9909 = vpop.f32.mrf.mxu0
    %9910 = vdwg.mxu0
    %v9911 = vmax.f32 %v9865, 0.0
    %v9912 = vmax.f32 %v9867, 0.0
    %v9913 = vmax.f32 %v9869, 0.0
    %v9914 = vmax.f32 %v9871, 0.0
    %v9915 = vmax.f32 %v9875, 0.0
    %v9916 = vmax.f32 %v9877, 0.0
    %v9917 = vmax.f32 %v9879, 0.0
    %v9918 = vmax.f32 %v9881, 0.0
    %v9919 = vmax.f32 %v9885, 0.0
    %v9920 = vmax.f32 %v9887, 0.0
    %v9921 = vmax.f32 %v9889, 0.0
    %v9922 = vmax.f32 %v9891, 0.0
    %v9923 = vmax.f32 %v9895, 0.0
    %v9924 = vmax.f32 %v9897, 0.0
    %v9925 = vmax.f32 %v9899, 0.0
    %v9926 = vmax.f32 %v9901, 0.0
    %v9927 = vmax.f32 %v9905, 0.0
    %v9928 = vmax.f32 %v9907, 0.0
    %v9929 = vpack.c.bf16 %v9913, %v9911
    %v9930 = vpack.c.bf16 %v9914, %v9912
    %v9931 = vpack.c.bf16 %v9917, %v9915
    %v9932 = vpack.c.bf16 %v9918, %v9916
    %v9933 = vpack.c.bf16 %v9921, %v9919
    %v9934 = vpack.c.bf16 %v9922, %v9920
    %v9935 = vpack.c.bf16 %v9925, %v9923
    %v9936 = vpack.c.bf16 %v9926, %v9924
    %v9937 = vpack.c.bf16 %v9927, %v9927
    %v9938 = vpack.c.bf16 %v9928, %v9928
    %v9939 = vld [vmem:[%s7] sm:$0xf]
    %v9940 = vld [vmem:[%s7 + $0x4] sm:$0xf]
    %v9941 = vld [vmem:[%s7 + $0x8] sm:$0xf]
    %v9942 = vld [vmem:[%s7 + $0xc] sm:$0xf]
    %v9943 = vld [vmem:[%s7 + $0x10] sm:$0xf]
    %v9944 = vld [vmem:[%s7 + $0x14] sm:$0xf]
    %v9945 = vld [vmem:[%s7 + $0x18] sm:$0xf]
    %v9946 = vld [vmem:[%s7 + $0x1c] sm:$0xf]
    %v9947 = vld [vmem:[%s7 + $0x20] sm:$0xf]
    %v9948 = vld [vmem:[%s7 + $0x24] sm:$0xf]
    %v9949 = vld [vmem:[%s7 + $0x28] sm:$0xf]
    %v9950 = vld [vmem:[%s7 + $0x2c] sm:$0xf]
    %v9951 = vld [vmem:[%s7 + $0x30] sm:$0xf]
    %v9952 = vld [vmem:[%s7 + $0x34] sm:$0xf]
    %v9953 = vld [vmem:[%s7 + $0x38] sm:$0xf]
    %v9954 = vld [vmem:[%s7 + $0x3c] sm:$0xf]
    %v9955 = vld [vmem:[%s7 + $0x40] sm:$0xf]
    %v9956 = vld [vmem:[%s7 + $0x44] sm:$0xf]
    %v9957 = vld [vmem:[%s7 + $0x48] sm:$0xf]
    %v9958 = vld [vmem:[%s7 + $0x4c] sm:$0xf]
    %v9959 = vld [vmem:[%s7 + $0x50] sm:$0xf]
    %v9960 = vld [vmem:[%s7 + $0x54] sm:$0xf]
    %v9961 = vld [vmem:[%s7 + $0x58] sm:$0xf]
    %v9962 = vld [vmem:[%s7 + $0x5c] sm:$0xf]
    %v9963 = vld [vmem:[%s7 + $0x60] sm:$0xf]
    %v9964 = vld [vmem:[%s7 + $0x64] sm:$0xf]
    %v9965 = vld [vmem:[%s7 + $0x68] sm:$0xf]
    %v9966 = vld [vmem:[%s7 + $0x6c] sm:$0xf]
    %v9967 = vld [vmem:[%s7 + $0x70] sm:$0xf]
    %v9968 = vld [vmem:[%s7 + $0x74] sm:$0xf]
    %v9969 = vld [vmem:[%s7 + $0x78] sm:$0xf]
    %v9970 = vld [vmem:[%s7 + $0x7c] sm:$0xf]
    %v9971 = vld [vmem:[%s8] sm:$0x1]
    %v9973 = vlaneseq
    %v9974 = vshrl.u32 %v9973, 7
    %v9975 = vsub.s32 0, %v9974
    %v9976 = vrot.slane %v9971, %v9975
    %v10010 = vunpack.c.l.b16 %v9939
    %v10011 = vunpack.c.l.b16 %v9940
    %v10012 = vunpack.c.l.b16 %v9941
    %v10013 = vunpack.c.l.b16 %v9942
    %v10014 = vunpack.c.l.b16 %v9943
    %v10015 = vunpack.c.l.b16 %v9944
    %v10016 = vunpack.c.l.b16 %v9945
    %v10017 = vunpack.c.l.b16 %v9946
    %v10018 = vunpack.c.l.b16 %v9947
    %v10019 = vunpack.c.l.b16 %v9948
    %v10020 = vunpack.c.l.b16 %v9949
    %v10021 = vunpack.c.l.b16 %v9950
    %v10022 = vunpack.c.l.b16 %v9951
    %v10023 = vunpack.c.l.b16 %v9952
    %v10024 = vunpack.c.l.b16 %v9953
    %v10025 = vunpack.c.l.b16 %v9954
    %v10026 = vunpack.c.l.b16 %v9955
    %v10027 = vunpack.c.l.b16 %v9956
    %v10028 = vunpack.c.l.b16 %v9957
    %v10029 = vunpack.c.l.b16 %v9958
    %v10030 = vunpack.c.l.b16 %v9959
    %v10031 = vunpack.c.l.b16 %v9960
    %v10032 = vunpack.c.l.b16 %v9961
    %v10033 = vunpack.c.l.b16 %v9962
    %v10034 = vunpack.c.l.b16 %v9963
    %v10035 = vunpack.c.l.b16 %v9964
    %v10036 = vunpack.c.l.b16 %v9965
    %v10037 = vunpack.c.l.b16 %v9966
    %v10038 = vunpack.c.l.b16 %v9967
    %v10039 = vunpack.c.l.b16 %v9968
    %v10040 = vunpack.c.l.b16 %v9969
    %v10041 = vunpack.c.l.b16 %v9970
    %v10042 = vpack.c.b16 %v10011, %v10010
    %v10043 = vpack.c.b16 %v10013, %v10012
    %v10044 = vpack.c.b16 %v10015, %v10014
    %v10045 = vpack.c.b16 %v10017, %v10016
    %v10046 = vpack.c.b16 %v10019, %v10018
    %v10047 = vpack.c.b16 %v10021, %v10020
    %v10048 = vpack.c.b16 %v10023, %v10022
    %v10049 = vpack.c.b16 %v10025, %v10024
    %v10050 = vpack.c.b16 %v10027, %v10026
    %v10051 = vpack.c.b16 %v10029, %v10028
    %v10052 = vpack.c.b16 %v10031, %v10030
    %v10053 = vpack.c.b16 %v10033, %v10032
    %v10054 = vpack.c.b16 %v10035, %v10034
    %v10055 = vpack.c.b16 %v10037, %v10036
    %v10056 = vpack.c.b16 %v10039, %v10038
    %v10057 = vpack.c.b16 %v10041, %v10040
    %10074 = vmatprep.subr.bf16.mxu0 0
    %10075 = vmatpush1.bf16.msra.mxu0 %v10049
    %10076 = vmatprep.subr.bf16.mxu0 0
    %10077 = vmatpush1.bf16.msra.mxu0 %v10048
    %10078 = vmatprep.subr.bf16.mxu0 0
    %10079 = vmatpush1.bf16.msra.mxu0 %v10047
    %10080 = vmatprep.subr.bf16.mxu0 0
    %10081 = vmatpush1.bf16.msra.mxu0 %v10046
    %10082 = vmatprep.subr.bf16.mxu0 0
    %10083 = vmatpush1.bf16.msra.mxu0 %v10045
    %10084 = vmatprep.subr.bf16.mxu0 0
    %10085 = vmatpush1.bf16.msra.mxu0 %v10044
    %10086 = vmatprep.subr.bf16.mxu0 0
    %10087 = vmatpush1.bf16.msra.mxu0 %v10043
    %10088 = vmatprep.subr.bf16.mxu0 0
    %10089 = vmatpush1.bf16.msra.mxu0 %v10042
    %10090 = vmatprep.subr.bf16.mxu0 0
    %10091 = vmatpush2.bf16.msra.mxu0 %v10057
    %10092 = vmatprep.subr.bf16.mxu0 0
    %10093 = vmatpush2.bf16.msra.mxu0 %v10056
    %10094 = vmatprep.subr.bf16.mxu0 0
    %10095 = vmatpush2.bf16.msra.mxu0 %v10055
    %10096 = vmatprep.subr.bf16.mxu0 0
    %10097 = vmatpush2.bf16.msra.mxu0 %v10054
    %10098 = vmatprep.subr.bf16.mxu0 0
    %10099 = vmatpush2.bf16.msra.mxu0 %v10053
    %10100 = vmatprep.subr.bf16.mxu0 0
    %10101 = vmatpush2.bf16.msra.mxu0 %v10052
    %10102 = vmatprep.subr.bf16.mxu0 0
    %10103 = vmatpush2.bf16.msra.mxu0 %v10051
    %10104 = vmatprep.subr.bf16.mxu0 0
    %10105 = vmatpush2.bf16.msra.mxu0 %v10050
    %10106 = vmatprep.mubr.bf16.mxu0 %v9930
    %10107 = vmatmul.mubr.bf16.gmra.mxu0 %v9929
    %v10108 = vpop.f32.mrf.mxu0
    %v10109 = vadd.f32 %v9976, %v10108
    %v10110 = vpop.f32.mrf.mxu0
    %v10111 = vpop.f32.mrf.mxu0
    %v10112 = vadd.f32 %v9976, %v10111
    %v10113 = vpop.f32.mrf.mxu0
    %10114 = vmatprep.mubr.bf16.mxu0 %v9932
    %10115 = vmatmul.mubr.bf16.gmra.mxu0 %v9931
    %v10116 = vpop.f32.mrf.mxu0
    %v10117 = vadd.f32 %v9976, %v10116
    %v10118 = vpop.f32.mrf.mxu0
    %v10119 = vpop.f32.mrf.mxu0
    %v10120 = vadd.f32 %v9976, %v10119
    %v10121 = vpop.f32.mrf.mxu0
    %10122 = vmatprep.mubr.bf16.mxu0 %v9934
    %10123 = vmatmul.mubr.bf16.gmra.mxu0 %v9933
    %v10124 = vpop.f32.mrf.mxu0
    %v10125 = vadd.f32 %v9976, %v10124
    %v10126 = vpop.f32.mrf.mxu0
    %v10127 = vpop.f32.mrf.mxu0
    %v10128 = vadd.f32 %v9976, %v10127
    %v10129 = vpop.f32.mrf.mxu0
    %10130 = vmatprep.mubr.bf16.mxu0 %v9936
    %10131 = vmatmul.mubr.bf16.gmra.mxu0 %v9935
    %v10132 = vpop.f32.mrf.mxu0
    %v10133 = vadd.f32 %v9976, %v10132
    %v10134 = vpop.f32.mrf.mxu0
    %v10135 = vpop.f32.mrf.mxu0
    %v10136 = vadd.f32 %v9976, %v10135
    %v10137 = vpop.f32.mrf.mxu0
    %10138 = vmatprep.mubr.bf16.mxu0 %v9938
    %10139 = vmatmul.mubr.bf16.gmra.mxu0 %v9937
    %v10140 = vpop.f32.mrf.mxu0
    %v10141 = vadd.f32 %v9976, %v10140
    %v10142 = vpop.f32.mrf.mxu0
    %v10143 = vpop.f32.mrf.mxu0
    %v10144 = vpop.f32.mrf.mxu0
    %10145 = vdwg.mxu0
    %10146 = vst [vmem:[%s9] sm:$0xff] %v9911
    %10147 = vst [vmem:[%s9 + $0x8] sm:$0xff] %v9912
    %10148 = vst [vmem:[%s9 + $0x10] sm:$0xff] %v9913
    %10149 = vst [vmem:[%s9 + $0x18] sm:$0xff] %v9914
    %10150 = vst [vmem:[%s9 + $0x20] sm:$0xff] %v9915
    %10151 = vst [vmem:[%s9 + $0x28] sm:$0xff] %v9916
    %10152 = vst [vmem:[%s9 + $0x30] sm:$0xff] %v9917
    %10153 = vst [vmem:[%s9 + $0x38] sm:$0xff] %v9918
    %10154 = vst [vmem:[%s9 + $0x40] sm:$0xff] %v9919
    %10155 = vst [vmem:[%s9 + $0x48] sm:$0xff] %v9920
    %10156 = vst [vmem:[%s9 + $0x50] sm:$0xff] %v9921
    %10157 = vst [vmem:[%s9 + $0x58] sm:$0xff] %v9922
    %10158 = vst [vmem:[%s9 + $0x60] sm:$0xff] %v9923
    %10159 = vst [vmem:[%s9 + $0x68] sm:$0xff] %v9924
    %10160 = vst [vmem:[%s9 + $0x70] sm:$0xff] %v9925
    %10161 = vst [vmem:[%s9 + $0x78] sm:$0xff] %v9926
    %10162 = vst [vmem:[%s9 + $0x80] sm:$0xff] %v9927
    %10163 = vst [vmem:[%s9 + $0x88] sm:$0xff] %v9928
    %10164 = vst [vmem:[%s10] sm:$0xff] %v10109
    %10165 = vst [vmem:[%s10 + $0x8] sm:$0xff] %v10112
    %10166 = vst [vmem:[%s10 + $0x10] sm:$0xff] %v10117
    %10167 = vst [vmem:[%s10 + $0x18] sm:$0xff] %v10120
    %10168 = vst [vmem:[%s10 + $0x20] sm:$0xff] %v10125
    %10169 = vst [vmem:[%s10 + $0x28] sm:$0xff] %v10128
    %10170 = vst [vmem:[%s10 + $0x30] sm:$0xff] %v10133
    %10171 = vst [vmem:[%s10 + $0x38] sm:$0xff] %v10136
    %10172 = vst [vmem:[%s10 + $0x40] sm:$0xff] %v10141
    // Predicated region
    $region42: #{causal_forward.3} parent=1 // pred_check
      _
    $region43: #{causal_forward.3} parent=1 // pred_check_branch
      %10174 = sbr.rel (0) target = $region45
    $region44: #{causal_forward.3} parent=1 // pred_region
      _
    $region45: #{causal_forward.3} parent=1 // pred_fallthru
      _
    // Predicated region
    $region46: #{causal_forward.3} parent=1 // pred_check
      _
    $region47: #{causal_forward.3} parent=1 // pred_check_branch
      %10176 = sbr.rel (0) target = $region49
    $region48: #{causal_forward.3} parent=1 // pred_region
      _
    $region49: #{causal_forward.3} parent=1 // pred_fallthru
      _
    // Predicated region
    $region50: #{causal_forward.3} parent=1 // pred_check
      _
    $region51: #{causal_forward.3} parent=1 // pred_check_branch
      %10178 = sbr.rel (0) target = $region53
    $region52: #{causal_forward.3} parent=1 // pred_region
      _
    $region53: #{causal_forward.3} parent=1 // pred_fallthru
      _
    // Predicated region
    $region54: #{causal_forward.3} parent=1 // pred_check
      _
    $region55: #{causal_forward.3} parent=1 // pred_check_branch
      %10180 = sbr.rel (0) target = $region57
    $region56: #{causal_forward.3} parent=1 // pred_region
      _
    $region57: #{causal_forward.3} parent=1 // pred_fallthru
      _
    %10181 = vsyncpa [#allocation3], 1

</llo_original>
